<compile_context>
chip_gen: v6e
topology: v6e:2x2x1
jax: 0.10.0
libtpu: 0.0.40
codegen_flags: <defaults>
</compile_context>

<pallas_src>
import jax
import jax.numpy as jnp
from jax.experimental import pallas as pl
from jax.experimental.pallas import tpu as pltpu

# ----------------------------- configuration -----------------------------
IMAGE_SIZE = 16        # signal length L
TMP_CH = 32            # channels -> transformer dim
NUM_CLASSES = 10
DEPTH = 2
HEADS = 4
DIM_HEAD = 8
MLP_DIM = 64
BATCH = 2

DIM = TMP_CH                      # transformer dim
INNER = HEADS * DIM_HEAD          # 32
SEQ = IMAGE_SIZE + 1              # tokens + cls
EPS = 1e-5                        # nn.LayerNorm default
SCALE = DIM_HEAD ** (-0.5)
INV_SQRT2 = 0.7071067811865476


# ----------------------------- shared math helpers -----------------------------
def _layernorm(x, g, b):
    mu = jnp.mean(x, axis=-1, keepdims=True)
    var = jnp.mean((x - mu) ** 2, axis=-1, keepdims=True)
    return (x - mu) * jax.lax.rsqrt(var + EPS) * g + b


def _gelu_exact(x):
    # nn.GELU() default (erf formulation)
    return 0.5 * x * (1.0 + jax.lax.erf(x * INV_SQRT2))


# ----------------------------- fused forward kernel -----------------------------
def model_kernel(tok_ref, cls_ref, pos_ref,
                 ln1_g_ref, ln1_b_ref, wq_ref, wk_ref, wv_ref, wo_ref, ob_ref,
                 ln2_g_ref, ln2_b_ref, w1_ref, b1_ref, w2_ref, b2_ref,
                 hg_ref, hb_ref, hw_ref, hbias_ref, o_ref):
    B, L, D = tok_ref.shape
    S = L + 1
    depth, H = wq_ref.shape[0], wq_ref.shape[1]

    toks = tok_ref[...]                     # (B, L, D)
    cls = cls_ref[...]                      # (1, D)
    pos = pos_ref[...]                      # (S, D)

    # Build [cls; tokens] + pos per batch and flatten batch into the sublane axis:
    # all row-wise ops below run on (B*S, D).
    rows = [jnp.concatenate([cls, toks[b]], axis=0) + pos for b in range(B)]
    h = jnp.concatenate(rows, axis=0)       # (B*S, D)

    for l in range(depth):
        # ---- PreNorm + Attention2 ----
        xn = _layernorm(h, ln1_g_ref[l], ln1_b_ref[l])

        scores = []
        v_heads = []
        for hd in range(H):
            # per-head projections over the whole batch (scale pre-folded into wq)
            q = jnp.dot(xn, wq_ref[l, hd], preferred_element_type=jnp.float32)   # (B*S, dh)
            k = jnp.dot(xn, wk_ref[l, hd], preferred_element_type=jnp.float32)
            v = jnp.dot(xn, wv_ref[l, hd], preferred_element_type=jnp.float32)
            v_heads.append(v)
            for b in range(B):
                qb = q[b * S:(b + 1) * S]
                kb = k[b * S:(b + 1) * S]
                scores.append(jnp.dot(qb, kb.T, preferred_element_type=jnp.float32))  # (S, S)

        # One softmax for all (head, batch) blocks, stacked along the sublane axis.
        s_all = jnp.concatenate(scores, axis=0)                  # (H*B*S, S)
        s_all = s_all - jnp.max(s_all, axis=-1, keepdims=True)
        e = jnp.exp(s_all)
        p_all = e * pl.reciprocal(jnp.sum(e, axis=-1, keepdims=True), approx=True)

        # attn @ v per (head, batch), then fold heads via per-head out-weight matmuls
        # (algebraically identical to concat-heads followed by the to_out Linear).
        attn_out = jnp.zeros((B * S, D), jnp.float32)
        for hd in range(H):
            per_b = []
            for b in range(B):
                idx = hd * B + b
                a = p_all[idx * S:(idx + 1) * S]                 # (S, S)
                per_b.append(jnp.dot(a, v_heads[hd][b * S:(b + 1) * S],
                                     preferred_element_type=jnp.float32))        # (S, dh)
            head_out = jnp.concatenate(per_b, axis=0)            # (B*S, dh)
            attn_out = attn_out + jnp.dot(head_out, wo_ref[l, hd],
                                          preferred_element_type=jnp.float32)    # (B*S, D)
        h = h + attn_out + ob_ref[l]                             # residual + to_out bias

        # ---- PreNorm + FeedForward ----
        xn2 = _layernorm(h, ln2_g_ref[l], ln2_b_ref[l])
        a1 = _gelu_exact(jnp.dot(xn2, w1_ref[l], preferred_element_type=jnp.float32) + b1_ref[l])
        a2 = jnp.dot(a1, w2_ref[l], preferred_element_type=jnp.float32) + b2_ref[l]
        h = h + a2

    # ---- classifier head on the cls-token rows (pool == 'cls') ----
    cls_rows = jnp.concatenate([h[b * S:b * S + 1] for b in range(B)], axis=0)   # (B, D)
    xc = _layernorm(cls_rows, hg_ref[...], hb_ref[...])
    o_ref[...] = jnp.dot(xc, hw_ref[...], preferred_element_type=jnp.float32) + hbias_ref[...]


def transformer_forward(x, pp):
    """x: (B, C, L) float32. Single fused pallas_call; everything resident in VMEM."""
    B = x.shape[0]
    # Rearrange('b c (w p1) -> b (w) (p1 c)', p1=1) == transpose to (B, L, C).
    tokens = jnp.transpose(x, (0, 2, 1))
    args = (tokens, pp['cls'], pp['pos'],
            pp['ln1_g'], pp['ln1_b'], pp['wq'], pp['wk'], pp['wv'], pp['wo'], pp['ob'],
            pp['ln2_g'], pp['ln2_b'], pp['w1'], pp['b1'], pp['w2'], pp['b2'],
            pp['hg'], pp['hb'], pp['hw'], pp['hbias'])
    vmem = pl.BlockSpec(memory_space=pltpu.MemorySpace.VMEM)
    return pl.pallas_call(
        model_kernel,
        out_shape=jax.ShapeDtypeStruct((B, NUM_CLASSES), jnp.float32),
        in_specs=[vmem] * len(args),
        out_specs=vmem,
    )(*args)


# ----------------------------- one-time parameter preparation -----------------------------
def prepare_params(params):
    """Split qkv/out weights per head, fold the attention scale into Wq, stack per-layer
    tensors along a leading DEPTH axis.  Done once, outside the hot path."""
    def per_head_cols(qkv_w, start):
        w = qkv_w[:, start:start + INNER]                         # (D, INNER)
        return w.reshape(DIM, HEADS, DIM_HEAD).transpose(1, 0, 2)  # (H, D, dh)

    layers = params['layers']
    wq = jnp.stack([per_head_cols(lp['qkv_w'], 0) * SCALE for lp in layers])      # (DEPTH,H,D,dh)
    wk = jnp.stack([per_head_cols(lp['qkv_w'], INNER) for lp in layers])
    wv = jnp.stack([per_head_cols(lp['qkv_w'], 2 * INNER) for lp in layers])
    wo = jnp.stack([lp['out_w'].reshape(HEADS, DIM_HEAD, DIM) for lp in layers])  # (DEPTH,H,dh,D)
    st = lambda name: jnp.stack([lp[name] for lp in layers])

    return dict(
        cls=params['cls_token'][0],            # (1, D)
        pos=params['pos_embedding'][0],        # (S, D)
        ln1_g=st('ln1_g'), ln1_b=st('ln1_b'),
        wq=wq, wk=wk, wv=wv, wo=wo, ob=st('out_b'),
        ln2_g=st('ln2_g'), ln2_b=st('ln2_b'),
        w1=st('w1'), b1=st('b1'), w2=st('w2'), b2=st('b2'),
        hg=params['head']['ln_g'], hb=params['head']['ln_b'],
        hw=params['head']['w'], hbias=params['head']['b'],
    )


# ----------------------------- pure-JAX reference (for correctness check) -----------------------------
def reference_forward(x, params):
    B, C, L = x.shape
    tokens = jnp.transpose(x, (0, 2, 1))
    cls = jnp.broadcast_to(params['cls_token'], (B, 1, DIM))
    h = jnp.concatenate([cls, tokens], axis=1) + params['pos_embedding'][:, :L + 1]
    for lp in params['layers']:
        xn = _layernorm(h, lp['ln1_g'], lp['ln1_b'])
        qkv = xn @ lp['qkv_w']
        q, k, v = jnp.split(qkv, 3, axis=-1)
        sh = lambda t: t.reshape(B, L + 1, HEADS, DIM_HEAD).transpose(0, 2, 1, 3)
        q, k, v = sh(q), sh(k), sh(v)
        dots = jnp.einsum('bhqd,bhkd->bhqk', q, k) * SCALE
        attn = jax.nn.softmax(dots, axis=-1)
        out = jnp.einsum('bhqk,bhkd->bhqd', attn, v)
        out = out.transpose(0, 2, 1, 3).reshape(B, L + 1, INNER)
        h = h + out @ lp['out_w'] + lp['out_b']
        xn2 = _layernorm(h, lp['ln2_g'], lp['ln2_b'])
        h = h + _gelu_exact(xn2 @ lp['w1'] + lp['b1']) @ lp['w2'] + lp['b2']
    xc = _layernorm(h[:, 0], params['head']['ln_g'], params['head']['ln_b'])
    return xc @ params['head']['w'] + params['head']['b']


# ----------------------------- deterministic parameter init -----------------------------
def init_params(key):
    keys = jax.random.split(key, 4 + DEPTH)

    def lin(k, fan_in, fan_out):
        lim = 1.0 / float(fan_in) ** 0.5
        return jax.random.uniform(k, (fan_in, fan_out), jnp.float32, -lim, lim)

    def bias(k, fan_in, n):
        lim = 1.0 / float(fan_in) ** 0.5
        return jax.random.uniform(k, (1, n), jnp.float32, -lim, lim)

    params = {
        'cls_token': jax.random.normal(keys[0], (1, 1, DIM), jnp.float32),
        'pos_embedding': jax.random.normal(keys[1], (1, SEQ, DIM), jnp.float32),
    }

    layers = []
    for i in range(DEPTH):
        lk = jax.random.split(keys[2 + i], 7)
        layers.append({
            'ln1_g': jnp.ones((1, DIM), jnp.float32),
            'ln1_b': jnp.zeros((1, DIM), jnp.float32),
            'qkv_w': lin(lk[0], DIM, 3 * INNER),                 # to_qkv (bias=False)
            'out_w': lin(lk[1], INNER, DIM),                     # to_out Linear
            'out_b': bias(lk[2], INNER, DIM),
            'ln2_g': jnp.ones((1, DIM), jnp.float32),
            'ln2_b': jnp.zeros((1, DIM), jnp.float32),
            'w1': lin(lk[3], DIM, MLP_DIM),
            'b1': bias(lk[4], DIM, MLP_DIM),
            'w2': lin(lk[5], MLP_DIM, DIM),
            'b2': bias(lk[6], MLP_DIM, DIM),
        })
    params['layers'] = layers

    hk = jax.random.split(keys[2 + DEPTH], 2)
    params['head'] = {
        'ln_g': jnp.ones((1, DIM), jnp.float32),
        'ln_b': jnp.zeros((1, DIM), jnp.float32),
        'w': lin(hk[0], DIM, NUM_CLASSES),
        'b': bias(hk[1], DIM, NUM_CLASSES),
    }
    return params


# ----------------------------- main -----------------------------
if __name__ == "__main__":
    key = jax.random.PRNGKey(0)
    pkey, xkey = jax.random.split(key)
    params = init_params(pkey)
    prepared = prepare_params(params)
    x = jax.random.normal(xkey, (BATCH, TMP_CH, IMAGE_SIZE), jnp.float32)  # (B, C, L)

    fwd = jax.jit(transformer_forward)
    out = jax.block_until_ready(fwd(x, prepared))

    assert out.shape == (BATCH, NUM_CLASSES), out.shape
    assert bool(jnp.all(jnp.isfinite(out)))

    # Correctness against a pure-JAX reference (loose tolerance: approx reciprocal on EUP).
    ref = reference_forward(x, params)
    assert jnp.allclose(out, ref, rtol=2e-2, atol=2e-2), (out, ref)

    print("KERNEL_OK")
</pallas_src>

<mosaic_0001>
module attributes {stable_mosaic.version = 11 : i64} {
  func.func @model_kernel(%arg0: memref<2x16x32xf32, #tpu.memory_space<vmem>>, %arg1: memref<1x32xf32, #tpu.memory_space<vmem>>, %arg2: memref<17x32xf32, #tpu.memory_space<vmem>>, %arg3: memref<2x1x32xf32, #tpu.memory_space<vmem>>, %arg4: memref<2x1x32xf32, #tpu.memory_space<vmem>>, %arg5: memref<2x4x32x8xf32, #tpu.memory_space<vmem>>, %arg6: memref<2x4x32x8xf32, #tpu.memory_space<vmem>>, %arg7: memref<2x4x32x8xf32, #tpu.memory_space<vmem>>, %arg8: memref<2x4x8x32xf32, #tpu.memory_space<vmem>>, %arg9: memref<2x1x32xf32, #tpu.memory_space<vmem>>, %arg10: memref<2x1x32xf32, #tpu.memory_space<vmem>>, %arg11: memref<2x1x32xf32, #tpu.memory_space<vmem>>, %arg12: memref<2x32x64xf32, #tpu.memory_space<vmem>>, %arg13: memref<2x1x64xf32, #tpu.memory_space<vmem>>, %arg14: memref<2x64x32xf32, #tpu.memory_space<vmem>>, %arg15: memref<2x1x32xf32, #tpu.memory_space<vmem>>, %arg16: memref<1x32xf32, #tpu.memory_space<vmem>>, %arg17: memref<1x32xf32, #tpu.memory_space<vmem>>, %arg18: memref<32x10xf32, #tpu.memory_space<vmem>>, %arg19: memref<1x10xf32, #tpu.memory_space<vmem>>, %arg20: memref<2x10xf32, #tpu.memory_space<vmem>>) attributes {dimension_semantics = [], scalar_prefetch = 0 : i64, scratch_operands = 0 : i64, tpu.core_type = #tpu.core_type<tc>} {
    %c0 = arith.constant 0 : index
    %c0_0 = arith.constant 0 : index
    %c0_1 = arith.constant 0 : index
    %0 = vector.load %arg0[%c0, %c0_0, %c0_1] : memref<2x16x32xf32, #tpu.memory_space<vmem>>, vector<2x16x32xf32>
    %c0_2 = arith.constant 0 : index
    %c0_3 = arith.constant 0 : index
    %1 = vector.load %arg1[%c0_2, %c0_3] : memref<1x32xf32, #tpu.memory_space<vmem>>, vector<1x32xf32>
    %c0_4 = arith.constant 0 : index
    %c0_5 = arith.constant 0 : index
    %2 = vector.load %arg2[%c0_4, %c0_5] : memref<17x32xf32, #tpu.memory_space<vmem>>, vector<17x32xf32>
    %3 = vector.extract_strided_slice %0 {offsets = [0, 0, 0], sizes = [1, 16, 32], strides = [1, 1, 1]} : vector<2x16x32xf32> to vector<1x16x32xf32>
    %4 = vector.shape_cast %3 : vector<1x16x32xf32> to vector<16x32xf32>
    %5 = tpu.concatenate %1, %4 in 0 : vector<1x32xf32>, vector<16x32xf32> -> vector<17x32xf32>
    %6 = arith.addf %5, %2 : vector<17x32xf32>
    %7 = vector.extract_strided_slice %0 {offsets = [1, 0, 0], sizes = [1, 16, 32], strides = [1, 1, 1]} : vector<2x16x32xf32> to vector<1x16x32xf32>
    %8 = vector.shape_cast %7 : vector<1x16x32xf32> to vector<16x32xf32>
    %9 = tpu.concatenate %1, %8 in 0 : vector<1x32xf32>, vector<16x32xf32> -> vector<17x32xf32>
    %10 = arith.addf %9, %2 : vector<17x32xf32>
    %11 = tpu.concatenate %6, %10 in 0 : vector<17x32xf32>, vector<17x32xf32> -> vector<34x32xf32>
    %c0_6 = arith.constant 0 : index
    %c0_7 = arith.constant 0 : index
    %c0_8 = arith.constant 0 : index
    %12 = vector.load %arg3[%c0_6, %c0_7, %c0_8] : memref<2x1x32xf32, #tpu.memory_space<vmem>>, vector<1x1x32xf32>
    %13 = vector.shape_cast %12 : vector<1x1x32xf32> to vector<1x32xf32>
    %c0_9 = arith.constant 0 : index
    %c0_10 = arith.constant 0 : index
    %c0_11 = arith.constant 0 : index
    %14 = vector.load %arg4[%c0_9, %c0_10, %c0_11] : memref<2x1x32xf32, #tpu.memory_space<vmem>>, vector<1x1x32xf32>
    %15 = vector.shape_cast %14 : vector<1x1x32xf32> to vector<1x32xf32>
    %cst = arith.constant dense<0.000000e+00> : vector<34xf32>
    %16 = vector.multi_reduction <add>, %11, %cst [1] : vector<34x32xf32> to vector<34xf32>
    %17 = vector.shape_cast %16 : vector<34xf32> to vector<34x1xf32>
    %cst_12 = arith.constant 3.200000e+01 : f32
    %18 = vector.broadcast %cst_12 : f32 to vector<34x1xf32>
    %19 = arith.divf %17, %18 : vector<34x1xf32>
    %20 = vector.broadcast %19 : vector<34x1xf32> to vector<34x32xf32>
    %21 = arith.subf %11, %20 : vector<34x32xf32>
    %22 = arith.mulf %21, %21 : vector<34x32xf32>
    %cst_13 = arith.constant dense<0.000000e+00> : vector<34xf32>
    %23 = vector.multi_reduction <add>, %22, %cst_13 [1] : vector<34x32xf32> to vector<34xf32>
    %24 = vector.shape_cast %23 : vector<34xf32> to vector<34x1xf32>
    %cst_14 = arith.constant 3.200000e+01 : f32
    %25 = vector.broadcast %cst_14 : f32 to vector<34x1xf32>
    %26 = arith.divf %24, %25 : vector<34x1xf32>
    %27 = vector.broadcast %19 : vector<34x1xf32> to vector<34x32xf32>
    %28 = arith.subf %11, %27 : vector<34x32xf32>
    %cst_15 = arith.constant 9.99999974E-6 : f32
    %29 = vector.broadcast %cst_15 : f32 to vector<34x1xf32>
    %30 = arith.addf %26, %29 : vector<34x1xf32>
    %31 = math.rsqrt %30 : vector<34x1xf32>
    %32 = vector.broadcast %31 : vector<34x1xf32> to vector<34x32xf32>
    %33 = arith.mulf %28, %32 : vector<34x32xf32>
    %34 = vector.broadcast %13 : vector<1x32xf32> to vector<34x32xf32>
    %35 = arith.mulf %33, %34 : vector<34x32xf32>
    %36 = vector.broadcast %15 : vector<1x32xf32> to vector<34x32xf32>
    %37 = arith.addf %35, %36 : vector<34x32xf32>
    %c0_16 = arith.constant 0 : index
    %c0_17 = arith.constant 0 : index
    %c0_18 = arith.constant 0 : index
    %c0_19 = arith.constant 0 : index
    %38 = vector.load %arg5[%c0_16, %c0_17, %c0_18, %c0_19] : memref<2x4x32x8xf32, #tpu.memory_space<vmem>>, vector<1x1x32x8xf32>
    %39 = vector.shape_cast %38 : vector<1x1x32x8xf32> to vector<32x8xf32>
    %cst_20 = arith.constant dense<0.000000e+00> : vector<34x8xf32>
    %40 = tpu.matmul %37, %39, %cst_20 {dimension_numbers = #tpu.dot_dimension_numbers<[1], [0], [0], [1], [0, 0, 1, 1], [], []>} : vector<34x32xf32>, vector<32x8xf32>, vector<34x8xf32> -> vector<34x8xf32>
    %c0_21 = arith.constant 0 : index
    %c0_22 = arith.constant 0 : index
    %c0_23 = arith.constant 0 : index
    %c0_24 = arith.constant 0 : index
    %41 = vector.load %arg6[%c0_21, %c0_22, %c0_23, %c0_24] : memref<2x4x32x8xf32, #tpu.memory_space<vmem>>, vector<1x1x32x8xf32>
    %42 = vector.shape_cast %41 : vector<1x1x32x8xf32> to vector<32x8xf32>
    %cst_25 = arith.constant dense<0.000000e+00> : vector<34x8xf32>
    %43 = tpu.matmul %37, %42, %cst_25 {dimension_numbers = #tpu.dot_dimension_numbers<[1], [0], [0], [1], [0, 0, 1, 1], [], []>} : vector<34x32xf32>, vector<32x8xf32>, vector<34x8xf32> -> vector<34x8xf32>
    %c0_26 = arith.constant 0 : index
    %c0_27 = arith.constant 0 : index
    %c0_28 = arith.constant 0 : index
    %c0_29 = arith.constant 0 : index
    %44 = vector.load %arg7[%c0_26, %c0_27, %c0_28, %c0_29] : memref<2x4x32x8xf32, #tpu.memory_space<vmem>>, vector<1x1x32x8xf32>
    %45 = vector.shape_cast %44 : vector<1x1x32x8xf32> to vector<32x8xf32>
    %cst_30 = arith.constant dense<0.000000e+00> : vector<34x8xf32>
    %46 = tpu.matmul %37, %45, %cst_30 {dimension_numbers = #tpu.dot_dimension_numbers<[1], [0], [0], [1], [0, 0, 1, 1], [], []>} : vector<34x32xf32>, vector<32x8xf32>, vector<34x8xf32> -> vector<34x8xf32>
    %47 = vector.extract_strided_slice %40 {offsets = [0, 0], sizes = [17, 8], strides = [1, 1]} : vector<34x8xf32> to vector<17x8xf32>
    %48 = vector.extract_strided_slice %43 {offsets = [0, 0], sizes = [17, 8], strides = [1, 1]} : vector<34x8xf32> to vector<17x8xf32>
    %49 = tpu.transpose %48, [1, 0] : vector<17x8xf32> -> vector<8x17xf32>
    %cst_31 = arith.constant dense<0.000000e+00> : vector<17x17xf32>
    %50 = tpu.matmul %47, %49, %cst_31 {dimension_numbers = #tpu.dot_dimension_numbers<[1], [0], [0], [1], [0, 0, 1, 1], [], []>} : vector<17x8xf32>, vector<8x17xf32>, vector<17x17xf32> -> vector<17x17xf32>
    %51 = vector.extract_strided_slice %40 {offsets = [17, 0], sizes = [17, 8], strides = [1, 1]} : vector<34x8xf32> to vector<17x8xf32>
    %52 = vector.extract_strided_slice %43 {offsets = [17, 0], sizes = [17, 8], strides = [1, 1]} : vector<34x8xf32> to vector<17x8xf32>
    %53 = tpu.transpose %52, [1, 0] : vector<17x8xf32> -> vector<8x17xf32>
    %cst_32 = arith.constant dense<0.000000e+00> : vector<17x17xf32>
    %54 = tpu.matmul %51, %53, %cst_32 {dimension_numbers = #tpu.dot_dimension_numbers<[1], [0], [0], [1], [0, 0, 1, 1], [], []>} : vector<17x8xf32>, vector<8x17xf32>, vector<17x17xf32> -> vector<17x17xf32>
    %c0_33 = arith.constant 0 : index
    %c1 = arith.constant 1 : index
    %c0_34 = arith.constant 0 : index
    %c0_35 = arith.constant 0 : index
    %55 = vector.load %arg5[%c0_33, %c1, %c0_34, %c0_35] : memref<2x4x32x8xf32, #tpu.memory_space<vmem>>, vector<1x1x32x8xf32>
    %56 = vector.shape_cast %55 : vector<1x1x32x8xf32> to vector<32x8xf32>
    %cst_36 = arith.constant dense<0.000000e+00> : vector<34x8xf32>
    %57 = tpu.matmul %37, %56, %cst_36 {dimension_numbers = #tpu.dot_dimension_numbers<[1], [0], [0], [1], [0, 0, 1, 1], [], []>} : vector<34x32xf32>, vector<32x8xf32>, vector<34x8xf32> -> vector<34x8xf32>
    %c0_37 = arith.constant 0 : index
    %c1_38 = arith.constant 1 : index
    %c0_39 = arith.constant 0 : index
    %c0_40 = arith.constant 0 : index
    %58 = vector.load %arg6[%c0_37, %c1_38, %c0_39, %c0_40] : memref<2x4x32x8xf32, #tpu.memory_space<vmem>>, vector<1x1x32x8xf32>
    %59 = vector.shape_cast %58 : vector<1x1x32x8xf32> to vector<32x8xf32>
    %cst_41 = arith.constant dense<0.000000e+00> : vector<34x8xf32>
    %60 = tpu.matmul %37, %59, %cst_41 {dimension_numbers = #tpu.dot_dimension_numbers<[1], [0], [0], [1], [0, 0, 1, 1], [], []>} : vector<34x32xf32>, vector<32x8xf32>, vector<34x8xf32> -> vector<34x8xf32>
    %c0_42 = arith.constant 0 : index
    %c1_43 = arith.constant 1 : index
    %c0_44 = arith.constant 0 : index
    %c0_45 = arith.constant 0 : index
    %61 = vector.load %arg7[%c0_42, %c1_43, %c0_44, %c0_45] : memref<2x4x32x8xf32, #tpu.memory_space<vmem>>, vector<1x1x32x8xf32>
    %62 = vector.shape_cast %61 : vector<1x1x32x8xf32> to vector<32x8xf32>
    %cst_46 = arith.constant dense<0.000000e+00> : vector<34x8xf32>
    %63 = tpu.matmul %37, %62, %cst_46 {dimension_numbers = #tpu.dot_dimension_numbers<[1], [0], [0], [1], [0, 0, 1, 1], [], []>} : vector<34x32xf32>, vector<32x8xf32>, vector<34x8xf32> -> vector<34x8xf32>
    %64 = vector.extract_strided_slice %57 {offsets = [0, 0], sizes = [17, 8], strides = [1, 1]} : vector<34x8xf32> to vector<17x8xf32>
    %65 = vector.extract_strided_slice %60 {offsets = [0, 0], sizes = [17, 8], strides = [1, 1]} : vector<34x8xf32> to vector<17x8xf32>
    %66 = tpu.transpose %65, [1, 0] : vector<17x8xf32> -> vector<8x17xf32>
    %cst_47 = arith.constant dense<0.000000e+00> : vector<17x17xf32>
    %67 = tpu.matmul %64, %66, %cst_47 {dimension_numbers = #tpu.dot_dimension_numbers<[1], [0], [0], [1], [0, 0, 1, 1], [], []>} : vector<17x8xf32>, vector<8x17xf32>, vector<17x17xf32> -> vector<17x17xf32>
    %68 = vector.extract_strided_slice %57 {offsets = [17, 0], sizes = [17, 8], strides = [1, 1]} : vector<34x8xf32> to vector<17x8xf32>
    %69 = vector.extract_strided_slice %60 {offsets = [17, 0], sizes = [17, 8], strides = [1, 1]} : vector<34x8xf32> to vector<17x8xf32>
    %70 = tpu.transpose %69, [1, 0] : vector<17x8xf32> -> vector<8x17xf32>
    %cst_48 = arith.constant dense<0.000000e+00> : vector<17x17xf32>
    %71 = tpu.matmul %68, %70, %cst_48 {dimension_numbers = #tpu.dot_dimension_numbers<[1], [0], [0], [1], [0, 0, 1, 1], [], []>} : vector<17x8xf32>, vector<8x17xf32>, vector<17x17xf32> -> vector<17x17xf32>
    %c0_49 = arith.constant 0 : index
    %c2 = arith.constant 2 : index
    %c0_50 = arith.constant 0 : index
    %c0_51 = arith.constant 0 : index
    %72 = vector.load %arg5[%c0_49, %c2, %c0_50, %c0_51] : memref<2x4x32x8xf32, #tpu.memory_space<vmem>>, vector<1x1x32x8xf32>
    %73 = vector.shape_cast %72 : vector<1x1x32x8xf32> to vector<32x8xf32>
    %cst_52 = arith.constant dense<0.000000e+00> : vector<34x8xf32>
    %74 = tpu.matmul %37, %73, %cst_52 {dimension_numbers = #tpu.dot_dimension_numbers<[1], [0], [0], [1], [0, 0, 1, 1], [], []>} : vector<34x32xf32>, vector<32x8xf32>, vector<34x8xf32> -> vector<34x8xf32>
    %c0_53 = arith.constant 0 : index
    %c2_54 = arith.constant 2 : index
    %c0_55 = arith.constant 0 : index
    %c0_56 = arith.constant 0 : index
    %75 = vector.load %arg6[%c0_53, %c2_54, %c0_55, %c0_56] : memref<2x4x32x8xf32, #tpu.memory_space<vmem>>, vector<1x1x32x8xf32>
    %76 = vector.shape_cast %75 : vector<1x1x32x8xf32> to vector<32x8xf32>
    %cst_57 = arith.constant dense<0.000000e+00> : vector<34x8xf32>
    %77 = tpu.matmul %37, %76, %cst_57 {dimension_numbers = #tpu.dot_dimension_numbers<[1], [0], [0], [1], [0, 0, 1, 1], [], []>} : vector<34x32xf32>, vector<32x8xf32>, vector<34x8xf32> -> vector<34x8xf32>
    %c0_58 = arith.constant 0 : index
    %c2_59 = arith.constant 2 : index
    %c0_60 = arith.constant 0 : index
    %c0_61 = arith.constant 0 : index
    %78 = vector.load %arg7[%c0_58, %c2_59, %c0_60, %c0_61] : memref<2x4x32x8xf32, #tpu.memory_space<vmem>>, vector<1x1x32x8xf32>
    %79 = vector.shape_cast %78 : vector<1x1x32x8xf32> to vector<32x8xf32>
    %cst_62 = arith.constant dense<0.000000e+00> : vector<34x8xf32>
    %80 = tpu.matmul %37, %79, %cst_62 {dimension_numbers = #tpu.dot_dimension_numbers<[1], [0], [0], [1], [0, 0, 1, 1], [], []>} : vector<34x32xf32>, vector<32x8xf32>, vector<34x8xf32> -> vector<34x8xf32>
    %81 = vector.extract_strided_slice %74 {offsets = [0, 0], sizes = [17, 8], strides = [1, 1]} : vector<34x8xf32> to vector<17x8xf32>
    %82 = vector.extract_strided_slice %77 {offsets = [0, 0], sizes = [17, 8], strides = [1, 1]} : vector<34x8xf32> to vector<17x8xf32>
    %83 = tpu.transpose %82, [1, 0] : vector<17x8xf32> -> vector<8x17xf32>
    %cst_63 = arith.constant dense<0.000000e+00> : vector<17x17xf32>
    %84 = tpu.matmul %81, %83, %cst_63 {dimension_numbers = #tpu.dot_dimension_numbers<[1], [0], [0], [1], [0, 0, 1, 1], [], []>} : vector<17x8xf32>, vector<8x17xf32>, vector<17x17xf32> -> vector<17x17xf32>
    %85 = vector.extract_strided_slice %74 {offsets = [17, 0], sizes = [17, 8], strides = [1, 1]} : vector<34x8xf32> to vector<17x8xf32>
    %86 = vector.extract_strided_slice %77 {offsets = [17, 0], sizes = [17, 8], strides = [1, 1]} : vector<34x8xf32> to vector<17x8xf32>
    %87 = tpu.transpose %86, [1, 0] : vector<17x8xf32> -> vector<8x17xf32>
    %cst_64 = arith.constant dense<0.000000e+00> : vector<17x17xf32>
    %88 = tpu.matmul %85, %87, %cst_64 {dimension_numbers = #tpu.dot_dimension_numbers<[1], [0], [0], [1], [0, 0, 1, 1], [], []>} : vector<17x8xf32>, vector<8x17xf32>, vector<17x17xf32> -> vector<17x17xf32>
    %c0_65 = arith.constant 0 : index
    %c3 = arith.constant 3 : index
    %c0_66 = arith.constant 0 : index
    %c0_67 = arith.constant 0 : index
    %89 = vector.load %arg5[%c0_65, %c3, %c0_66, %c0_67] : memref<2x4x32x8xf32, #tpu.memory_space<vmem>>, vector<1x1x32x8xf32>
    %90 = vector.shape_cast %89 : vector<1x1x32x8xf32> to vector<32x8xf32>
    %cst_68 = arith.constant dense<0.000000e+00> : vector<34x8xf32>
    %91 = tpu.matmul %37, %90, %cst_68 {dimension_numbers = #tpu.dot_dimension_numbers<[1], [0], [0], [1], [0, 0, 1, 1], [], []>} : vector<34x32xf32>, vector<32x8xf32>, vector<34x8xf32> -> vector<34x8xf32>
    %c0_69 = arith.constant 0 : index
    %c3_70 = arith.constant 3 : index
    %c0_71 = arith.constant 0 : index
    %c0_72 = arith.constant 0 : index
    %92 = vector.load %arg6[%c0_69, %c3_70, %c0_71, %c0_72] : memref<2x4x32x8xf32, #tpu.memory_space<vmem>>, vector<1x1x32x8xf32>
    %93 = vector.shape_cast %92 : vector<1x1x32x8xf32> to vector<32x8xf32>
    %cst_73 = arith.constant dense<0.000000e+00> : vector<34x8xf32>
    %94 = tpu.matmul %37, %93, %cst_73 {dimension_numbers = #tpu.dot_dimension_numbers<[1], [0], [0], [1], [0, 0, 1, 1], [], []>} : vector<34x32xf32>, vector<32x8xf32>, vector<34x8xf32> -> vector<34x8xf32>
    %c0_74 = arith.constant 0 : index
    %c3_75 = arith.constant 3 : index
    %c0_76 = arith.constant 0 : index
    %c0_77 = arith.constant 0 : index
    %95 = vector.load %arg7[%c0_74, %c3_75, %c0_76, %c0_77] : memref<2x4x32x8xf32, #tpu.memory_space<vmem>>, vector<1x1x32x8xf32>
    %96 = vector.shape_cast %95 : vector<1x1x32x8xf32> to vector<32x8xf32>
    %cst_78 = arith.constant dense<0.000000e+00> : vector<34x8xf32>
    %97 = tpu.matmul %37, %96, %cst_78 {dimension_numbers = #tpu.dot_dimension_numbers<[1], [0], [0], [1], [0, 0, 1, 1], [], []>} : vector<34x32xf32>, vector<32x8xf32>, vector<34x8xf32> -> vector<34x8xf32>
    %98 = vector.extract_strided_slice %91 {offsets = [0, 0], sizes = [17, 8], strides = [1, 1]} : vector<34x8xf32> to vector<17x8xf32>
    %99 = vector.extract_strided_slice %94 {offsets = [0, 0], sizes = [17, 8], strides = [1, 1]} : vector<34x8xf32> to vector<17x8xf32>
    %100 = tpu.transpose %99, [1, 0] : vector<17x8xf32> -> vector<8x17xf32>
    %cst_79 = arith.constant dense<0.000000e+00> : vector<17x17xf32>
    %101 = tpu.matmul %98, %100, %cst_79 {dimension_numbers = #tpu.dot_dimension_numbers<[1], [0], [0], [1], [0, 0, 1, 1], [], []>} : vector<17x8xf32>, vector<8x17xf32>, vector<17x17xf32> -> vector<17x17xf32>
    %102 = vector.extract_strided_slice %91 {offsets = [17, 0], sizes = [17, 8], strides = [1, 1]} : vector<34x8xf32> to vector<17x8xf32>
    %103 = vector.extract_strided_slice %94 {offsets = [17, 0], sizes = [17, 8], strides = [1, 1]} : vector<34x8xf32> to vector<17x8xf32>
    %104 = tpu.transpose %103, [1, 0] : vector<17x8xf32> -> vector<8x17xf32>
    %cst_80 = arith.constant dense<0.000000e+00> : vector<17x17xf32>
    %105 = tpu.matmul %102, %104, %cst_80 {dimension_numbers = #tpu.dot_dimension_numbers<[1], [0], [0], [1], [0, 0, 1, 1], [], []>} : vector<17x8xf32>, vector<8x17xf32>, vector<17x17xf32> -> vector<17x17xf32>
    %106 = tpu.concatenate %50, %54, %67, %71, %84, %88, %101, %105 in 0 : vector<17x17xf32>, vector<17x17xf32>, vector<17x17xf32>, vector<17x17xf32>, vector<17x17xf32>, vector<17x17xf32>, vector<17x17xf32>, vector<17x17xf32> -> vector<136x17xf32>
    %cst_81 = arith.constant dense<0xFF800000> : vector<136xf32>
    %107 = vector.multi_reduction <maximumf>, %106, %cst_81 [1] : vector<136x17xf32> to vector<136xf32>
    %108 = vector.shape_cast %107 : vector<136xf32> to vector<136x1xf32>
    %109 = vector.broadcast %108 : vector<136x1xf32> to vector<136x17xf32>
    %110 = arith.subf %106, %109 : vector<136x17xf32>
    %111 = math.exp %110 : vector<136x17xf32>
    %cst_82 = arith.constant dense<0.000000e+00> : vector<136xf32>
    %112 = vector.multi_reduction <add>, %111, %cst_82 [1] : vector<136x17xf32> to vector<136xf32>
    %113 = vector.shape_cast %112 : vector<136xf32> to vector<136x1xf32>
    %114 = tpu.reciprocal %113 {approx = true} : vector<136x1xf32> -> vector<136x1xf32>
    %115 = vector.broadcast %114 : vector<136x1xf32> to vector<136x17xf32>
    %116 = arith.mulf %111, %115 : vector<136x17xf32>
    %cst_83 = arith.constant 0.000000e+00 : f32
    %117 = vector.broadcast %cst_83 : f32 to vector<34x32xf32>
    %118 = vector.extract_strided_slice %116 {offsets = [0, 0], sizes = [17, 17], strides = [1, 1]} : vector<136x17xf32> to vector<17x17xf32>
    %119 = vector.extract_strided_slice %46 {offsets = [0, 0], sizes = [17, 8], strides = [1, 1]} : vector<34x8xf32> to vector<17x8xf32>
    %cst_84 = arith.constant dense<0.000000e+00> : vector<17x8xf32>
    %120 = tpu.matmul %118, %119, %cst_84 {dimension_numbers = #tpu.dot_dimension_numbers<[1], [0], [0], [1], [0, 0, 1, 1], [], []>} : vector<17x17xf32>, vector<17x8xf32>, vector<17x8xf32> -> vector<17x8xf32>
    %121 = vector.extract_strided_slice %116 {offsets = [17, 0], sizes = [17, 17], strides = [1, 1]} : vector<136x17xf32> to vector<17x17xf32>
    %122 = vector.extract_strided_slice %46 {offsets = [17, 0], sizes = [17, 8], strides = [1, 1]} : vector<34x8xf32> to vector<17x8xf32>
    %cst_85 = arith.constant dense<0.000000e+00> : vector<17x8xf32>
    %123 = tpu.matmul %121, %122, %cst_85 {dimension_numbers = #tpu.dot_dimension_numbers<[1], [0], [0], [1], [0, 0, 1, 1], [], []>} : vector<17x17xf32>, vector<17x8xf32>, vector<17x8xf32> -> vector<17x8xf32>
    %124 = tpu.concatenate %120, %123 in 0 : vector<17x8xf32>, vector<17x8xf32> -> vector<34x8xf32>
    %c0_86 = arith.constant 0 : index
    %c0_87 = arith.constant 0 : index
    %c0_88 = arith.constant 0 : index
    %c0_89 = arith.constant 0 : index
    %125 = vector.load %arg8[%c0_86, %c0_87, %c0_88, %c0_89] : memref<2x4x8x32xf32, #tpu.memory_space<vmem>>, vector<1x1x8x32xf32>
    %126 = vector.shape_cast %125 : vector<1x1x8x32xf32> to vector<8x32xf32>
    %cst_90 = arith.constant dense<0.000000e+00> : vector<34x32xf32>
    %127 = tpu.matmul %124, %126, %cst_90 {dimension_numbers = #tpu.dot_dimension_numbers<[1], [0], [0], [1], [0, 0, 1, 1], [], []>} : vector<34x8xf32>, vector<8x32xf32>, vector<34x32xf32> -> vector<34x32xf32>
    %128 = arith.addf %117, %127 : vector<34x32xf32>
    %129 = vector.extract_strided_slice %116 {offsets = [34, 0], sizes = [17, 17], strides = [1, 1]} : vector<136x17xf32> to vector<17x17xf32>
    %130 = vector.extract_strided_slice %63 {offsets = [0, 0], sizes = [17, 8], strides = [1, 1]} : vector<34x8xf32> to vector<17x8xf32>
    %cst_91 = arith.constant dense<0.000000e+00> : vector<17x8xf32>
    %131 = tpu.matmul %129, %130, %cst_91 {dimension_numbers = #tpu.dot_dimension_numbers<[1], [0], [0], [1], [0, 0, 1, 1], [], []>} : vector<17x17xf32>, vector<17x8xf32>, vector<17x8xf32> -> vector<17x8xf32>
    %132 = vector.extract_strided_slice %116 {offsets = [51, 0], sizes = [17, 17], strides = [1, 1]} : vector<136x17xf32> to vector<17x17xf32>
    %133 = vector.extract_strided_slice %63 {offsets = [17, 0], sizes = [17, 8], strides = [1, 1]} : vector<34x8xf32> to vector<17x8xf32>
    %cst_92 = arith.constant dense<0.000000e+00> : vector<17x8xf32>
    %134 = tpu.matmul %132, %133, %cst_92 {dimension_numbers = #tpu.dot_dimension_numbers<[1], [0], [0], [1], [0, 0, 1, 1], [], []>} : vector<17x17xf32>, vector<17x8xf32>, vector<17x8xf32> -> vector<17x8xf32>
    %135 = tpu.concatenate %131, %134 in 0 : vector<17x8xf32>, vector<17x8xf32> -> vector<34x8xf32>
    %c0_93 = arith.constant 0 : index
    %c1_94 = arith.constant 1 : index
    %c0_95 = arith.constant 0 : index
    %c0_96 = arith.constant 0 : index
    %136 = vector.load %arg8[%c0_93, %c1_94, %c0_95, %c0_96] : memref<2x4x8x32xf32, #tpu.memory_space<vmem>>, vector<1x1x8x32xf32>
    %137 = vector.shape_cast %136 : vector<1x1x8x32xf32> to vector<8x32xf32>
    %cst_97 = arith.constant dense<0.000000e+00> : vector<34x32xf32>
    %138 = tpu.matmul %135, %137, %cst_97 {dimension_numbers = #tpu.dot_dimension_numbers<[1], [0], [0], [1], [0, 0, 1, 1], [], []>} : vector<34x8xf32>, vector<8x32xf32>, vector<34x32xf32> -> vector<34x32xf32>
    %139 = arith.addf %128, %138 : vector<34x32xf32>
    %140 = vector.extract_strided_slice %116 {offsets = [68, 0], sizes = [17, 17], strides = [1, 1]} : vector<136x17xf32> to vector<17x17xf32>
    %141 = vector.extract_strided_slice %80 {offsets = [0, 0], sizes = [17, 8], strides = [1, 1]} : vector<34x8xf32> to vector<17x8xf32>
    %cst_98 = arith.constant dense<0.000000e+00> : vector<17x8xf32>
    %142 = tpu.matmul %140, %141, %cst_98 {dimension_numbers = #tpu.dot_dimension_numbers<[1], [0], [0], [1], [0, 0, 1, 1], [], []>} : vector<17x17xf32>, vector<17x8xf32>, vector<17x8xf32> -> vector<17x8xf32>
    %143 = vector.extract_strided_slice %116 {offsets = [85, 0], sizes = [17, 17], strides = [1, 1]} : vector<136x17xf32> to vector<17x17xf32>
    %144 = vector.extract_strided_slice %80 {offsets = [17, 0], sizes = [17, 8], strides = [1, 1]} : vector<34x8xf32> to vector<17x8xf32>
    %cst_99 = arith.constant dense<0.000000e+00> : vector<17x8xf32>
    %145 = tpu.matmul %143, %144, %cst_99 {dimension_numbers = #tpu.dot_dimension_numbers<[1], [0], [0], [1], [0, 0, 1, 1], [], []>} : vector<17x17xf32>, vector<17x8xf32>, vector<17x8xf32> -> vector<17x8xf32>
    %146 = tpu.concatenate %142, %145 in 0 : vector<17x8xf32>, vector<17x8xf32> -> vector<34x8xf32>
    %c0_100 = arith.constant 0 : index
    %c2_101 = arith.constant 2 : index
    %c0_102 = arith.constant 0 : index
    %c0_103 = arith.constant 0 : index
    %147 = vector.load %arg8[%c0_100, %c2_101, %c0_102, %c0_103] : memref<2x4x8x32xf32, #tpu.memory_space<vmem>>, vector<1x1x8x32xf32>
    %148 = vector.shape_cast %147 : vector<1x1x8x32xf32> to vector<8x32xf32>
    %cst_104 = arith.constant dense<0.000000e+00> : vector<34x32xf32>
    %149 = tpu.matmul %146, %148, %cst_104 {dimension_numbers = #tpu.dot_dimension_numbers<[1], [0], [0], [1], [0, 0, 1, 1], [], []>} : vector<34x8xf32>, vector<8x32xf32>, vector<34x32xf32> -> vector<34x32xf32>
    %150 = arith.addf %139, %149 : vector<34x32xf32>
    %151 = vector.extract_strided_slice %116 {offsets = [102, 0], sizes = [17, 17], strides = [1, 1]} : vector<136x17xf32> to vector<17x17xf32>
    %152 = vector.extract_strided_slice %97 {offsets = [0, 0], sizes = [17, 8], strides = [1, 1]} : vector<34x8xf32> to vector<17x8xf32>
    %cst_105 = arith.constant dense<0.000000e+00> : vector<17x8xf32>
    %153 = tpu.matmul %151, %152, %cst_105 {dimension_numbers = #tpu.dot_dimension_numbers<[1], [0], [0], [1], [0, 0, 1, 1], [], []>} : vector<17x17xf32>, vector<17x8xf32>, vector<17x8xf32> -> vector<17x8xf32>
    %154 = vector.extract_strided_slice %116 {offsets = [119, 0], sizes = [17, 17], strides = [1, 1]} : vector<136x17xf32> to vector<17x17xf32>
    %155 = vector.extract_strided_slice %97 {offsets = [17, 0], sizes = [17, 8], strides = [1, 1]} : vector<34x8xf32> to vector<17x8xf32>
    %cst_106 = arith.constant dense<0.000000e+00> : vector<17x8xf32>
    %156 = tpu.matmul %154, %155, %cst_106 {dimension_numbers = #tpu.dot_dimension_numbers<[1], [0], [0], [1], [0, 0, 1, 1], [], []>} : vector<17x17xf32>, vector<17x8xf32>, vector<17x8xf32> -> vector<17x8xf32>
    %157 = tpu.concatenate %153, %156 in 0 : vector<17x8xf32>, vector<17x8xf32> -> vector<34x8xf32>
    %c0_107 = arith.constant 0 : index
    %c3_108 = arith.constant 3 : index
    %c0_109 = arith.constant 0 : index
    %c0_110 = arith.constant 0 : index
    %158 = vector.load %arg8[%c0_107, %c3_108, %c0_109, %c0_110] : memref<2x4x8x32xf32, #tpu.memory_space<vmem>>, vector<1x1x8x32xf32>
    %159 = vector.shape_cast %158 : vector<1x1x8x32xf32> to vector<8x32xf32>
    %cst_111 = arith.constant dense<0.000000e+00> : vector<34x32xf32>
    %160 = tpu.matmul %157, %159, %cst_111 {dimension_numbers = #tpu.dot_dimension_numbers<[1], [0], [0], [1], [0, 0, 1, 1], [], []>} : vector<34x8xf32>, vector<8x32xf32>, vector<34x32xf32> -> vector<34x32xf32>
    %161 = arith.addf %150, %160 : vector<34x32xf32>
    %162 = arith.addf %11, %161 : vector<34x32xf32>
    %c0_112 = arith.constant 0 : index
    %c0_113 = arith.constant 0 : index
    %c0_114 = arith.constant 0 : index
    %163 = vector.load %arg9[%c0_112, %c0_113, %c0_114] : memref<2x1x32xf32, #tpu.memory_space<vmem>>, vector<1x1x32xf32>
    %164 = vector.shape_cast %163 : vector<1x1x32xf32> to vector<1x32xf32>
    %165 = vector.broadcast %164 : vector<1x32xf32> to vector<34x32xf32>
    %166 = arith.addf %162, %165 : vector<34x32xf32>
    %c0_115 = arith.constant 0 : index
    %c0_116 = arith.constant 0 : index
    %c0_117 = arith.constant 0 : index
    %167 = vector.load %arg10[%c0_115, %c0_116, %c0_117] : memref<2x1x32xf32, #tpu.memory_space<vmem>>, vector<1x1x32xf32>
    %168 = vector.shape_cast %167 : vector<1x1x32xf32> to vector<1x32xf32>
    %c0_118 = arith.constant 0 : index
    %c0_119 = arith.constant 0 : index
    %c0_120 = arith.constant 0 : index
    %169 = vector.load %arg11[%c0_118, %c0_119, %c0_120] : memref<2x1x32xf32, #tpu.memory_space<vmem>>, vector<1x1x32xf32>
    %170 = vector.shape_cast %169 : vector<1x1x32xf32> to vector<1x32xf32>
    %cst_121 = arith.constant dense<0.000000e+00> : vector<34xf32>
    %171 = vector.multi_reduction <add>, %166, %cst_121 [1] : vector<34x32xf32> to vector<34xf32>
    %172 = vector.shape_cast %171 : vector<34xf32> to vector<34x1xf32>
    %cst_122 = arith.constant 3.200000e+01 : f32
    %173 = vector.broadcast %cst_122 : f32 to vector<34x1xf32>
    %174 = arith.divf %172, %173 : vector<34x1xf32>
    %175 = vector.broadcast %174 : vector<34x1xf32> to vector<34x32xf32>
    %176 = arith.subf %166, %175 : vector<34x32xf32>
    %177 = arith.mulf %176, %176 : vector<34x32xf32>
    %cst_123 = arith.constant dense<0.000000e+00> : vector<34xf32>
    %178 = vector.multi_reduction <add>, %177, %cst_123 [1] : vector<34x32xf32> to vector<34xf32>
    %179 = vector.shape_cast %178 : vector<34xf32> to vector<34x1xf32>
    %cst_124 = arith.constant 3.200000e+01 : f32
    %180 = vector.broadcast %cst_124 : f32 to vector<34x1xf32>
    %181 = arith.divf %179, %180 : vector<34x1xf32>
    %182 = vector.broadcast %174 : vector<34x1xf32> to vector<34x32xf32>
    %183 = arith.subf %166, %182 : vector<34x32xf32>
    %cst_125 = arith.constant 9.99999974E-6 : f32
    %184 = vector.broadcast %cst_125 : f32 to vector<34x1xf32>
    %185 = arith.addf %181, %184 : vector<34x1xf32>
    %186 = math.rsqrt %185 : vector<34x1xf32>
    %187 = vector.broadcast %186 : vector<34x1xf32> to vector<34x32xf32>
    %188 = arith.mulf %183, %187 : vector<34x32xf32>
    %189 = vector.broadcast %168 : vector<1x32xf32> to vector<34x32xf32>
    %190 = arith.mulf %188, %189 : vector<34x32xf32>
    %191 = vector.broadcast %170 : vector<1x32xf32> to vector<34x32xf32>
    %192 = arith.addf %190, %191 : vector<34x32xf32>
    %c0_126 = arith.constant 0 : index
    %c0_127 = arith.constant 0 : index
    %c0_128 = arith.constant 0 : index
    %193 = vector.load %arg12[%c0_126, %c0_127, %c0_128] : memref<2x32x64xf32, #tpu.memory_space<vmem>>, vector<1x32x64xf32>
    %194 = vector.shape_cast %193 : vector<1x32x64xf32> to vector<32x64xf32>
    %cst_129 = arith.constant dense<0.000000e+00> : vector<34x64xf32>
    %195 = tpu.matmul %192, %194, %cst_129 {dimension_numbers = #tpu.dot_dimension_numbers<[1], [0], [0], [1], [0, 0, 1, 1], [], []>} : vector<34x32xf32>, vector<32x64xf32>, vector<34x64xf32> -> vector<34x64xf32>
    %c0_130 = arith.constant 0 : index
    %c0_131 = arith.constant 0 : index
    %c0_132 = arith.constant 0 : index
    %196 = vector.load %arg13[%c0_130, %c0_131, %c0_132] : memref<2x1x64xf32, #tpu.memory_space<vmem>>, vector<1x1x64xf32>
    %197 = vector.shape_cast %196 : vector<1x1x64xf32> to vector<1x64xf32>
    %198 = vector.broadcast %197 : vector<1x64xf32> to vector<34x64xf32>
    %199 = arith.addf %195, %198 : vector<34x64xf32>
    %cst_133 = arith.constant 5.000000e-01 : f32
    %200 = vector.broadcast %cst_133 : f32 to vector<34x64xf32>
    %201 = arith.mulf %200, %199 : vector<34x64xf32>
    %cst_134 = arith.constant 0.707106769 : f32
    %202 = vector.broadcast %cst_134 : f32 to vector<34x64xf32>
    %203 = arith.mulf %199, %202 : vector<34x64xf32>
    %204 = math.erf %203 : vector<34x64xf32>
    %cst_135 = arith.constant 1.000000e+00 : f32
    %205 = vector.broadcast %cst_135 : f32 to vector<34x64xf32>
    %206 = arith.addf %205, %204 : vector<34x64xf32>
    %207 = arith.mulf %201, %206 : vector<34x64xf32>
    %c0_136 = arith.constant 0 : index
    %c0_137 = arith.constant 0 : index
    %c0_138 = arith.constant 0 : index
    %208 = vector.load %arg14[%c0_136, %c0_137, %c0_138] : memref<2x64x32xf32, #tpu.memory_space<vmem>>, vector<1x64x32xf32>
    %209 = vector.shape_cast %208 : vector<1x64x32xf32> to vector<64x32xf32>
    %cst_139 = arith.constant dense<0.000000e+00> : vector<34x32xf32>
    %210 = tpu.matmul %207, %209, %cst_139 {dimension_numbers = #tpu.dot_dimension_numbers<[1], [0], [0], [1], [0, 0, 1, 1], [], []>} : vector<34x64xf32>, vector<64x32xf32>, vector<34x32xf32> -> vector<34x32xf32>
    %c0_140 = arith.constant 0 : index
    %c0_141 = arith.constant 0 : index
    %c0_142 = arith.constant 0 : index
    %211 = vector.load %arg15[%c0_140, %c0_141, %c0_142] : memref<2x1x32xf32, #tpu.memory_space<vmem>>, vector<1x1x32xf32>
    %212 = vector.shape_cast %211 : vector<1x1x32xf32> to vector<1x32xf32>
    %213 = vector.broadcast %212 : vector<1x32xf32> to vector<34x32xf32>
    %214 = arith.addf %210, %213 : vector<34x32xf32>
    %215 = arith.addf %166, %214 : vector<34x32xf32>
    %c1_143 = arith.constant 1 : index
    %c0_144 = arith.constant 0 : index
    %c0_145 = arith.constant 0 : index
    %216 = vector.load %arg3[%c1_143, %c0_144, %c0_145] : memref<2x1x32xf32, #tpu.memory_space<vmem>>, vector<1x1x32xf32>
    %217 = vector.shape_cast %216 : vector<1x1x32xf32> to vector<1x32xf32>
    %c1_146 = arith.constant 1 : index
    %c0_147 = arith.constant 0 : index
    %c0_148 = arith.constant 0 : index
    %218 = vector.load %arg4[%c1_146, %c0_147, %c0_148] : memref<2x1x32xf32, #tpu.memory_space<vmem>>, vector<1x1x32xf32>
    %219 = vector.shape_cast %218 : vector<1x1x32xf32> to vector<1x32xf32>
    %cst_149 = arith.constant dense<0.000000e+00> : vector<34xf32>
    %220 = vector.multi_reduction <add>, %215, %cst_149 [1] : vector<34x32xf32> to vector<34xf32>
    %221 = vector.shape_cast %220 : vector<34xf32> to vector<34x1xf32>
    %cst_150 = arith.constant 3.200000e+01 : f32
    %222 = vector.broadcast %cst_150 : f32 to vector<34x1xf32>
    %223 = arith.divf %221, %222 : vector<34x1xf32>
    %224 = vector.broadcast %223 : vector<34x1xf32> to vector<34x32xf32>
    %225 = arith.subf %215, %224 : vector<34x32xf32>
    %226 = arith.mulf %225, %225 : vector<34x32xf32>
    %cst_151 = arith.constant dense<0.000000e+00> : vector<34xf32>
    %227 = vector.multi_reduction <add>, %226, %cst_151 [1] : vector<34x32xf32> to vector<34xf32>
    %228 = vector.shape_cast %227 : vector<34xf32> to vector<34x1xf32>
    %cst_152 = arith.constant 3.200000e+01 : f32
    %229 = vector.broadcast %cst_152 : f32 to vector<34x1xf32>
    %230 = arith.divf %228, %229 : vector<34x1xf32>
    %231 = vector.broadcast %223 : vector<34x1xf32> to vector<34x32xf32>
    %232 = arith.subf %215, %231 : vector<34x32xf32>
    %cst_153 = arith.constant 9.99999974E-6 : f32
    %233 = vector.broadcast %cst_153 : f32 to vector<34x1xf32>
    %234 = arith.addf %230, %233 : vector<34x1xf32>
    %235 = math.rsqrt %234 : vector<34x1xf32>
    %236 = vector.broadcast %235 : vector<34x1xf32> to vector<34x32xf32>
    %237 = arith.mulf %232, %236 : vector<34x32xf32>
    %238 = vector.broadcast %217 : vector<1x32xf32> to vector<34x32xf32>
    %239 = arith.mulf %237, %238 : vector<34x32xf32>
    %240 = vector.broadcast %219 : vector<1x32xf32> to vector<34x32xf32>
    %241 = arith.addf %239, %240 : vector<34x32xf32>
    %c1_154 = arith.constant 1 : index
    %c0_155 = arith.constant 0 : index
    %c0_156 = arith.constant 0 : index
    %c0_157 = arith.constant 0 : index
    %242 = vector.load %arg5[%c1_154, %c0_155, %c0_156, %c0_157] : memref<2x4x32x8xf32, #tpu.memory_space<vmem>>, vector<1x1x32x8xf32>
    %243 = vector.shape_cast %242 : vector<1x1x32x8xf32> to vector<32x8xf32>
    %cst_158 = arith.constant dense<0.000000e+00> : vector<34x8xf32>
    %244 = tpu.matmul %241, %243, %cst_158 {dimension_numbers = #tpu.dot_dimension_numbers<[1], [0], [0], [1], [0, 0, 1, 1], [], []>} : vector<34x32xf32>, vector<32x8xf32>, vector<34x8xf32> -> vector<34x8xf32>
    %c1_159 = arith.constant 1 : index
    %c0_160 = arith.constant 0 : index
    %c0_161 = arith.constant 0 : index
    %c0_162 = arith.constant 0 : index
    %245 = vector.load %arg6[%c1_159, %c0_160, %c0_161, %c0_162] : memref<2x4x32x8xf32, #tpu.memory_space<vmem>>, vector<1x1x32x8xf32>
    %246 = vector.shape_cast %245 : vector<1x1x32x8xf32> to vector<32x8xf32>
    %cst_163 = arith.constant dense<0.000000e+00> : vector<34x8xf32>
    %247 = tpu.matmul %241, %246, %cst_163 {dimension_numbers = #tpu.dot_dimension_numbers<[1], [0], [0], [1], [0, 0, 1, 1], [], []>} : vector<34x32xf32>, vector<32x8xf32>, vector<34x8xf32> -> vector<34x8xf32>
    %c1_164 = arith.constant 1 : index
    %c0_165 = arith.constant 0 : index
    %c0_166 = arith.constant 0 : index
    %c0_167 = arith.constant 0 : index
    %248 = vector.load %arg7[%c1_164, %c0_165, %c0_166, %c0_167] : memref<2x4x32x8xf32, #tpu.memory_space<vmem>>, vector<1x1x32x8xf32>
    %249 = vector.shape_cast %248 : vector<1x1x32x8xf32> to vector<32x8xf32>
    %cst_168 = arith.constant dense<0.000000e+00> : vector<34x8xf32>
    %250 = tpu.matmul %241, %249, %cst_168 {dimension_numbers = #tpu.dot_dimension_numbers<[1], [0], [0], [1], [0, 0, 1, 1], [], []>} : vector<34x32xf32>, vector<32x8xf32>, vector<34x8xf32> -> vector<34x8xf32>
    %251 = vector.extract_strided_slice %244 {offsets = [0, 0], sizes = [17, 8], strides = [1, 1]} : vector<34x8xf32> to vector<17x8xf32>
    %252 = vector.extract_strided_slice %247 {offsets = [0, 0], sizes = [17, 8], strides = [1, 1]} : vector<34x8xf32> to vector<17x8xf32>
    %253 = tpu.transpose %252, [1, 0] : vector<17x8xf32> -> vector<8x17xf32>
    %cst_169 = arith.constant dense<0.000000e+00> : vector<17x17xf32>
    %254 = tpu.matmul %251, %253, %cst_169 {dimension_numbers = #tpu.dot_dimension_numbers<[1], [0], [0], [1], [0, 0, 1, 1], [], []>} : vector<17x8xf32>, vector<8x17xf32>, vector<17x17xf32> -> vector<17x17xf32>
    %255 = vector.extract_strided_slice %244 {offsets = [17, 0], sizes = [17, 8], strides = [1, 1]} : vector<34x8xf32> to vector<17x8xf32>
    %256 = vector.extract_strided_slice %247 {offsets = [17, 0], sizes = [17, 8], strides = [1, 1]} : vector<34x8xf32> to vector<17x8xf32>
    %257 = tpu.transpose %256, [1, 0] : vector<17x8xf32> -> vector<8x17xf32>
    %cst_170 = arith.constant dense<0.000000e+00> : vector<17x17xf32>
    %258 = tpu.matmul %255, %257, %cst_170 {dimension_numbers = #tpu.dot_dimension_numbers<[1], [0], [0], [1], [0, 0, 1, 1], [], []>} : vector<17x8xf32>, vector<8x17xf32>, vector<17x17xf32> -> vector<17x17xf32>
    %c1_171 = arith.constant 1 : index
    %c1_172 = arith.constant 1 : index
    %c0_173 = arith.constant 0 : index
    %c0_174 = arith.constant 0 : index
    %259 = vector.load %arg5[%c1_171, %c1_172, %c0_173, %c0_174] : memref<2x4x32x8xf32, #tpu.memory_space<vmem>>, vector<1x1x32x8xf32>
    %260 = vector.shape_cast %259 : vector<1x1x32x8xf32> to vector<32x8xf32>
    %cst_175 = arith.constant dense<0.000000e+00> : vector<34x8xf32>
    %261 = tpu.matmul %241, %260, %cst_175 {dimension_numbers = #tpu.dot_dimension_numbers<[1], [0], [0], [1], [0, 0, 1, 1], [], []>} : vector<34x32xf32>, vector<32x8xf32>, vector<34x8xf32> -> vector<34x8xf32>
    %c1_176 = arith.constant 1 : index
    %c1_177 = arith.constant 1 : index
    %c0_178 = arith.constant 0 : index
    %c0_179 = arith.constant 0 : index
    %262 = vector.load %arg6[%c1_176, %c1_177, %c0_178, %c0_179] : memref<2x4x32x8xf32, #tpu.memory_space<vmem>>, vector<1x1x32x8xf32>
    %263 = vector.shape_cast %262 : vector<1x1x32x8xf32> to vector<32x8xf32>
    %cst_180 = arith.constant dense<0.000000e+00> : vector<34x8xf32>
    %264 = tpu.matmul %241, %263, %cst_180 {dimension_numbers = #tpu.dot_dimension_numbers<[1], [0], [0], [1], [0, 0, 1, 1], [], []>} : vector<34x32xf32>, vector<32x8xf32>, vector<34x8xf32> -> vector<34x8xf32>
    %c1_181 = arith.constant 1 : index
    %c1_182 = arith.constant 1 : index
    %c0_183 = arith.constant 0 : index
    %c0_184 = arith.constant 0 : index
    %265 = vector.load %arg7[%c1_181, %c1_182, %c0_183, %c0_184] : memref<2x4x32x8xf32, #tpu.memory_space<vmem>>, vector<1x1x32x8xf32>
    %266 = vector.shape_cast %265 : vector<1x1x32x8xf32> to vector<32x8xf32>
    %cst_185 = arith.constant dense<0.000000e+00> : vector<34x8xf32>
    %267 = tpu.matmul %241, %266, %cst_185 {dimension_numbers = #tpu.dot_dimension_numbers<[1], [0], [0], [1], [0, 0, 1, 1], [], []>} : vector<34x32xf32>, vector<32x8xf32>, vector<34x8xf32> -> vector<34x8xf32>
    %268 = vector.extract_strided_slice %261 {offsets = [0, 0], sizes = [17, 8], strides = [1, 1]} : vector<34x8xf32> to vector<17x8xf32>
    %269 = vector.extract_strided_slice %264 {offsets = [0, 0], sizes = [17, 8], strides = [1, 1]} : vector<34x8xf32> to vector<17x8xf32>
    %270 = tpu.transpose %269, [1, 0] : vector<17x8xf32> -> vector<8x17xf32>
    %cst_186 = arith.constant dense<0.000000e+00> : vector<17x17xf32>
    %271 = tpu.matmul %268, %270, %cst_186 {dimension_numbers = #tpu.dot_dimension_numbers<[1], [0], [0], [1], [0, 0, 1, 1], [], []>} : vector<17x8xf32>, vector<8x17xf32>, vector<17x17xf32> -> vector<17x17xf32>
    %272 = vector.extract_strided_slice %261 {offsets = [17, 0], sizes = [17, 8], strides = [1, 1]} : vector<34x8xf32> to vector<17x8xf32>
    %273 = vector.extract_strided_slice %264 {offsets = [17, 0], sizes = [17, 8], strides = [1, 1]} : vector<34x8xf32> to vector<17x8xf32>
    %274 = tpu.transpose %273, [1, 0] : vector<17x8xf32> -> vector<8x17xf32>
    %cst_187 = arith.constant dense<0.000000e+00> : vector<17x17xf32>
    %275 = tpu.matmul %272, %274, %cst_187 {dimension_numbers = #tpu.dot_dimension_numbers<[1], [0], [0], [1], [0, 0, 1, 1], [], []>} : vector<17x8xf32>, vector<8x17xf32>, vector<17x17xf32> -> vector<17x17xf32>
    %c1_188 = arith.constant 1 : index
    %c2_189 = arith.constant 2 : index
    %c0_190 = arith.constant 0 : index
    %c0_191 = arith.constant 0 : index
    %276 = vector.load %arg5[%c1_188, %c2_189, %c0_190, %c0_191] : memref<2x4x32x8xf32, #tpu.memory_space<vmem>>, vector<1x1x32x8xf32>
    %277 = vector.shape_cast %276 : vector<1x1x32x8xf32> to vector<32x8xf32>
    %cst_192 = arith.constant dense<0.000000e+00> : vector<34x8xf32>
    %278 = tpu.matmul %241, %277, %cst_192 {dimension_numbers = #tpu.dot_dimension_numbers<[1], [0], [0], [1], [0, 0, 1, 1], [], []>} : vector<34x32xf32>, vector<32x8xf32>, vector<34x8xf32> -> vector<34x8xf32>
    %c1_193 = arith.constant 1 : index
    %c2_194 = arith.constant 2 : index
    %c0_195 = arith.constant 0 : index
    %c0_196 = arith.constant 0 : index
    %279 = vector.load %arg6[%c1_193, %c2_194, %c0_195, %c0_196] : memref<2x4x32x8xf32, #tpu.memory_space<vmem>>, vector<1x1x32x8xf32>
    %280 = vector.shape_cast %279 : vector<1x1x32x8xf32> to vector<32x8xf32>
    %cst_197 = arith.constant dense<0.000000e+00> : vector<34x8xf32>
    %281 = tpu.matmul %241, %280, %cst_197 {dimension_numbers = #tpu.dot_dimension_numbers<[1], [0], [0], [1], [0, 0, 1, 1], [], []>} : vector<34x32xf32>, vector<32x8xf32>, vector<34x8xf32> -> vector<34x8xf32>
    %c1_198 = arith.constant 1 : index
    %c2_199 = arith.constant 2 : index
    %c0_200 = arith.constant 0 : index
    %c0_201 = arith.constant 0 : index
    %282 = vector.load %arg7[%c1_198, %c2_199, %c0_200, %c0_201] : memref<2x4x32x8xf32, #tpu.memory_space<vmem>>, vector<1x1x32x8xf32>
    %283 = vector.shape_cast %282 : vector<1x1x32x8xf32> to vector<32x8xf32>
    %cst_202 = arith.constant dense<0.000000e+00> : vector<34x8xf32>
    %284 = tpu.matmul %241, %283, %cst_202 {dimension_numbers = #tpu.dot_dimension_numbers<[1], [0], [0], [1], [0, 0, 1, 1], [], []>} : vector<34x32xf32>, vector<32x8xf32>, vector<34x8xf32> -> vector<34x8xf32>
    %285 = vector.extract_strided_slice %278 {offsets = [0, 0], sizes = [17, 8], strides = [1, 1]} : vector<34x8xf32> to vector<17x8xf32>
    %286 = vector.extract_strided_slice %281 {offsets = [0, 0], sizes = [17, 8], strides = [1, 1]} : vector<34x8xf32> to vector<17x8xf32>
    %287 = tpu.transpose %286, [1, 0] : vector<17x8xf32> -> vector<8x17xf32>
    %cst_203 = arith.constant dense<0.000000e+00> : vector<17x17xf32>
    %288 = tpu.matmul %285, %287, %cst_203 {dimension_numbers = #tpu.dot_dimension_numbers<[1], [0], [0], [1], [0, 0, 1, 1], [], []>} : vector<17x8xf32>, vector<8x17xf32>, vector<17x17xf32> -> vector<17x17xf32>
    %289 = vector.extract_strided_slice %278 {offsets = [17, 0], sizes = [17, 8], strides = [1, 1]} : vector<34x8xf32> to vector<17x8xf32>
    %290 = vector.extract_strided_slice %281 {offsets = [17, 0], sizes = [17, 8], strides = [1, 1]} : vector<34x8xf32> to vector<17x8xf32>
    %291 = tpu.transpose %290, [1, 0] : vector<17x8xf32> -> vector<8x17xf32>
    %cst_204 = arith.constant dense<0.000000e+00> : vector<17x17xf32>
    %292 = tpu.matmul %289, %291, %cst_204 {dimension_numbers = #tpu.dot_dimension_numbers<[1], [0], [0], [1], [0, 0, 1, 1], [], []>} : vector<17x8xf32>, vector<8x17xf32>, vector<17x17xf32> -> vector<17x17xf32>
    %c1_205 = arith.constant 1 : index
    %c3_206 = arith.constant 3 : index
    %c0_207 = arith.constant 0 : index
    %c0_208 = arith.constant 0 : index
    %293 = vector.load %arg5[%c1_205, %c3_206, %c0_207, %c0_208] : memref<2x4x32x8xf32, #tpu.memory_space<vmem>>, vector<1x1x32x8xf32>
    %294 = vector.shape_cast %293 : vector<1x1x32x8xf32> to vector<32x8xf32>
    %cst_209 = arith.constant dense<0.000000e+00> : vector<34x8xf32>
    %295 = tpu.matmul %241, %294, %cst_209 {dimension_numbers = #tpu.dot_dimension_numbers<[1], [0], [0], [1], [0, 0, 1, 1], [], []>} : vector<34x32xf32>, vector<32x8xf32>, vector<34x8xf32> -> vector<34x8xf32>
    %c1_210 = arith.constant 1 : index
    %c3_211 = arith.constant 3 : index
    %c0_212 = arith.constant 0 : index
    %c0_213 = arith.constant 0 : index
    %296 = vector.load %arg6[%c1_210, %c3_211, %c0_212, %c0_213] : memref<2x4x32x8xf32, #tpu.memory_space<vmem>>, vector<1x1x32x8xf32>
    %297 = vector.shape_cast %296 : vector<1x1x32x8xf32> to vector<32x8xf32>
    %cst_214 = arith.constant dense<0.000000e+00> : vector<34x8xf32>
    %298 = tpu.matmul %241, %297, %cst_214 {dimension_numbers = #tpu.dot_dimension_numbers<[1], [0], [0], [1], [0, 0, 1, 1], [], []>} : vector<34x32xf32>, vector<32x8xf32>, vector<34x8xf32> -> vector<34x8xf32>
    %c1_215 = arith.constant 1 : index
    %c3_216 = arith.constant 3 : index
    %c0_217 = arith.constant 0 : index
    %c0_218 = arith.constant 0 : index
    %299 = vector.load %arg7[%c1_215, %c3_216, %c0_217, %c0_218] : memref<2x4x32x8xf32, #tpu.memory_space<vmem>>, vector<1x1x32x8xf32>
    %300 = vector.shape_cast %299 : vector<1x1x32x8xf32> to vector<32x8xf32>
    %cst_219 = arith.constant dense<0.000000e+00> : vector<34x8xf32>
    %301 = tpu.matmul %241, %300, %cst_219 {dimension_numbers = #tpu.dot_dimension_numbers<[1], [0], [0], [1], [0, 0, 1, 1], [], []>} : vector<34x32xf32>, vector<32x8xf32>, vector<34x8xf32> -> vector<34x8xf32>
    %302 = vector.extract_strided_slice %295 {offsets = [0, 0], sizes = [17, 8], strides = [1, 1]} : vector<34x8xf32> to vector<17x8xf32>
    %303 = vector.extract_strided_slice %298 {offsets = [0, 0], sizes = [17, 8], strides = [1, 1]} : vector<34x8xf32> to vector<17x8xf32>
    %304 = tpu.transpose %303, [1, 0] : vector<17x8xf32> -> vector<8x17xf32>
    %cst_220 = arith.constant dense<0.000000e+00> : vector<17x17xf32>
    %305 = tpu.matmul %302, %304, %cst_220 {dimension_numbers = #tpu.dot_dimension_numbers<[1], [0], [0], [1], [0, 0, 1, 1], [], []>} : vector<17x8xf32>, vector<8x17xf32>, vector<17x17xf32> -> vector<17x17xf32>
    %306 = vector.extract_strided_slice %295 {offsets = [17, 0], sizes = [17, 8], strides = [1, 1]} : vector<34x8xf32> to vector<17x8xf32>
    %307 = vector.extract_strided_slice %298 {offsets = [17, 0], sizes = [17, 8], strides = [1, 1]} : vector<34x8xf32> to vector<17x8xf32>
    %308 = tpu.transpose %307, [1, 0] : vector<17x8xf32> -> vector<8x17xf32>
    %cst_221 = arith.constant dense<0.000000e+00> : vector<17x17xf32>
    %309 = tpu.matmul %306, %308, %cst_221 {dimension_numbers = #tpu.dot_dimension_numbers<[1], [0], [0], [1], [0, 0, 1, 1], [], []>} : vector<17x8xf32>, vector<8x17xf32>, vector<17x17xf32> -> vector<17x17xf32>
    %310 = tpu.concatenate %254, %258, %271, %275, %288, %292, %305, %309 in 0 : vector<17x17xf32>, vector<17x17xf32>, vector<17x17xf32>, vector<17x17xf32>, vector<17x17xf32>, vector<17x17xf32>, vector<17x17xf32>, vector<17x17xf32> -> vector<136x17xf32>
    %cst_222 = arith.constant dense<0xFF800000> : vector<136xf32>
    %311 = vector.multi_reduction <maximumf>, %310, %cst_222 [1] : vector<136x17xf32> to vector<136xf32>
    %312 = vector.shape_cast %311 : vector<136xf32> to vector<136x1xf32>
    %313 = vector.broadcast %312 : vector<136x1xf32> to vector<136x17xf32>
    %314 = arith.subf %310, %313 : vector<136x17xf32>
    %315 = math.exp %314 : vector<136x17xf32>
    %cst_223 = arith.constant dense<0.000000e+00> : vector<136xf32>
    %316 = vector.multi_reduction <add>, %315, %cst_223 [1] : vector<136x17xf32> to vector<136xf32>
    %317 = vector.shape_cast %316 : vector<136xf32> to vector<136x1xf32>
    %318 = tpu.reciprocal %317 {approx = true} : vector<136x1xf32> -> vector<136x1xf32>
    %319 = vector.broadcast %318 : vector<136x1xf32> to vector<136x17xf32>
    %320 = arith.mulf %315, %319 : vector<136x17xf32>
    %cst_224 = arith.constant 0.000000e+00 : f32
    %321 = vector.broadcast %cst_224 : f32 to vector<34x32xf32>
    %322 = vector.extract_strided_slice %320 {offsets = [0, 0], sizes = [17, 17], strides = [1, 1]} : vector<136x17xf32> to vector<17x17xf32>
    %323 = vector.extract_strided_slice %250 {offsets = [0, 0], sizes = [17, 8], strides = [1, 1]} : vector<34x8xf32> to vector<17x8xf32>
    %cst_225 = arith.constant dense<0.000000e+00> : vector<17x8xf32>
    %324 = tpu.matmul %322, %323, %cst_225 {dimension_numbers = #tpu.dot_dimension_numbers<[1], [0], [0], [1], [0, 0, 1, 1], [], []>} : vector<17x17xf32>, vector<17x8xf32>, vector<17x8xf32> -> vector<17x8xf32>
    %325 = vector.extract_strided_slice %320 {offsets = [17, 0], sizes = [17, 17], strides = [1, 1]} : vector<136x17xf32> to vector<17x17xf32>
    %326 = vector.extract_strided_slice %250 {offsets = [17, 0], sizes = [17, 8], strides = [1, 1]} : vector<34x8xf32> to vector<17x8xf32>
    %cst_226 = arith.constant dense<0.000000e+00> : vector<17x8xf32>
    %327 = tpu.matmul %325, %326, %cst_226 {dimension_numbers = #tpu.dot_dimension_numbers<[1], [0], [0], [1], [0, 0, 1, 1], [], []>} : vector<17x17xf32>, vector<17x8xf32>, vector<17x8xf32> -> vector<17x8xf32>
    %328 = tpu.concatenate %324, %327 in 0 : vector<17x8xf32>, vector<17x8xf32> -> vector<34x8xf32>
    %c1_227 = arith.constant 1 : index
    %c0_228 = arith.constant 0 : index
    %c0_229 = arith.constant 0 : index
    %c0_230 = arith.constant 0 : index
    %329 = vector.load %arg8[%c1_227, %c0_228, %c0_229, %c0_230] : memref<2x4x8x32xf32, #tpu.memory_space<vmem>>, vector<1x1x8x32xf32>
    %330 = vector.shape_cast %329 : vector<1x1x8x32xf32> to vector<8x32xf32>
    %cst_231 = arith.constant dense<0.000000e+00> : vector<34x32xf32>
    %331 = tpu.matmul %328, %330, %cst_231 {dimension_numbers = #tpu.dot_dimension_numbers<[1], [0], [0], [1], [0, 0, 1, 1], [], []>} : vector<34x8xf32>, vector<8x32xf32>, vector<34x32xf32> -> vector<34x32xf32>
    %332 = arith.addf %321, %331 : vector<34x32xf32>
    %333 = vector.extract_strided_slice %320 {offsets = [34, 0], sizes = [17, 17], strides = [1, 1]} : vector<136x17xf32> to vector<17x17xf32>
    %334 = vector.extract_strided_slice %267 {offsets = [0, 0], sizes = [17, 8], strides = [1, 1]} : vector<34x8xf32> to vector<17x8xf32>
    %cst_232 = arith.constant dense<0.000000e+00> : vector<17x8xf32>
    %335 = tpu.matmul %333, %334, %cst_232 {dimension_numbers = #tpu.dot_dimension_numbers<[1], [0], [0], [1], [0, 0, 1, 1], [], []>} : vector<17x17xf32>, vector<17x8xf32>, vector<17x8xf32> -> vector<17x8xf32>
    %336 = vector.extract_strided_slice %320 {offsets = [51, 0], sizes = [17, 17], strides = [1, 1]} : vector<136x17xf32> to vector<17x17xf32>
    %337 = vector.extract_strided_slice %267 {offsets = [17, 0], sizes = [17, 8], strides = [1, 1]} : vector<34x8xf32> to vector<17x8xf32>
    %cst_233 = arith.constant dense<0.000000e+00> : vector<17x8xf32>
    %338 = tpu.matmul %336, %337, %cst_233 {dimension_numbers = #tpu.dot_dimension_numbers<[1], [0], [0], [1], [0, 0, 1, 1], [], []>} : vector<17x17xf32>, vector<17x8xf32>, vector<17x8xf32> -> vector<17x8xf32>
    %339 = tpu.concatenate %335, %338 in 0 : vector<17x8xf32>, vector<17x8xf32> -> vector<34x8xf32>
    %c1_234 = arith.constant 1 : index
    %c1_235 = arith.constant 1 : index
    %c0_236 = arith.constant 0 : index
    %c0_237 = arith.constant 0 : index
    %340 = vector.load %arg8[%c1_234, %c1_235, %c0_236, %c0_237] : memref<2x4x8x32xf32, #tpu.memory_space<vmem>>, vector<1x1x8x32xf32>
    %341 = vector.shape_cast %340 : vector<1x1x8x32xf32> to vector<8x32xf32>
    %cst_238 = arith.constant dense<0.000000e+00> : vector<34x32xf32>
    %342 = tpu.matmul %339, %341, %cst_238 {dimension_numbers = #tpu.dot_dimension_numbers<[1], [0], [0], [1], [0, 0, 1, 1], [], []>} : vector<34x8xf32>, vector<8x32xf32>, vector<34x32xf32> -> vector<34x32xf32>
    %343 = arith.addf %332, %342 : vector<34x32xf32>
    %344 = vector.extract_strided_slice %320 {offsets = [68, 0], sizes = [17, 17], strides = [1, 1]} : vector<136x17xf32> to vector<17x17xf32>
    %345 = vector.extract_strided_slice %284 {offsets = [0, 0], sizes = [17, 8], strides = [1, 1]} : vector<34x8xf32> to vector<17x8xf32>
    %cst_239 = arith.constant dense<0.000000e+00> : vector<17x8xf32>
    %346 = tpu.matmul %344, %345, %cst_239 {dimension_numbers = #tpu.dot_dimension_numbers<[1], [0], [0], [1], [0, 0, 1, 1], [], []>} : vector<17x17xf32>, vector<17x8xf32>, vector<17x8xf32> -> vector<17x8xf32>
    %347 = vector.extract_strided_slice %320 {offsets = [85, 0], sizes = [17, 17], strides = [1, 1]} : vector<136x17xf32> to vector<17x17xf32>
    %348 = vector.extract_strided_slice %284 {offsets = [17, 0], sizes = [17, 8], strides = [1, 1]} : vector<34x8xf32> to vector<17x8xf32>
    %cst_240 = arith.constant dense<0.000000e+00> : vector<17x8xf32>
    %349 = tpu.matmul %347, %348, %cst_240 {dimension_numbers = #tpu.dot_dimension_numbers<[1], [0], [0], [1], [0, 0, 1, 1], [], []>} : vector<17x17xf32>, vector<17x8xf32>, vector<17x8xf32> -> vector<17x8xf32>
    %350 = tpu.concatenate %346, %349 in 0 : vector<17x8xf32>, vector<17x8xf32> -> vector<34x8xf32>
    %c1_241 = arith.constant 1 : index
    %c2_242 = arith.constant 2 : index
    %c0_243 = arith.constant 0 : index
    %c0_244 = arith.constant 0 : index
    %351 = vector.load %arg8[%c1_241, %c2_242, %c0_243, %c0_244] : memref<2x4x8x32xf32, #tpu.memory_space<vmem>>, vector<1x1x8x32xf32>
    %352 = vector.shape_cast %351 : vector<1x1x8x32xf32> to vector<8x32xf32>
    %cst_245 = arith.constant dense<0.000000e+00> : vector<34x32xf32>
    %353 = tpu.matmul %350, %352, %cst_245 {dimension_numbers = #tpu.dot_dimension_numbers<[1], [0], [0], [1], [0, 0, 1, 1], [], []>} : vector<34x8xf32>, vector<8x32xf32>, vector<34x32xf32> -> vector<34x32xf32>
    %354 = arith.addf %343, %353 : vector<34x32xf32>
    %355 = vector.extract_strided_slice %320 {offsets = [102, 0], sizes = [17, 17], strides = [1, 1]} : vector<136x17xf32> to vector<17x17xf32>
    %356 = vector.extract_strided_slice %301 {offsets = [0, 0], sizes = [17, 8], strides = [1, 1]} : vector<34x8xf32> to vector<17x8xf32>
    %cst_246 = arith.constant dense<0.000000e+00> : vector<17x8xf32>
    %357 = tpu.matmul %355, %356, %cst_246 {dimension_numbers = #tpu.dot_dimension_numbers<[1], [0], [0], [1], [0, 0, 1, 1], [], []>} : vector<17x17xf32>, vector<17x8xf32>, vector<17x8xf32> -> vector<17x8xf32>
    %358 = vector.extract_strided_slice %320 {offsets = [119, 0], sizes = [17, 17], strides = [1, 1]} : vector<136x17xf32> to vector<17x17xf32>
    %359 = vector.extract_strided_slice %301 {offsets = [17, 0], sizes = [17, 8], strides = [1, 1]} : vector<34x8xf32> to vector<17x8xf32>
    %cst_247 = arith.constant dense<0.000000e+00> : vector<17x8xf32>
    %360 = tpu.matmul %358, %359, %cst_247 {dimension_numbers = #tpu.dot_dimension_numbers<[1], [0], [0], [1], [0, 0, 1, 1], [], []>} : vector<17x17xf32>, vector<17x8xf32>, vector<17x8xf32> -> vector<17x8xf32>
    %361 = tpu.concatenate %357, %360 in 0 : vector<17x8xf32>, vector<17x8xf32> -> vector<34x8xf32>
    %c1_248 = arith.constant 1 : index
    %c3_249 = arith.constant 3 : index
    %c0_250 = arith.constant 0 : index
    %c0_251 = arith.constant 0 : index
    %362 = vector.load %arg8[%c1_248, %c3_249, %c0_250, %c0_251] : memref<2x4x8x32xf32, #tpu.memory_space<vmem>>, vector<1x1x8x32xf32>
    %363 = vector.shape_cast %362 : vector<1x1x8x32xf32> to vector<8x32xf32>
    %cst_252 = arith.constant dense<0.000000e+00> : vector<34x32xf32>
    %364 = tpu.matmul %361, %363, %cst_252 {dimension_numbers = #tpu.dot_dimension_numbers<[1], [0], [0], [1], [0, 0, 1, 1], [], []>} : vector<34x8xf32>, vector<8x32xf32>, vector<34x32xf32> -> vector<34x32xf32>
    %365 = arith.addf %354, %364 : vector<34x32xf32>
    %366 = arith.addf %215, %365 : vector<34x32xf32>
    %c1_253 = arith.constant 1 : index
    %c0_254 = arith.constant 0 : index
    %c0_255 = arith.constant 0 : index
    %367 = vector.load %arg9[%c1_253, %c0_254, %c0_255] : memref<2x1x32xf32, #tpu.memory_space<vmem>>, vector<1x1x32xf32>
    %368 = vector.shape_cast %367 : vector<1x1x32xf32> to vector<1x32xf32>
    %369 = vector.broadcast %368 : vector<1x32xf32> to vector<34x32xf32>
    %370 = arith.addf %366, %369 : vector<34x32xf32>
    %c1_256 = arith.constant 1 : index
    %c0_257 = arith.constant 0 : index
    %c0_258 = arith.constant 0 : index
    %371 = vector.load %arg10[%c1_256, %c0_257, %c0_258] : memref<2x1x32xf32, #tpu.memory_space<vmem>>, vector<1x1x32xf32>
    %372 = vector.shape_cast %371 : vector<1x1x32xf32> to vector<1x32xf32>
    %c1_259 = arith.constant 1 : index
    %c0_260 = arith.constant 0 : index
    %c0_261 = arith.constant 0 : index
    %373 = vector.load %arg11[%c1_259, %c0_260, %c0_261] : memref<2x1x32xf32, #tpu.memory_space<vmem>>, vector<1x1x32xf32>
    %374 = vector.shape_cast %373 : vector<1x1x32xf32> to vector<1x32xf32>
    %cst_262 = arith.constant dense<0.000000e+00> : vector<34xf32>
    %375 = vector.multi_reduction <add>, %370, %cst_262 [1] : vector<34x32xf32> to vector<34xf32>
    %376 = vector.shape_cast %375 : vector<34xf32> to vector<34x1xf32>
    %cst_263 = arith.constant 3.200000e+01 : f32
    %377 = vector.broadcast %cst_263 : f32 to vector<34x1xf32>
    %378 = arith.divf %376, %377 : vector<34x1xf32>
    %379 = vector.broadcast %378 : vector<34x1xf32> to vector<34x32xf32>
    %380 = arith.subf %370, %379 : vector<34x32xf32>
    %381 = arith.mulf %380, %380 : vector<34x32xf32>
    %cst_264 = arith.constant dense<0.000000e+00> : vector<34xf32>
    %382 = vector.multi_reduction <add>, %381, %cst_264 [1] : vector<34x32xf32> to vector<34xf32>
    %383 = vector.shape_cast %382 : vector<34xf32> to vector<34x1xf32>
    %cst_265 = arith.constant 3.200000e+01 : f32
    %384 = vector.broadcast %cst_265 : f32 to vector<34x1xf32>
    %385 = arith.divf %383, %384 : vector<34x1xf32>
    %386 = vector.broadcast %378 : vector<34x1xf32> to vector<34x32xf32>
    %387 = arith.subf %370, %386 : vector<34x32xf32>
    %cst_266 = arith.constant 9.99999974E-6 : f32
    %388 = vector.broadcast %cst_266 : f32 to vector<34x1xf32>
    %389 = arith.addf %385, %388 : vector<34x1xf32>
    %390 = math.rsqrt %389 : vector<34x1xf32>
    %391 = vector.broadcast %390 : vector<34x1xf32> to vector<34x32xf32>
    %392 = arith.mulf %387, %391 : vector<34x32xf32>
    %393 = vector.broadcast %372 : vector<1x32xf32> to vector<34x32xf32>
    %394 = arith.mulf %392, %393 : vector<34x32xf32>
    %395 = vector.broadcast %374 : vector<1x32xf32> to vector<34x32xf32>
    %396 = arith.addf %394, %395 : vector<34x32xf32>
    %c1_267 = arith.constant 1 : index
    %c0_268 = arith.constant 0 : index
    %c0_269 = arith.constant 0 : index
    %397 = vector.load %arg12[%c1_267, %c0_268, %c0_269] : memref<2x32x64xf32, #tpu.memory_space<vmem>>, vector<1x32x64xf32>
    %398 = vector.shape_cast %397 : vector<1x32x64xf32> to vector<32x64xf32>
    %cst_270 = arith.constant dense<0.000000e+00> : vector<34x64xf32>
    %399 = tpu.matmul %396, %398, %cst_270 {dimension_numbers = #tpu.dot_dimension_numbers<[1], [0], [0], [1], [0, 0, 1, 1], [], []>} : vector<34x32xf32>, vector<32x64xf32>, vector<34x64xf32> -> vector<34x64xf32>
    %c1_271 = arith.constant 1 : index
    %c0_272 = arith.constant 0 : index
    %c0_273 = arith.constant 0 : index
    %400 = vector.load %arg13[%c1_271, %c0_272, %c0_273] : memref<2x1x64xf32, #tpu.memory_space<vmem>>, vector<1x1x64xf32>
    %401 = vector.shape_cast %400 : vector<1x1x64xf32> to vector<1x64xf32>
    %402 = vector.broadcast %401 : vector<1x64xf32> to vector<34x64xf32>
    %403 = arith.addf %399, %402 : vector<34x64xf32>
    %cst_274 = arith.constant 5.000000e-01 : f32
    %404 = vector.broadcast %cst_274 : f32 to vector<34x64xf32>
    %405 = arith.mulf %404, %403 : vector<34x64xf32>
    %cst_275 = arith.constant 0.707106769 : f32
    %406 = vector.broadcast %cst_275 : f32 to vector<34x64xf32>
    %407 = arith.mulf %403, %406 : vector<34x64xf32>
    %408 = math.erf %407 : vector<34x64xf32>
    %cst_276 = arith.constant 1.000000e+00 : f32
    %409 = vector.broadcast %cst_276 : f32 to vector<34x64xf32>
    %410 = arith.addf %409, %408 : vector<34x64xf32>
    %411 = arith.mulf %405, %410 : vector<34x64xf32>
    %c1_277 = arith.constant 1 : index
    %c0_278 = arith.constant 0 : index
    %c0_279 = arith.constant 0 : index
    %412 = vector.load %arg14[%c1_277, %c0_278, %c0_279] : memref<2x64x32xf32, #tpu.memory_space<vmem>>, vector<1x64x32xf32>
    %413 = vector.shape_cast %412 : vector<1x64x32xf32> to vector<64x32xf32>
    %cst_280 = arith.constant dense<0.000000e+00> : vector<34x32xf32>
    %414 = tpu.matmul %411, %413, %cst_280 {dimension_numbers = #tpu.dot_dimension_numbers<[1], [0], [0], [1], [0, 0, 1, 1], [], []>} : vector<34x64xf32>, vector<64x32xf32>, vector<34x32xf32> -> vector<34x32xf32>
    %c1_281 = arith.constant 1 : index
    %c0_282 = arith.constant 0 : index
    %c0_283 = arith.constant 0 : index
    %415 = vector.load %arg15[%c1_281, %c0_282, %c0_283] : memref<2x1x32xf32, #tpu.memory_space<vmem>>, vector<1x1x32xf32>
    %416 = vector.shape_cast %415 : vector<1x1x32xf32> to vector<1x32xf32>
    %417 = vector.broadcast %416 : vector<1x32xf32> to vector<34x32xf32>
    %418 = arith.addf %414, %417 : vector<34x32xf32>
    %419 = arith.addf %370, %418 : vector<34x32xf32>
    %420 = vector.extract_strided_slice %419 {offsets = [0, 0], sizes = [1, 32], strides = [1, 1]} : vector<34x32xf32> to vector<1x32xf32>
    %421 = vector.extract_strided_slice %419 {offsets = [17, 0], sizes = [1, 32], strides = [1, 1]} : vector<34x32xf32> to vector<1x32xf32>
    %422 = tpu.concatenate %420, %421 in 0 : vector<1x32xf32>, vector<1x32xf32> -> vector<2x32xf32>
    %c0_284 = arith.constant 0 : index
    %c0_285 = arith.constant 0 : index
    %423 = vector.load %arg16[%c0_284, %c0_285] : memref<1x32xf32, #tpu.memory_space<vmem>>, vector<1x32xf32>
    %c0_286 = arith.constant 0 : index
    %c0_287 = arith.constant 0 : index
    %424 = vector.load %arg17[%c0_286, %c0_287] : memref<1x32xf32, #tpu.memory_space<vmem>>, vector<1x32xf32>
    %cst_288 = arith.constant dense<0.000000e+00> : vector<2xf32>
    %425 = vector.multi_reduction <add>, %422, %cst_288 [1] : vector<2x32xf32> to vector<2xf32>
    %426 = vector.shape_cast %425 : vector<2xf32> to vector<2x1xf32>
    %cst_289 = arith.constant 3.200000e+01 : f32
    %427 = vector.broadcast %cst_289 : f32 to vector<2x1xf32>
    %428 = arith.divf %426, %427 : vector<2x1xf32>
    %429 = vector.broadcast %428 : vector<2x1xf32> to vector<2x32xf32>
    %430 = arith.subf %422, %429 : vector<2x32xf32>
    %431 = arith.mulf %430, %430 : vector<2x32xf32>
    %cst_290 = arith.constant dense<0.000000e+00> : vector<2xf32>
    %432 = vector.multi_reduction <add>, %431, %cst_290 [1] : vector<2x32xf32> to vector<2xf32>
    %433 = vector.shape_cast %432 : vector<2xf32> to vector<2x1xf32>
    %cst_291 = arith.constant 3.200000e+01 : f32
    %434 = vector.broadcast %cst_291 : f32 to vector<2x1xf32>
    %435 = arith.divf %433, %434 : vector<2x1xf32>
    %436 = vector.broadcast %428 : vector<2x1xf32> to vector<2x32xf32>
    %437 = arith.subf %422, %436 : vector<2x32xf32>
    %cst_292 = arith.constant 9.99999974E-6 : f32
    %438 = vector.broadcast %cst_292 : f32 to vector<2x1xf32>
    %439 = arith.addf %435, %438 : vector<2x1xf32>
    %440 = math.rsqrt %439 : vector<2x1xf32>
    %441 = vector.broadcast %440 : vector<2x1xf32> to vector<2x32xf32>
    %442 = arith.mulf %437, %441 : vector<2x32xf32>
    %443 = vector.broadcast %423 : vector<1x32xf32> to vector<2x32xf32>
    %444 = arith.mulf %442, %443 : vector<2x32xf32>
    %445 = vector.broadcast %424 : vector<1x32xf32> to vector<2x32xf32>
    %446 = arith.addf %444, %445 : vector<2x32xf32>
    %c0_293 = arith.constant 0 : index
    %c0_294 = arith.constant 0 : index
    %447 = vector.load %arg18[%c0_293, %c0_294] : memref<32x10xf32, #tpu.memory_space<vmem>>, vector<32x10xf32>
    %cst_295 = arith.constant dense<0.000000e+00> : vector<2x10xf32>
    %448 = tpu.matmul %446, %447, %cst_295 {dimension_numbers = #tpu.dot_dimension_numbers<[1], [0], [0], [1], [0, 0, 1, 1], [], []>} : vector<2x32xf32>, vector<32x10xf32>, vector<2x10xf32> -> vector<2x10xf32>
    %c0_296 = arith.constant 0 : index
    %c0_297 = arith.constant 0 : index
    %449 = vector.load %arg19[%c0_296, %c0_297] : memref<1x10xf32, #tpu.memory_space<vmem>>, vector<1x10xf32>
    %450 = vector.broadcast %449 : vector<1x10xf32> to vector<2x10xf32>
    %451 = arith.addf %448, %450 : vector<2x10xf32>
    %c0_298 = arith.constant 0 : index
    %c0_299 = arith.constant 0 : index
    %452 = vector.load %arg20[%c0_298, %c0_299] : memref<2x10xf32, #tpu.memory_space<vmem>>, vector<2x10xf32>
    tpu.vector_store %arg20[%c0_298, %c0_299], %451 {strides = array<i32>} : memref<2x10xf32, #tpu.memory_space<vmem>>, vector<2x10xf32>,
    return
  }
}

</mosaic_0001>

<llo_original>
// kernel: transformer_forward.1
$region0: #{transformer_forward.1}
  #allocation0 [shape = 'u32[]', space=smem, size = 0x4, offset = 0x4, fixed_abs, tag = 'smem constant byte address 0x4 - core index']
  #allocation1 [shape = 'u32[144,128]{1,0:T(1,128)}', space=vmem, size = 0x12000, scoped, tag = 'internal scratch']
  %s0 = inlined_call_operand.vmem [shape: f32[2,16,32], index: 0, kind: input, shape index: {}]
  %s1 = inlined_call_operand.vmem [shape: f32[1,32], index: 1, kind: input, shape index: {}]
  %s2 = inlined_call_operand.vmem [shape: f32[17,32], index: 2, kind: input, shape index: {}]
  %s3 = inlined_call_operand.vmem [shape: f32[2,1,32], index: 3, kind: input, shape index: {}]
  %s4 = inlined_call_operand.vmem [shape: f32[2,1,32], index: 4, kind: input, shape index: {}]
  %s5 = inlined_call_operand.vmem [shape: f32[2,4,32,8], index: 5, kind: input, shape index: {}]
  %s6 = inlined_call_operand.vmem [shape: f32[2,4,32,8], index: 6, kind: input, shape index: {}]
  %s7 = inlined_call_operand.vmem [shape: f32[2,4,32,8], index: 7, kind: input, shape index: {}]
  %s8 = inlined_call_operand.vmem [shape: f32[2,4,8,32], index: 8, kind: input, shape index: {}]
  %s9 = inlined_call_operand.vmem [shape: f32[2,1,32], index: 9, kind: input, shape index: {}]
  %s10 = inlined_call_operand.vmem [shape: f32[2,1,32], index: 10, kind: input, shape index: {}]
  %s11 = inlined_call_operand.vmem [shape: f32[2,1,32], index: 11, kind: input, shape index: {}]
  %s12 = inlined_call_operand.vmem [shape: f32[2,32,64], index: 12, kind: input, shape index: {}]
  %s13 = inlined_call_operand.vmem [shape: f32[2,1,64], index: 13, kind: input, shape index: {}]
  %s14 = inlined_call_operand.vmem [shape: f32[2,64,32], index: 14, kind: input, shape index: {}]
  %s15 = inlined_call_operand.vmem [shape: f32[2,1,32], index: 15, kind: input, shape index: {}]
  %s16 = inlined_call_operand.vmem [shape: f32[1,32], index: 16, kind: input, shape index: {}]
  %s17 = inlined_call_operand.vmem [shape: f32[1,32], index: 17, kind: input, shape index: {}]
  %s18 = inlined_call_operand.vmem [shape: f32[32,10], index: 18, kind: input, shape index: {}]
  %s19 = inlined_call_operand.vmem [shape: f32[1,10], index: 19, kind: input, shape index: {}]
  %s20 = inlined_call_operand.hbm [shape: f32[2,10], index: 20, kind: output, shape index: {}]
  %s21 = sld [smem:[#allocation0]]
  $region90: #{transformer_forward.1} parent=0
    _
  %s23 = ssub.s32 1, %s21
  %s24 = scalar_select 0, %s23, %s21
  $region1: #{transformer_forward.1} parent=0
    #allocation2 [shape = 'u8[1024]{0}', space=vmem, size = 0x400, scoped, tag = 'output window, operand 0, single buffered']
    #allocation3 [shape = 's32[1]{0}', space=sflag, size = 0x4, scoped, tag = 'scoped memory for transformer_forward.1']
    %25 = vsyncpa [#allocation3], 0
    // Predicated region
    $region2: #{transformer_forward.1} parent=1 // pred_check
      _
    $region3: #{transformer_forward.1} parent=1 // pred_check_branch
      %27 = sbr.rel (0) target = $region5
    $region4: #{transformer_forward.1} parent=1 // pred_region
      _
    $region5: #{transformer_forward.1} parent=1 // pred_fallthru
      _
    // Predicated region
    $region6: #{transformer_forward.1} parent=1 // pred_check
      _
    $region7: #{transformer_forward.1} parent=1 // pred_check_branch
      %29 = sbr.rel (0) target = $region9
    $region8: #{transformer_forward.1} parent=1 // pred_region
      _
    $region9: #{transformer_forward.1} parent=1 // pred_fallthru
      _
    // Predicated region
    $region10: #{transformer_forward.1} parent=1 // pred_check
      _
    $region11: #{transformer_forward.1} parent=1 // pred_check_branch
      %31 = sbr.rel (0) target = $region13
    $region12: #{transformer_forward.1} parent=1 // pred_region
      _
    $region13: #{transformer_forward.1} parent=1 // pred_fallthru
      _
    // Predicated region
    $region14: #{transformer_forward.1} parent=1 // pred_check
      _
    $region15: #{transformer_forward.1} parent=1 // pred_check_branch
      %33 = sbr.rel (0) target = $region17
    $region16: #{transformer_forward.1} parent=1 // pred_region
      _
    $region17: #{transformer_forward.1} parent=1 // pred_fallthru
      _
    // Predicated region
    $region18: #{transformer_forward.1} parent=1 // pred_check
      _
    $region19: #{transformer_forward.1} parent=1 // pred_check_branch
      %35 = sbr.rel (0) target = $region21
    $region20: #{transformer_forward.1} parent=1 // pred_region
      _
    $region21: #{transformer_forward.1} parent=1 // pred_fallthru
      _
    // Predicated region
    $region22: #{transformer_forward.1} parent=1 // pred_check
      _
    $region23: #{transformer_forward.1} parent=1 // pred_check_branch
      %37 = sbr.rel (0) target = $region25
    $region24: #{transformer_forward.1} parent=1 // pred_region
      _
    $region25: #{transformer_forward.1} parent=1 // pred_fallthru
      _
    // Predicated region
    $region26: #{transformer_forward.1} parent=1 // pred_check
      _
    $region27: #{transformer_forward.1} parent=1 // pred_check_branch
      %39 = sbr.rel (0) target = $region29
    $region28: #{transformer_forward.1} parent=1 // pred_region
      _
    $region29: #{transformer_forward.1} parent=1 // pred_fallthru
      _
    // Predicated region
    $region30: #{transformer_forward.1} parent=1 // pred_check
      _
    $region31: #{transformer_forward.1} parent=1 // pred_check_branch
      %41 = sbr.rel (0) target = $region33
    $region32: #{transformer_forward.1} parent=1 // pred_region
      _
    $region33: #{transformer_forward.1} parent=1 // pred_fallthru
      _
    // Predicated region
    $region34: #{transformer_forward.1} parent=1 // pred_check
      _
    $region35: #{transformer_forward.1} parent=1 // pred_check_branch
      %43 = sbr.rel (0) target = $region37
    $region36: #{transformer_forward.1} parent=1 // pred_region
      _
    $region37: #{transformer_forward.1} parent=1 // pred_fallthru
      _
    // Predicated region
    $region38: #{transformer_forward.1} parent=1 // pred_check
      _
    $region39: #{transformer_forward.1} parent=1 // pred_check_branch
      %45 = sbr.rel (0) target = $region41
    $region40: #{transformer_forward.1} parent=1 // pred_region
      _
    $region41: #{transformer_forward.1} parent=1 // pred_fallthru
      _
    // Predicated region
    $region42: #{transformer_forward.1} parent=1 // pred_check
      _
    $region43: #{transformer_forward.1} parent=1 // pred_check_branch
      %47 = sbr.rel (0) target = $region45
    $region44: #{transformer_forward.1} parent=1 // pred_region
      _
    $region45: #{transformer_forward.1} parent=1 // pred_fallthru
      _
    // Predicated region
    $region46: #{transformer_forward.1} parent=1 // pred_check
      _
    $region47: #{transformer_forward.1} parent=1 // pred_check_branch
      %49 = sbr.rel (0) target = $region49
    $region48: #{transformer_forward.1} parent=1 // pred_region
      _
    $region49: #{transformer_forward.1} parent=1 // pred_fallthru
      _
    // Predicated region
    $region50: #{transformer_forward.1} parent=1 // pred_check
      _
    $region51: #{transformer_forward.1} parent=1 // pred_check_branch
      %51 = sbr.rel (0) target = $region53
    $region52: #{transformer_forward.1} parent=1 // pred_region
      _
    $region53: #{transformer_forward.1} parent=1 // pred_fallthru
      _
    // Predicated region
    $region54: #{transformer_forward.1} parent=1 // pred_check
      _
    $region55: #{transformer_forward.1} parent=1 // pred_check_branch
      %53 = sbr.rel (0) target = $region57
    $region56: #{transformer_forward.1} parent=1 // pred_region
      _
    $region57: #{transformer_forward.1} parent=1 // pred_fallthru
      _
    // Predicated region
    $region58: #{transformer_forward.1} parent=1 // pred_check
      _
    $region59: #{transformer_forward.1} parent=1 // pred_check_branch
      %55 = sbr.rel (0) target = $region61
    $region60: #{transformer_forward.1} parent=1 // pred_region
      _
    $region61: #{transformer_forward.1} parent=1 // pred_fallthru
      _
    // Predicated region
    $region62: #{transformer_forward.1} parent=1 // pred_check
      _
    $region63: #{transformer_forward.1} parent=1 // pred_check_branch
      %57 = sbr.rel (0) target = $region65
    $region64: #{transformer_forward.1} parent=1 // pred_region
      _
    $region65: #{transformer_forward.1} parent=1 // pred_fallthru
      _
    // Predicated region
    $region66: #{transformer_forward.1} parent=1 // pred_check
      _
    $region67: #{transformer_forward.1} parent=1 // pred_check_branch
      %59 = sbr.rel (0) target = $region69
    $region68: #{transformer_forward.1} parent=1 // pred_region
      _
    $region69: #{transformer_forward.1} parent=1 // pred_fallthru
      _
    // Predicated region
    $region70: #{transformer_forward.1} parent=1 // pred_check
      _
    $region71: #{transformer_forward.1} parent=1 // pred_check_branch
      %61 = sbr.rel (0) target = $region73
    $region72: #{transformer_forward.1} parent=1 // pred_region
      _
    $region73: #{transformer_forward.1} parent=1 // pred_fallthru
      _
    // Predicated region
    $region74: #{transformer_forward.1} parent=1 // pred_check
      _
    $region75: #{transformer_forward.1} parent=1 // pred_check_branch
      %63 = sbr.rel (0) target = $region77
    $region76: #{transformer_forward.1} parent=1 // pred_region
      _
    $region77: #{transformer_forward.1} parent=1 // pred_fallthru
      _
    // Predicated region
    $region78: #{transformer_forward.1} parent=1 // pred_check
      _
    $region79: #{transformer_forward.1} parent=1 // pred_check_branch
      %65 = sbr.rel (0) target = $region81
    $region80: #{transformer_forward.1} parent=1 // pred_region
      _
    $region81: #{transformer_forward.1} parent=1 // pred_fallthru
      _
    %v66 = vld [vmem:[%s0] sm:$0xff]
    %v67 = vld [vmem:[%s0 + $0x8] sm:$0xff]
    %v68 = vld [vmem:[%s0 + $0x10] sm:$0xff]
    %v69 = vld [vmem:[%s0 + $0x18] sm:$0xff]
    %v70 = vld [vmem:[%s1] sm:$0x1]
    %v71 = vld [vmem:[%s2] sm:$0xff]
    %v72 = vld [vmem:[%s2 + $0x8] sm:$0xff]
    %v73 = vld [vmem:[%s2 + $0x10] sm:$0x1]
    %vm76 = vcmask 1040384
    %v77 = vrot.slane %v66, 7
    %v78 = vrot.slane %v67, 7
    %v79 = vsel %vm76, %v77, %v78
    %v83 = vsel %vm76, %v70, %v77
    %v84 = vadd.f32 %v83, %v71
    %v85 = vadd.f32 %v79, %v72
    %v86 = vadd.f32 %v78, %v73
    %v89 = vrot.slane %v68, 7
    %v90 = vrot.slane %v69, 7
    %v91 = vsel %vm76, %v89, %v90
    %v95 = vsel %vm76, %v70, %v89
    %v96 = vadd.f32 %v95, %v71
    %v97 = vadd.f32 %v91, %v72
    %v98 = vadd.f32 %v90, %v73
    %v102 = vrot.slane %v96, 7
    %v103 = vrot.slane %v97, 7
    %v104 = vsel %vm76, %v102, %v103
    %v105 = vrot.slane %v98, 7
    %v106 = vsel %vm76, %v103, %v105
    %v110 = vsel %vm76, %v86, %v102
    %v111 = vld [vmem:[%s3] sm:$0x1]
    %v112 = vld [vmem:[%s4] sm:$0x1]
    %vm113 = vcmask 261120
    %v114 = vsel %vm113, %v84, 0.0
    %115 = vadd.xlane.f32.xlu0 %v114
    %v116 = vpop.xlane.xlu0 %115
    %v117 = vsel %vm113, %v85, 0.0
    %118 = vadd.xlane.f32.xlu0 %v117
    %v119 = vpop.xlane.xlu0 %118
    %v120 = vsel %vm113, %v110, 0.0
    %121 = vadd.xlane.f32.xlu0 %v120
    %v122 = vpop.xlane.xlu0 %121
    %v123 = vsel %vm113, %v104, 0.0
    %124 = vadd.xlane.f32.xlu0 %v123
    %v125 = vpop.xlane.xlu0 %124
    %vm126 = vcmask 254976
    %v127 = vsel %vm126, %v106, 0.0
    %128 = vadd.xlane.f32.xlu0 %v127
    %v129 = vpop.xlane.xlu0 %128
    %v130 = vrcp.pop 32.0
    %v131 = vmul.f32 %v116, %v130
    %v132 = vmul.f32 %v119, %v130
    %v133 = vmul.f32 %v122, %v130
    %v134 = vmul.f32 %v125, %v130
    %v135 = vmul.f32 %v129, %v130
    %v136 = vsub.f32 %v84, %v131
    %v137 = vsub.f32 %v85, %v132
    %v138 = vsub.f32 %v110, %v133
    %v139 = vsub.f32 %v104, %v134
    %v140 = vsub.f32 %v106, %v135
    %v141 = vmul.f32 %v136, %v136
    %v142 = vmul.f32 %v137, %v137
    %v143 = vmul.f32 %v138, %v138
    %v144 = vmul.f32 %v139, %v139
    %v145 = vmul.f32 %v140, %v140
    %v146 = vsel %vm113, %v141, 0.0
    %147 = vadd.xlane.f32.xlu0 %v146
    %v148 = vpop.xlane.xlu0 %147
    %v149 = vsel %vm113, %v142, 0.0
    %150 = vadd.xlane.f32.xlu0 %v149
    %v151 = vpop.xlane.xlu0 %150
    %v152 = vsel %vm113, %v143, 0.0
    %153 = vadd.xlane.f32.xlu0 %v152
    %v154 = vpop.xlane.xlu0 %153
    %v155 = vsel %vm113, %v144, 0.0
    %156 = vadd.xlane.f32.xlu0 %v155
    %v157 = vpop.xlane.xlu0 %156
    %v158 = vsel %vm126, %v145, 0.0
    %159 = vadd.xlane.f32.xlu0 %v158
    %v160 = vpop.xlane.xlu0 %159
    %v161 = vmul.f32 %v148, %v130
    %v162 = vmul.f32 %v151, %v130
    %v163 = vmul.f32 %v154, %v130
    %v164 = vmul.f32 %v157, %v130
    %v165 = vmul.f32 %v160, %v130
    %v166 = vadd.f32 %v161, 1e-05
    %v167 = vadd.f32 %v162, 1e-05
    %v168 = vadd.f32 %v163, 1e-05
    %v169 = vadd.f32 %v164, 1e-05
    %v170 = vadd.f32 %v165, 1e-05
    %v171 = vrsqrt.pop %v166
    %v172 = vrsqrt.pop %v167
    %v173 = vrsqrt.pop %v168
    %v174 = vrsqrt.pop %v169
    %v175 = vrsqrt.pop %v170
    %v176 = vmul.f32 %v136, %v171
    %v177 = vmul.f32 %v137, %v172
    %v178 = vmul.f32 %v138, %v173
    %v179 = vmul.f32 %v139, %v174
    %v180 = vmul.f32 %v140, %v175
    %v182 = vlaneseq
    %v183 = vshrl.u32 %v182, 7
    %v184 = vsub.s32 0, %v183
    %v185 = vrot.slane %v111, %v184
    %v187 = vmul.f32 %v176, %v185
    %v188 = vmul.f32 %v177, %v185
    %v189 = vmul.f32 %v178, %v185
    %v190 = vmul.f32 %v179, %v185
    %v191 = vmul.f32 %v180, %v185
    %v193 = vlaneseq
    %v194 = vshrl.u32 %v193, 7
    %v195 = vsub.s32 0, %v194
    %v196 = vrot.slane %v112, %v195
    %v198 = vadd.f32 %v187, %v196
    %v199 = vadd.f32 %v188, %v196
    %v200 = vadd.f32 %v189, %v196
    %v201 = vadd.f32 %v190, %v196
    %v202 = vadd.f32 %v191, %v196
    %v203 = vld [vmem:[%s5] sm:$0xff]
    %v204 = vld [vmem:[%s5 + $0x8] sm:$0xff]
    %v205 = vld [vmem:[%s5 + $0x10] sm:$0xff]
    %v206 = vld [vmem:[%s5 + $0x18] sm:$0xff]
    %v208 = vsel %vm113, %v198, 0
    %v211 = vsel %vm113, %v199, 0
    %v214 = vsel %vm113, %v200, 0
    %v217 = vsel %vm113, %v201, 0
    %v220 = vsel %vm113, %v202, 0
    %222 = vmatprep.subr.mxu0 0.0
    %223 = vmatpush1.msra.mxu0 0.0
    %224 = vmatprep.subr.mxu0 0.0
    %225 = vmatpush1.msra.mxu0 0.0
    %226 = vmatprep.subr.mxu0 0.0
    %227 = vmatpush1.msra.mxu0 0.0
    %228 = vmatprep.subr.mxu0 0.0
    %229 = vmatpush1.msra.mxu0 0.0
    %230 = vmatprep.subr.mxu0 0.0
    %231 = vmatpush1.msra.mxu0 0.0
    %232 = vmatprep.subr.mxu0 0.0
    %233 = vmatpush1.msra.mxu0 0.0
    %234 = vmatprep.subr.mxu0 0.0
    %235 = vmatpush1.msra.mxu0 0.0
    %236 = vmatprep.subr.mxu0 0.0
    %237 = vmatpush1.msra.mxu0 0.0
    %238 = vmatprep.subr.mxu0 0.0
    %239 = vmatpush1.msra.mxu0 0.0
    %240 = vmatprep.subr.mxu0 0.0
    %241 = vmatpush1.msra.mxu0 0.0
    %242 = vmatprep.subr.mxu0 0.0
    %243 = vmatpush1.msra.mxu0 0.0
    %244 = vmatprep.subr.mxu0 0.0
    %245 = vmatpush1.msra.mxu0 0.0
    %246 = vmatprep.subr.mxu0 0.0
    %247 = vmatpush1.msra.mxu0 %v206
    %248 = vmatprep.subr.mxu0 0.0
    %249 = vmatpush1.msra.mxu0 %v205
    %250 = vmatprep.subr.mxu0 0.0
    %251 = vmatpush1.msra.mxu0 %v204
    %252 = vmatprep.subr.mxu0 0.0
    %253 = vmatpush1.msra.mxu0 %v203
    %254 = vmatprep.subr.mxu0 0.0
    %255 = vmatpush2.msra.mxu0 0.0
    %256 = vmatprep.subr.mxu0 0.0
    %257 = vmatpush2.msra.mxu0 0.0
    %258 = vmatprep.subr.mxu0 0.0
    %259 = vmatpush2.msra.mxu0 0.0
    %260 = vmatprep.subr.mxu0 0.0
    %261 = vmatpush2.msra.mxu0 0.0
    %262 = vmatprep.subr.mxu0 0.0
    %263 = vmatpush2.msra.mxu0 0.0
    %264 = vmatprep.subr.mxu0 0.0
    %265 = vmatpush2.msra.mxu0 0.0
    %266 = vmatprep.subr.mxu0 0.0
    %267 = vmatpush2.msra.mxu0 0.0
    %268 = vmatprep.subr.mxu0 0.0
    %269 = vmatpush2.msra.mxu0 0.0
    %270 = vmatprep.subr.mxu0 0.0
    %271 = vmatpush2.msra.mxu0 0.0
    %272 = vmatprep.subr.mxu0 0.0
    %273 = vmatpush2.msra.mxu0 0.0
    %274 = vmatprep.subr.mxu0 0.0
    %275 = vmatpush2.msra.mxu0 0.0
    %276 = vmatprep.subr.mxu0 0.0
    %277 = vmatpush2.msra.mxu0 0.0
    %278 = vmatprep.subr.mxu0 0.0
    %279 = vmatpush2.msra.mxu0 0.0
    %280 = vmatprep.subr.mxu0 0.0
    %281 = vmatpush2.msra.mxu0 0.0
    %282 = vmatprep.subr.mxu0 0.0
    %283 = vmatpush2.msra.mxu0 0.0
    %284 = vmatprep.subr.mxu0 0.0
    %285 = vmatpush2.msra.mxu0 0.0
    %286 = vmatprep.mubr.f32.mxu0 0.0
    %287 = vmatmul.mubr.f32.gmra.mxu0 %v208
    %v288 = vpop.f32.mrf.mxu0
    %v289 = vadd.f32 0.0, %v288
    %v290 = vpop.f32.mrf.mxu0
    %291 = vmatprep.mubr.f32.mxu0 0.0
    %292 = vmatmul.mubr.f32.gmra.mxu0 %v211
    %v293 = vpop.f32.mrf.mxu0
    %v294 = vadd.f32 0.0, %v293
    %v295 = vpop.f32.mrf.mxu0
    %296 = vmatprep.mubr.f32.mxu0 0.0
    %297 = vmatmul.mubr.f32.gmra.mxu0 %v214
    %v298 = vpop.f32.mrf.mxu0
    %v299 = vadd.f32 0.0, %v298
    %v300 = vpop.f32.mrf.mxu0
    %301 = vmatprep.mubr.f32.mxu0 0.0
    %302 = vmatmul.mubr.f32.gmra.mxu0 %v217
    %v303 = vpop.f32.mrf.mxu0
    %v304 = vadd.f32 0.0, %v303
    %v305 = vpop.f32.mrf.mxu0
    %306 = vmatprep.mubr.f32.mxu0 0.0
    %307 = vmatmul.mubr.f32.gmra.mxu0 %v220
    %v308 = vpop.f32.mrf.mxu0
    %v309 = vadd.f32 0.0, %v308
    %v310 = vpop.f32.mrf.mxu0
    %311 = vdwg.mxu0
    %v312 = vld [vmem:[%s6] sm:$0xff]
    %v313 = vld [vmem:[%s6 + $0x8] sm:$0xff]
    %v314 = vld [vmem:[%s6 + $0x10] sm:$0xff]
    %v315 = vld [vmem:[%s6 + $0x18] sm:$0xff]
    %316 = vmatprep.subr.mxu0 0.0
    %317 = vmatpush1.msra.mxu0 0.0
    %318 = vmatprep.subr.mxu0 0.0
    %319 = vmatpush1.msra.mxu0 0.0
    %320 = vmatprep.subr.mxu0 0.0
    %321 = vmatpush1.msra.mxu0 0.0
    %322 = vmatprep.subr.mxu0 0.0
    %323 = vmatpush1.msra.mxu0 0.0
    %324 = vmatprep.subr.mxu0 0.0
    %325 = vmatpush1.msra.mxu0 0.0
    %326 = vmatprep.subr.mxu0 0.0
    %327 = vmatpush1.msra.mxu0 0.0
    %328 = vmatprep.subr.mxu0 0.0
    %329 = vmatpush1.msra.mxu0 0.0
    %330 = vmatprep.subr.mxu0 0.0
    %331 = vmatpush1.msra.mxu0 0.0
    %332 = vmatprep.subr.mxu0 0.0
    %333 = vmatpush1.msra.mxu0 0.0
    %334 = vmatprep.subr.mxu0 0.0
    %335 = vmatpush1.msra.mxu0 0.0
    %336 = vmatprep.subr.mxu0 0.0
    %337 = vmatpush1.msra.mxu0 0.0
    %338 = vmatprep.subr.mxu0 0.0
    %339 = vmatpush1.msra.mxu0 0.0
    %340 = vmatprep.subr.mxu0 0.0
    %341 = vmatpush1.msra.mxu0 %v315
    %342 = vmatprep.subr.mxu0 0.0
    %343 = vmatpush1.msra.mxu0 %v314
    %344 = vmatprep.subr.mxu0 0.0
    %345 = vmatpush1.msra.mxu0 %v313
    %346 = vmatprep.subr.mxu0 0.0
    %347 = vmatpush1.msra.mxu0 %v312
    %348 = vmatprep.subr.mxu0 0.0
    %349 = vmatpush2.msra.mxu0 0.0
    %350 = vmatprep.subr.mxu0 0.0
    %351 = vmatpush2.msra.mxu0 0.0
    %352 = vmatprep.subr.mxu0 0.0
    %353 = vmatpush2.msra.mxu0 0.0
    %354 = vmatprep.subr.mxu0 0.0
    %355 = vmatpush2.msra.mxu0 0.0
    %356 = vmatprep.subr.mxu0 0.0
    %357 = vmatpush2.msra.mxu0 0.0
    %358 = vmatprep.subr.mxu0 0.0
    %359 = vmatpush2.msra.mxu0 0.0
    %360 = vmatprep.subr.mxu0 0.0
    %361 = vmatpush2.msra.mxu0 0.0
    %362 = vmatprep.subr.mxu0 0.0
    %363 = vmatpush2.msra.mxu0 0.0
    %364 = vmatprep.subr.mxu0 0.0
    %365 = vmatpush2.msra.mxu0 0.0
    %366 = vmatprep.subr.mxu0 0.0
    %367 = vmatpush2.msra.mxu0 0.0
    %368 = vmatprep.subr.mxu0 0.0
    %369 = vmatpush2.msra.mxu0 0.0
    %370 = vmatprep.subr.mxu0 0.0
    %371 = vmatpush2.msra.mxu0 0.0
    %372 = vmatprep.subr.mxu0 0.0
    %373 = vmatpush2.msra.mxu0 0.0
    %374 = vmatprep.subr.mxu0 0.0
    %375 = vmatpush2.msra.mxu0 0.0
    %376 = vmatprep.subr.mxu0 0.0
    %377 = vmatpush2.msra.mxu0 0.0
    %378 = vmatprep.subr.mxu0 0.0
    %379 = vmatpush2.msra.mxu0 0.0
    %380 = vmatprep.mubr.f32.mxu0 0.0
    %381 = vmatmul.mubr.f32.gmra.mxu0 %v208
    %v382 = vpop.f32.mrf.mxu0
    %v383 = vadd.f32 0.0, %v382
    %v384 = vpop.f32.mrf.mxu0
    %385 = vmatprep.mubr.f32.mxu0 0.0
    %386 = vmatmul.mubr.f32.gmra.mxu0 %v211
    %v387 = vpop.f32.mrf.mxu0
    %v388 = vadd.f32 0.0, %v387
    %v389 = vpop.f32.mrf.mxu0
    %390 = vmatprep.mubr.f32.mxu0 0.0
    %391 = vmatmul.mubr.f32.gmra.mxu0 %v214
    %v392 = vpop.f32.mrf.mxu0
    %v393 = vadd.f32 0.0, %v392
    %v394 = vpop.f32.mrf.mxu0
    %395 = vmatprep.mubr.f32.mxu0 0.0
    %396 = vmatmul.mubr.f32.gmra.mxu0 %v217
    %v397 = vpop.f32.mrf.mxu0
    %v398 = vadd.f32 0.0, %v397
    %v399 = vpop.f32.mrf.mxu0
    %400 = vmatprep.mubr.f32.mxu0 0.0
    %401 = vmatmul.mubr.f32.gmra.mxu0 %v220
    %v402 = vpop.f32.mrf.mxu0
    %v403 = vadd.f32 0.0, %v402
    %v404 = vpop.f32.mrf.mxu0
    %405 = vdwg.mxu0
    %v406 = vld [vmem:[%s7] sm:$0xff]
    %v407 = vld [vmem:[%s7 + $0x8] sm:$0xff]
    %v408 = vld [vmem:[%s7 + $0x10] sm:$0xff]
    %v409 = vld [vmem:[%s7 + $0x18] sm:$0xff]
    %410 = vmatprep.subr.mxu0 0.0
    %411 = vmatpush1.msra.mxu0 0.0
    %412 = vmatprep.subr.mxu0 0.0
    %413 = vmatpush1.msra.mxu0 0.0
    %414 = vmatprep.subr.mxu0 0.0
    %415 = vmatpush1.msra.mxu0 0.0
    %416 = vmatprep.subr.mxu0 0.0
    %417 = vmatpush1.msra.mxu0 0.0
    %418 = vmatprep.subr.mxu0 0.0
    %419 = vmatpush1.msra.mxu0 0.0
    %420 = vmatprep.subr.mxu0 0.0
    %421 = vmatpush1.msra.mxu0 0.0
    %422 = vmatprep.subr.mxu0 0.0
    %423 = vmatpush1.msra.mxu0 0.0
    %424 = vmatprep.subr.mxu0 0.0
    %425 = vmatpush1.msra.mxu0 0.0
    %426 = vmatprep.subr.mxu0 0.0
    %427 = vmatpush1.msra.mxu0 0.0
    %428 = vmatprep.subr.mxu0 0.0
    %429 = vmatpush1.msra.mxu0 0.0
    %430 = vmatprep.subr.mxu0 0.0
    %431 = vmatpush1.msra.mxu0 0.0
    %432 = vmatprep.subr.mxu0 0.0
    %433 = vmatpush1.msra.mxu0 0.0
    %434 = vmatprep.subr.mxu0 0.0
    %435 = vmatpush1.msra.mxu0 %v409
    %436 = vmatprep.subr.mxu0 0.0
    %437 = vmatpush1.msra.mxu0 %v408
    %438 = vmatprep.subr.mxu0 0.0
    %439 = vmatpush1.msra.mxu0 %v407
    %440 = vmatprep.subr.mxu0 0.0
    %441 = vmatpush1.msra.mxu0 %v406
    %442 = vmatprep.subr.mxu0 0.0
    %443 = vmatpush2.msra.mxu0 0.0
    %444 = vmatprep.subr.mxu0 0.0
    %445 = vmatpush2.msra.mxu0 0.0
    %446 = vmatprep.subr.mxu0 0.0
    %447 = vmatpush2.msra.mxu0 0.0
    %448 = vmatprep.subr.mxu0 0.0
    %449 = vmatpush2.msra.mxu0 0.0
    %450 = vmatprep.subr.mxu0 0.0
    %451 = vmatpush2.msra.mxu0 0.0
    %452 = vmatprep.subr.mxu0 0.0
    %453 = vmatpush2.msra.mxu0 0.0
    %454 = vmatprep.subr.mxu0 0.0
    %455 = vmatpush2.msra.mxu0 0.0
    %456 = vmatprep.subr.mxu0 0.0
    %457 = vmatpush2.msra.mxu0 0.0
    %458 = vmatprep.subr.mxu0 0.0
    %459 = vmatpush2.msra.mxu0 0.0
    %460 = vmatprep.subr.mxu0 0.0
    %461 = vmatpush2.msra.mxu0 0.0
    %462 = vmatprep.subr.mxu0 0.0
    %463 = vmatpush2.msra.mxu0 0.0
    %464 = vmatprep.subr.mxu0 0.0
    %465 = vmatpush2.msra.mxu0 0.0
    %466 = vmatprep.subr.mxu0 0.0
    %467 = vmatpush2.msra.mxu0 0.0
    %468 = vmatprep.subr.mxu0 0.0
    %469 = vmatpush2.msra.mxu0 0.0
    %470 = vmatprep.subr.mxu0 0.0
    %471 = vmatpush2.msra.mxu0 0.0
    %472 = vmatprep.subr.mxu0 0.0
    %473 = vmatpush2.msra.mxu0 0.0
    %474 = vmatprep.mubr.f32.mxu0 0.0
    %475 = vmatmul.mubr.f32.gmra.mxu0 %v208
    %v476 = vpop.f32.mrf.mxu0
    %v477 = vadd.f32 0.0, %v476
    %v478 = vpop.f32.mrf.mxu0
    %479 = vmatprep.mubr.f32.mxu0 0.0
    %480 = vmatmul.mubr.f32.gmra.mxu0 %v211
    %v481 = vpop.f32.mrf.mxu0
    %v482 = vadd.f32 0.0, %v481
    %v483 = vpop.f32.mrf.mxu0
    %484 = vmatprep.mubr.f32.mxu0 0.0
    %485 = vmatmul.mubr.f32.gmra.mxu0 %v214
    %v486 = vpop.f32.mrf.mxu0
    %v487 = vadd.f32 0.0, %v486
    %v488 = vpop.f32.mrf.mxu0
    %489 = vmatprep.mubr.f32.mxu0 0.0
    %490 = vmatmul.mubr.f32.gmra.mxu0 %v217
    %v491 = vpop.f32.mrf.mxu0
    %v492 = vadd.f32 0.0, %v491
    %v493 = vpop.f32.mrf.mxu0
    %494 = vmatprep.mubr.f32.mxu0 0.0
    %495 = vmatmul.mubr.f32.gmra.mxu0 %v220
    %v496 = vpop.f32.mrf.mxu0
    %v497 = vadd.f32 0.0, %v496
    %v498 = vpop.f32.mrf.mxu0
    %499 = vdwg.mxu0
    %vm500 = vcmask 64512
    %v502 = vsel %vm500, %v289, 0
    %v505 = vsel %vm500, %v294, 0
    %v508 = vsel %vm500, %v299, 0
    %v511 = vsel %vm500, %v383, 0
    %v514 = vsel %vm500, %v388, 0
    %v517 = vsel %vm500, %v393, 0
    %519 = vmatprep.subr.mxu0 0.0
    %520 = vmatpush1.xpose.msra.mxu0 0.0
    %521 = vmatprep.subr.mxu0 0.0
    %522 = vmatpush1.xpose.msra.mxu0 0.0
    %523 = vmatprep.subr.mxu0 0.0
    %524 = vmatpush1.xpose.msra.mxu0 0.0
    %525 = vmatprep.subr.mxu0 0.0
    %526 = vmatpush1.xpose.msra.mxu0 0.0
    %527 = vmatprep.subr.mxu0 0.0
    %528 = vmatpush1.xpose.msra.mxu0 0.0
    %529 = vmatprep.subr.mxu0 0.0
    %530 = vmatpush1.xpose.msra.mxu0 0.0
    %531 = vmatprep.subr.mxu0 0.0
    %532 = vmatpush1.xpose.msra.mxu0 0.0
    %533 = vmatprep.subr.mxu0 0.0
    %534 = vmatpush1.xpose.msra.mxu0 0.0
    %535 = vmatprep.subr.mxu0 0.0
    %536 = vmatpush1.xpose.msra.mxu0 0.0
    %537 = vmatprep.subr.mxu0 0.0
    %538 = vmatpush1.xpose.msra.mxu0 0.0
    %539 = vmatprep.subr.mxu0 0.0
    %540 = vmatpush1.xpose.msra.mxu0 0.0
    %541 = vmatprep.subr.mxu0 0.0
    %542 = vmatpush1.xpose.msra.mxu0 0.0
    %543 = vmatprep.subr.mxu0 0.0
    %544 = vmatpush1.xpose.msra.mxu0 0.0
    %545 = vmatprep.subr.mxu0 0.0
    %546 = vmatpush1.xpose.msra.mxu0 %v517
    %547 = vmatprep.subr.mxu0 0.0
    %548 = vmatpush1.xpose.msra.mxu0 %v514
    %549 = vmatprep.subr.mxu0 0.0
    %550 = vmatpush1.xpose.msra.mxu0 %v511
    %551 = vmatprep.subr.mxu0 0.0
    %552 = vmatpush2.xpose.msra.mxu0 0.0
    %553 = vmatprep.subr.mxu0 0.0
    %554 = vmatpush2.xpose.msra.mxu0 0.0
    %555 = vmatprep.subr.mxu0 0.0
    %556 = vmatpush2.xpose.msra.mxu0 0.0
    %557 = vmatprep.subr.mxu0 0.0
    %558 = vmatpush2.xpose.msra.mxu0 0.0
    %559 = vmatprep.subr.mxu0 0.0
    %560 = vmatpush2.xpose.msra.mxu0 0.0
    %561 = vmatprep.subr.mxu0 0.0
    %562 = vmatpush2.xpose.msra.mxu0 0.0
    %563 = vmatprep.subr.mxu0 0.0
    %564 = vmatpush2.xpose.msra.mxu0 0.0
    %565 = vmatprep.subr.mxu0 0.0
    %566 = vmatpush2.xpose.msra.mxu0 0.0
    %567 = vmatprep.subr.mxu0 0.0
    %568 = vmatpush2.xpose.msra.mxu0 0.0
    %569 = vmatprep.subr.mxu0 0.0
    %570 = vmatpush2.xpose.msra.mxu0 0.0
    %571 = vmatprep.subr.mxu0 0.0
    %572 = vmatpush2.xpose.msra.mxu0 0.0
    %573 = vmatprep.subr.mxu0 0.0
    %574 = vmatpush2.xpose.msra.mxu0 0.0
    %575 = vmatprep.subr.mxu0 0.0
    %576 = vmatpush2.xpose.msra.mxu0 0.0
    %577 = vmatprep.subr.mxu0 0.0
    %578 = vmatpush2.xpose.msra.mxu0 0.0
    %579 = vmatprep.subr.mxu0 0.0
    %580 = vmatpush2.xpose.msra.mxu0 0.0
    %581 = vmatprep.subr.mxu0 0.0
    %582 = vmatpush2.xpose.msra.mxu0 0.0
    %583 = vmatprep.mubr.f32.mxu0 0.0
    %584 = vmatmul.mubr.f32.gmra.mxu0 %v502
    %v585 = vpop.f32.mrf.mxu0
    %v586 = vadd.f32 0.0, %v585
    %v587 = vpop.f32.mrf.mxu0
    %588 = vmatprep.mubr.f32.mxu0 0.0
    %589 = vmatmul.mubr.f32.gmra.mxu0 %v505
    %v590 = vpop.f32.mrf.mxu0
    %v591 = vadd.f32 0.0, %v590
    %v592 = vpop.f32.mrf.mxu0
    %593 = vmatprep.mubr.f32.mxu0 0.0
    %594 = vmatmul.mubr.f32.gmra.mxu0 %v508
    %v595 = vpop.f32.mrf.mxu0
    %v596 = vadd.f32 0.0, %v595
    %v597 = vpop.f32.mrf.mxu0
    %598 = vdwg.mxu0
    %vm601 = vcmask 1046528
    %v602 = vrot.slane %v299, 1
    %v603 = vrot.slane %v304, 1
    %v604 = vsel %vm601, %v602, %v603
    %v605 = vrot.slane %v309, 1
    %v606 = vsel %vm601, %v603, %v605
    %v609 = vrot.slane %v393, 1
    %v610 = vrot.slane %v398, 1
    %v611 = vsel %vm601, %v609, %v610
    %v612 = vrot.slane %v403, 1
    %v613 = vsel %vm601, %v610, %v612
    %v614 = vsel %vm500, %v604, 0
    %v616 = vsel %vm500, %v606, 0
    %v618 = vsel %vm500, %v605, 0
    %v620 = vsel %vm500, %v611, 0
    %v622 = vsel %vm500, %v613, 0
    %v624 = vsel %vm500, %v612, 0
    %626 = vmatprep.subr.mxu0 0.0
    %627 = vmatpush1.xpose.msra.mxu0 0.0
    %628 = vmatprep.subr.mxu0 0.0
    %629 = vmatpush1.xpose.msra.mxu0 0.0
    %630 = vmatprep.subr.mxu0 0.0
    %631 = vmatpush1.xpose.msra.mxu0 0.0
    %632 = vmatprep.subr.mxu0 0.0
    %633 = vmatpush1.xpose.msra.mxu0 0.0
    %634 = vmatprep.subr.mxu0 0.0
    %635 = vmatpush1.xpose.msra.mxu0 0.0
    %636 = vmatprep.subr.mxu0 0.0
    %637 = vmatpush1.xpose.msra.mxu0 0.0
    %638 = vmatprep.subr.mxu0 0.0
    %639 = vmatpush1.xpose.msra.mxu0 0.0
    %640 = vmatprep.subr.mxu0 0.0
    %641 = vmatpush1.xpose.msra.mxu0 0.0
    %642 = vmatprep.subr.mxu0 0.0
    %643 = vmatpush1.xpose.msra.mxu0 0.0
    %644 = vmatprep.subr.mxu0 0.0
    %645 = vmatpush1.xpose.msra.mxu0 0.0
    %646 = vmatprep.subr.mxu0 0.0
    %647 = vmatpush1.xpose.msra.mxu0 0.0
    %648 = vmatprep.subr.mxu0 0.0
    %649 = vmatpush1.xpose.msra.mxu0 0.0
    %650 = vmatprep.subr.mxu0 0.0
    %651 = vmatpush1.xpose.msra.mxu0 0.0
    %652 = vmatprep.subr.mxu0 0.0
    %653 = vmatpush1.xpose.msra.mxu0 %v624
    %654 = vmatprep.subr.mxu0 0.0
    %655 = vmatpush1.xpose.msra.mxu0 %v622
    %656 = vmatprep.subr.mxu0 0.0
    %657 = vmatpush1.xpose.msra.mxu0 %v620
    %658 = vmatprep.subr.mxu0 0.0
    %659 = vmatpush2.xpose.msra.mxu0 0.0
    %660 = vmatprep.subr.mxu0 0.0
    %661 = vmatpush2.xpose.msra.mxu0 0.0
    %662 = vmatprep.subr.mxu0 0.0
    %663 = vmatpush2.xpose.msra.mxu0 0.0
    %664 = vmatprep.subr.mxu0 0.0
    %665 = vmatpush2.xpose.msra.mxu0 0.0
    %666 = vmatprep.subr.mxu0 0.0
    %667 = vmatpush2.xpose.msra.mxu0 0.0
    %668 = vmatprep.subr.mxu0 0.0
    %669 = vmatpush2.xpose.msra.mxu0 0.0
    %670 = vmatprep.subr.mxu0 0.0
    %671 = vmatpush2.xpose.msra.mxu0 0.0
    %672 = vmatprep.subr.mxu0 0.0
    %673 = vmatpush2.xpose.msra.mxu0 0.0
    %674 = vmatprep.subr.mxu0 0.0
    %675 = vmatpush2.xpose.msra.mxu0 0.0
    %676 = vmatprep.subr.mxu0 0.0
    %677 = vmatpush2.xpose.msra.mxu0 0.0
    %678 = vmatprep.subr.mxu0 0.0
    %679 = vmatpush2.xpose.msra.mxu0 0.0
    %680 = vmatprep.subr.mxu0 0.0
    %681 = vmatpush2.xpose.msra.mxu0 0.0
    %682 = vmatprep.subr.mxu0 0.0
    %683 = vmatpush2.xpose.msra.mxu0 0.0
    %684 = vmatprep.subr.mxu0 0.0
    %685 = vmatpush2.xpose.msra.mxu0 0.0
    %686 = vmatprep.subr.mxu0 0.0
    %687 = vmatpush2.xpose.msra.mxu0 0.0
    %688 = vmatprep.subr.mxu0 0.0
    %689 = vmatpush2.xpose.msra.mxu0 0.0
    %690 = vmatprep.mubr.f32.mxu0 0.0
    %691 = vmatmul.mubr.f32.gmra.mxu0 %v614
    %v692 = vpop.f32.mrf.mxu0
    %v693 = vadd.f32 0.0, %v692
    %v694 = vpop.f32.mrf.mxu0
    %695 = vmatprep.mubr.f32.mxu0 0.0
    %696 = vmatmul.mubr.f32.gmra.mxu0 %v616
    %v697 = vpop.f32.mrf.mxu0
    %v698 = vadd.f32 0.0, %v697
    %v699 = vpop.f32.mrf.mxu0
    %700 = vmatprep.mubr.f32.mxu0 0.0
    %701 = vmatmul.mubr.f32.gmra.mxu0 %v618
    %v702 = vpop.f32.mrf.mxu0
    %v703 = vadd.f32 0.0, %v702
    %v704 = vpop.f32.mrf.mxu0
    %705 = vdwg.mxu0
    %s706 = scalar_lea.vmem %s5, 32
    %v707 = vld [vmem:[%s706] sm:$0xff]
    %v708 = vld [vmem:[%s706 + $0x8] sm:$0xff]
    %v709 = vld [vmem:[%s706 + $0x10] sm:$0xff]
    %v710 = vld [vmem:[%s706 + $0x18] sm:$0xff]
    %711 = vmatprep.subr.mxu0 0.0
    %712 = vmatpush1.msra.mxu0 0.0
    %713 = vmatprep.subr.mxu0 0.0
    %714 = vmatpush1.msra.mxu0 0.0
    %715 = vmatprep.subr.mxu0 0.0
    %716 = vmatpush1.msra.mxu0 0.0
    %717 = vmatprep.subr.mxu0 0.0
    %718 = vmatpush1.msra.mxu0 0.0
    %719 = vmatprep.subr.mxu0 0.0
    %720 = vmatpush1.msra.mxu0 0.0
    %721 = vmatprep.subr.mxu0 0.0
    %722 = vmatpush1.msra.mxu0 0.0
    %723 = vmatprep.subr.mxu0 0.0
    %724 = vmatpush1.msra.mxu0 0.0
    %725 = vmatprep.subr.mxu0 0.0
    %726 = vmatpush1.msra.mxu0 0.0
    %727 = vmatprep.subr.mxu0 0.0
    %728 = vmatpush1.msra.mxu0 0.0
    %729 = vmatprep.subr.mxu0 0.0
    %730 = vmatpush1.msra.mxu0 0.0
    %731 = vmatprep.subr.mxu0 0.0
    %732 = vmatpush1.msra.mxu0 0.0
    %733 = vmatprep.subr.mxu0 0.0
    %734 = vmatpush1.msra.mxu0 0.0
    %735 = vmatprep.subr.mxu0 0.0
    %736 = vmatpush1.msra.mxu0 %v710
    %737 = vmatprep.subr.mxu0 0.0
    %738 = vmatpush1.msra.mxu0 %v709
    %739 = vmatprep.subr.mxu0 0.0
    %740 = vmatpush1.msra.mxu0 %v708
    %741 = vmatprep.subr.mxu0 0.0
    %742 = vmatpush1.msra.mxu0 %v707
    %743 = vmatprep.subr.mxu0 0.0
    %744 = vmatpush2.msra.mxu0 0.0
    %745 = vmatprep.subr.mxu0 0.0
    %746 = vmatpush2.msra.mxu0 0.0
    %747 = vmatprep.subr.mxu0 0.0
    %748 = vmatpush2.msra.mxu0 0.0
    %749 = vmatprep.subr.mxu0 0.0
    %750 = vmatpush2.msra.mxu0 0.0
    %751 = vmatprep.subr.mxu0 0.0
    %752 = vmatpush2.msra.mxu0 0.0
    %753 = vmatprep.subr.mxu0 0.0
    %754 = vmatpush2.msra.mxu0 0.0
    %755 = vmatprep.subr.mxu0 0.0
    %756 = vmatpush2.msra.mxu0 0.0
    %757 = vmatprep.subr.mxu0 0.0
    %758 = vmatpush2.msra.mxu0 0.0
    %759 = vmatprep.subr.mxu0 0.0
    %760 = vmatpush2.msra.mxu0 0.0
    %761 = vmatprep.subr.mxu0 0.0
    %762 = vmatpush2.msra.mxu0 0.0
    %763 = vmatprep.subr.mxu0 0.0
    %764 = vmatpush2.msra.mxu0 0.0
    %765 = vmatprep.subr.mxu0 0.0
    %766 = vmatpush2.msra.mxu0 0.0
    %767 = vmatprep.subr.mxu0 0.0
    %768 = vmatpush2.msra.mxu0 0.0
    %769 = vmatprep.subr.mxu0 0.0
    %770 = vmatpush2.msra.mxu0 0.0
    %771 = vmatprep.subr.mxu0 0.0
    %772 = vmatpush2.msra.mxu0 0.0
    %773 = vmatprep.subr.mxu0 0.0
    %774 = vmatpush2.msra.mxu0 0.0
    %775 = vmatprep.mubr.f32.mxu0 0.0
    %776 = vmatmul.mubr.f32.gmra.mxu0 %v208
    %v777 = vpop.f32.mrf.mxu0
    %v778 = vadd.f32 0.0, %v777
    %v779 = vpop.f32.mrf.mxu0
    %780 = vmatprep.mubr.f32.mxu0 0.0
    %781 = vmatmul.mubr.f32.gmra.mxu0 %v211
    %v782 = vpop.f32.mrf.mxu0
    %v783 = vadd.f32 0.0, %v782
    %v784 = vpop.f32.mrf.mxu0
    %785 = vmatprep.mubr.f32.mxu0 0.0
    %786 = vmatmul.mubr.f32.gmra.mxu0 %v214
    %v787 = vpop.f32.mrf.mxu0
    %v788 = vadd.f32 0.0, %v787
    %v789 = vpop.f32.mrf.mxu0
    %790 = vmatprep.mubr.f32.mxu0 0.0
    %791 = vmatmul.mubr.f32.gmra.mxu0 %v217
    %v792 = vpop.f32.mrf.mxu0
    %v793 = vadd.f32 0.0, %v792
    %v794 = vpop.f32.mrf.mxu0
    %795 = vmatprep.mubr.f32.mxu0 0.0
    %796 = vmatmul.mubr.f32.gmra.mxu0 %v220
    %v797 = vpop.f32.mrf.mxu0
    %v798 = vadd.f32 0.0, %v797
    %v799 = vpop.f32.mrf.mxu0
    %800 = vdwg.mxu0
    %s801 = scalar_lea.vmem %s6, 32
    %v802 = vld [vmem:[%s801] sm:$0xff]
    %v803 = vld [vmem:[%s801 + $0x8] sm:$0xff]
    %v804 = vld [vmem:[%s801 + $0x10] sm:$0xff]
    %v805 = vld [vmem:[%s801 + $0x18] sm:$0xff]
    %806 = vmatprep.subr.mxu0 0.0
    %807 = vmatpush1.msra.mxu0 0.0
    %808 = vmatprep.subr.mxu0 0.0
    %809 = vmatpush1.msra.mxu0 0.0
    %810 = vmatprep.subr.mxu0 0.0
    %811 = vmatpush1.msra.mxu0 0.0
    %812 = vmatprep.subr.mxu0 0.0
    %813 = vmatpush1.msra.mxu0 0.0
    %814 = vmatprep.subr.mxu0 0.0
    %815 = vmatpush1.msra.mxu0 0.0
    %816 = vmatprep.subr.mxu0 0.0
    %817 = vmatpush1.msra.mxu0 0.0
    %818 = vmatprep.subr.mxu0 0.0
    %819 = vmatpush1.msra.mxu0 0.0
    %820 = vmatprep.subr.mxu0 0.0
    %821 = vmatpush1.msra.mxu0 0.0
    %822 = vmatprep.subr.mxu0 0.0
    %823 = vmatpush1.msra.mxu0 0.0
    %824 = vmatprep.subr.mxu0 0.0
    %825 = vmatpush1.msra.mxu0 0.0
    %826 = vmatprep.subr.mxu0 0.0
    %827 = vmatpush1.msra.mxu0 0.0
    %828 = vmatprep.subr.mxu0 0.0
    %829 = vmatpush1.msra.mxu0 0.0
    %830 = vmatprep.subr.mxu0 0.0
    %831 = vmatpush1.msra.mxu0 %v805
    %832 = vmatprep.subr.mxu0 0.0
    %833 = vmatpush1.msra.mxu0 %v804
    %834 = vmatprep.subr.mxu0 0.0
    %835 = vmatpush1.msra.mxu0 %v803
    %836 = vmatprep.subr.mxu0 0.0
    %837 = vmatpush1.msra.mxu0 %v802
    %838 = vmatprep.subr.mxu0 0.0
    %839 = vmatpush2.msra.mxu0 0.0
    %840 = vmatprep.subr.mxu0 0.0
    %841 = vmatpush2.msra.mxu0 0.0
    %842 = vmatprep.subr.mxu0 0.0
    %843 = vmatpush2.msra.mxu0 0.0
    %844 = vmatprep.subr.mxu0 0.0
    %845 = vmatpush2.msra.mxu0 0.0
    %846 = vmatprep.subr.mxu0 0.0
    %847 = vmatpush2.msra.mxu0 0.0
    %848 = vmatprep.subr.mxu0 0.0
    %849 = vmatpush2.msra.mxu0 0.0
    %850 = vmatprep.subr.mxu0 0.0
    %851 = vmatpush2.msra.mxu0 0.0
    %852 = vmatprep.subr.mxu0 0.0
    %853 = vmatpush2.msra.mxu0 0.0
    %854 = vmatprep.subr.mxu0 0.0
    %855 = vmatpush2.msra.mxu0 0.0
    %856 = vmatprep.subr.mxu0 0.0
    %857 = vmatpush2.msra.mxu0 0.0
    %858 = vmatprep.subr.mxu0 0.0
    %859 = vmatpush2.msra.mxu0 0.0
    %860 = vmatprep.subr.mxu0 0.0
    %861 = vmatpush2.msra.mxu0 0.0
    %862 = vmatprep.subr.mxu0 0.0
    %863 = vmatpush2.msra.mxu0 0.0
    %864 = vmatprep.subr.mxu0 0.0
    %865 = vmatpush2.msra.mxu0 0.0
    %866 = vmatprep.subr.mxu0 0.0
    %867 = vmatpush2.msra.mxu0 0.0
    %868 = vmatprep.subr.mxu0 0.0
    %869 = vmatpush2.msra.mxu0 0.0
    %870 = vmatprep.mubr.f32.mxu0 0.0
    %871 = vmatmul.mubr.f32.gmra.mxu0 %v208
    %v872 = vpop.f32.mrf.mxu0
    %v873 = vadd.f32 0.0, %v872
    %v874 = vpop.f32.mrf.mxu0
    %875 = vmatprep.mubr.f32.mxu0 0.0
    %876 = vmatmul.mubr.f32.gmra.mxu0 %v211
    %v877 = vpop.f32.mrf.mxu0
    %v878 = vadd.f32 0.0, %v877
    %v879 = vpop.f32.mrf.mxu0
    %880 = vmatprep.mubr.f32.mxu0 0.0
    %881 = vmatmul.mubr.f32.gmra.mxu0 %v214
    %v882 = vpop.f32.mrf.mxu0
    %v883 = vadd.f32 0.0, %v882
    %v884 = vpop.f32.mrf.mxu0
    %885 = vmatprep.mubr.f32.mxu0 0.0
    %886 = vmatmul.mubr.f32.gmra.mxu0 %v217
    %v887 = vpop.f32.mrf.mxu0
    %v888 = vadd.f32 0.0, %v887
    %v889 = vpop.f32.mrf.mxu0
    %890 = vmatprep.mubr.f32.mxu0 0.0
    %891 = vmatmul.mubr.f32.gmra.mxu0 %v220
    %v892 = vpop.f32.mrf.mxu0
    %v893 = vadd.f32 0.0, %v892
    %v894 = vpop.f32.mrf.mxu0
    %895 = vdwg.mxu0
    %s896 = scalar_lea.vmem %s7, 32
    %v897 = vld [vmem:[%s896] sm:$0xff]
    %v898 = vld [vmem:[%s896 + $0x8] sm:$0xff]
    %v899 = vld [vmem:[%s896 + $0x10] sm:$0xff]
    %v900 = vld [vmem:[%s896 + $0x18] sm:$0xff]
    %901 = vmatprep.subr.mxu0 0.0
    %902 = vmatpush1.msra.mxu0 0.0
    %903 = vmatprep.subr.mxu0 0.0
    %904 = vmatpush1.msra.mxu0 0.0
    %905 = vmatprep.subr.mxu0 0.0
    %906 = vmatpush1.msra.mxu0 0.0
    %907 = vmatprep.subr.mxu0 0.0
    %908 = vmatpush1.msra.mxu0 0.0
    %909 = vmatprep.subr.mxu0 0.0
    %910 = vmatpush1.msra.mxu0 0.0
    %911 = vmatprep.subr.mxu0 0.0
    %912 = vmatpush1.msra.mxu0 0.0
    %913 = vmatprep.subr.mxu0 0.0
    %914 = vmatpush1.msra.mxu0 0.0
    %915 = vmatprep.subr.mxu0 0.0
    %916 = vmatpush1.msra.mxu0 0.0
    %917 = vmatprep.subr.mxu0 0.0
    %918 = vmatpush1.msra.mxu0 0.0
    %919 = vmatprep.subr.mxu0 0.0
    %920 = vmatpush1.msra.mxu0 0.0
    %921 = vmatprep.subr.mxu0 0.0
    %922 = vmatpush1.msra.mxu0 0.0
    %923 = vmatprep.subr.mxu0 0.0
    %924 = vmatpush1.msra.mxu0 0.0
    %925 = vmatprep.subr.mxu0 0.0
    %926 = vmatpush1.msra.mxu0 %v900
    %927 = vmatprep.subr.mxu0 0.0
    %928 = vmatpush1.msra.mxu0 %v899
    %929 = vmatprep.subr.mxu0 0.0
    %930 = vmatpush1.msra.mxu0 %v898
    %931 = vmatprep.subr.mxu0 0.0
    %932 = vmatpush1.msra.mxu0 %v897
    %933 = vmatprep.subr.mxu0 0.0
    %934 = vmatpush2.msra.mxu0 0.0
    %935 = vmatprep.subr.mxu0 0.0
    %936 = vmatpush2.msra.mxu0 0.0
    %937 = vmatprep.subr.mxu0 0.0
    %938 = vmatpush2.msra.mxu0 0.0
    %939 = vmatprep.subr.mxu0 0.0
    %940 = vmatpush2.msra.mxu0 0.0
    %941 = vmatprep.subr.mxu0 0.0
    %942 = vmatpush2.msra.mxu0 0.0
    %943 = vmatprep.subr.mxu0 0.0
    %944 = vmatpush2.msra.mxu0 0.0
    %945 = vmatprep.subr.mxu0 0.0
    %946 = vmatpush2.msra.mxu0 0.0
    %947 = vmatprep.subr.mxu0 0.0
    %948 = vmatpush2.msra.mxu0 0.0
    %949 = vmatprep.subr.mxu0 0.0
    %950 = vmatpush2.msra.mxu0 0.0
    %951 = vmatprep.subr.mxu0 0.0
    %952 = vmatpush2.msra.mxu0 0.0
    %953 = vmatprep.subr.mxu0 0.0
    %954 = vmatpush2.msra.mxu0 0.0
    %955 = vmatprep.subr.mxu0 0.0
    %956 = vmatpush2.msra.mxu0 0.0
    %957 = vmatprep.subr.mxu0 0.0
    %958 = vmatpush2.msra.mxu0 0.0
    %959 = vmatprep.subr.mxu0 0.0
    %960 = vmatpush2.msra.mxu0 0.0
    %961 = vmatprep.subr.mxu0 0.0
    %962 = vmatpush2.msra.mxu0 0.0
    %963 = vmatprep.subr.mxu0 0.0
    %964 = vmatpush2.msra.mxu0 0.0
    %965 = vmatprep.mubr.f32.mxu0 0.0
    %966 = vmatmul.mubr.f32.gmra.mxu0 %v208
    %v967 = vpop.f32.mrf.mxu0
    %v968 = vadd.f32 0.0, %v967
    %v969 = vpop.f32.mrf.mxu0
    %970 = vmatprep.mubr.f32.mxu0 0.0
    %971 = vmatmul.mubr.f32.gmra.mxu0 %v211
    %v972 = vpop.f32.mrf.mxu0
    %v973 = vadd.f32 0.0, %v972
    %v974 = vpop.f32.mrf.mxu0
    %975 = vmatprep.mubr.f32.mxu0 0.0
    %976 = vmatmul.mubr.f32.gmra.mxu0 %v214
    %v977 = vpop.f32.mrf.mxu0
    %v978 = vadd.f32 0.0, %v977
    %v979 = vpop.f32.mrf.mxu0
    %980 = vmatprep.mubr.f32.mxu0 0.0
    %981 = vmatmul.mubr.f32.gmra.mxu0 %v217
    %v982 = vpop.f32.mrf.mxu0
    %v983 = vadd.f32 0.0, %v982
    %v984 = vpop.f32.mrf.mxu0
    %985 = vmatprep.mubr.f32.mxu0 0.0
    %986 = vmatmul.mubr.f32.gmra.mxu0 %v220
    %v987 = vpop.f32.mrf.mxu0
    %v988 = vadd.f32 0.0, %v987
    %v989 = vpop.f32.mrf.mxu0
    %990 = vdwg.mxu0
    %v992 = vsel %vm500, %v778, 0
    %v995 = vsel %vm500, %v783, 0
    %v998 = vsel %vm500, %v788, 0
    %v1001 = vsel %vm500, %v873, 0
    %v1004 = vsel %vm500, %v878, 0
    %v1007 = vsel %vm500, %v883, 0
    %1009 = vmatprep.subr.mxu0 0.0
    %1010 = vmatpush1.xpose.msra.mxu0 0.0
    %1011 = vmatprep.subr.mxu0 0.0
    %1012 = vmatpush1.xpose.msra.mxu0 0.0
    %1013 = vmatprep.subr.mxu0 0.0
    %1014 = vmatpush1.xpose.msra.mxu0 0.0
    %1015 = vmatprep.subr.mxu0 0.0
    %1016 = vmatpush1.xpose.msra.mxu0 0.0
    %1017 = vmatprep.subr.mxu0 0.0
    %1018 = vmatpush1.xpose.msra.mxu0 0.0
    %1019 = vmatprep.subr.mxu0 0.0
    %1020 = vmatpush1.xpose.msra.mxu0 0.0
    %1021 = vmatprep.subr.mxu0 0.0
    %1022 = vmatpush1.xpose.msra.mxu0 0.0
    %1023 = vmatprep.subr.mxu0 0.0
    %1024 = vmatpush1.xpose.msra.mxu0 0.0
    %1025 = vmatprep.subr.mxu0 0.0
    %1026 = vmatpush1.xpose.msra.mxu0 0.0
    %1027 = vmatprep.subr.mxu0 0.0
    %1028 = vmatpush1.xpose.msra.mxu0 0.0
    %1029 = vmatprep.subr.mxu0 0.0
    %1030 = vmatpush1.xpose.msra.mxu0 0.0
    %1031 = vmatprep.subr.mxu0 0.0
    %1032 = vmatpush1.xpose.msra.mxu0 0.0
    %1033 = vmatprep.subr.mxu0 0.0
    %1034 = vmatpush1.xpose.msra.mxu0 0.0
    %1035 = vmatprep.subr.mxu0 0.0
    %1036 = vmatpush1.xpose.msra.mxu0 %v1007
    %1037 = vmatprep.subr.mxu0 0.0
    %1038 = vmatpush1.xpose.msra.mxu0 %v1004
    %1039 = vmatprep.subr.mxu0 0.0
    %1040 = vmatpush1.xpose.msra.mxu0 %v1001
    %1041 = vmatprep.subr.mxu0 0.0
    %1042 = vmatpush2.xpose.msra.mxu0 0.0
    %1043 = vmatprep.subr.mxu0 0.0
    %1044 = vmatpush2.xpose.msra.mxu0 0.0
    %1045 = vmatprep.subr.mxu0 0.0
    %1046 = vmatpush2.xpose.msra.mxu0 0.0
    %1047 = vmatprep.subr.mxu0 0.0
    %1048 = vmatpush2.xpose.msra.mxu0 0.0
    %1049 = vmatprep.subr.mxu0 0.0
    %1050 = vmatpush2.xpose.msra.mxu0 0.0
    %1051 = vmatprep.subr.mxu0 0.0
    %1052 = vmatpush2.xpose.msra.mxu0 0.0
    %1053 = vmatprep.subr.mxu0 0.0
    %1054 = vmatpush2.xpose.msra.mxu0 0.0
    %1055 = vmatprep.subr.mxu0 0.0
    %1056 = vmatpush2.xpose.msra.mxu0 0.0
    %1057 = vmatprep.subr.mxu0 0.0
    %1058 = vmatpush2.xpose.msra.mxu0 0.0
    %1059 = vmatprep.subr.mxu0 0.0
    %1060 = vmatpush2.xpose.msra.mxu0 0.0
    %1061 = vmatprep.subr.mxu0 0.0
    %1062 = vmatpush2.xpose.msra.mxu0 0.0
    %1063 = vmatprep.subr.mxu0 0.0
    %1064 = vmatpush2.xpose.msra.mxu0 0.0
    %1065 = vmatprep.subr.mxu0 0.0
    %1066 = vmatpush2.xpose.msra.mxu0 0.0
    %1067 = vmatprep.subr.mxu0 0.0
    %1068 = vmatpush2.xpose.msra.mxu0 0.0
    %1069 = vmatprep.subr.mxu0 0.0
    %1070 = vmatpush2.xpose.msra.mxu0 0.0
    %1071 = vmatprep.subr.mxu0 0.0
    %1072 = vmatpush2.xpose.msra.mxu0 0.0
    %1073 = vmatprep.mubr.f32.mxu0 0.0
    %1074 = vmatmul.mubr.f32.gmra.mxu0 %v992
    %v1075 = vpop.f32.mrf.mxu0
    %v1076 = vadd.f32 0.0, %v1075
    %v1077 = vpop.f32.mrf.mxu0
    %1078 = vmatprep.mubr.f32.mxu0 0.0
    %1079 = vmatmul.mubr.f32.gmra.mxu0 %v995
    %v1080 = vpop.f32.mrf.mxu0
    %v1081 = vadd.f32 0.0, %v1080
    %v1082 = vpop.f32.mrf.mxu0
    %1083 = vmatprep.mubr.f32.mxu0 0.0
    %1084 = vmatmul.mubr.f32.gmra.mxu0 %v998
    %v1085 = vpop.f32.mrf.mxu0
    %v1086 = vadd.f32 0.0, %v1085
    %v1087 = vpop.f32.mrf.mxu0
    %1088 = vdwg.mxu0
    %v1091 = vrot.slane %v788, 1
    %v1092 = vrot.slane %v793, 1
    %v1093 = vsel %vm601, %v1091, %v1092
    %v1094 = vrot.slane %v798, 1
    %v1095 = vsel %vm601, %v1092, %v1094
    %v1098 = vrot.slane %v883, 1
    %v1099 = vrot.slane %v888, 1
    %v1100 = vsel %vm601, %v1098, %v1099
    %v1101 = vrot.slane %v893, 1
    %v1102 = vsel %vm601, %v1099, %v1101
    %v1103 = vsel %vm500, %v1093, 0
    %v1105 = vsel %vm500, %v1095, 0
    %v1107 = vsel %vm500, %v1094, 0
    %v1109 = vsel %vm500, %v1100, 0
    %v1111 = vsel %vm500, %v1102, 0
    %v1113 = vsel %vm500, %v1101, 0
    %1115 = vmatprep.subr.mxu0 0.0
    %1116 = vmatpush1.xpose.msra.mxu0 0.0
    %1117 = vmatprep.subr.mxu0 0.0
    %1118 = vmatpush1.xpose.msra.mxu0 0.0
    %1119 = vmatprep.subr.mxu0 0.0
    %1120 = vmatpush1.xpose.msra.mxu0 0.0
    %1121 = vmatprep.subr.mxu0 0.0
    %1122 = vmatpush1.xpose.msra.mxu0 0.0
    %1123 = vmatprep.subr.mxu0 0.0
    %1124 = vmatpush1.xpose.msra.mxu0 0.0
    %1125 = vmatprep.subr.mxu0 0.0
    %1126 = vmatpush1.xpose.msra.mxu0 0.0
    %1127 = vmatprep.subr.mxu0 0.0
    %1128 = vmatpush1.xpose.msra.mxu0 0.0
    %1129 = vmatprep.subr.mxu0 0.0
    %1130 = vmatpush1.xpose.msra.mxu0 0.0
    %1131 = vmatprep.subr.mxu0 0.0
    %1132 = vmatpush1.xpose.msra.mxu0 0.0
    %1133 = vmatprep.subr.mxu0 0.0
    %1134 = vmatpush1.xpose.msra.mxu0 0.0
    %1135 = vmatprep.subr.mxu0 0.0
    %1136 = vmatpush1.xpose.msra.mxu0 0.0
    %1137 = vmatprep.subr.mxu0 0.0
    %1138 = vmatpush1.xpose.msra.mxu0 0.0
    %1139 = vmatprep.subr.mxu0 0.0
    %1140 = vmatpush1.xpose.msra.mxu0 0.0
    %1141 = vmatprep.subr.mxu0 0.0
    %1142 = vmatpush1.xpose.msra.mxu0 %v1113
    %1143 = vmatprep.subr.mxu0 0.0
    %1144 = vmatpush1.xpose.msra.mxu0 %v1111
    %1145 = vmatprep.subr.mxu0 0.0
    %1146 = vmatpush1.xpose.msra.mxu0 %v1109
    %1147 = vmatprep.subr.mxu0 0.0
    %1148 = vmatpush2.xpose.msra.mxu0 0.0
    %1149 = vmatprep.subr.mxu0 0.0
    %1150 = vmatpush2.xpose.msra.mxu0 0.0
    %1151 = vmatprep.subr.mxu0 0.0
    %1152 = vmatpush2.xpose.msra.mxu0 0.0
    %1153 = vmatprep.subr.mxu0 0.0
    %1154 = vmatpush2.xpose.msra.mxu0 0.0
    %1155 = vmatprep.subr.mxu0 0.0
    %1156 = vmatpush2.xpose.msra.mxu0 0.0
    %1157 = vmatprep.subr.mxu0 0.0
    %1158 = vmatpush2.xpose.msra.mxu0 0.0
    %1159 = vmatprep.subr.mxu0 0.0
    %1160 = vmatpush2.xpose.msra.mxu0 0.0
    %1161 = vmatprep.subr.mxu0 0.0
    %1162 = vmatpush2.xpose.msra.mxu0 0.0
    %1163 = vmatprep.subr.mxu0 0.0
    %1164 = vmatpush2.xpose.msra.mxu0 0.0
    %1165 = vmatprep.subr.mxu0 0.0
    %1166 = vmatpush2.xpose.msra.mxu0 0.0
    %1167 = vmatprep.subr.mxu0 0.0
    %1168 = vmatpush2.xpose.msra.mxu0 0.0
    %1169 = vmatprep.subr.mxu0 0.0
    %1170 = vmatpush2.xpose.msra.mxu0 0.0
    %1171 = vmatprep.subr.mxu0 0.0
    %1172 = vmatpush2.xpose.msra.mxu0 0.0
    %1173 = vmatprep.subr.mxu0 0.0
    %1174 = vmatpush2.xpose.msra.mxu0 0.0
    %1175 = vmatprep.subr.mxu0 0.0
    %1176 = vmatpush2.xpose.msra.mxu0 0.0
    %1177 = vmatprep.subr.mxu0 0.0
    %1178 = vmatpush2.xpose.msra.mxu0 0.0
    %1179 = vmatprep.mubr.f32.mxu0 0.0
    %1180 = vmatmul.mubr.f32.gmra.mxu0 %v1103
    %v1181 = vpop.f32.mrf.mxu0
    %v1182 = vadd.f32 0.0, %v1181
    %v1183 = vpop.f32.mrf.mxu0
    %1184 = vmatprep.mubr.f32.mxu0 0.0
    %1185 = vmatmul.mubr.f32.gmra.mxu0 %v1105
    %v1186 = vpop.f32.mrf.mxu0
    %v1187 = vadd.f32 0.0, %v1186
    %v1188 = vpop.f32.mrf.mxu0
    %1189 = vmatprep.mubr.f32.mxu0 0.0
    %1190 = vmatmul.mubr.f32.gmra.mxu0 %v1107
    %v1191 = vpop.f32.mrf.mxu0
    %v1192 = vadd.f32 0.0, %v1191
    %v1193 = vpop.f32.mrf.mxu0
    %1194 = vdwg.mxu0
    %s1195 = scalar_lea.vmem %s5, 64
    %v1196 = vld [vmem:[%s1195] sm:$0xff]
    %v1197 = vld [vmem:[%s1195 + $0x8] sm:$0xff]
    %v1198 = vld [vmem:[%s1195 + $0x10] sm:$0xff]
    %v1199 = vld [vmem:[%s1195 + $0x18] sm:$0xff]
    %1200 = vmatprep.subr.mxu0 0.0
    %1201 = vmatpush1.msra.mxu0 0.0
    %1202 = vmatprep.subr.mxu0 0.0
    %1203 = vmatpush1.msra.mxu0 0.0
    %1204 = vmatprep.subr.mxu0 0.0
    %1205 = vmatpush1.msra.mxu0 0.0
    %1206 = vmatprep.subr.mxu0 0.0
    %1207 = vmatpush1.msra.mxu0 0.0
    %1208 = vmatprep.subr.mxu0 0.0
    %1209 = vmatpush1.msra.mxu0 0.0
    %1210 = vmatprep.subr.mxu0 0.0
    %1211 = vmatpush1.msra.mxu0 0.0
    %1212 = vmatprep.subr.mxu0 0.0
    %1213 = vmatpush1.msra.mxu0 0.0
    %1214 = vmatprep.subr.mxu0 0.0
    %1215 = vmatpush1.msra.mxu0 0.0
    %1216 = vmatprep.subr.mxu0 0.0
    %1217 = vmatpush1.msra.mxu0 0.0
    %1218 = vmatprep.subr.mxu0 0.0
    %1219 = vmatpush1.msra.mxu0 0.0
    %1220 = vmatprep.subr.mxu0 0.0
    %1221 = vmatpush1.msra.mxu0 0.0
    %1222 = vmatprep.subr.mxu0 0.0
    %1223 = vmatpush1.msra.mxu0 0.0
    %1224 = vmatprep.subr.mxu0 0.0
    %1225 = vmatpush1.msra.mxu0 %v1199
    %1226 = vmatprep.subr.mxu0 0.0
    %1227 = vmatpush1.msra.mxu0 %v1198
    %1228 = vmatprep.subr.mxu0 0.0
    %1229 = vmatpush1.msra.mxu0 %v1197
    %1230 = vmatprep.subr.mxu0 0.0
    %1231 = vmatpush1.msra.mxu0 %v1196
    %1232 = vmatprep.subr.mxu0 0.0
    %1233 = vmatpush2.msra.mxu0 0.0
    %1234 = vmatprep.subr.mxu0 0.0
    %1235 = vmatpush2.msra.mxu0 0.0
    %1236 = vmatprep.subr.mxu0 0.0
    %1237 = vmatpush2.msra.mxu0 0.0
    %1238 = vmatprep.subr.mxu0 0.0
    %1239 = vmatpush2.msra.mxu0 0.0
    %1240 = vmatprep.subr.mxu0 0.0
    %1241 = vmatpush2.msra.mxu0 0.0
    %1242 = vmatprep.subr.mxu0 0.0
    %1243 = vmatpush2.msra.mxu0 0.0
    %1244 = vmatprep.subr.mxu0 0.0
    %1245 = vmatpush2.msra.mxu0 0.0
    %1246 = vmatprep.subr.mxu0 0.0
    %1247 = vmatpush2.msra.mxu0 0.0
    %1248 = vmatprep.subr.mxu0 0.0
    %1249 = vmatpush2.msra.mxu0 0.0
    %1250 = vmatprep.subr.mxu0 0.0
    %1251 = vmatpush2.msra.mxu0 0.0
    %1252 = vmatprep.subr.mxu0 0.0
    %1253 = vmatpush2.msra.mxu0 0.0
    %1254 = vmatprep.subr.mxu0 0.0
    %1255 = vmatpush2.msra.mxu0 0.0
    %1256 = vmatprep.subr.mxu0 0.0
    %1257 = vmatpush2.msra.mxu0 0.0
    %1258 = vmatprep.subr.mxu0 0.0
    %1259 = vmatpush2.msra.mxu0 0.0
    %1260 = vmatprep.subr.mxu0 0.0
    %1261 = vmatpush2.msra.mxu0 0.0
    %1262 = vmatprep.subr.mxu0 0.0
    %1263 = vmatpush2.msra.mxu0 0.0
    %1264 = vmatprep.mubr.f32.mxu0 0.0
    %1265 = vmatmul.mubr.f32.gmra.mxu0 %v208
    %v1266 = vpop.f32.mrf.mxu0
    %v1267 = vadd.f32 0.0, %v1266
    %v1268 = vpop.f32.mrf.mxu0
    %1269 = vmatprep.mubr.f32.mxu0 0.0
    %1270 = vmatmul.mubr.f32.gmra.mxu0 %v211
    %v1271 = vpop.f32.mrf.mxu0
    %v1272 = vadd.f32 0.0, %v1271
    %v1273 = vpop.f32.mrf.mxu0
    %1274 = vmatprep.mubr.f32.mxu0 0.0
    %1275 = vmatmul.mubr.f32.gmra.mxu0 %v214
    %v1276 = vpop.f32.mrf.mxu0
    %v1277 = vadd.f32 0.0, %v1276
    %v1278 = vpop.f32.mrf.mxu0
    %1279 = vmatprep.mubr.f32.mxu0 0.0
    %1280 = vmatmul.mubr.f32.gmra.mxu0 %v217
    %v1281 = vpop.f32.mrf.mxu0
    %v1282 = vadd.f32 0.0, %v1281
    %v1283 = vpop.f32.mrf.mxu0
    %1284 = vmatprep.mubr.f32.mxu0 0.0
    %1285 = vmatmul.mubr.f32.gmra.mxu0 %v220
    %v1286 = vpop.f32.mrf.mxu0
    %v1287 = vadd.f32 0.0, %v1286
    %v1288 = vpop.f32.mrf.mxu0
    %1289 = vdwg.mxu0
    %s1290 = scalar_lea.vmem %s6, 64
    %v1291 = vld [vmem:[%s1290] sm:$0xff]
    %v1292 = vld [vmem:[%s1290 + $0x8] sm:$0xff]
    %v1293 = vld [vmem:[%s1290 + $0x10] sm:$0xff]
    %v1294 = vld [vmem:[%s1290 + $0x18] sm:$0xff]
    %1295 = vmatprep.subr.mxu0 0.0
    %1296 = vmatpush1.msra.mxu0 0.0
    %1297 = vmatprep.subr.mxu0 0.0
    %1298 = vmatpush1.msra.mxu0 0.0
    %1299 = vmatprep.subr.mxu0 0.0
    %1300 = vmatpush1.msra.mxu0 0.0
    %1301 = vmatprep.subr.mxu0 0.0
    %1302 = vmatpush1.msra.mxu0 0.0
    %1303 = vmatprep.subr.mxu0 0.0
    %1304 = vmatpush1.msra.mxu0 0.0
    %1305 = vmatprep.subr.mxu0 0.0
    %1306 = vmatpush1.msra.mxu0 0.0
    %1307 = vmatprep.subr.mxu0 0.0
    %1308 = vmatpush1.msra.mxu0 0.0
    %1309 = vmatprep.subr.mxu0 0.0
    %1310 = vmatpush1.msra.mxu0 0.0
    %1311 = vmatprep.subr.mxu0 0.0
    %1312 = vmatpush1.msra.mxu0 0.0
    %1313 = vmatprep.subr.mxu0 0.0
    %1314 = vmatpush1.msra.mxu0 0.0
    %1315 = vmatprep.subr.mxu0 0.0
    %1316 = vmatpush1.msra.mxu0 0.0
    %1317 = vmatprep.subr.mxu0 0.0
    %1318 = vmatpush1.msra.mxu0 0.0
    %1319 = vmatprep.subr.mxu0 0.0
    %1320 = vmatpush1.msra.mxu0 %v1294
    %1321 = vmatprep.subr.mxu0 0.0
    %1322 = vmatpush1.msra.mxu0 %v1293
    %1323 = vmatprep.subr.mxu0 0.0
    %1324 = vmatpush1.msra.mxu0 %v1292
    %1325 = vmatprep.subr.mxu0 0.0
    %1326 = vmatpush1.msra.mxu0 %v1291
    %1327 = vmatprep.subr.mxu0 0.0
    %1328 = vmatpush2.msra.mxu0 0.0
    %1329 = vmatprep.subr.mxu0 0.0
    %1330 = vmatpush2.msra.mxu0 0.0
    %1331 = vmatprep.subr.mxu0 0.0
    %1332 = vmatpush2.msra.mxu0 0.0
    %1333 = vmatprep.subr.mxu0 0.0
    %1334 = vmatpush2.msra.mxu0 0.0
    %1335 = vmatprep.subr.mxu0 0.0
    %1336 = vmatpush2.msra.mxu0 0.0
    %1337 = vmatprep.subr.mxu0 0.0
    %1338 = vmatpush2.msra.mxu0 0.0
    %1339 = vmatprep.subr.mxu0 0.0
    %1340 = vmatpush2.msra.mxu0 0.0
    %1341 = vmatprep.subr.mxu0 0.0
    %1342 = vmatpush2.msra.mxu0 0.0
    %1343 = vmatprep.subr.mxu0 0.0
    %1344 = vmatpush2.msra.mxu0 0.0
    %1345 = vmatprep.subr.mxu0 0.0
    %1346 = vmatpush2.msra.mxu0 0.0
    %1347 = vmatprep.subr.mxu0 0.0
    %1348 = vmatpush2.msra.mxu0 0.0
    %1349 = vmatprep.subr.mxu0 0.0
    %1350 = vmatpush2.msra.mxu0 0.0
    %1351 = vmatprep.subr.mxu0 0.0
    %1352 = vmatpush2.msra.mxu0 0.0
    %1353 = vmatprep.subr.mxu0 0.0
    %1354 = vmatpush2.msra.mxu0 0.0
    %1355 = vmatprep.subr.mxu0 0.0
    %1356 = vmatpush2.msra.mxu0 0.0
    %1357 = vmatprep.subr.mxu0 0.0
    %1358 = vmatpush2.msra.mxu0 0.0
    %1359 = vmatprep.mubr.f32.mxu0 0.0
    %1360 = vmatmul.mubr.f32.gmra.mxu0 %v208
    %v1361 = vpop.f32.mrf.mxu0
    %v1362 = vadd.f32 0.0, %v1361
    %v1363 = vpop.f32.mrf.mxu0
    %1364 = vmatprep.mubr.f32.mxu0 0.0
    %1365 = vmatmul.mubr.f32.gmra.mxu0 %v211
    %v1366 = vpop.f32.mrf.mxu0
    %v1367 = vadd.f32 0.0, %v1366
    %v1368 = vpop.f32.mrf.mxu0
    %1369 = vmatprep.mubr.f32.mxu0 0.0
    %1370 = vmatmul.mubr.f32.gmra.mxu0 %v214
    %v1371 = vpop.f32.mrf.mxu0
    %v1372 = vadd.f32 0.0, %v1371
    %v1373 = vpop.f32.mrf.mxu0
    %1374 = vmatprep.mubr.f32.mxu0 0.0
    %1375 = vmatmul.mubr.f32.gmra.mxu0 %v217
    %v1376 = vpop.f32.mrf.mxu0
    %v1377 = vadd.f32 0.0, %v1376
    %v1378 = vpop.f32.mrf.mxu0
    %1379 = vmatprep.mubr.f32.mxu0 0.0
    %1380 = vmatmul.mubr.f32.gmra.mxu0 %v220
    %v1381 = vpop.f32.mrf.mxu0
    %v1382 = vadd.f32 0.0, %v1381
    %v1383 = vpop.f32.mrf.mxu0
    %1384 = vdwg.mxu0
    %s1385 = scalar_lea.vmem %s7, 64
    %v1386 = vld [vmem:[%s1385] sm:$0xff]
    %v1387 = vld [vmem:[%s1385 + $0x8] sm:$0xff]
    %v1388 = vld [vmem:[%s1385 + $0x10] sm:$0xff]
    %v1389 = vld [vmem:[%s1385 + $0x18] sm:$0xff]
    %1390 = vmatprep.subr.mxu0 0.0
    %1391 = vmatpush1.msra.mxu0 0.0
    %1392 = vmatprep.subr.mxu0 0.0
    %1393 = vmatpush1.msra.mxu0 0.0
    %1394 = vmatprep.subr.mxu0 0.0
    %1395 = vmatpush1.msra.mxu0 0.0
    %1396 = vmatprep.subr.mxu0 0.0
    %1397 = vmatpush1.msra.mxu0 0.0
    %1398 = vmatprep.subr.mxu0 0.0
    %1399 = vmatpush1.msra.mxu0 0.0
    %1400 = vmatprep.subr.mxu0 0.0
    %1401 = vmatpush1.msra.mxu0 0.0
    %1402 = vmatprep.subr.mxu0 0.0
    %1403 = vmatpush1.msra.mxu0 0.0
    %1404 = vmatprep.subr.mxu0 0.0
    %1405 = vmatpush1.msra.mxu0 0.0
    %1406 = vmatprep.subr.mxu0 0.0
    %1407 = vmatpush1.msra.mxu0 0.0
    %1408 = vmatprep.subr.mxu0 0.0
    %1409 = vmatpush1.msra.mxu0 0.0
    %1410 = vmatprep.subr.mxu0 0.0
    %1411 = vmatpush1.msra.mxu0 0.0
    %1412 = vmatprep.subr.mxu0 0.0
    %1413 = vmatpush1.msra.mxu0 0.0
    %1414 = vmatprep.subr.mxu0 0.0
    %1415 = vmatpush1.msra.mxu0 %v1389
    %1416 = vmatprep.subr.mxu0 0.0
    %1417 = vmatpush1.msra.mxu0 %v1388
    %1418 = vmatprep.subr.mxu0 0.0
    %1419 = vmatpush1.msra.mxu0 %v1387
    %1420 = vmatprep.subr.mxu0 0.0
    %1421 = vmatpush1.msra.mxu0 %v1386
    %1422 = vmatprep.subr.mxu0 0.0
    %1423 = vmatpush2.msra.mxu0 0.0
    %1424 = vmatprep.subr.mxu0 0.0
    %1425 = vmatpush2.msra.mxu0 0.0
    %1426 = vmatprep.subr.mxu0 0.0
    %1427 = vmatpush2.msra.mxu0 0.0
    %1428 = vmatprep.subr.mxu0 0.0
    %1429 = vmatpush2.msra.mxu0 0.0
    %1430 = vmatprep.subr.mxu0 0.0
    %1431 = vmatpush2.msra.mxu0 0.0
    %1432 = vmatprep.subr.mxu0 0.0
    %1433 = vmatpush2.msra.mxu0 0.0
    %1434 = vmatprep.subr.mxu0 0.0
    %1435 = vmatpush2.msra.mxu0 0.0
    %1436 = vmatprep.subr.mxu0 0.0
    %1437 = vmatpush2.msra.mxu0 0.0
    %1438 = vmatprep.subr.mxu0 0.0
    %1439 = vmatpush2.msra.mxu0 0.0
    %1440 = vmatprep.subr.mxu0 0.0
    %1441 = vmatpush2.msra.mxu0 0.0
    %1442 = vmatprep.subr.mxu0 0.0
    %1443 = vmatpush2.msra.mxu0 0.0
    %1444 = vmatprep.subr.mxu0 0.0
    %1445 = vmatpush2.msra.mxu0 0.0
    %1446 = vmatprep.subr.mxu0 0.0
    %1447 = vmatpush2.msra.mxu0 0.0
    %1448 = vmatprep.subr.mxu0 0.0
    %1449 = vmatpush2.msra.mxu0 0.0
    %1450 = vmatprep.subr.mxu0 0.0
    %1451 = vmatpush2.msra.mxu0 0.0
    %1452 = vmatprep.subr.mxu0 0.0
    %1453 = vmatpush2.msra.mxu0 0.0
    %1454 = vmatprep.mubr.f32.mxu0 0.0
    %1455 = vmatmul.mubr.f32.gmra.mxu0 %v208
    %v1456 = vpop.f32.mrf.mxu0
    %v1457 = vadd.f32 0.0, %v1456
    %v1458 = vpop.f32.mrf.mxu0
    %1459 = vmatprep.mubr.f32.mxu0 0.0
    %1460 = vmatmul.mubr.f32.gmra.mxu0 %v211
    %v1461 = vpop.f32.mrf.mxu0
    %v1462 = vadd.f32 0.0, %v1461
    %v1463 = vpop.f32.mrf.mxu0
    %1464 = vmatprep.mubr.f32.mxu0 0.0
    %1465 = vmatmul.mubr.f32.gmra.mxu0 %v214
    %v1466 = vpop.f32.mrf.mxu0
    %v1467 = vadd.f32 0.0, %v1466
    %v1468 = vpop.f32.mrf.mxu0
    %1469 = vmatprep.mubr.f32.mxu0 0.0
    %1470 = vmatmul.mubr.f32.gmra.mxu0 %v217
    %v1471 = vpop.f32.mrf.mxu0
    %v1472 = vadd.f32 0.0, %v1471
    %v1473 = vpop.f32.mrf.mxu0
    %1474 = vmatprep.mubr.f32.mxu0 0.0
    %1475 = vmatmul.mubr.f32.gmra.mxu0 %v220
    %v1476 = vpop.f32.mrf.mxu0
    %v1477 = vadd.f32 0.0, %v1476
    %v1478 = vpop.f32.mrf.mxu0
    %1479 = vdwg.mxu0
    %v1481 = vsel %vm500, %v1267, 0
    %v1484 = vsel %vm500, %v1272, 0
    %v1487 = vsel %vm500, %v1277, 0
    %v1490 = vsel %vm500, %v1362, 0
    %v1493 = vsel %vm500, %v1367, 0
    %v1496 = vsel %vm500, %v1372, 0
    %1498 = vmatprep.subr.mxu0 0.0
    %1499 = vmatpush1.xpose.msra.mxu0 0.0
    %1500 = vmatprep.subr.mxu0 0.0
    %1501 = vmatpush1.xpose.msra.mxu0 0.0
    %1502 = vmatprep.subr.mxu0 0.0
    %1503 = vmatpush1.xpose.msra.mxu0 0.0
    %1504 = vmatprep.subr.mxu0 0.0
    %1505 = vmatpush1.xpose.msra.mxu0 0.0
    %1506 = vmatprep.subr.mxu0 0.0
    %1507 = vmatpush1.xpose.msra.mxu0 0.0
    %1508 = vmatprep.subr.mxu0 0.0
    %1509 = vmatpush1.xpose.msra.mxu0 0.0
    %1510 = vmatprep.subr.mxu0 0.0
    %1511 = vmatpush1.xpose.msra.mxu0 0.0
    %1512 = vmatprep.subr.mxu0 0.0
    %1513 = vmatpush1.xpose.msra.mxu0 0.0
    %1514 = vmatprep.subr.mxu0 0.0
    %1515 = vmatpush1.xpose.msra.mxu0 0.0
    %1516 = vmatprep.subr.mxu0 0.0
    %1517 = vmatpush1.xpose.msra.mxu0 0.0
    %1518 = vmatprep.subr.mxu0 0.0
    %1519 = vmatpush1.xpose.msra.mxu0 0.0
    %1520 = vmatprep.subr.mxu0 0.0
    %1521 = vmatpush1.xpose.msra.mxu0 0.0
    %1522 = vmatprep.subr.mxu0 0.0
    %1523 = vmatpush1.xpose.msra.mxu0 0.0
    %1524 = vmatprep.subr.mxu0 0.0
    %1525 = vmatpush1.xpose.msra.mxu0 %v1496
    %1526 = vmatprep.subr.mxu0 0.0
    %1527 = vmatpush1.xpose.msra.mxu0 %v1493
    %1528 = vmatprep.subr.mxu0 0.0
    %1529 = vmatpush1.xpose.msra.mxu0 %v1490
    %1530 = vmatprep.subr.mxu0 0.0
    %1531 = vmatpush2.xpose.msra.mxu0 0.0
    %1532 = vmatprep.subr.mxu0 0.0
    %1533 = vmatpush2.xpose.msra.mxu0 0.0
    %1534 = vmatprep.subr.mxu0 0.0
    %1535 = vmatpush2.xpose.msra.mxu0 0.0
    %1536 = vmatprep.subr.mxu0 0.0
    %1537 = vmatpush2.xpose.msra.mxu0 0.0
    %1538 = vmatprep.subr.mxu0 0.0
    %1539 = vmatpush2.xpose.msra.mxu0 0.0
    %1540 = vmatprep.subr.mxu0 0.0
    %1541 = vmatpush2.xpose.msra.mxu0 0.0
    %1542 = vmatprep.subr.mxu0 0.0
    %1543 = vmatpush2.xpose.msra.mxu0 0.0
    %1544 = vmatprep.subr.mxu0 0.0
    %1545 = vmatpush2.xpose.msra.mxu0 0.0
    %1546 = vmatprep.subr.mxu0 0.0
    %1547 = vmatpush2.xpose.msra.mxu0 0.0
    %1548 = vmatprep.subr.mxu0 0.0
    %1549 = vmatpush2.xpose.msra.mxu0 0.0
    %1550 = vmatprep.subr.mxu0 0.0
    %1551 = vmatpush2.xpose.msra.mxu0 0.0
    %1552 = vmatprep.subr.mxu0 0.0
    %1553 = vmatpush2.xpose.msra.mxu0 0.0
    %1554 = vmatprep.subr.mxu0 0.0
    %1555 = vmatpush2.xpose.msra.mxu0 0.0
    %1556 = vmatprep.subr.mxu0 0.0
    %1557 = vmatpush2.xpose.msra.mxu0 0.0
    %1558 = vmatprep.subr.mxu0 0.0
    %1559 = vmatpush2.xpose.msra.mxu0 0.0
    %1560 = vmatprep.subr.mxu0 0.0
    %1561 = vmatpush2.xpose.msra.mxu0 0.0
    %1562 = vmatprep.mubr.f32.mxu0 0.0
    %1563 = vmatmul.mubr.f32.gmra.mxu0 %v1481
    %v1564 = vpop.f32.mrf.mxu0
    %v1565 = vadd.f32 0.0, %v1564
    %v1566 = vpop.f32.mrf.mxu0
    %1567 = vmatprep.mubr.f32.mxu0 0.0
    %1568 = vmatmul.mubr.f32.gmra.mxu0 %v1484
    %v1569 = vpop.f32.mrf.mxu0
    %v1570 = vadd.f32 0.0, %v1569
    %v1571 = vpop.f32.mrf.mxu0
    %1572 = vmatprep.mubr.f32.mxu0 0.0
    %1573 = vmatmul.mubr.f32.gmra.mxu0 %v1487
    %v1574 = vpop.f32.mrf.mxu0
    %v1575 = vadd.f32 0.0, %v1574
    %v1576 = vpop.f32.mrf.mxu0
    %1577 = vdwg.mxu0
    %v1580 = vrot.slane %v1277, 1
    %v1581 = vrot.slane %v1282, 1
    %v1582 = vsel %vm601, %v1580, %v1581
    %v1583 = vrot.slane %v1287, 1
    %v1584 = vsel %vm601, %v1581, %v1583
    %v1587 = vrot.slane %v1372, 1
    %v1588 = vrot.slane %v1377, 1
    %v1589 = vsel %vm601, %v1587, %v1588
    %v1590 = vrot.slane %v1382, 1
    %v1591 = vsel %vm601, %v1588, %v1590
    %v1592 = vsel %vm500, %v1582, 0
    %v1594 = vsel %vm500, %v1584, 0
    %v1596 = vsel %vm500, %v1583, 0
    %v1598 = vsel %vm500, %v1589, 0
    %v1600 = vsel %vm500, %v1591, 0
    %v1602 = vsel %vm500, %v1590, 0
    %1604 = vmatprep.subr.mxu0 0.0
    %1605 = vmatpush1.xpose.msra.mxu0 0.0
    %1606 = vmatprep.subr.mxu0 0.0
    %1607 = vmatpush1.xpose.msra.mxu0 0.0
    %1608 = vmatprep.subr.mxu0 0.0
    %1609 = vmatpush1.xpose.msra.mxu0 0.0
    %1610 = vmatprep.subr.mxu0 0.0
    %1611 = vmatpush1.xpose.msra.mxu0 0.0
    %1612 = vmatprep.subr.mxu0 0.0
    %1613 = vmatpush1.xpose.msra.mxu0 0.0
    %1614 = vmatprep.subr.mxu0 0.0
    %1615 = vmatpush1.xpose.msra.mxu0 0.0
    %1616 = vmatprep.subr.mxu0 0.0
    %1617 = vmatpush1.xpose.msra.mxu0 0.0
    %1618 = vmatprep.subr.mxu0 0.0
    %1619 = vmatpush1.xpose.msra.mxu0 0.0
    %1620 = vmatprep.subr.mxu0 0.0
    %1621 = vmatpush1.xpose.msra.mxu0 0.0
    %1622 = vmatprep.subr.mxu0 0.0
    %1623 = vmatpush1.xpose.msra.mxu0 0.0
    %1624 = vmatprep.subr.mxu0 0.0
    %1625 = vmatpush1.xpose.msra.mxu0 0.0
    %1626 = vmatprep.subr.mxu0 0.0
    %1627 = vmatpush1.xpose.msra.mxu0 0.0
    %1628 = vmatprep.subr.mxu0 0.0
    %1629 = vmatpush1.xpose.msra.mxu0 0.0
    %1630 = vmatprep.subr.mxu0 0.0
    %1631 = vmatpush1.xpose.msra.mxu0 %v1602
    %1632 = vmatprep.subr.mxu0 0.0
    %1633 = vmatpush1.xpose.msra.mxu0 %v1600
    %1634 = vmatprep.subr.mxu0 0.0
    %1635 = vmatpush1.xpose.msra.mxu0 %v1598
    %1636 = vmatprep.subr.mxu0 0.0
    %1637 = vmatpush2.xpose.msra.mxu0 0.0
    %1638 = vmatprep.subr.mxu0 0.0
    %1639 = vmatpush2.xpose.msra.mxu0 0.0
    %1640 = vmatprep.subr.mxu0 0.0
    %1641 = vmatpush2.xpose.msra.mxu0 0.0
    %1642 = vmatprep.subr.mxu0 0.0
    %1643 = vmatpush2.xpose.msra.mxu0 0.0
    %1644 = vmatprep.subr.mxu0 0.0
    %1645 = vmatpush2.xpose.msra.mxu0 0.0
    %1646 = vmatprep.subr.mxu0 0.0
    %1647 = vmatpush2.xpose.msra.mxu0 0.0
    %1648 = vmatprep.subr.mxu0 0.0
    %1649 = vmatpush2.xpose.msra.mxu0 0.0
    %1650 = vmatprep.subr.mxu0 0.0
    %1651 = vmatpush2.xpose.msra.mxu0 0.0
    %1652 = vmatprep.subr.mxu0 0.0
    %1653 = vmatpush2.xpose.msra.mxu0 0.0
    %1654 = vmatprep.subr.mxu0 0.0
    %1655 = vmatpush2.xpose.msra.mxu0 0.0
    %1656 = vmatprep.subr.mxu0 0.0
    %1657 = vmatpush2.xpose.msra.mxu0 0.0
    %1658 = vmatprep.subr.mxu0 0.0
    %1659 = vmatpush2.xpose.msra.mxu0 0.0
    %1660 = vmatprep.subr.mxu0 0.0
    %1661 = vmatpush2.xpose.msra.mxu0 0.0
    %1662 = vmatprep.subr.mxu0 0.0
    %1663 = vmatpush2.xpose.msra.mxu0 0.0
    %1664 = vmatprep.subr.mxu0 0.0
    %1665 = vmatpush2.xpose.msra.mxu0 0.0
    %1666 = vmatprep.subr.mxu0 0.0
    %1667 = vmatpush2.xpose.msra.mxu0 0.0
    %1668 = vmatprep.mubr.f32.mxu0 0.0
    %1669 = vmatmul.mubr.f32.gmra.mxu0 %v1592
    %v1670 = vpop.f32.mrf.mxu0
    %v1671 = vadd.f32 0.0, %v1670
    %v1672 = vpop.f32.mrf.mxu0
    %1673 = vmatprep.mubr.f32.mxu0 0.0
    %1674 = vmatmul.mubr.f32.gmra.mxu0 %v1594
    %v1675 = vpop.f32.mrf.mxu0
    %v1676 = vadd.f32 0.0, %v1675
    %v1677 = vpop.f32.mrf.mxu0
    %1678 = vmatprep.mubr.f32.mxu0 0.0
    %1679 = vmatmul.mubr.f32.gmra.mxu0 %v1596
    %v1680 = vpop.f32.mrf.mxu0
    %v1681 = vadd.f32 0.0, %v1680
    %v1682 = vpop.f32.mrf.mxu0
    %1683 = vdwg.mxu0
    %s1684 = scalar_lea.vmem %s5, 96
    %v1685 = vld [vmem:[%s1684] sm:$0xff]
    %v1686 = vld [vmem:[%s1684 + $0x8] sm:$0xff]
    %v1687 = vld [vmem:[%s1684 + $0x10] sm:$0xff]
    %v1688 = vld [vmem:[%s1684 + $0x18] sm:$0xff]
    %1689 = vmatprep.subr.mxu0 0.0
    %1690 = vmatpush1.msra.mxu0 0.0
    %1691 = vmatprep.subr.mxu0 0.0
    %1692 = vmatpush1.msra.mxu0 0.0
    %1693 = vmatprep.subr.mxu0 0.0
    %1694 = vmatpush1.msra.mxu0 0.0
    %1695 = vmatprep.subr.mxu0 0.0
    %1696 = vmatpush1.msra.mxu0 0.0
    %1697 = vmatprep.subr.mxu0 0.0
    %1698 = vmatpush1.msra.mxu0 0.0
    %1699 = vmatprep.subr.mxu0 0.0
    %1700 = vmatpush1.msra.mxu0 0.0
    %1701 = vmatprep.subr.mxu0 0.0
    %1702 = vmatpush1.msra.mxu0 0.0
    %1703 = vmatprep.subr.mxu0 0.0
    %1704 = vmatpush1.msra.mxu0 0.0
    %1705 = vmatprep.subr.mxu0 0.0
    %1706 = vmatpush1.msra.mxu0 0.0
    %1707 = vmatprep.subr.mxu0 0.0
    %1708 = vmatpush1.msra.mxu0 0.0
    %1709 = vmatprep.subr.mxu0 0.0
    %1710 = vmatpush1.msra.mxu0 0.0
    %1711 = vmatprep.subr.mxu0 0.0
    %1712 = vmatpush1.msra.mxu0 0.0
    %1713 = vmatprep.subr.mxu0 0.0
    %1714 = vmatpush1.msra.mxu0 %v1688
    %1715 = vmatprep.subr.mxu0 0.0
    %1716 = vmatpush1.msra.mxu0 %v1687
    %1717 = vmatprep.subr.mxu0 0.0
    %1718 = vmatpush1.msra.mxu0 %v1686
    %1719 = vmatprep.subr.mxu0 0.0
    %1720 = vmatpush1.msra.mxu0 %v1685
    %1721 = vmatprep.subr.mxu0 0.0
    %1722 = vmatpush2.msra.mxu0 0.0
    %1723 = vmatprep.subr.mxu0 0.0
    %1724 = vmatpush2.msra.mxu0 0.0
    %1725 = vmatprep.subr.mxu0 0.0
    %1726 = vmatpush2.msra.mxu0 0.0
    %1727 = vmatprep.subr.mxu0 0.0
    %1728 = vmatpush2.msra.mxu0 0.0
    %1729 = vmatprep.subr.mxu0 0.0
    %1730 = vmatpush2.msra.mxu0 0.0
    %1731 = vmatprep.subr.mxu0 0.0
    %1732 = vmatpush2.msra.mxu0 0.0
    %1733 = vmatprep.subr.mxu0 0.0
    %1734 = vmatpush2.msra.mxu0 0.0
    %1735 = vmatprep.subr.mxu0 0.0
    %1736 = vmatpush2.msra.mxu0 0.0
    %1737 = vmatprep.subr.mxu0 0.0
    %1738 = vmatpush2.msra.mxu0 0.0
    %1739 = vmatprep.subr.mxu0 0.0
    %1740 = vmatpush2.msra.mxu0 0.0
    %1741 = vmatprep.subr.mxu0 0.0
    %1742 = vmatpush2.msra.mxu0 0.0
    %1743 = vmatprep.subr.mxu0 0.0
    %1744 = vmatpush2.msra.mxu0 0.0
    %1745 = vmatprep.subr.mxu0 0.0
    %1746 = vmatpush2.msra.mxu0 0.0
    %1747 = vmatprep.subr.mxu0 0.0
    %1748 = vmatpush2.msra.mxu0 0.0
    %1749 = vmatprep.subr.mxu0 0.0
    %1750 = vmatpush2.msra.mxu0 0.0
    %1751 = vmatprep.subr.mxu0 0.0
    %1752 = vmatpush2.msra.mxu0 0.0
    %1753 = vmatprep.mubr.f32.mxu0 0.0
    %1754 = vmatmul.mubr.f32.gmra.mxu0 %v208
    %v1755 = vpop.f32.mrf.mxu0
    %v1756 = vadd.f32 0.0, %v1755
    %v1757 = vpop.f32.mrf.mxu0
    %1758 = vmatprep.mubr.f32.mxu0 0.0
    %1759 = vmatmul.mubr.f32.gmra.mxu0 %v211
    %v1760 = vpop.f32.mrf.mxu0
    %v1761 = vadd.f32 0.0, %v1760
    %v1762 = vpop.f32.mrf.mxu0
    %1763 = vmatprep.mubr.f32.mxu0 0.0
    %1764 = vmatmul.mubr.f32.gmra.mxu0 %v214
    %v1765 = vpop.f32.mrf.mxu0
    %v1766 = vadd.f32 0.0, %v1765
    %v1767 = vpop.f32.mrf.mxu0
    %1768 = vmatprep.mubr.f32.mxu0 0.0
    %1769 = vmatmul.mubr.f32.gmra.mxu0 %v217
    %v1770 = vpop.f32.mrf.mxu0
    %v1771 = vadd.f32 0.0, %v1770
    %v1772 = vpop.f32.mrf.mxu0
    %1773 = vmatprep.mubr.f32.mxu0 0.0
    %1774 = vmatmul.mubr.f32.gmra.mxu0 %v220
    %v1775 = vpop.f32.mrf.mxu0
    %v1776 = vadd.f32 0.0, %v1775
    %v1777 = vpop.f32.mrf.mxu0
    %1778 = vdwg.mxu0
    %s1779 = scalar_lea.vmem %s6, 96
    %v1780 = vld [vmem:[%s1779] sm:$0xff]
    %v1781 = vld [vmem:[%s1779 + $0x8] sm:$0xff]
    %v1782 = vld [vmem:[%s1779 + $0x10] sm:$0xff]
    %v1783 = vld [vmem:[%s1779 + $0x18] sm:$0xff]
    %1784 = vmatprep.subr.mxu0 0.0
    %1785 = vmatpush1.msra.mxu0 0.0
    %1786 = vmatprep.subr.mxu0 0.0
    %1787 = vmatpush1.msra.mxu0 0.0
    %1788 = vmatprep.subr.mxu0 0.0
    %1789 = vmatpush1.msra.mxu0 0.0
    %1790 = vmatprep.subr.mxu0 0.0
    %1791 = vmatpush1.msra.mxu0 0.0
    %1792 = vmatprep.subr.mxu0 0.0
    %1793 = vmatpush1.msra.mxu0 0.0
    %1794 = vmatprep.subr.mxu0 0.0
    %1795 = vmatpush1.msra.mxu0 0.0
    %1796 = vmatprep.subr.mxu0 0.0
    %1797 = vmatpush1.msra.mxu0 0.0
    %1798 = vmatprep.subr.mxu0 0.0
    %1799 = vmatpush1.msra.mxu0 0.0
    %1800 = vmatprep.subr.mxu0 0.0
    %1801 = vmatpush1.msra.mxu0 0.0
    %1802 = vmatprep.subr.mxu0 0.0
    %1803 = vmatpush1.msra.mxu0 0.0
    %1804 = vmatprep.subr.mxu0 0.0
    %1805 = vmatpush1.msra.mxu0 0.0
    %1806 = vmatprep.subr.mxu0 0.0
    %1807 = vmatpush1.msra.mxu0 0.0
    %1808 = vmatprep.subr.mxu0 0.0
    %1809 = vmatpush1.msra.mxu0 %v1783
    %1810 = vmatprep.subr.mxu0 0.0
    %1811 = vmatpush1.msra.mxu0 %v1782
    %1812 = vmatprep.subr.mxu0 0.0
    %1813 = vmatpush1.msra.mxu0 %v1781
    %1814 = vmatprep.subr.mxu0 0.0
    %1815 = vmatpush1.msra.mxu0 %v1780
    %1816 = vmatprep.subr.mxu0 0.0
    %1817 = vmatpush2.msra.mxu0 0.0
    %1818 = vmatprep.subr.mxu0 0.0
    %1819 = vmatpush2.msra.mxu0 0.0
    %1820 = vmatprep.subr.mxu0 0.0
    %1821 = vmatpush2.msra.mxu0 0.0
    %1822 = vmatprep.subr.mxu0 0.0
    %1823 = vmatpush2.msra.mxu0 0.0
    %1824 = vmatprep.subr.mxu0 0.0
    %1825 = vmatpush2.msra.mxu0 0.0
    %1826 = vmatprep.subr.mxu0 0.0
    %1827 = vmatpush2.msra.mxu0 0.0
    %1828 = vmatprep.subr.mxu0 0.0
    %1829 = vmatpush2.msra.mxu0 0.0
    %1830 = vmatprep.subr.mxu0 0.0
    %1831 = vmatpush2.msra.mxu0 0.0
    %1832 = vmatprep.subr.mxu0 0.0
    %1833 = vmatpush2.msra.mxu0 0.0
    %1834 = vmatprep.subr.mxu0 0.0
    %1835 = vmatpush2.msra.mxu0 0.0
    %1836 = vmatprep.subr.mxu0 0.0
    %1837 = vmatpush2.msra.mxu0 0.0
    %1838 = vmatprep.subr.mxu0 0.0
    %1839 = vmatpush2.msra.mxu0 0.0
    %1840 = vmatprep.subr.mxu0 0.0
    %1841 = vmatpush2.msra.mxu0 0.0
    %1842 = vmatprep.subr.mxu0 0.0
    %1843 = vmatpush2.msra.mxu0 0.0
    %1844 = vmatprep.subr.mxu0 0.0
    %1845 = vmatpush2.msra.mxu0 0.0
    %1846 = vmatprep.subr.mxu0 0.0
    %1847 = vmatpush2.msra.mxu0 0.0
    %1848 = vmatprep.mubr.f32.mxu0 0.0
    %1849 = vmatmul.mubr.f32.gmra.mxu0 %v208
    %v1850 = vpop.f32.mrf.mxu0
    %v1851 = vadd.f32 0.0, %v1850
    %v1852 = vpop.f32.mrf.mxu0
    %1853 = vmatprep.mubr.f32.mxu0 0.0
    %1854 = vmatmul.mubr.f32.gmra.mxu0 %v211
    %v1855 = vpop.f32.mrf.mxu0
    %v1856 = vadd.f32 0.0, %v1855
    %v1857 = vpop.f32.mrf.mxu0
    %1858 = vmatprep.mubr.f32.mxu0 0.0
    %1859 = vmatmul.mubr.f32.gmra.mxu0 %v214
    %v1860 = vpop.f32.mrf.mxu0
    %v1861 = vadd.f32 0.0, %v1860
    %v1862 = vpop.f32.mrf.mxu0
    %1863 = vmatprep.mubr.f32.mxu0 0.0
    %1864 = vmatmul.mubr.f32.gmra.mxu0 %v217
    %v1865 = vpop.f32.mrf.mxu0
    %v1866 = vadd.f32 0.0, %v1865
    %v1867 = vpop.f32.mrf.mxu0
    %1868 = vmatprep.mubr.f32.mxu0 0.0
    %1869 = vmatmul.mubr.f32.gmra.mxu0 %v220
    %v1870 = vpop.f32.mrf.mxu0
    %v1871 = vadd.f32 0.0, %v1870
    %v1872 = vpop.f32.mrf.mxu0
    %1873 = vdwg.mxu0
    %s1874 = scalar_lea.vmem %s7, 96
    %v1875 = vld [vmem:[%s1874] sm:$0xff]
    %v1876 = vld [vmem:[%s1874 + $0x8] sm:$0xff]
    %v1877 = vld [vmem:[%s1874 + $0x10] sm:$0xff]
    %v1878 = vld [vmem:[%s1874 + $0x18] sm:$0xff]
    %1879 = vmatprep.subr.mxu0 0.0
    %1880 = vmatpush1.msra.mxu0 0.0
    %1881 = vmatprep.subr.mxu0 0.0
    %1882 = vmatpush1.msra.mxu0 0.0
    %1883 = vmatprep.subr.mxu0 0.0
    %1884 = vmatpush1.msra.mxu0 0.0
    %1885 = vmatprep.subr.mxu0 0.0
    %1886 = vmatpush1.msra.mxu0 0.0
    %1887 = vmatprep.subr.mxu0 0.0
    %1888 = vmatpush1.msra.mxu0 0.0
    %1889 = vmatprep.subr.mxu0 0.0
    %1890 = vmatpush1.msra.mxu0 0.0
    %1891 = vmatprep.subr.mxu0 0.0
    %1892 = vmatpush1.msra.mxu0 0.0
    %1893 = vmatprep.subr.mxu0 0.0
    %1894 = vmatpush1.msra.mxu0 0.0
    %1895 = vmatprep.subr.mxu0 0.0
    %1896 = vmatpush1.msra.mxu0 0.0
    %1897 = vmatprep.subr.mxu0 0.0
    %1898 = vmatpush1.msra.mxu0 0.0
    %1899 = vmatprep.subr.mxu0 0.0
    %1900 = vmatpush1.msra.mxu0 0.0
    %1901 = vmatprep.subr.mxu0 0.0
    %1902 = vmatpush1.msra.mxu0 0.0
    %1903 = vmatprep.subr.mxu0 0.0
    %1904 = vmatpush1.msra.mxu0 %v1878
    %1905 = vmatprep.subr.mxu0 0.0
    %1906 = vmatpush1.msra.mxu0 %v1877
    %1907 = vmatprep.subr.mxu0 0.0
    %1908 = vmatpush1.msra.mxu0 %v1876
    %1909 = vmatprep.subr.mxu0 0.0
    %1910 = vmatpush1.msra.mxu0 %v1875
    %1911 = vmatprep.subr.mxu0 0.0
    %1912 = vmatpush2.msra.mxu0 0.0
    %1913 = vmatprep.subr.mxu0 0.0
    %1914 = vmatpush2.msra.mxu0 0.0
    %1915 = vmatprep.subr.mxu0 0.0
    %1916 = vmatpush2.msra.mxu0 0.0
    %1917 = vmatprep.subr.mxu0 0.0
    %1918 = vmatpush2.msra.mxu0 0.0
    %1919 = vmatprep.subr.mxu0 0.0
    %1920 = vmatpush2.msra.mxu0 0.0
    %1921 = vmatprep.subr.mxu0 0.0
    %1922 = vmatpush2.msra.mxu0 0.0
    %1923 = vmatprep.subr.mxu0 0.0
    %1924 = vmatpush2.msra.mxu0 0.0
    %1925 = vmatprep.subr.mxu0 0.0
    %1926 = vmatpush2.msra.mxu0 0.0
    %1927 = vmatprep.subr.mxu0 0.0
    %1928 = vmatpush2.msra.mxu0 0.0
    %1929 = vmatprep.subr.mxu0 0.0
    %1930 = vmatpush2.msra.mxu0 0.0
    %1931 = vmatprep.subr.mxu0 0.0
    %1932 = vmatpush2.msra.mxu0 0.0
    %1933 = vmatprep.subr.mxu0 0.0
    %1934 = vmatpush2.msra.mxu0 0.0
    %1935 = vmatprep.subr.mxu0 0.0
    %1936 = vmatpush2.msra.mxu0 0.0
    %1937 = vmatprep.subr.mxu0 0.0
    %1938 = vmatpush2.msra.mxu0 0.0
    %1939 = vmatprep.subr.mxu0 0.0
    %1940 = vmatpush2.msra.mxu0 0.0
    %1941 = vmatprep.subr.mxu0 0.0
    %1942 = vmatpush2.msra.mxu0 0.0
    %1943 = vmatprep.mubr.f32.mxu0 0.0
    %1944 = vmatmul.mubr.f32.gmra.mxu0 %v208
    %v1945 = vpop.f32.mrf.mxu0
    %v1946 = vadd.f32 0.0, %v1945
    %v1947 = vpop.f32.mrf.mxu0
    %1948 = vmatprep.mubr.f32.mxu0 0.0
    %1949 = vmatmul.mubr.f32.gmra.mxu0 %v211
    %v1950 = vpop.f32.mrf.mxu0
    %v1951 = vadd.f32 0.0, %v1950
    %v1952 = vpop.f32.mrf.mxu0
    %1953 = vmatprep.mubr.f32.mxu0 0.0
    %1954 = vmatmul.mubr.f32.gmra.mxu0 %v214
    %v1955 = vpop.f32.mrf.mxu0
    %v1956 = vadd.f32 0.0, %v1955
    %v1957 = vpop.f32.mrf.mxu0
    %1958 = vmatprep.mubr.f32.mxu0 0.0
    %1959 = vmatmul.mubr.f32.gmra.mxu0 %v217
    %v1960 = vpop.f32.mrf.mxu0
    %v1961 = vadd.f32 0.0, %v1960
    %v1962 = vpop.f32.mrf.mxu0
    %1963 = vmatprep.mubr.f32.mxu0 0.0
    %1964 = vmatmul.mubr.f32.gmra.mxu0 %v220
    %v1965 = vpop.f32.mrf.mxu0
    %v1966 = vadd.f32 0.0, %v1965
    %v1967 = vpop.f32.mrf.mxu0
    %1968 = vdwg.mxu0
    %v1970 = vsel %vm500, %v1756, 0
    %v1973 = vsel %vm500, %v1761, 0
    %v1976 = vsel %vm500, %v1766, 0
    %v1979 = vsel %vm500, %v1851, 0
    %v1982 = vsel %vm500, %v1856, 0
    %v1985 = vsel %vm500, %v1861, 0
    %1987 = vmatprep.subr.mxu0 0.0
    %1988 = vmatpush1.xpose.msra.mxu0 0.0
    %1989 = vmatprep.subr.mxu0 0.0
    %1990 = vmatpush1.xpose.msra.mxu0 0.0
    %1991 = vmatprep.subr.mxu0 0.0
    %1992 = vmatpush1.xpose.msra.mxu0 0.0
    %1993 = vmatprep.subr.mxu0 0.0
    %1994 = vmatpush1.xpose.msra.mxu0 0.0
    %1995 = vmatprep.subr.mxu0 0.0
    %1996 = vmatpush1.xpose.msra.mxu0 0.0
    %1997 = vmatprep.subr.mxu0 0.0
    %1998 = vmatpush1.xpose.msra.mxu0 0.0
    %1999 = vmatprep.subr.mxu0 0.0
    %2000 = vmatpush1.xpose.msra.mxu0 0.0
    %2001 = vmatprep.subr.mxu0 0.0
    %2002 = vmatpush1.xpose.msra.mxu0 0.0
    %2003 = vmatprep.subr.mxu0 0.0
    %2004 = vmatpush1.xpose.msra.mxu0 0.0
    %2005 = vmatprep.subr.mxu0 0.0
    %2006 = vmatpush1.xpose.msra.mxu0 0.0
    %2007 = vmatprep.subr.mxu0 0.0
    %2008 = vmatpush1.xpose.msra.mxu0 0.0
    %2009 = vmatprep.subr.mxu0 0.0
    %2010 = vmatpush1.xpose.msra.mxu0 0.0
    %2011 = vmatprep.subr.mxu0 0.0
    %2012 = vmatpush1.xpose.msra.mxu0 0.0
    %2013 = vmatprep.subr.mxu0 0.0
    %2014 = vmatpush1.xpose.msra.mxu0 %v1985
    %2015 = vmatprep.subr.mxu0 0.0
    %2016 = vmatpush1.xpose.msra.mxu0 %v1982
    %2017 = vmatprep.subr.mxu0 0.0
    %2018 = vmatpush1.xpose.msra.mxu0 %v1979
    %2019 = vmatprep.subr.mxu0 0.0
    %2020 = vmatpush2.xpose.msra.mxu0 0.0
    %2021 = vmatprep.subr.mxu0 0.0
    %2022 = vmatpush2.xpose.msra.mxu0 0.0
    %2023 = vmatprep.subr.mxu0 0.0
    %2024 = vmatpush2.xpose.msra.mxu0 0.0
    %2025 = vmatprep.subr.mxu0 0.0
    %2026 = vmatpush2.xpose.msra.mxu0 0.0
    %2027 = vmatprep.subr.mxu0 0.0
    %2028 = vmatpush2.xpose.msra.mxu0 0.0
    %2029 = vmatprep.subr.mxu0 0.0
    %2030 = vmatpush2.xpose.msra.mxu0 0.0
    %2031 = vmatprep.subr.mxu0 0.0
    %2032 = vmatpush2.xpose.msra.mxu0 0.0
    %2033 = vmatprep.subr.mxu0 0.0
    %2034 = vmatpush2.xpose.msra.mxu0 0.0
    %2035 = vmatprep.subr.mxu0 0.0
    %2036 = vmatpush2.xpose.msra.mxu0 0.0
    %2037 = vmatprep.subr.mxu0 0.0
    %2038 = vmatpush2.xpose.msra.mxu0 0.0
    %2039 = vmatprep.subr.mxu0 0.0
    %2040 = vmatpush2.xpose.msra.mxu0 0.0
    %2041 = vmatprep.subr.mxu0 0.0
    %2042 = vmatpush2.xpose.msra.mxu0 0.0
    %2043 = vmatprep.subr.mxu0 0.0
    %2044 = vmatpush2.xpose.msra.mxu0 0.0
    %2045 = vmatprep.subr.mxu0 0.0
    %2046 = vmatpush2.xpose.msra.mxu0 0.0
    %2047 = vmatprep.subr.mxu0 0.0
    %2048 = vmatpush2.xpose.msra.mxu0 0.0
    %2049 = vmatprep.subr.mxu0 0.0
    %2050 = vmatpush2.xpose.msra.mxu0 0.0
    %2051 = vmatprep.mubr.f32.mxu0 0.0
    %2052 = vmatmul.mubr.f32.gmra.mxu0 %v1970
    %v2053 = vpop.f32.mrf.mxu0
    %v2054 = vadd.f32 0.0, %v2053
    %v2055 = vpop.f32.mrf.mxu0
    %2056 = vmatprep.mubr.f32.mxu0 0.0
    %2057 = vmatmul.mubr.f32.gmra.mxu0 %v1973
    %v2058 = vpop.f32.mrf.mxu0
    %v2059 = vadd.f32 0.0, %v2058
    %v2060 = vpop.f32.mrf.mxu0
    %2061 = vmatprep.mubr.f32.mxu0 0.0
    %2062 = vmatmul.mubr.f32.gmra.mxu0 %v1976
    %v2063 = vpop.f32.mrf.mxu0
    %v2064 = vadd.f32 0.0, %v2063
    %v2065 = vpop.f32.mrf.mxu0
    %2066 = vdwg.mxu0
    %v2069 = vrot.slane %v1766, 1
    %v2070 = vrot.slane %v1771, 1
    %v2071 = vsel %vm601, %v2069, %v2070
    %v2072 = vrot.slane %v1776, 1
    %v2073 = vsel %vm601, %v2070, %v2072
    %v2076 = vrot.slane %v1861, 1
    %v2077 = vrot.slane %v1866, 1
    %v2078 = vsel %vm601, %v2076, %v2077
    %v2079 = vrot.slane %v1871, 1
    %v2080 = vsel %vm601, %v2077, %v2079
    %v2081 = vsel %vm500, %v2071, 0
    %v2083 = vsel %vm500, %v2073, 0
    %v2085 = vsel %vm500, %v2072, 0
    %v2087 = vsel %vm500, %v2078, 0
    %v2089 = vsel %vm500, %v2080, 0
    %v2091 = vsel %vm500, %v2079, 0
    %2093 = vmatprep.subr.mxu0 0.0
    %2094 = vmatpush1.xpose.msra.mxu0 0.0
    %2095 = vmatprep.subr.mxu0 0.0
    %2096 = vmatpush1.xpose.msra.mxu0 0.0
    %2097 = vmatprep.subr.mxu0 0.0
    %2098 = vmatpush1.xpose.msra.mxu0 0.0
    %2099 = vmatprep.subr.mxu0 0.0
    %2100 = vmatpush1.xpose.msra.mxu0 0.0
    %2101 = vmatprep.subr.mxu0 0.0
    %2102 = vmatpush1.xpose.msra.mxu0 0.0
    %2103 = vmatprep.subr.mxu0 0.0
    %2104 = vmatpush1.xpose.msra.mxu0 0.0
    %2105 = vmatprep.subr.mxu0 0.0
    %2106 = vmatpush1.xpose.msra.mxu0 0.0
    %2107 = vmatprep.subr.mxu0 0.0
    %2108 = vmatpush1.xpose.msra.mxu0 0.0
    %2109 = vmatprep.subr.mxu0 0.0
    %2110 = vmatpush1.xpose.msra.mxu0 0.0
    %2111 = vmatprep.subr.mxu0 0.0
    %2112 = vmatpush1.xpose.msra.mxu0 0.0
    %2113 = vmatprep.subr.mxu0 0.0
    %2114 = vmatpush1.xpose.msra.mxu0 0.0
    %2115 = vmatprep.subr.mxu0 0.0
    %2116 = vmatpush1.xpose.msra.mxu0 0.0
    %2117 = vmatprep.subr.mxu0 0.0
    %2118 = vmatpush1.xpose.msra.mxu0 0.0
    %2119 = vmatprep.subr.mxu0 0.0
    %2120 = vmatpush1.xpose.msra.mxu0 %v2091
    %2121 = vmatprep.subr.mxu0 0.0
    %2122 = vmatpush1.xpose.msra.mxu0 %v2089
    %2123 = vmatprep.subr.mxu0 0.0
    %2124 = vmatpush1.xpose.msra.mxu0 %v2087
    %2125 = vmatprep.subr.mxu0 0.0
    %2126 = vmatpush2.xpose.msra.mxu0 0.0
    %2127 = vmatprep.subr.mxu0 0.0
    %2128 = vmatpush2.xpose.msra.mxu0 0.0
    %2129 = vmatprep.subr.mxu0 0.0
    %2130 = vmatpush2.xpose.msra.mxu0 0.0
    %2131 = vmatprep.subr.mxu0 0.0
    %2132 = vmatpush2.xpose.msra.mxu0 0.0
    %2133 = vmatprep.subr.mxu0 0.0
    %2134 = vmatpush2.xpose.msra.mxu0 0.0
    %2135 = vmatprep.subr.mxu0 0.0
    %2136 = vmatpush2.xpose.msra.mxu0 0.0
    %2137 = vmatprep.subr.mxu0 0.0
    %2138 = vmatpush2.xpose.msra.mxu0 0.0
    %2139 = vmatprep.subr.mxu0 0.0
    %2140 = vmatpush2.xpose.msra.mxu0 0.0
    %2141 = vmatprep.subr.mxu0 0.0
    %2142 = vmatpush2.xpose.msra.mxu0 0.0
    %2143 = vmatprep.subr.mxu0 0.0
    %2144 = vmatpush2.xpose.msra.mxu0 0.0
    %2145 = vmatprep.subr.mxu0 0.0
    %2146 = vmatpush2.xpose.msra.mxu0 0.0
    %2147 = vmatprep.subr.mxu0 0.0
    %2148 = vmatpush2.xpose.msra.mxu0 0.0
    %2149 = vmatprep.subr.mxu0 0.0
    %2150 = vmatpush2.xpose.msra.mxu0 0.0
    %2151 = vmatprep.subr.mxu0 0.0
    %2152 = vmatpush2.xpose.msra.mxu0 0.0
    %2153 = vmatprep.subr.mxu0 0.0
    %2154 = vmatpush2.xpose.msra.mxu0 0.0
    %2155 = vmatprep.subr.mxu0 0.0
    %2156 = vmatpush2.xpose.msra.mxu0 0.0
    %2157 = vmatprep.mubr.f32.mxu0 0.0
    %2158 = vmatmul.mubr.f32.gmra.mxu0 %v2081
    %v2159 = vpop.f32.mrf.mxu0
    %v2160 = vadd.f32 0.0, %v2159
    %v2161 = vpop.f32.mrf.mxu0
    %2162 = vmatprep.mubr.f32.mxu0 0.0
    %2163 = vmatmul.mubr.f32.gmra.mxu0 %v2083
    %v2164 = vpop.f32.mrf.mxu0
    %v2165 = vadd.f32 0.0, %v2164
    %v2166 = vpop.f32.mrf.mxu0
    %2167 = vmatprep.mubr.f32.mxu0 0.0
    %2168 = vmatmul.mubr.f32.gmra.mxu0 %v2085
    %v2169 = vpop.f32.mrf.mxu0
    %v2170 = vadd.f32 0.0, %v2169
    %v2171 = vpop.f32.mrf.mxu0
    %2172 = vdwg.mxu0
    %v2176 = vrot.slane %v693, 7
    %v2177 = vrot.slane %v698, 7
    %v2178 = vsel %vm76, %v2176, %v2177
    %v2179 = vrot.slane %v703, 7
    %v2180 = vsel %vm76, %v2177, %v2179
    %vm2187 = vcmask 1041408
    %v2188 = vrot.slane %v1076, 6
    %v2189 = vrot.slane %v1081, 6
    %v2190 = vsel %vm2187, %v2188, %v2189
    %v2191 = vrot.slane %v1086, 6
    %v2192 = vsel %vm2187, %v2189, %v2191
    %vm2199 = vcmask 1042432
    %v2200 = vrot.slane %v1182, 5
    %v2201 = vrot.slane %v1187, 5
    %v2202 = vsel %vm2199, %v2200, %v2201
    %v2203 = vrot.slane %v1192, 5
    %v2204 = vsel %vm2199, %v2201, %v2203
    %vm2211 = vcmask 1043456
    %v2212 = vrot.slane %v1565, 4
    %v2213 = vrot.slane %v1570, 4
    %v2214 = vsel %vm2211, %v2212, %v2213
    %v2215 = vrot.slane %v1575, 4
    %v2216 = vsel %vm2211, %v2213, %v2215
    %vm2223 = vcmask 1044480
    %v2224 = vrot.slane %v1671, 3
    %v2225 = vrot.slane %v1676, 3
    %v2226 = vsel %vm2223, %v2224, %v2225
    %v2227 = vrot.slane %v1681, 3
    %v2228 = vsel %vm2223, %v2225, %v2227
    %vm2235 = vcmask 1045504
    %v2236 = vrot.slane %v2054, 2
    %v2237 = vrot.slane %v2059, 2
    %v2238 = vsel %vm2235, %v2236, %v2237
    %v2239 = vrot.slane %v2064, 2
    %v2240 = vsel %vm2235, %v2237, %v2239
    %v2247 = vrot.slane %v2160, 1
    %v2248 = vrot.slane %v2165, 1
    %v2249 = vsel %vm601, %v2247, %v2248
    %v2250 = vrot.slane %v2170, 1
    %v2251 = vsel %vm601, %v2248, %v2250
    %v2255 = vsel %vm76, %v596, %v2176
    %v2256 = vsel %vm2187, %v2180, %v2188
    %v2257 = vsel %vm2199, %v2192, %v2200
    %v2258 = vsel %vm2211, %v2204, %v2212
    %v2259 = vsel %vm2223, %v2216, %v2224
    %v2260 = vsel %vm2235, %v2228, %v2236
    %v2261 = vsel %vm601, %v2240, %v2247
    %vm2262 = vcmask 138240
    %v2263 = vsel %vm2262, %v586, -inf
    %2264 = vmax.xlane.f32.xlu0 %v2263
    %v2265 = vpop.xlane.xlu0 %2264
    %v2266 = vsel %vm2262, %v591, -inf
    %2267 = vmax.xlane.f32.xlu0 %v2266
    %v2268 = vpop.xlane.xlu0 %2267
    %v2269 = vsel %vm2262, %v2255, -inf
    %2270 = vmax.xlane.f32.xlu0 %v2269
    %v2271 = vpop.xlane.xlu0 %2270
    %v2272 = vsel %vm2262, %v2178, -inf
    %2273 = vmax.xlane.f32.xlu0 %v2272
    %v2274 = vpop.xlane.xlu0 %2273
    %v2275 = vsel %vm2262, %v2256, -inf
    %2276 = vmax.xlane.f32.xlu0 %v2275
    %v2277 = vpop.xlane.xlu0 %2276
    %v2278 = vsel %vm2262, %v2190, -inf
    %2279 = vmax.xlane.f32.xlu0 %v2278
    %v2280 = vpop.xlane.xlu0 %2279
    %v2281 = vsel %vm2262, %v2257, -inf
    %2282 = vmax.xlane.f32.xlu0 %v2281
    %v2283 = vpop.xlane.xlu0 %2282
    %v2284 = vsel %vm2262, %v2202, -inf
    %2285 = vmax.xlane.f32.xlu0 %v2284
    %v2286 = vpop.xlane.xlu0 %2285
    %v2287 = vsel %vm2262, %v2258, -inf
    %2288 = vmax.xlane.f32.xlu0 %v2287
    %v2289 = vpop.xlane.xlu0 %2288
    %v2290 = vsel %vm2262, %v2214, -inf
    %2291 = vmax.xlane.f32.xlu0 %v2290
    %v2292 = vpop.xlane.xlu0 %2291
    %v2293 = vsel %vm2262, %v2259, -inf
    %2294 = vmax.xlane.f32.xlu0 %v2293
    %v2295 = vpop.xlane.xlu0 %2294
    %v2296 = vsel %vm2262, %v2226, -inf
    %2297 = vmax.xlane.f32.xlu0 %v2296
    %v2298 = vpop.xlane.xlu0 %2297
    %v2299 = vsel %vm2262, %v2260, -inf
    %2300 = vmax.xlane.f32.xlu0 %v2299
    %v2301 = vpop.xlane.xlu0 %2300
    %v2302 = vsel %vm2262, %v2238, -inf
    %2303 = vmax.xlane.f32.xlu0 %v2302
    %v2304 = vpop.xlane.xlu0 %2303
    %v2305 = vsel %vm2262, %v2261, -inf
    %2306 = vmax.xlane.f32.xlu0 %v2305
    %v2307 = vpop.xlane.xlu0 %2306
    %v2308 = vsel %vm2262, %v2249, -inf
    %2309 = vmax.xlane.f32.xlu0 %v2308
    %v2310 = vpop.xlane.xlu0 %2309
    %v2311 = vsel %vm2262, %v2251, -inf
    %2312 = vmax.xlane.f32.xlu0 %v2311
    %v2313 = vpop.xlane.xlu0 %2312
    %v2314 = vsub.f32 %v586, %v2265
    %v2315 = vsub.f32 %v591, %v2268
    %v2316 = vsub.f32 %v2255, %v2271
    %v2317 = vsub.f32 %v2178, %v2274
    %v2318 = vsub.f32 %v2256, %v2277
    %v2319 = vsub.f32 %v2190, %v2280
    %v2320 = vsub.f32 %v2257, %v2283
    %v2321 = vsub.f32 %v2202, %v2286
    %v2322 = vsub.f32 %v2258, %v2289
    %v2323 = vsub.f32 %v2214, %v2292
    %v2324 = vsub.f32 %v2259, %v2295
    %v2325 = vsub.f32 %v2226, %v2298
    %v2326 = vsub.f32 %v2260, %v2301
    %v2327 = vsub.f32 %v2238, %v2304
    %v2328 = vsub.f32 %v2261, %v2307
    %v2329 = vsub.f32 %v2249, %v2310
    %v2330 = vsub.f32 %v2251, %v2313
    %v2331 = vmul.f32 %v2314, 1.442695
    %v2332 = vpow.pop %v2331
    %v2333 = vmul.f32 %v2315, 1.442695
    %v2334 = vpow.pop %v2333
    %v2335 = vmul.f32 %v2316, 1.442695
    %v2336 = vpow.pop %v2335
    %v2337 = vmul.f32 %v2317, 1.442695
    %v2338 = vpow.pop %v2337
    %v2339 = vmul.f32 %v2318, 1.442695
    %v2340 = vpow.pop %v2339
    %v2341 = vmul.f32 %v2319, 1.442695
    %v2342 = vpow.pop %v2341
    %v2343 = vmul.f32 %v2320, 1.442695
    %v2344 = vpow.pop %v2343
    %v2345 = vmul.f32 %v2321, 1.442695
    %v2346 = vpow.pop %v2345
    %v2347 = vmul.f32 %v2322, 1.442695
    %v2348 = vpow.pop %v2347
    %v2349 = vmul.f32 %v2323, 1.442695
    %v2350 = vpow.pop %v2349
    %v2351 = vmul.f32 %v2324, 1.442695
    %v2352 = vpow.pop %v2351
    %v2353 = vmul.f32 %v2325, 1.442695
    %v2354 = vpow.pop %v2353
    %v2355 = vmul.f32 %v2326, 1.442695
    %v2356 = vpow.pop %v2355
    %v2357 = vmul.f32 %v2327, 1.442695
    %v2358 = vpow.pop %v2357
    %v2359 = vmul.f32 %v2328, 1.442695
    %v2360 = vpow.pop %v2359
    %v2361 = vmul.f32 %v2329, 1.442695
    %v2362 = vpow.pop %v2361
    %v2363 = vmul.f32 %v2330, 1.442695
    %v2364 = vpow.pop %v2363
    %v2365 = vsel %vm2262, %v2332, 0.0
    %2366 = vadd.xlane.f32.xlu0 %v2365
    %v2367 = vpop.xlane.xlu0 %2366
    %v2368 = vsel %vm2262, %v2334, 0.0
    %2369 = vadd.xlane.f32.xlu0 %v2368
    %v2370 = vpop.xlane.xlu0 %2369
    %v2371 = vsel %vm2262, %v2336, 0.0
    %2372 = vadd.xlane.f32.xlu0 %v2371
    %v2373 = vpop.xlane.xlu0 %2372
    %v2374 = vsel %vm2262, %v2338, 0.0
    %2375 = vadd.xlane.f32.xlu0 %v2374
    %v2376 = vpop.xlane.xlu0 %2375
    %v2377 = vsel %vm2262, %v2340, 0.0
    %2378 = vadd.xlane.f32.xlu0 %v2377
    %v2379 = vpop.xlane.xlu0 %2378
    %v2380 = vsel %vm2262, %v2342, 0.0
    %2381 = vadd.xlane.f32.xlu0 %v2380
    %v2382 = vpop.xlane.xlu0 %2381
    %v2383 = vsel %vm2262, %v2344, 0.0
    %2384 = vadd.xlane.f32.xlu0 %v2383
    %v2385 = vpop.xlane.xlu0 %2384
    %v2386 = vsel %vm2262, %v2346, 0.0
    %2387 = vadd.xlane.f32.xlu0 %v2386
    %v2388 = vpop.xlane.xlu0 %2387
    %v2389 = vsel %vm2262, %v2348, 0.0
    %2390 = vadd.xlane.f32.xlu0 %v2389
    %v2391 = vpop.xlane.xlu0 %2390
    %v2392 = vsel %vm2262, %v2350, 0.0
    %2393 = vadd.xlane.f32.xlu0 %v2392
    %v2394 = vpop.xlane.xlu0 %2393
    %v2395 = vsel %vm2262, %v2352, 0.0
    %2396 = vadd.xlane.f32.xlu0 %v2395
    %v2397 = vpop.xlane.xlu0 %2396
    %v2398 = vsel %vm2262, %v2354, 0.0
    %2399 = vadd.xlane.f32.xlu0 %v2398
    %v2400 = vpop.xlane.xlu0 %2399
    %v2401 = vsel %vm2262, %v2356, 0.0
    %2402 = vadd.xlane.f32.xlu0 %v2401
    %v2403 = vpop.xlane.xlu0 %2402
    %v2404 = vsel %vm2262, %v2358, 0.0
    %2405 = vadd.xlane.f32.xlu0 %v2404
    %v2406 = vpop.xlane.xlu0 %2405
    %v2407 = vsel %vm2262, %v2360, 0.0
    %2408 = vadd.xlane.f32.xlu0 %v2407
    %v2409 = vpop.xlane.xlu0 %2408
    %v2410 = vsel %vm2262, %v2362, 0.0
    %2411 = vadd.xlane.f32.xlu0 %v2410
    %v2412 = vpop.xlane.xlu0 %2411
    %v2413 = vsel %vm2262, %v2364, 0.0
    %2414 = vadd.xlane.f32.xlu0 %v2413
    %v2415 = vpop.xlane.xlu0 %2414
    %v2416 = vrcp.pop %v2367
    %v2417 = vrcp.pop %v2370
    %v2418 = vrcp.pop %v2373
    %v2419 = vrcp.pop %v2376
    %v2420 = vrcp.pop %v2379
    %v2421 = vrcp.pop %v2382
    %v2422 = vrcp.pop %v2385
    %v2423 = vrcp.pop %v2388
    %v2424 = vrcp.pop %v2391
    %v2425 = vrcp.pop %v2394
    %v2426 = vrcp.pop %v2397
    %v2427 = vrcp.pop %v2400
    %v2428 = vrcp.pop %v2403
    %v2429 = vrcp.pop %v2406
    %v2430 = vrcp.pop %v2409
    %v2431 = vrcp.pop %v2412
    %v2432 = vrcp.pop %v2415
    %v2433 = vmul.f32 %v2332, %v2416
    %v2434 = vmul.f32 %v2334, %v2417
    %v2435 = vmul.f32 %v2336, %v2418
    %v2436 = vmul.f32 %v2338, %v2419
    %v2437 = vmul.f32 %v2340, %v2420
    %v2438 = vmul.f32 %v2342, %v2421
    %v2439 = vmul.f32 %v2344, %v2422
    %v2440 = vmul.f32 %v2346, %v2423
    %v2441 = vmul.f32 %v2348, %v2424
    %v2442 = vmul.f32 %v2350, %v2425
    %v2443 = vmul.f32 %v2352, %v2426
    %v2444 = vmul.f32 %v2354, %v2427
    %v2445 = vmul.f32 %v2356, %v2428
    %v2446 = vmul.f32 %v2358, %v2429
    %v2447 = vmul.f32 %v2360, %v2430
    %v2448 = vmul.f32 %v2362, %v2431
    %v2449 = vmul.f32 %v2364, %v2432
    %v2451 = vsel %vm2262, %v2433, 0
    %v2454 = vsel %vm2262, %v2434, 0
    %v2457 = vsel %vm2262, %v2435, 0
    %v2460 = vsel %vm76, %v487, 0
    %2462 = vmatprep.subr.mxu0 0.0
    %2463 = vmatpush1.msra.mxu0 0.0
    %2464 = vmatprep.subr.mxu0 0.0
    %2465 = vmatpush1.msra.mxu0 0.0
    %2466 = vmatprep.subr.mxu0 0.0
    %2467 = vmatpush1.msra.mxu0 0.0
    %2468 = vmatprep.subr.mxu0 0.0
    %2469 = vmatpush1.msra.mxu0 0.0
    %2470 = vmatprep.subr.mxu0 0.0
    %2471 = vmatpush1.msra.mxu0 0.0
    %2472 = vmatprep.subr.mxu0 0.0
    %2473 = vmatpush1.msra.mxu0 0.0
    %2474 = vmatprep.subr.mxu0 0.0
    %2475 = vmatpush1.msra.mxu0 0.0
    %2476 = vmatprep.subr.mxu0 0.0
    %2477 = vmatpush1.msra.mxu0 0.0
    %2478 = vmatprep.subr.mxu0 0.0
    %2479 = vmatpush1.msra.mxu0 0.0
    %2480 = vmatprep.subr.mxu0 0.0
    %2481 = vmatpush1.msra.mxu0 0.0
    %2482 = vmatprep.subr.mxu0 0.0
    %2483 = vmatpush1.msra.mxu0 0.0
    %2484 = vmatprep.subr.mxu0 0.0
    %2485 = vmatpush1.msra.mxu0 0.0
    %2486 = vmatprep.subr.mxu0 0.0
    %2487 = vmatpush1.msra.mxu0 0.0
    %2488 = vmatprep.subr.mxu0 0.0
    %2489 = vmatpush1.msra.mxu0 %v2460
    %2490 = vmatprep.subr.mxu0 0.0
    %2491 = vmatpush1.msra.mxu0 %v482
    %2492 = vmatprep.subr.mxu0 0.0
    %2493 = vmatpush1.msra.mxu0 %v477
    %2494 = vmatprep.subr.mxu0 0.0
    %2495 = vmatpush2.msra.mxu0 0.0
    %2496 = vmatprep.subr.mxu0 0.0
    %2497 = vmatpush2.msra.mxu0 0.0
    %2498 = vmatprep.subr.mxu0 0.0
    %2499 = vmatpush2.msra.mxu0 0.0
    %2500 = vmatprep.subr.mxu0 0.0
    %2501 = vmatpush2.msra.mxu0 0.0
    %2502 = vmatprep.subr.mxu0 0.0
    %2503 = vmatpush2.msra.mxu0 0.0
    %2504 = vmatprep.subr.mxu0 0.0
    %2505 = vmatpush2.msra.mxu0 0.0
    %2506 = vmatprep.subr.mxu0 0.0
    %2507 = vmatpush2.msra.mxu0 0.0
    %2508 = vmatprep.subr.mxu0 0.0
    %2509 = vmatpush2.msra.mxu0 0.0
    %2510 = vmatprep.subr.mxu0 0.0
    %2511 = vmatpush2.msra.mxu0 0.0
    %2512 = vmatprep.subr.mxu0 0.0
    %2513 = vmatpush2.msra.mxu0 0.0
    %2514 = vmatprep.subr.mxu0 0.0
    %2515 = vmatpush2.msra.mxu0 0.0
    %2516 = vmatprep.subr.mxu0 0.0
    %2517 = vmatpush2.msra.mxu0 0.0
    %2518 = vmatprep.subr.mxu0 0.0
    %2519 = vmatpush2.msra.mxu0 0.0
    %2520 = vmatprep.subr.mxu0 0.0
    %2521 = vmatpush2.msra.mxu0 0.0
    %2522 = vmatprep.subr.mxu0 0.0
    %2523 = vmatpush2.msra.mxu0 0.0
    %2524 = vmatprep.subr.mxu0 0.0
    %2525 = vmatpush2.msra.mxu0 0.0
    %2526 = vmatprep.mubr.f32.mxu0 0.0
    %2527 = vmatmul.mubr.f32.gmra.mxu0 %v2451
    %v2528 = vpop.f32.mrf.mxu0
    %v2529 = vadd.f32 0.0, %v2528
    %v2530 = vpop.f32.mrf.mxu0
    %2531 = vmatprep.mubr.f32.mxu0 0.0
    %2532 = vmatmul.mubr.f32.gmra.mxu0 %v2454
    %v2533 = vpop.f32.mrf.mxu0
    %v2534 = vadd.f32 0.0, %v2533
    %v2535 = vpop.f32.mrf.mxu0
    %2536 = vmatprep.mubr.f32.mxu0 0.0
    %2537 = vmatmul.mubr.f32.gmra.mxu0 %v2457
    %v2538 = vpop.f32.mrf.mxu0
    %v2539 = vadd.f32 0.0, %v2538
    %v2540 = vpop.f32.mrf.mxu0
    %2541 = vdwg.mxu0
    %v2544 = vrot.slane %v2435, 1
    %v2545 = vrot.slane %v2436, 1
    %v2546 = vsel %vm601, %v2544, %v2545
    %v2547 = vrot.slane %v2437, 1
    %v2548 = vsel %vm601, %v2545, %v2547
    %v2551 = vrot.slane %v487, 1
    %v2552 = vrot.slane %v492, 1
    %v2553 = vsel %vm601, %v2551, %v2552
    %v2554 = vrot.slane %v497, 1
    %v2555 = vsel %vm601, %v2552, %v2554
    %v2558 = vsel %vm2262, %v2546, 0
    %v2560 = vsel %vm2262, %v2548, 0
    %v2562 = vsel %vm2262, %v2547, 0
    %v2564 = vsel %vm76, %v2554, 0
    %2566 = vmatprep.subr.mxu0 0.0
    %2567 = vmatpush1.msra.mxu0 0.0
    %2568 = vmatprep.subr.mxu0 0.0
    %2569 = vmatpush1.msra.mxu0 0.0
    %2570 = vmatprep.subr.mxu0 0.0
    %2571 = vmatpush1.msra.mxu0 0.0
    %2572 = vmatprep.subr.mxu0 0.0
    %2573 = vmatpush1.msra.mxu0 0.0
    %2574 = vmatprep.subr.mxu0 0.0
    %2575 = vmatpush1.msra.mxu0 0.0
    %2576 = vmatprep.subr.mxu0 0.0
    %2577 = vmatpush1.msra.mxu0 0.0
    %2578 = vmatprep.subr.mxu0 0.0
    %2579 = vmatpush1.msra.mxu0 0.0
    %2580 = vmatprep.subr.mxu0 0.0
    %2581 = vmatpush1.msra.mxu0 0.0
    %2582 = vmatprep.subr.mxu0 0.0
    %2583 = vmatpush1.msra.mxu0 0.0
    %2584 = vmatprep.subr.mxu0 0.0
    %2585 = vmatpush1.msra.mxu0 0.0
    %2586 = vmatprep.subr.mxu0 0.0
    %2587 = vmatpush1.msra.mxu0 0.0
    %2588 = vmatprep.subr.mxu0 0.0
    %2589 = vmatpush1.msra.mxu0 0.0
    %2590 = vmatprep.subr.mxu0 0.0
    %2591 = vmatpush1.msra.mxu0 0.0
    %2592 = vmatprep.subr.mxu0 0.0
    %2593 = vmatpush1.msra.mxu0 %v2564
    %2594 = vmatprep.subr.mxu0 0.0
    %2595 = vmatpush1.msra.mxu0 %v2555
    %2596 = vmatprep.subr.mxu0 0.0
    %2597 = vmatpush1.msra.mxu0 %v2553
    %2598 = vmatprep.subr.mxu0 0.0
    %2599 = vmatpush2.msra.mxu0 0.0
    %2600 = vmatprep.subr.mxu0 0.0
    %2601 = vmatpush2.msra.mxu0 0.0
    %2602 = vmatprep.subr.mxu0 0.0
    %2603 = vmatpush2.msra.mxu0 0.0
    %2604 = vmatprep.subr.mxu0 0.0
    %2605 = vmatpush2.msra.mxu0 0.0
    %2606 = vmatprep.subr.mxu0 0.0
    %2607 = vmatpush2.msra.mxu0 0.0
    %2608 = vmatprep.subr.mxu0 0.0
    %2609 = vmatpush2.msra.mxu0 0.0
    %2610 = vmatprep.subr.mxu0 0.0
    %2611 = vmatpush2.msra.mxu0 0.0
    %2612 = vmatprep.subr.mxu0 0.0
    %2613 = vmatpush2.msra.mxu0 0.0
    %2614 = vmatprep.subr.mxu0 0.0
    %2615 = vmatpush2.msra.mxu0 0.0
    %2616 = vmatprep.subr.mxu0 0.0
    %2617 = vmatpush2.msra.mxu0 0.0
    %2618 = vmatprep.subr.mxu0 0.0
    %2619 = vmatpush2.msra.mxu0 0.0
    %2620 = vmatprep.subr.mxu0 0.0
    %2621 = vmatpush2.msra.mxu0 0.0
    %2622 = vmatprep.subr.mxu0 0.0
    %2623 = vmatpush2.msra.mxu0 0.0
    %2624 = vmatprep.subr.mxu0 0.0
    %2625 = vmatpush2.msra.mxu0 0.0
    %2626 = vmatprep.subr.mxu0 0.0
    %2627 = vmatpush2.msra.mxu0 0.0
    %2628 = vmatprep.subr.mxu0 0.0
    %2629 = vmatpush2.msra.mxu0 0.0
    %2630 = vmatprep.mubr.f32.mxu0 0.0
    %2631 = vmatmul.mubr.f32.gmra.mxu0 %v2558
    %v2632 = vpop.f32.mrf.mxu0
    %v2633 = vadd.f32 0.0, %v2632
    %v2634 = vpop.f32.mrf.mxu0
    %2635 = vmatprep.mubr.f32.mxu0 0.0
    %2636 = vmatmul.mubr.f32.gmra.mxu0 %v2560
    %v2637 = vpop.f32.mrf.mxu0
    %v2638 = vadd.f32 0.0, %v2637
    %v2639 = vpop.f32.mrf.mxu0
    %2640 = vmatprep.mubr.f32.mxu0 0.0
    %2641 = vmatmul.mubr.f32.gmra.mxu0 %v2562
    %v2642 = vpop.f32.mrf.mxu0
    %v2643 = vadd.f32 0.0, %v2642
    %v2644 = vpop.f32.mrf.mxu0
    %2645 = vdwg.mxu0
    %v2649 = vrot.slane %v2633, 7
    %v2650 = vrot.slane %v2638, 7
    %v2651 = vsel %vm76, %v2649, %v2650
    %v2652 = vrot.slane %v2643, 7
    %v2653 = vsel %vm76, %v2650, %v2652
    %v2655 = vsel %vm76, %v2539, %v2649
    %v2656 = vld [vmem:[%s8] sm:$0xff]
    %v2659 = vrot.slane %v2437, 2
    %v2660 = vrot.slane %v2438, 2
    %v2661 = vsel %vm2235, %v2659, %v2660
    %v2662 = vrot.slane %v2439, 2
    %v2663 = vsel %vm2235, %v2660, %v2662
    %v2664 = vsel %vm2262, %v2661, 0
    %v2666 = vsel %vm2262, %v2663, 0
    %v2668 = vsel %vm2262, %v2662, 0
    %v2671 = vsel %vm76, %v978, 0
    %2673 = vmatprep.subr.mxu0 0.0
    %2674 = vmatpush1.msra.mxu0 0.0
    %2675 = vmatprep.subr.mxu0 0.0
    %2676 = vmatpush1.msra.mxu0 0.0
    %2677 = vmatprep.subr.mxu0 0.0
    %2678 = vmatpush1.msra.mxu0 0.0
    %2679 = vmatprep.subr.mxu0 0.0
    %2680 = vmatpush1.msra.mxu0 0.0
    %2681 = vmatprep.subr.mxu0 0.0
    %2682 = vmatpush1.msra.mxu0 0.0
    %2683 = vmatprep.subr.mxu0 0.0
    %2684 = vmatpush1.msra.mxu0 0.0
    %2685 = vmatprep.subr.mxu0 0.0
    %2686 = vmatpush1.msra.mxu0 0.0
    %2687 = vmatprep.subr.mxu0 0.0
    %2688 = vmatpush1.msra.mxu0 0.0
    %2689 = vmatprep.subr.mxu0 0.0
    %2690 = vmatpush1.msra.mxu0 0.0
    %2691 = vmatprep.subr.mxu0 0.0
    %2692 = vmatpush1.msra.mxu0 0.0
    %2693 = vmatprep.subr.mxu0 0.0
    %2694 = vmatpush1.msra.mxu0 0.0
    %2695 = vmatprep.subr.mxu0 0.0
    %2696 = vmatpush1.msra.mxu0 0.0
    %2697 = vmatprep.subr.mxu0 0.0
    %2698 = vmatpush1.msra.mxu0 0.0
    %2699 = vmatprep.subr.mxu0 0.0
    %2700 = vmatpush1.msra.mxu0 %v2671
    %2701 = vmatprep.subr.mxu0 0.0
    %2702 = vmatpush1.msra.mxu0 %v973
    %2703 = vmatprep.subr.mxu0 0.0
    %2704 = vmatpush1.msra.mxu0 %v968
    %2705 = vmatprep.subr.mxu0 0.0
    %2706 = vmatpush2.msra.mxu0 0.0
    %2707 = vmatprep.subr.mxu0 0.0
    %2708 = vmatpush2.msra.mxu0 0.0
    %2709 = vmatprep.subr.mxu0 0.0
    %2710 = vmatpush2.msra.mxu0 0.0
    %2711 = vmatprep.subr.mxu0 0.0
    %2712 = vmatpush2.msra.mxu0 0.0
    %2713 = vmatprep.subr.mxu0 0.0
    %2714 = vmatpush2.msra.mxu0 0.0
    %2715 = vmatprep.subr.mxu0 0.0
    %2716 = vmatpush2.msra.mxu0 0.0
    %2717 = vmatprep.subr.mxu0 0.0
    %2718 = vmatpush2.msra.mxu0 0.0
    %2719 = vmatprep.subr.mxu0 0.0
    %2720 = vmatpush2.msra.mxu0 0.0
    %2721 = vmatprep.subr.mxu0 0.0
    %2722 = vmatpush2.msra.mxu0 0.0
    %2723 = vmatprep.subr.mxu0 0.0
    %2724 = vmatpush2.msra.mxu0 0.0
    %2725 = vmatprep.subr.mxu0 0.0
    %2726 = vmatpush2.msra.mxu0 0.0
    %2727 = vmatprep.subr.mxu0 0.0
    %2728 = vmatpush2.msra.mxu0 0.0
    %2729 = vmatprep.subr.mxu0 0.0
    %2730 = vmatpush2.msra.mxu0 0.0
    %2731 = vmatprep.subr.mxu0 0.0
    %2732 = vmatpush2.msra.mxu0 0.0
    %2733 = vmatprep.subr.mxu0 0.0
    %2734 = vmatpush2.msra.mxu0 0.0
    %2735 = vmatprep.subr.mxu0 0.0
    %2736 = vmatpush2.msra.mxu0 0.0
    %2737 = vmatprep.mubr.f32.mxu0 0.0
    %2738 = vmatmul.mubr.f32.gmra.mxu0 %v2664
    %v2739 = vpop.f32.mrf.mxu0
    %v2740 = vadd.f32 0.0, %v2739
    %v2741 = vpop.f32.mrf.mxu0
    %2742 = vmatprep.mubr.f32.mxu0 0.0
    %2743 = vmatmul.mubr.f32.gmra.mxu0 %v2666
    %v2744 = vpop.f32.mrf.mxu0
    %v2745 = vadd.f32 0.0, %v2744
    %v2746 = vpop.f32.mrf.mxu0
    %2747 = vmatprep.mubr.f32.mxu0 0.0
    %2748 = vmatmul.mubr.f32.gmra.mxu0 %v2668
    %v2749 = vpop.f32.mrf.mxu0
    %v2750 = vadd.f32 0.0, %v2749
    %v2751 = vpop.f32.mrf.mxu0
    %2752 = vdwg.mxu0
    %v2755 = vrot.slane %v2439, 3
    %v2756 = vrot.slane %v2440, 3
    %v2757 = vsel %vm2223, %v2755, %v2756
    %v2758 = vrot.slane %v2441, 3
    %v2759 = vsel %vm2223, %v2756, %v2758
    %v2762 = vrot.slane %v978, 1
    %v2763 = vrot.slane %v983, 1
    %v2764 = vsel %vm601, %v2762, %v2763
    %v2765 = vrot.slane %v988, 1
    %v2766 = vsel %vm601, %v2763, %v2765
    %v2769 = vsel %vm2262, %v2757, 0
    %v2771 = vsel %vm2262, %v2759, 0
    %v2773 = vsel %vm2262, %v2758, 0
    %v2775 = vsel %vm76, %v2765, 0
    %2777 = vmatprep.subr.mxu0 0.0
    %2778 = vmatpush1.msra.mxu0 0.0
    %2779 = vmatprep.subr.mxu0 0.0
    %2780 = vmatpush1.msra.mxu0 0.0
    %2781 = vmatprep.subr.mxu0 0.0
    %2782 = vmatpush1.msra.mxu0 0.0
    %2783 = vmatprep.subr.mxu0 0.0
    %2784 = vmatpush1.msra.mxu0 0.0
    %2785 = vmatprep.subr.mxu0 0.0
    %2786 = vmatpush1.msra.mxu0 0.0
    %2787 = vmatprep.subr.mxu0 0.0
    %2788 = vmatpush1.msra.mxu0 0.0
    %2789 = vmatprep.subr.mxu0 0.0
    %2790 = vmatpush1.msra.mxu0 0.0
    %2791 = vmatprep.subr.mxu0 0.0
    %2792 = vmatpush1.msra.mxu0 0.0
    %2793 = vmatprep.subr.mxu0 0.0
    %2794 = vmatpush1.msra.mxu0 0.0
    %2795 = vmatprep.subr.mxu0 0.0
    %2796 = vmatpush1.msra.mxu0 0.0
    %2797 = vmatprep.subr.mxu0 0.0
    %2798 = vmatpush1.msra.mxu0 0.0
    %2799 = vmatprep.subr.mxu0 0.0
    %2800 = vmatpush1.msra.mxu0 0.0
    %2801 = vmatprep.subr.mxu0 0.0
    %2802 = vmatpush1.msra.mxu0 0.0
    %2803 = vmatprep.subr.mxu0 0.0
    %2804 = vmatpush1.msra.mxu0 %v2775
    %2805 = vmatprep.subr.mxu0 0.0
    %2806 = vmatpush1.msra.mxu0 %v2766
    %2807 = vmatprep.subr.mxu0 0.0
    %2808 = vmatpush1.msra.mxu0 %v2764
    %2809 = vmatprep.subr.mxu0 0.0
    %2810 = vmatpush2.msra.mxu0 0.0
    %2811 = vmatprep.subr.mxu0 0.0
    %2812 = vmatpush2.msra.mxu0 0.0
    %2813 = vmatprep.subr.mxu0 0.0
    %2814 = vmatpush2.msra.mxu0 0.0
    %2815 = vmatprep.subr.mxu0 0.0
    %2816 = vmatpush2.msra.mxu0 0.0
    %2817 = vmatprep.subr.mxu0 0.0
    %2818 = vmatpush2.msra.mxu0 0.0
    %2819 = vmatprep.subr.mxu0 0.0
    %2820 = vmatpush2.msra.mxu0 0.0
    %2821 = vmatprep.subr.mxu0 0.0
    %2822 = vmatpush2.msra.mxu0 0.0
    %2823 = vmatprep.subr.mxu0 0.0
    %2824 = vmatpush2.msra.mxu0 0.0
    %2825 = vmatprep.subr.mxu0 0.0
    %2826 = vmatpush2.msra.mxu0 0.0
    %2827 = vmatprep.subr.mxu0 0.0
    %2828 = vmatpush2.msra.mxu0 0.0
    %2829 = vmatprep.subr.mxu0 0.0
    %2830 = vmatpush2.msra.mxu0 0.0
    %2831 = vmatprep.subr.mxu0 0.0
    %2832 = vmatpush2.msra.mxu0 0.0
    %2833 = vmatprep.subr.mxu0 0.0
    %2834 = vmatpush2.msra.mxu0 0.0
    %2835 = vmatprep.subr.mxu0 0.0
    %2836 = vmatpush2.msra.mxu0 0.0
    %2837 = vmatprep.subr.mxu0 0.0
    %2838 = vmatpush2.msra.mxu0 0.0
    %2839 = vmatprep.subr.mxu0 0.0
    %2840 = vmatpush2.msra.mxu0 0.0
    %2841 = vmatprep.mubr.f32.mxu0 0.0
    %2842 = vmatmul.mubr.f32.gmra.mxu0 %v2769
    %v2843 = vpop.f32.mrf.mxu0
    %v2844 = vadd.f32 0.0, %v2843
    %v2845 = vpop.f32.mrf.mxu0
    %2846 = vmatprep.mubr.f32.mxu0 0.0
    %2847 = vmatmul.mubr.f32.gmra.mxu0 %v2771
    %v2848 = vpop.f32.mrf.mxu0
    %v2849 = vadd.f32 0.0, %v2848
    %v2850 = vpop.f32.mrf.mxu0
    %2851 = vmatprep.mubr.f32.mxu0 0.0
    %2852 = vmatmul.mubr.f32.gmra.mxu0 %v2773
    %v2853 = vpop.f32.mrf.mxu0
    %v2854 = vadd.f32 0.0, %v2853
    %v2855 = vpop.f32.mrf.mxu0
    %2856 = vdwg.mxu0
    %v2860 = vrot.slane %v2844, 7
    %v2861 = vrot.slane %v2849, 7
    %v2862 = vsel %vm76, %v2860, %v2861
    %v2863 = vrot.slane %v2854, 7
    %v2864 = vsel %vm76, %v2861, %v2863
    %v2866 = vsel %vm76, %v2750, %v2860
    %s2867 = scalar_lea.vmem %s8, 8
    %v2868 = vld [vmem:[%s2867] sm:$0xff]
    %v2870 = vsel %vm500, %v2740, 0
    %v2873 = vsel %vm500, %v2745, 0
    %v2876 = vsel %vm500, %v2866, 0
    %v2878 = vsel %vm500, %v2862, 0
    %v2880 = vsel %vm500, %v2864, 0
    %2882 = vmatprep.subr.mxu0 0.0
    %2883 = vmatpush1.msra.mxu0 0.0
    %2884 = vmatprep.subr.mxu0 0.0
    %2885 = vmatpush1.msra.mxu0 0.0
    %2886 = vmatprep.subr.mxu0 0.0
    %2887 = vmatpush1.msra.mxu0 0.0
    %2888 = vmatprep.subr.mxu0 0.0
    %2889 = vmatpush1.msra.mxu0 0.0
    %2890 = vmatprep.subr.mxu0 0.0
    %2891 = vmatpush1.msra.mxu0 0.0
    %2892 = vmatprep.subr.mxu0 0.0
    %2893 = vmatpush1.msra.mxu0 0.0
    %2894 = vmatprep.subr.mxu0 0.0
    %2895 = vmatpush1.msra.mxu0 0.0
    %2896 = vmatprep.subr.mxu0 0.0
    %2897 = vmatpush1.msra.mxu0 0.0
    %2898 = vmatprep.subr.mxu0 0.0
    %2899 = vmatpush1.msra.mxu0 0.0
    %2900 = vmatprep.subr.mxu0 0.0
    %2901 = vmatpush1.msra.mxu0 0.0
    %2902 = vmatprep.subr.mxu0 0.0
    %2903 = vmatpush1.msra.mxu0 0.0
    %2904 = vmatprep.subr.mxu0 0.0
    %2905 = vmatpush1.msra.mxu0 0.0
    %2906 = vmatprep.subr.mxu0 0.0
    %2907 = vmatpush1.msra.mxu0 0.0
    %2908 = vmatprep.subr.mxu0 0.0
    %2909 = vmatpush1.msra.mxu0 0.0
    %2910 = vmatprep.subr.mxu0 0.0
    %2911 = vmatpush1.msra.mxu0 0.0
    %2912 = vmatprep.subr.mxu0 0.0
    %2913 = vmatpush1.msra.mxu0 %v2868
    %2914 = vmatprep.subr.mxu0 0.0
    %2915 = vmatpush2.msra.mxu0 0.0
    %2916 = vmatprep.subr.mxu0 0.0
    %2917 = vmatpush2.msra.mxu0 0.0
    %2918 = vmatprep.subr.mxu0 0.0
    %2919 = vmatpush2.msra.mxu0 0.0
    %2920 = vmatprep.subr.mxu0 0.0
    %2921 = vmatpush2.msra.mxu0 0.0
    %2922 = vmatprep.subr.mxu0 0.0
    %2923 = vmatpush2.msra.mxu0 0.0
    %2924 = vmatprep.subr.mxu0 0.0
    %2925 = vmatpush2.msra.mxu0 0.0
    %2926 = vmatprep.subr.mxu0 0.0
    %2927 = vmatpush2.msra.mxu0 0.0
    %2928 = vmatprep.subr.mxu0 0.0
    %2929 = vmatpush2.msra.mxu0 0.0
    %2930 = vmatprep.subr.mxu0 0.0
    %2931 = vmatpush2.msra.mxu0 0.0
    %2932 = vmatprep.subr.mxu0 0.0
    %2933 = vmatpush2.msra.mxu0 0.0
    %2934 = vmatprep.subr.mxu0 0.0
    %2935 = vmatpush2.msra.mxu0 0.0
    %2936 = vmatprep.subr.mxu0 0.0
    %2937 = vmatpush2.msra.mxu0 0.0
    %2938 = vmatprep.subr.mxu0 0.0
    %2939 = vmatpush2.msra.mxu0 0.0
    %2940 = vmatprep.subr.mxu0 0.0
    %2941 = vmatpush2.msra.mxu0 0.0
    %2942 = vmatprep.subr.mxu0 0.0
    %2943 = vmatpush2.msra.mxu0 0.0
    %2944 = vmatprep.subr.mxu0 0.0
    %2945 = vmatpush2.msra.mxu0 0.0
    %2946 = vmatprep.mubr.f32.mxu0 0.0
    %2947 = vmatmul.mubr.f32.gmra.mxu0 %v2870
    %v2948 = vpop.f32.mrf.mxu0
    %v2949 = vadd.f32 0.0, %v2948
    %v2950 = vpop.f32.mrf.mxu0
    %2951 = vmatprep.mubr.f32.mxu0 0.0
    %2952 = vmatmul.mubr.f32.gmra.mxu0 %v2873
    %v2953 = vpop.f32.mrf.mxu0
    %v2954 = vadd.f32 0.0, %v2953
    %v2955 = vpop.f32.mrf.mxu0
    %2956 = vmatprep.mubr.f32.mxu0 0.0
    %2957 = vmatmul.mubr.f32.gmra.mxu0 %v2876
    %v2958 = vpop.f32.mrf.mxu0
    %v2959 = vadd.f32 0.0, %v2958
    %v2960 = vpop.f32.mrf.mxu0
    %2961 = vmatprep.mubr.f32.mxu0 0.0
    %2962 = vmatmul.mubr.f32.gmra.mxu0 %v2878
    %v2963 = vpop.f32.mrf.mxu0
    %v2964 = vadd.f32 0.0, %v2963
    %v2965 = vpop.f32.mrf.mxu0
    %2966 = vmatprep.mubr.f32.mxu0 0.0
    %2967 = vmatmul.mubr.f32.gmra.mxu0 %v2880
    %v2968 = vpop.f32.mrf.mxu0
    %v2969 = vadd.f32 0.0, %v2968
    %v2970 = vpop.f32.mrf.mxu0
    %2971 = vdwg.mxu0
    %v2973 = vsel %vm500, %v2529, 0
    %v2976 = vsel %vm500, %v2534, 0
    %v2979 = vsel %vm500, %v2655, 0
    %v2981 = vsel %vm500, %v2651, 0
    %v2983 = vsel %vm500, %v2653, 0
    %2985 = vmatprep.subr.mxu0 0.0
    %2986 = vmatpush1.msra.mxu0 0.0
    %2987 = vmatprep.subr.mxu0 0.0
    %2988 = vmatpush1.msra.mxu0 0.0
    %2989 = vmatprep.subr.mxu0 0.0
    %2990 = vmatpush1.msra.mxu0 0.0
    %2991 = vmatprep.subr.mxu0 0.0
    %2992 = vmatpush1.msra.mxu0 0.0
    %2993 = vmatprep.subr.mxu0 0.0
    %2994 = vmatpush1.msra.mxu0 0.0
    %2995 = vmatprep.subr.mxu0 0.0
    %2996 = vmatpush1.msra.mxu0 0.0
    %2997 = vmatprep.subr.mxu0 0.0
    %2998 = vmatpush1.msra.mxu0 0.0
    %2999 = vmatprep.subr.mxu0 0.0
    %3000 = vmatpush1.msra.mxu0 0.0
    %3001 = vmatprep.subr.mxu0 0.0
    %3002 = vmatpush1.msra.mxu0 0.0
    %3003 = vmatprep.subr.mxu0 0.0
    %3004 = vmatpush1.msra.mxu0 0.0
    %3005 = vmatprep.subr.mxu0 0.0
    %3006 = vmatpush1.msra.mxu0 0.0
    %3007 = vmatprep.subr.mxu0 0.0
    %3008 = vmatpush1.msra.mxu0 0.0
    %3009 = vmatprep.subr.mxu0 0.0
    %3010 = vmatpush1.msra.mxu0 0.0
    %3011 = vmatprep.subr.mxu0 0.0
    %3012 = vmatpush1.msra.mxu0 0.0
    %3013 = vmatprep.subr.mxu0 0.0
    %3014 = vmatpush1.msra.mxu0 0.0
    %3015 = vmatprep.subr.mxu0 0.0
    %3016 = vmatpush1.msra.mxu0 %v2656
    %3017 = vmatprep.subr.mxu0 0.0
    %3018 = vmatpush2.msra.mxu0 0.0
    %3019 = vmatprep.subr.mxu0 0.0
    %3020 = vmatpush2.msra.mxu0 0.0
    %3021 = vmatprep.subr.mxu0 0.0
    %3022 = vmatpush2.msra.mxu0 0.0
    %3023 = vmatprep.subr.mxu0 0.0
    %3024 = vmatpush2.msra.mxu0 0.0
    %3025 = vmatprep.subr.mxu0 0.0
    %3026 = vmatpush2.msra.mxu0 0.0
    %3027 = vmatprep.subr.mxu0 0.0
    %3028 = vmatpush2.msra.mxu0 0.0
    %3029 = vmatprep.subr.mxu0 0.0
    %3030 = vmatpush2.msra.mxu0 0.0
    %3031 = vmatprep.subr.mxu0 0.0
    %3032 = vmatpush2.msra.mxu0 0.0
    %3033 = vmatprep.subr.mxu0 0.0
    %3034 = vmatpush2.msra.mxu0 0.0
    %3035 = vmatprep.subr.mxu0 0.0
    %3036 = vmatpush2.msra.mxu0 0.0
    %3037 = vmatprep.subr.mxu0 0.0
    %3038 = vmatpush2.msra.mxu0 0.0
    %3039 = vmatprep.subr.mxu0 0.0
    %3040 = vmatpush2.msra.mxu0 0.0
    %3041 = vmatprep.subr.mxu0 0.0
    %3042 = vmatpush2.msra.mxu0 0.0
    %3043 = vmatprep.subr.mxu0 0.0
    %3044 = vmatpush2.msra.mxu0 0.0
    %3045 = vmatprep.subr.mxu0 0.0
    %3046 = vmatpush2.msra.mxu0 0.0
    %3047 = vmatprep.subr.mxu0 0.0
    %3048 = vmatpush2.msra.mxu0 0.0
    %3049 = vmatprep.mubr.f32.mxu0 0.0
    %3050 = vmatmul.mubr.f32.gmra.mxu0 %v2973
    %v3051 = vpop.f32.mrf.mxu0
    %v3052 = vadd.f32 %v2949, %v3051
    %v3053 = vpop.f32.mrf.mxu0
    %3054 = vmatprep.mubr.f32.mxu0 0.0
    %3055 = vmatmul.mubr.f32.gmra.mxu0 %v2976
    %v3056 = vpop.f32.mrf.mxu0
    %v3057 = vadd.f32 %v2954, %v3056
    %v3058 = vpop.f32.mrf.mxu0
    %3059 = vmatprep.mubr.f32.mxu0 0.0
    %3060 = vmatmul.mubr.f32.gmra.mxu0 %v2979
    %v3061 = vpop.f32.mrf.mxu0
    %v3062 = vadd.f32 %v2959, %v3061
    %v3063 = vpop.f32.mrf.mxu0
    %3064 = vmatprep.mubr.f32.mxu0 0.0
    %3065 = vmatmul.mubr.f32.gmra.mxu0 %v2981
    %v3066 = vpop.f32.mrf.mxu0
    %v3067 = vadd.f32 %v2964, %v3066
    %v3068 = vpop.f32.mrf.mxu0
    %3069 = vmatprep.mubr.f32.mxu0 0.0
    %3070 = vmatmul.mubr.f32.gmra.mxu0 %v2983
    %v3071 = vpop.f32.mrf.mxu0
    %v3072 = vadd.f32 %v2969, %v3071
    %v3073 = vpop.f32.mrf.mxu0
    %3074 = vdwg.mxu0
    %v3077 = vrot.slane %v2441, 4
    %v3078 = vrot.slane %v2442, 4
    %v3079 = vsel %vm2211, %v3077, %v3078
    %v3080 = vrot.slane %v2443, 4
    %v3081 = vsel %vm2211, %v3078, %v3080
    %v3082 = vsel %vm2262, %v3079, 0
    %v3084 = vsel %vm2262, %v3081, 0
    %v3086 = vsel %vm2262, %v3080, 0
    %v3089 = vsel %vm76, %v1467, 0
    %3091 = vmatprep.subr.mxu0 0.0
    %3092 = vmatpush1.msra.mxu0 0.0
    %3093 = vmatprep.subr.mxu0 0.0
    %3094 = vmatpush1.msra.mxu0 0.0
    %3095 = vmatprep.subr.mxu0 0.0
    %3096 = vmatpush1.msra.mxu0 0.0
    %3097 = vmatprep.subr.mxu0 0.0
    %3098 = vmatpush1.msra.mxu0 0.0
    %3099 = vmatprep.subr.mxu0 0.0
    %3100 = vmatpush1.msra.mxu0 0.0
    %3101 = vmatprep.subr.mxu0 0.0
    %3102 = vmatpush1.msra.mxu0 0.0
    %3103 = vmatprep.subr.mxu0 0.0
    %3104 = vmatpush1.msra.mxu0 0.0
    %3105 = vmatprep.subr.mxu0 0.0
    %3106 = vmatpush1.msra.mxu0 0.0
    %3107 = vmatprep.subr.mxu0 0.0
    %3108 = vmatpush1.msra.mxu0 0.0
    %3109 = vmatprep.subr.mxu0 0.0
    %3110 = vmatpush1.msra.mxu0 0.0
    %3111 = vmatprep.subr.mxu0 0.0
    %3112 = vmatpush1.msra.mxu0 0.0
    %3113 = vmatprep.subr.mxu0 0.0
    %3114 = vmatpush1.msra.mxu0 0.0
    %3115 = vmatprep.subr.mxu0 0.0
    %3116 = vmatpush1.msra.mxu0 0.0
    %3117 = vmatprep.subr.mxu0 0.0
    %3118 = vmatpush1.msra.mxu0 %v3089
    %3119 = vmatprep.subr.mxu0 0.0
    %3120 = vmatpush1.msra.mxu0 %v1462
    %3121 = vmatprep.subr.mxu0 0.0
    %3122 = vmatpush1.msra.mxu0 %v1457
    %3123 = vmatprep.subr.mxu0 0.0
    %3124 = vmatpush2.msra.mxu0 0.0
    %3125 = vmatprep.subr.mxu0 0.0
    %3126 = vmatpush2.msra.mxu0 0.0
    %3127 = vmatprep.subr.mxu0 0.0
    %3128 = vmatpush2.msra.mxu0 0.0
    %3129 = vmatprep.subr.mxu0 0.0
    %3130 = vmatpush2.msra.mxu0 0.0
    %3131 = vmatprep.subr.mxu0 0.0
    %3132 = vmatpush2.msra.mxu0 0.0
    %3133 = vmatprep.subr.mxu0 0.0
    %3134 = vmatpush2.msra.mxu0 0.0
    %3135 = vmatprep.subr.mxu0 0.0
    %3136 = vmatpush2.msra.mxu0 0.0
    %3137 = vmatprep.subr.mxu0 0.0
    %3138 = vmatpush2.msra.mxu0 0.0
    %3139 = vmatprep.subr.mxu0 0.0
    %3140 = vmatpush2.msra.mxu0 0.0
    %3141 = vmatprep.subr.mxu0 0.0
    %3142 = vmatpush2.msra.mxu0 0.0
    %3143 = vmatprep.subr.mxu0 0.0
    %3144 = vmatpush2.msra.mxu0 0.0
    %3145 = vmatprep.subr.mxu0 0.0
    %3146 = vmatpush2.msra.mxu0 0.0
    %3147 = vmatprep.subr.mxu0 0.0
    %3148 = vmatpush2.msra.mxu0 0.0
    %3149 = vmatprep.subr.mxu0 0.0
    %3150 = vmatpush2.msra.mxu0 0.0
    %3151 = vmatprep.subr.mxu0 0.0
    %3152 = vmatpush2.msra.mxu0 0.0
    %3153 = vmatprep.subr.mxu0 0.0
    %3154 = vmatpush2.msra.mxu0 0.0
    %3155 = vmatprep.mubr.f32.mxu0 0.0
    %3156 = vmatmul.mubr.f32.gmra.mxu0 %v3082
    %v3157 = vpop.f32.mrf.mxu0
    %v3158 = vadd.f32 0.0, %v3157
    %v3159 = vpop.f32.mrf.mxu0
    %3160 = vmatprep.mubr.f32.mxu0 0.0
    %3161 = vmatmul.mubr.f32.gmra.mxu0 %v3084
    %v3162 = vpop.f32.mrf.mxu0
    %v3163 = vadd.f32 0.0, %v3162
    %v3164 = vpop.f32.mrf.mxu0
    %3165 = vmatprep.mubr.f32.mxu0 0.0
    %3166 = vmatmul.mubr.f32.gmra.mxu0 %v3086
    %v3167 = vpop.f32.mrf.mxu0
    %v3168 = vadd.f32 0.0, %v3167
    %v3169 = vpop.f32.mrf.mxu0
    %3170 = vdwg.mxu0
    %v3173 = vrot.slane %v2443, 5
    %v3174 = vrot.slane %v2444, 5
    %v3175 = vsel %vm2199, %v3173, %v3174
    %v3176 = vrot.slane %v2445, 5
    %v3177 = vsel %vm2199, %v3174, %v3176
    %v3180 = vrot.slane %v1467, 1
    %v3181 = vrot.slane %v1472, 1
    %v3182 = vsel %vm601, %v3180, %v3181
    %v3183 = vrot.slane %v1477, 1
    %v3184 = vsel %vm601, %v3181, %v3183
    %v3187 = vsel %vm2262, %v3175, 0
    %v3189 = vsel %vm2262, %v3177, 0
    %v3191 = vsel %vm2262, %v3176, 0
    %v3193 = vsel %vm76, %v3183, 0
    %3195 = vmatprep.subr.mxu0 0.0
    %3196 = vmatpush1.msra.mxu0 0.0
    %3197 = vmatprep.subr.mxu0 0.0
    %3198 = vmatpush1.msra.mxu0 0.0
    %3199 = vmatprep.subr.mxu0 0.0
    %3200 = vmatpush1.msra.mxu0 0.0
    %3201 = vmatprep.subr.mxu0 0.0
    %3202 = vmatpush1.msra.mxu0 0.0
    %3203 = vmatprep.subr.mxu0 0.0
    %3204 = vmatpush1.msra.mxu0 0.0
    %3205 = vmatprep.subr.mxu0 0.0
    %3206 = vmatpush1.msra.mxu0 0.0
    %3207 = vmatprep.subr.mxu0 0.0
    %3208 = vmatpush1.msra.mxu0 0.0
    %3209 = vmatprep.subr.mxu0 0.0
    %3210 = vmatpush1.msra.mxu0 0.0
    %3211 = vmatprep.subr.mxu0 0.0
    %3212 = vmatpush1.msra.mxu0 0.0
    %3213 = vmatprep.subr.mxu0 0.0
    %3214 = vmatpush1.msra.mxu0 0.0
    %3215 = vmatprep.subr.mxu0 0.0
    %3216 = vmatpush1.msra.mxu0 0.0
    %3217 = vmatprep.subr.mxu0 0.0
    %3218 = vmatpush1.msra.mxu0 0.0
    %3219 = vmatprep.subr.mxu0 0.0
    %3220 = vmatpush1.msra.mxu0 0.0
    %3221 = vmatprep.subr.mxu0 0.0
    %3222 = vmatpush1.msra.mxu0 %v3193
    %3223 = vmatprep.subr.mxu0 0.0
    %3224 = vmatpush1.msra.mxu0 %v3184
    %3225 = vmatprep.subr.mxu0 0.0
    %3226 = vmatpush1.msra.mxu0 %v3182
    %3227 = vmatprep.subr.mxu0 0.0
    %3228 = vmatpush2.msra.mxu0 0.0
    %3229 = vmatprep.subr.mxu0 0.0
    %3230 = vmatpush2.msra.mxu0 0.0
    %3231 = vmatprep.subr.mxu0 0.0
    %3232 = vmatpush2.msra.mxu0 0.0
    %3233 = vmatprep.subr.mxu0 0.0
    %3234 = vmatpush2.msra.mxu0 0.0
    %3235 = vmatprep.subr.mxu0 0.0
    %3236 = vmatpush2.msra.mxu0 0.0
    %3237 = vmatprep.subr.mxu0 0.0
    %3238 = vmatpush2.msra.mxu0 0.0
    %3239 = vmatprep.subr.mxu0 0.0
    %3240 = vmatpush2.msra.mxu0 0.0
    %3241 = vmatprep.subr.mxu0 0.0
    %3242 = vmatpush2.msra.mxu0 0.0
    %3243 = vmatprep.subr.mxu0 0.0
    %3244 = vmatpush2.msra.mxu0 0.0
    %3245 = vmatprep.subr.mxu0 0.0
    %3246 = vmatpush2.msra.mxu0 0.0
    %3247 = vmatprep.subr.mxu0 0.0
    %3248 = vmatpush2.msra.mxu0 0.0
    %3249 = vmatprep.subr.mxu0 0.0
    %3250 = vmatpush2.msra.mxu0 0.0
    %3251 = vmatprep.subr.mxu0 0.0
    %3252 = vmatpush2.msra.mxu0 0.0
    %3253 = vmatprep.subr.mxu0 0.0
    %3254 = vmatpush2.msra.mxu0 0.0
    %3255 = vmatprep.subr.mxu0 0.0
    %3256 = vmatpush2.msra.mxu0 0.0
    %3257 = vmatprep.subr.mxu0 0.0
    %3258 = vmatpush2.msra.mxu0 0.0
    %3259 = vmatprep.mubr.f32.mxu0 0.0
    %3260 = vmatmul.mubr.f32.gmra.mxu0 %v3187
    %v3261 = vpop.f32.mrf.mxu0
    %v3262 = vadd.f32 0.0, %v3261
    %v3263 = vpop.f32.mrf.mxu0
    %3264 = vmatprep.mubr.f32.mxu0 0.0
    %3265 = vmatmul.mubr.f32.gmra.mxu0 %v3189
    %v3266 = vpop.f32.mrf.mxu0
    %v3267 = vadd.f32 0.0, %v3266
    %v3268 = vpop.f32.mrf.mxu0
    %3269 = vmatprep.mubr.f32.mxu0 0.0
    %3270 = vmatmul.mubr.f32.gmra.mxu0 %v3191
    %v3271 = vpop.f32.mrf.mxu0
    %v3272 = vadd.f32 0.0, %v3271
    %v3273 = vpop.f32.mrf.mxu0
    %3274 = vdwg.mxu0
    %v3278 = vrot.slane %v3262, 7
    %v3279 = vrot.slane %v3267, 7
    %v3280 = vsel %vm76, %v3278, %v3279
    %v3281 = vrot.slane %v3272, 7
    %v3282 = vsel %vm76, %v3279, %v3281
    %v3284 = vsel %vm76, %v3168, %v3278
    %s3285 = scalar_lea.vmem %s8, 16
    %v3286 = vld [vmem:[%s3285] sm:$0xff]
    %v3288 = vsel %vm500, %v3158, 0
    %v3291 = vsel %vm500, %v3163, 0
    %v3294 = vsel %vm500, %v3284, 0
    %v3296 = vsel %vm500, %v3280, 0
    %v3298 = vsel %vm500, %v3282, 0
    %3300 = vmatprep.subr.mxu0 0.0
    %3301 = vmatpush1.msra.mxu0 0.0
    %3302 = vmatprep.subr.mxu0 0.0
    %3303 = vmatpush1.msra.mxu0 0.0
    %3304 = vmatprep.subr.mxu0 0.0
    %3305 = vmatpush1.msra.mxu0 0.0
    %3306 = vmatprep.subr.mxu0 0.0
    %3307 = vmatpush1.msra.mxu0 0.0
    %3308 = vmatprep.subr.mxu0 0.0
    %3309 = vmatpush1.msra.mxu0 0.0
    %3310 = vmatprep.subr.mxu0 0.0
    %3311 = vmatpush1.msra.mxu0 0.0
    %3312 = vmatprep.subr.mxu0 0.0
    %3313 = vmatpush1.msra.mxu0 0.0
    %3314 = vmatprep.subr.mxu0 0.0
    %3315 = vmatpush1.msra.mxu0 0.0
    %3316 = vmatprep.subr.mxu0 0.0
    %3317 = vmatpush1.msra.mxu0 0.0
    %3318 = vmatprep.subr.mxu0 0.0
    %3319 = vmatpush1.msra.mxu0 0.0
    %3320 = vmatprep.subr.mxu0 0.0
    %3321 = vmatpush1.msra.mxu0 0.0
    %3322 = vmatprep.subr.mxu0 0.0
    %3323 = vmatpush1.msra.mxu0 0.0
    %3324 = vmatprep.subr.mxu0 0.0
    %3325 = vmatpush1.msra.mxu0 0.0
    %3326 = vmatprep.subr.mxu0 0.0
    %3327 = vmatpush1.msra.mxu0 0.0
    %3328 = vmatprep.subr.mxu0 0.0
    %3329 = vmatpush1.msra.mxu0 0.0
    %3330 = vmatprep.subr.mxu0 0.0
    %3331 = vmatpush1.msra.mxu0 %v3286
    %3332 = vmatprep.subr.mxu0 0.0
    %3333 = vmatpush2.msra.mxu0 0.0
    %3334 = vmatprep.subr.mxu0 0.0
    %3335 = vmatpush2.msra.mxu0 0.0
    %3336 = vmatprep.subr.mxu0 0.0
    %3337 = vmatpush2.msra.mxu0 0.0
    %3338 = vmatprep.subr.mxu0 0.0
    %3339 = vmatpush2.msra.mxu0 0.0
    %3340 = vmatprep.subr.mxu0 0.0
    %3341 = vmatpush2.msra.mxu0 0.0
    %3342 = vmatprep.subr.mxu0 0.0
    %3343 = vmatpush2.msra.mxu0 0.0
    %3344 = vmatprep.subr.mxu0 0.0
    %3345 = vmatpush2.msra.mxu0 0.0
    %3346 = vmatprep.subr.mxu0 0.0
    %3347 = vmatpush2.msra.mxu0 0.0
    %3348 = vmatprep.subr.mxu0 0.0
    %3349 = vmatpush2.msra.mxu0 0.0
    %3350 = vmatprep.subr.mxu0 0.0
    %3351 = vmatpush2.msra.mxu0 0.0
    %3352 = vmatprep.subr.mxu0 0.0
    %3353 = vmatpush2.msra.mxu0 0.0
    %3354 = vmatprep.subr.mxu0 0.0
    %3355 = vmatpush2.msra.mxu0 0.0
    %3356 = vmatprep.subr.mxu0 0.0
    %3357 = vmatpush2.msra.mxu0 0.0
    %3358 = vmatprep.subr.mxu0 0.0
    %3359 = vmatpush2.msra.mxu0 0.0
    %3360 = vmatprep.subr.mxu0 0.0
    %3361 = vmatpush2.msra.mxu0 0.0
    %3362 = vmatprep.subr.mxu0 0.0
    %3363 = vmatpush2.msra.mxu0 0.0
    %3364 = vmatprep.mubr.f32.mxu0 0.0
    %3365 = vmatmul.mubr.f32.gmra.mxu0 %v3288
    %v3366 = vpop.f32.mrf.mxu0
    %v3367 = vadd.f32 0.0, %v3366
    %v3368 = vpop.f32.mrf.mxu0
    %3369 = vmatprep.mubr.f32.mxu0 0.0
    %3370 = vmatmul.mubr.f32.gmra.mxu0 %v3291
    %v3371 = vpop.f32.mrf.mxu0
    %v3372 = vadd.f32 0.0, %v3371
    %v3373 = vpop.f32.mrf.mxu0
    %3374 = vmatprep.mubr.f32.mxu0 0.0
    %3375 = vmatmul.mubr.f32.gmra.mxu0 %v3294
    %v3376 = vpop.f32.mrf.mxu0
    %v3377 = vadd.f32 0.0, %v3376
    %v3378 = vpop.f32.mrf.mxu0
    %3379 = vmatprep.mubr.f32.mxu0 0.0
    %3380 = vmatmul.mubr.f32.gmra.mxu0 %v3296
    %v3381 = vpop.f32.mrf.mxu0
    %v3382 = vadd.f32 0.0, %v3381
    %v3383 = vpop.f32.mrf.mxu0
    %3384 = vmatprep.mubr.f32.mxu0 0.0
    %3385 = vmatmul.mubr.f32.gmra.mxu0 %v3298
    %v3386 = vpop.f32.mrf.mxu0
    %v3387 = vadd.f32 0.0, %v3386
    %v3388 = vpop.f32.mrf.mxu0
    %3389 = vdwg.mxu0
    %v3390 = vadd.f32 %v3052, %v3367
    %v3391 = vadd.f32 %v3057, %v3372
    %v3392 = vadd.f32 %v3062, %v3377
    %v3393 = vadd.f32 %v3067, %v3382
    %v3394 = vadd.f32 %v3072, %v3387
    %v3397 = vrot.slane %v2445, 6
    %v3398 = vrot.slane %v2446, 6
    %v3399 = vsel %vm2187, %v3397, %v3398
    %v3400 = vrot.slane %v2447, 6
    %v3401 = vsel %vm2187, %v3398, %v3400
    %v3402 = vsel %vm2262, %v3399, 0
    %v3404 = vsel %vm2262, %v3401, 0
    %v3406 = vsel %vm2262, %v3400, 0
    %v3409 = vsel %vm76, %v1956, 0
    %3411 = vmatprep.subr.mxu0 0.0
    %3412 = vmatpush1.msra.mxu0 0.0
    %3413 = vmatprep.subr.mxu0 0.0
    %3414 = vmatpush1.msra.mxu0 0.0
    %3415 = vmatprep.subr.mxu0 0.0
    %3416 = vmatpush1.msra.mxu0 0.0
    %3417 = vmatprep.subr.mxu0 0.0
    %3418 = vmatpush1.msra.mxu0 0.0
    %3419 = vmatprep.subr.mxu0 0.0
    %3420 = vmatpush1.msra.mxu0 0.0
    %3421 = vmatprep.subr.mxu0 0.0
    %3422 = vmatpush1.msra.mxu0 0.0
    %3423 = vmatprep.subr.mxu0 0.0
    %3424 = vmatpush1.msra.mxu0 0.0
    %3425 = vmatprep.subr.mxu0 0.0
    %3426 = vmatpush1.msra.mxu0 0.0
    %3427 = vmatprep.subr.mxu0 0.0
    %3428 = vmatpush1.msra.mxu0 0.0
    %3429 = vmatprep.subr.mxu0 0.0
    %3430 = vmatpush1.msra.mxu0 0.0
    %3431 = vmatprep.subr.mxu0 0.0
    %3432 = vmatpush1.msra.mxu0 0.0
    %3433 = vmatprep.subr.mxu0 0.0
    %3434 = vmatpush1.msra.mxu0 0.0
    %3435 = vmatprep.subr.mxu0 0.0
    %3436 = vmatpush1.msra.mxu0 0.0
    %3437 = vmatprep.subr.mxu0 0.0
    %3438 = vmatpush1.msra.mxu0 %v3409
    %3439 = vmatprep.subr.mxu0 0.0
    %3440 = vmatpush1.msra.mxu0 %v1951
    %3441 = vmatprep.subr.mxu0 0.0
    %3442 = vmatpush1.msra.mxu0 %v1946
    %3443 = vmatprep.subr.mxu0 0.0
    %3444 = vmatpush2.msra.mxu0 0.0
    %3445 = vmatprep.subr.mxu0 0.0
    %3446 = vmatpush2.msra.mxu0 0.0
    %3447 = vmatprep.subr.mxu0 0.0
    %3448 = vmatpush2.msra.mxu0 0.0
    %3449 = vmatprep.subr.mxu0 0.0
    %3450 = vmatpush2.msra.mxu0 0.0
    %3451 = vmatprep.subr.mxu0 0.0
    %3452 = vmatpush2.msra.mxu0 0.0
    %3453 = vmatprep.subr.mxu0 0.0
    %3454 = vmatpush2.msra.mxu0 0.0
    %3455 = vmatprep.subr.mxu0 0.0
    %3456 = vmatpush2.msra.mxu0 0.0
    %3457 = vmatprep.subr.mxu0 0.0
    %3458 = vmatpush2.msra.mxu0 0.0
    %3459 = vmatprep.subr.mxu0 0.0
    %3460 = vmatpush2.msra.mxu0 0.0
    %3461 = vmatprep.subr.mxu0 0.0
    %3462 = vmatpush2.msra.mxu0 0.0
    %3463 = vmatprep.subr.mxu0 0.0
    %3464 = vmatpush2.msra.mxu0 0.0
    %3465 = vmatprep.subr.mxu0 0.0
    %3466 = vmatpush2.msra.mxu0 0.0
    %3467 = vmatprep.subr.mxu0 0.0
    %3468 = vmatpush2.msra.mxu0 0.0
    %3469 = vmatprep.subr.mxu0 0.0
    %3470 = vmatpush2.msra.mxu0 0.0
    %3471 = vmatprep.subr.mxu0 0.0
    %3472 = vmatpush2.msra.mxu0 0.0
    %3473 = vmatprep.subr.mxu0 0.0
    %3474 = vmatpush2.msra.mxu0 0.0
    %3475 = vmatprep.mubr.f32.mxu0 0.0
    %3476 = vmatmul.mubr.f32.gmra.mxu0 %v3402
    %v3477 = vpop.f32.mrf.mxu0
    %v3478 = vadd.f32 0.0, %v3477
    %v3479 = vpop.f32.mrf.mxu0
    %3480 = vmatprep.mubr.f32.mxu0 0.0
    %3481 = vmatmul.mubr.f32.gmra.mxu0 %v3404
    %v3482 = vpop.f32.mrf.mxu0
    %v3483 = vadd.f32 0.0, %v3482
    %v3484 = vpop.f32.mrf.mxu0
    %3485 = vmatprep.mubr.f32.mxu0 0.0
    %3486 = vmatmul.mubr.f32.gmra.mxu0 %v3406
    %v3487 = vpop.f32.mrf.mxu0
    %v3488 = vadd.f32 0.0, %v3487
    %v3489 = vpop.f32.mrf.mxu0
    %3490 = vdwg.mxu0
    %v3493 = vrot.slane %v2447, 7
    %v3494 = vrot.slane %v2448, 7
    %v3495 = vsel %vm76, %v3493, %v3494
    %v3496 = vrot.slane %v2449, 7
    %v3497 = vsel %vm76, %v3494, %v3496
    %v3500 = vrot.slane %v1956, 1
    %v3501 = vrot.slane %v1961, 1
    %v3502 = vsel %vm601, %v3500, %v3501
    %v3503 = vrot.slane %v1966, 1
    %v3504 = vsel %vm601, %v3501, %v3503
    %v3507 = vsel %vm2262, %v3495, 0
    %v3509 = vsel %vm2262, %v3497, 0
    %v3511 = vsel %vm2262, %v3496, 0
    %v3513 = vsel %vm76, %v3503, 0
    %3515 = vmatprep.subr.mxu0 0.0
    %3516 = vmatpush1.msra.mxu0 0.0
    %3517 = vmatprep.subr.mxu0 0.0
    %3518 = vmatpush1.msra.mxu0 0.0
    %3519 = vmatprep.subr.mxu0 0.0
    %3520 = vmatpush1.msra.mxu0 0.0
    %3521 = vmatprep.subr.mxu0 0.0
    %3522 = vmatpush1.msra.mxu0 0.0
    %3523 = vmatprep.subr.mxu0 0.0
    %3524 = vmatpush1.msra.mxu0 0.0
    %3525 = vmatprep.subr.mxu0 0.0
    %3526 = vmatpush1.msra.mxu0 0.0
    %3527 = vmatprep.subr.mxu0 0.0
    %3528 = vmatpush1.msra.mxu0 0.0
    %3529 = vmatprep.subr.mxu0 0.0
    %3530 = vmatpush1.msra.mxu0 0.0
    %3531 = vmatprep.subr.mxu0 0.0
    %3532 = vmatpush1.msra.mxu0 0.0
    %3533 = vmatprep.subr.mxu0 0.0
    %3534 = vmatpush1.msra.mxu0 0.0
    %3535 = vmatprep.subr.mxu0 0.0
    %3536 = vmatpush1.msra.mxu0 0.0
    %3537 = vmatprep.subr.mxu0 0.0
    %3538 = vmatpush1.msra.mxu0 0.0
    %3539 = vmatprep.subr.mxu0 0.0
    %3540 = vmatpush1.msra.mxu0 0.0
    %3541 = vmatprep.subr.mxu0 0.0
    %3542 = vmatpush1.msra.mxu0 %v3513
    %3543 = vmatprep.subr.mxu0 0.0
    %3544 = vmatpush1.msra.mxu0 %v3504
    %3545 = vmatprep.subr.mxu0 0.0
    %3546 = vmatpush1.msra.mxu0 %v3502
    %3547 = vmatprep.subr.mxu0 0.0
    %3548 = vmatpush2.msra.mxu0 0.0
    %3549 = vmatprep.subr.mxu0 0.0
    %3550 = vmatpush2.msra.mxu0 0.0
    %3551 = vmatprep.subr.mxu0 0.0
    %3552 = vmatpush2.msra.mxu0 0.0
    %3553 = vmatprep.subr.mxu0 0.0
    %3554 = vmatpush2.msra.mxu0 0.0
    %3555 = vmatprep.subr.mxu0 0.0
    %3556 = vmatpush2.msra.mxu0 0.0
    %3557 = vmatprep.subr.mxu0 0.0
    %3558 = vmatpush2.msra.mxu0 0.0
    %3559 = vmatprep.subr.mxu0 0.0
    %3560 = vmatpush2.msra.mxu0 0.0
    %3561 = vmatprep.subr.mxu0 0.0
    %3562 = vmatpush2.msra.mxu0 0.0
    %3563 = vmatprep.subr.mxu0 0.0
    %3564 = vmatpush2.msra.mxu0 0.0
    %3565 = vmatprep.subr.mxu0 0.0
    %3566 = vmatpush2.msra.mxu0 0.0
    %3567 = vmatprep.subr.mxu0 0.0
    %3568 = vmatpush2.msra.mxu0 0.0
    %3569 = vmatprep.subr.mxu0 0.0
    %3570 = vmatpush2.msra.mxu0 0.0
    %3571 = vmatprep.subr.mxu0 0.0
    %3572 = vmatpush2.msra.mxu0 0.0
    %3573 = vmatprep.subr.mxu0 0.0
    %3574 = vmatpush2.msra.mxu0 0.0
    %3575 = vmatprep.subr.mxu0 0.0
    %3576 = vmatpush2.msra.mxu0 0.0
    %3577 = vmatprep.subr.mxu0 0.0
    %3578 = vmatpush2.msra.mxu0 0.0
    %3579 = vmatprep.mubr.f32.mxu0 0.0
    %3580 = vmatmul.mubr.f32.gmra.mxu0 %v3507
    %v3581 = vpop.f32.mrf.mxu0
    %v3582 = vadd.f32 0.0, %v3581
    %v3583 = vpop.f32.mrf.mxu0
    %3584 = vmatprep.mubr.f32.mxu0 0.0
    %3585 = vmatmul.mubr.f32.gmra.mxu0 %v3509
    %v3586 = vpop.f32.mrf.mxu0
    %v3587 = vadd.f32 0.0, %v3586
    %v3588 = vpop.f32.mrf.mxu0
    %3589 = vmatprep.mubr.f32.mxu0 0.0
    %3590 = vmatmul.mubr.f32.gmra.mxu0 %v3511
    %v3591 = vpop.f32.mrf.mxu0
    %v3592 = vadd.f32 0.0, %v3591
    %v3593 = vpop.f32.mrf.mxu0
    %3594 = vdwg.mxu0
    %v3598 = vrot.slane %v3582, 7
    %v3599 = vrot.slane %v3587, 7
    %v3600 = vsel %vm76, %v3598, %v3599
    %v3601 = vrot.slane %v3592, 7
    %v3602 = vsel %vm76, %v3599, %v3601
    %v3604 = vsel %vm76, %v3488, %v3598
    %s3605 = scalar_lea.vmem %s8, 24
    %v3606 = vld [vmem:[%s3605] sm:$0xff]
    %v3608 = vsel %vm500, %v3478, 0
    %v3611 = vsel %vm500, %v3483, 0
    %v3614 = vsel %vm500, %v3604, 0
    %v3616 = vsel %vm500, %v3600, 0
    %v3618 = vsel %vm500, %v3602, 0
    %3620 = vmatprep.subr.mxu0 0.0
    %3621 = vmatpush1.msra.mxu0 0.0
    %3622 = vmatprep.subr.mxu0 0.0
    %3623 = vmatpush1.msra.mxu0 0.0
    %3624 = vmatprep.subr.mxu0 0.0
    %3625 = vmatpush1.msra.mxu0 0.0
    %3626 = vmatprep.subr.mxu0 0.0
    %3627 = vmatpush1.msra.mxu0 0.0
    %3628 = vmatprep.subr.mxu0 0.0
    %3629 = vmatpush1.msra.mxu0 0.0
    %3630 = vmatprep.subr.mxu0 0.0
    %3631 = vmatpush1.msra.mxu0 0.0
    %3632 = vmatprep.subr.mxu0 0.0
    %3633 = vmatpush1.msra.mxu0 0.0
    %3634 = vmatprep.subr.mxu0 0.0
    %3635 = vmatpush1.msra.mxu0 0.0
    %3636 = vmatprep.subr.mxu0 0.0
    %3637 = vmatpush1.msra.mxu0 0.0
    %3638 = vmatprep.subr.mxu0 0.0
    %3639 = vmatpush1.msra.mxu0 0.0
    %3640 = vmatprep.subr.mxu0 0.0
    %3641 = vmatpush1.msra.mxu0 0.0
    %3642 = vmatprep.subr.mxu0 0.0
    %3643 = vmatpush1.msra.mxu0 0.0
    %3644 = vmatprep.subr.mxu0 0.0
    %3645 = vmatpush1.msra.mxu0 0.0
    %3646 = vmatprep.subr.mxu0 0.0
    %3647 = vmatpush1.msra.mxu0 0.0
    %3648 = vmatprep.subr.mxu0 0.0
    %3649 = vmatpush1.msra.mxu0 0.0
    %3650 = vmatprep.subr.mxu0 0.0
    %3651 = vmatpush1.msra.mxu0 %v3606
    %3652 = vmatprep.subr.mxu0 0.0
    %3653 = vmatpush2.msra.mxu0 0.0
    %3654 = vmatprep.subr.mxu0 0.0
    %3655 = vmatpush2.msra.mxu0 0.0
    %3656 = vmatprep.subr.mxu0 0.0
    %3657 = vmatpush2.msra.mxu0 0.0
    %3658 = vmatprep.subr.mxu0 0.0
    %3659 = vmatpush2.msra.mxu0 0.0
    %3660 = vmatprep.subr.mxu0 0.0
    %3661 = vmatpush2.msra.mxu0 0.0
    %3662 = vmatprep.subr.mxu0 0.0
    %3663 = vmatpush2.msra.mxu0 0.0
    %3664 = vmatprep.subr.mxu0 0.0
    %3665 = vmatpush2.msra.mxu0 0.0
    %3666 = vmatprep.subr.mxu0 0.0
    %3667 = vmatpush2.msra.mxu0 0.0
    %3668 = vmatprep.subr.mxu0 0.0
    %3669 = vmatpush2.msra.mxu0 0.0
    %3670 = vmatprep.subr.mxu0 0.0
    %3671 = vmatpush2.msra.mxu0 0.0
    %3672 = vmatprep.subr.mxu0 0.0
    %3673 = vmatpush2.msra.mxu0 0.0
    %3674 = vmatprep.subr.mxu0 0.0
    %3675 = vmatpush2.msra.mxu0 0.0
    %3676 = vmatprep.subr.mxu0 0.0
    %3677 = vmatpush2.msra.mxu0 0.0
    %3678 = vmatprep.subr.mxu0 0.0
    %3679 = vmatpush2.msra.mxu0 0.0
    %3680 = vmatprep.subr.mxu0 0.0
    %3681 = vmatpush2.msra.mxu0 0.0
    %3682 = vmatprep.subr.mxu0 0.0
    %3683 = vmatpush2.msra.mxu0 0.0
    %3684 = vmatprep.mubr.f32.mxu0 0.0
    %3685 = vmatmul.mubr.f32.gmra.mxu0 %v3608
    %v3686 = vpop.f32.mrf.mxu0
    %v3687 = vadd.f32 0.0, %v3686
    %v3688 = vpop.f32.mrf.mxu0
    %3689 = vmatprep.mubr.f32.mxu0 0.0
    %3690 = vmatmul.mubr.f32.gmra.mxu0 %v3611
    %v3691 = vpop.f32.mrf.mxu0
    %v3692 = vadd.f32 0.0, %v3691
    %v3693 = vpop.f32.mrf.mxu0
    %3694 = vmatprep.mubr.f32.mxu0 0.0
    %3695 = vmatmul.mubr.f32.gmra.mxu0 %v3614
    %v3696 = vpop.f32.mrf.mxu0
    %v3697 = vadd.f32 0.0, %v3696
    %v3698 = vpop.f32.mrf.mxu0
    %3699 = vmatprep.mubr.f32.mxu0 0.0
    %3700 = vmatmul.mubr.f32.gmra.mxu0 %v3616
    %v3701 = vpop.f32.mrf.mxu0
    %v3702 = vadd.f32 0.0, %v3701
    %v3703 = vpop.f32.mrf.mxu0
    %3704 = vmatprep.mubr.f32.mxu0 0.0
    %3705 = vmatmul.mubr.f32.gmra.mxu0 %v3618
    %v3706 = vpop.f32.mrf.mxu0
    %v3707 = vadd.f32 0.0, %v3706
    %v3708 = vpop.f32.mrf.mxu0
    %3709 = vdwg.mxu0
    %v3710 = vadd.f32 %v3390, %v3687
    %v3711 = vadd.f32 %v3391, %v3692
    %v3712 = vadd.f32 %v3392, %v3697
    %v3713 = vadd.f32 %v3393, %v3702
    %v3714 = vadd.f32 %v3394, %v3707
    %v3715 = vadd.f32 %v84, %v3710
    %v3716 = vadd.f32 %v85, %v3711
    %v3717 = vadd.f32 %v110, %v3712
    %v3718 = vadd.f32 %v104, %v3713
    %v3719 = vadd.f32 %v106, %v3714
    %v3720 = vld [vmem:[%s9] sm:$0x1]
    %v3722 = vlaneseq
    %v3723 = vshrl.u32 %v3722, 7
    %v3724 = vsub.s32 0, %v3723
    %v3725 = vrot.slane %v3720, %v3724
    %v3727 = vadd.f32 %v3715, %v3725
    %v3728 = vadd.f32 %v3716, %v3725
    %v3729 = vadd.f32 %v3717, %v3725
    %v3730 = vadd.f32 %v3718, %v3725
    %v3731 = vadd.f32 %v3719, %v3725
    %v3732 = vld [vmem:[%s10] sm:$0x1]
    %v3733 = vld [vmem:[%s11] sm:$0x1]
    %v3734 = vsel %vm113, %v3727, 0.0
    %3735 = vadd.xlane.f32.xlu0 %v3734
    %v3736 = vpop.xlane.xlu0 %3735
    %v3737 = vsel %vm113, %v3728, 0.0
    %3738 = vadd.xlane.f32.xlu0 %v3737
    %v3739 = vpop.xlane.xlu0 %3738
    %v3740 = vsel %vm113, %v3729, 0.0
    %3741 = vadd.xlane.f32.xlu0 %v3740
    %v3742 = vpop.xlane.xlu0 %3741
    %v3743 = vsel %vm113, %v3730, 0.0
    %3744 = vadd.xlane.f32.xlu0 %v3743
    %v3745 = vpop.xlane.xlu0 %3744
    %v3746 = vsel %vm126, %v3731, 0.0
    %3747 = vadd.xlane.f32.xlu0 %v3746
    %v3748 = vpop.xlane.xlu0 %3747
    %v3749 = vmul.f32 %v3736, %v130
    %v3750 = vmul.f32 %v3739, %v130
    %v3751 = vmul.f32 %v3742, %v130
    %v3752 = vmul.f32 %v3745, %v130
    %v3753 = vmul.f32 %v3748, %v130
    %v3754 = vsub.f32 %v3727, %v3749
    %v3755 = vsub.f32 %v3728, %v3750
    %v3756 = vsub.f32 %v3729, %v3751
    %v3757 = vsub.f32 %v3730, %v3752
    %v3758 = vsub.f32 %v3731, %v3753
    %v3759 = vmul.f32 %v3754, %v3754
    %v3760 = vmul.f32 %v3755, %v3755
    %v3761 = vmul.f32 %v3756, %v3756
    %v3762 = vmul.f32 %v3757, %v3757
    %v3763 = vmul.f32 %v3758, %v3758
    %v3764 = vsel %vm113, %v3759, 0.0
    %3765 = vadd.xlane.f32.xlu0 %v3764
    %v3766 = vpop.xlane.xlu0 %3765
    %v3767 = vsel %vm113, %v3760, 0.0
    %3768 = vadd.xlane.f32.xlu0 %v3767
    %v3769 = vpop.xlane.xlu0 %3768
    %v3770 = vsel %vm113, %v3761, 0.0
    %3771 = vadd.xlane.f32.xlu0 %v3770
    %v3772 = vpop.xlane.xlu0 %3771
    %v3773 = vsel %vm113, %v3762, 0.0
    %3774 = vadd.xlane.f32.xlu0 %v3773
    %v3775 = vpop.xlane.xlu0 %3774
    %v3776 = vsel %vm126, %v3763, 0.0
    %3777 = vadd.xlane.f32.xlu0 %v3776
    %v3778 = vpop.xlane.xlu0 %3777
    %v3779 = vmul.f32 %v3766, %v130
    %v3780 = vmul.f32 %v3769, %v130
    %v3781 = vmul.f32 %v3772, %v130
    %v3782 = vmul.f32 %v3775, %v130
    %v3783 = vmul.f32 %v3778, %v130
    %v3784 = vadd.f32 %v3779, 1e-05
    %v3785 = vadd.f32 %v3780, 1e-05
    %v3786 = vadd.f32 %v3781, 1e-05
    %v3787 = vadd.f32 %v3782, 1e-05
    %v3788 = vadd.f32 %v3783, 1e-05
    %v3789 = vrsqrt.pop %v3784
    %v3790 = vrsqrt.pop %v3785
    %v3791 = vrsqrt.pop %v3786
    %v3792 = vrsqrt.pop %v3787
    %v3793 = vrsqrt.pop %v3788
    %v3794 = vmul.f32 %v3754, %v3789
    %v3795 = vmul.f32 %v3755, %v3790
    %v3796 = vmul.f32 %v3756, %v3791
    %v3797 = vmul.f32 %v3757, %v3792
    %v3798 = vmul.f32 %v3758, %v3793
    %v3800 = vlaneseq
    %v3801 = vshrl.u32 %v3800, 7
    %v3802 = vsub.s32 0, %v3801
    %v3803 = vrot.slane %v3732, %v3802
    %v3805 = vmul.f32 %v3794, %v3803
    %v3806 = vmul.f32 %v3795, %v3803
    %v3807 = vmul.f32 %v3796, %v3803
    %v3808 = vmul.f32 %v3797, %v3803
    %v3809 = vmul.f32 %v3798, %v3803
    %v3811 = vlaneseq
    %v3812 = vshrl.u32 %v3811, 7
    %v3813 = vsub.s32 0, %v3812
    %v3814 = vrot.slane %v3733, %v3813
    %v3816 = vadd.f32 %v3805, %v3814
    %v3817 = vadd.f32 %v3806, %v3814
    %v3818 = vadd.f32 %v3807, %v3814
    %v3819 = vadd.f32 %v3808, %v3814
    %v3820 = vadd.f32 %v3809, %v3814
    %v3821 = vld [vmem:[%s12] sm:$0xff]
    %v3822 = vld [vmem:[%s12 + $0x8] sm:$0xff]
    %v3823 = vld [vmem:[%s12 + $0x10] sm:$0xff]
    %v3824 = vld [vmem:[%s12 + $0x18] sm:$0xff]
    %v3825 = vld [vmem:[%s13] sm:$0x1]
    %v3827 = vlaneseq
    %v3828 = vshrl.u32 %v3827, 7
    %v3829 = vsub.s32 0, %v3828
    %v3830 = vrot.slane %v3825, %v3829
    %v3833 = vsel %vm113, %v3816, 0
    %v3836 = vsel %vm113, %v3817, 0
    %v3839 = vsel %vm113, %v3818, 0
    %v3842 = vsel %vm113, %v3819, 0
    %v3845 = vsel %vm113, %v3820, 0
    %3847 = vmatprep.subr.mxu0 0.0
    %3848 = vmatpush1.msra.mxu0 0.0
    %3849 = vmatprep.subr.mxu0 0.0
    %3850 = vmatpush1.msra.mxu0 0.0
    %3851 = vmatprep.subr.mxu0 0.0
    %3852 = vmatpush1.msra.mxu0 0.0
    %3853 = vmatprep.subr.mxu0 0.0
    %3854 = vmatpush1.msra.mxu0 0.0
    %3855 = vmatprep.subr.mxu0 0.0
    %3856 = vmatpush1.msra.mxu0 0.0
    %3857 = vmatprep.subr.mxu0 0.0
    %3858 = vmatpush1.msra.mxu0 0.0
    %3859 = vmatprep.subr.mxu0 0.0
    %3860 = vmatpush1.msra.mxu0 0.0
    %3861 = vmatprep.subr.mxu0 0.0
    %3862 = vmatpush1.msra.mxu0 0.0
    %3863 = vmatprep.subr.mxu0 0.0
    %3864 = vmatpush1.msra.mxu0 0.0
    %3865 = vmatprep.subr.mxu0 0.0
    %3866 = vmatpush1.msra.mxu0 0.0
    %3867 = vmatprep.subr.mxu0 0.0
    %3868 = vmatpush1.msra.mxu0 0.0
    %3869 = vmatprep.subr.mxu0 0.0
    %3870 = vmatpush1.msra.mxu0 0.0
    %3871 = vmatprep.subr.mxu0 0.0
    %3872 = vmatpush1.msra.mxu0 %v3824
    %3873 = vmatprep.subr.mxu0 0.0
    %3874 = vmatpush1.msra.mxu0 %v3823
    %3875 = vmatprep.subr.mxu0 0.0
    %3876 = vmatpush1.msra.mxu0 %v3822
    %3877 = vmatprep.subr.mxu0 0.0
    %3878 = vmatpush1.msra.mxu0 %v3821
    %3879 = vmatprep.subr.mxu0 0.0
    %3880 = vmatpush2.msra.mxu0 0.0
    %3881 = vmatprep.subr.mxu0 0.0
    %3882 = vmatpush2.msra.mxu0 0.0
    %3883 = vmatprep.subr.mxu0 0.0
    %3884 = vmatpush2.msra.mxu0 0.0
    %3885 = vmatprep.subr.mxu0 0.0
    %3886 = vmatpush2.msra.mxu0 0.0
    %3887 = vmatprep.subr.mxu0 0.0
    %3888 = vmatpush2.msra.mxu0 0.0
    %3889 = vmatprep.subr.mxu0 0.0
    %3890 = vmatpush2.msra.mxu0 0.0
    %3891 = vmatprep.subr.mxu0 0.0
    %3892 = vmatpush2.msra.mxu0 0.0
    %3893 = vmatprep.subr.mxu0 0.0
    %3894 = vmatpush2.msra.mxu0 0.0
    %3895 = vmatprep.subr.mxu0 0.0
    %3896 = vmatpush2.msra.mxu0 0.0
    %3897 = vmatprep.subr.mxu0 0.0
    %3898 = vmatpush2.msra.mxu0 0.0
    %3899 = vmatprep.subr.mxu0 0.0
    %3900 = vmatpush2.msra.mxu0 0.0
    %3901 = vmatprep.subr.mxu0 0.0
    %3902 = vmatpush2.msra.mxu0 0.0
    %3903 = vmatprep.subr.mxu0 0.0
    %3904 = vmatpush2.msra.mxu0 0.0
    %3905 = vmatprep.subr.mxu0 0.0
    %3906 = vmatpush2.msra.mxu0 0.0
    %3907 = vmatprep.subr.mxu0 0.0
    %3908 = vmatpush2.msra.mxu0 0.0
    %3909 = vmatprep.subr.mxu0 0.0
    %3910 = vmatpush2.msra.mxu0 0.0
    %3911 = vmatprep.mubr.f32.mxu0 0.0
    %3912 = vmatmul.mubr.f32.gmra.mxu0 %v3833
    %v3913 = vpop.f32.mrf.mxu0
    %v3914 = vadd.f32 %v3830, %v3913
    %v3915 = vpop.f32.mrf.mxu0
    %3916 = vmatprep.mubr.f32.mxu0 0.0
    %3917 = vmatmul.mubr.f32.gmra.mxu0 %v3836
    %v3918 = vpop.f32.mrf.mxu0
    %v3919 = vadd.f32 %v3830, %v3918
    %v3920 = vpop.f32.mrf.mxu0
    %3921 = vmatprep.mubr.f32.mxu0 0.0
    %3922 = vmatmul.mubr.f32.gmra.mxu0 %v3839
    %v3923 = vpop.f32.mrf.mxu0
    %v3924 = vadd.f32 %v3830, %v3923
    %v3925 = vpop.f32.mrf.mxu0
    %3926 = vmatprep.mubr.f32.mxu0 0.0
    %3927 = vmatmul.mubr.f32.gmra.mxu0 %v3842
    %v3928 = vpop.f32.mrf.mxu0
    %v3929 = vadd.f32 %v3830, %v3928
    %v3930 = vpop.f32.mrf.mxu0
    %3931 = vmatprep.mubr.f32.mxu0 0.0
    %3932 = vmatmul.mubr.f32.gmra.mxu0 %v3845
    %v3933 = vpop.f32.mrf.mxu0
    %v3934 = vadd.f32 %v3830, %v3933
    %v3935 = vpop.f32.mrf.mxu0
    %3936 = vdwg.mxu0
    %v3937 = vmul.f32 %v3914, 0.5
    %v3938 = vmul.f32 %v3919, 0.5
    %v3939 = vmul.f32 %v3924, 0.5
    %v3940 = vmul.f32 %v3929, 0.5
    %v3941 = vmul.f32 %v3934, 0.5
    %v3942 = vmul.f32 %v3914, 0.70710677
    %v3943 = vmul.f32 %v3919, 0.70710677
    %v3944 = vmul.f32 %v3924, 0.70710677
    %v3945 = vmul.f32 %v3929, 0.70710677
    %v3946 = vmul.f32 %v3934, 0.70710677
    %v3947 = verf.f32.pop %v3942
    %v3948 = verf.f32.pop %v3943
    %v3949 = verf.f32.pop %v3944
    %v3950 = verf.f32.pop %v3945
    %v3951 = verf.f32.pop %v3946
    %v3952 = vadd.f32 %v3947, 1.0
    %v3953 = vadd.f32 %v3948, 1.0
    %v3954 = vadd.f32 %v3949, 1.0
    %v3955 = vadd.f32 %v3950, 1.0
    %v3956 = vadd.f32 %v3951, 1.0
    %v3957 = vmul.f32 %v3937, %v3952
    %v3958 = vmul.f32 %v3938, %v3953
    %v3959 = vmul.f32 %v3939, %v3954
    %v3960 = vmul.f32 %v3940, %v3955
    %v3961 = vmul.f32 %v3941, %v3956
    %v3962 = vld [vmem:[%s14] sm:$0xff]
    %v3963 = vld [vmem:[%s14 + $0x8] sm:$0xff]
    %v3964 = vld [vmem:[%s14 + $0x10] sm:$0xff]
    %v3965 = vld [vmem:[%s14 + $0x18] sm:$0xff]
    %v3966 = vld [vmem:[%s14 + $0x20] sm:$0xff]
    %v3967 = vld [vmem:[%s14 + $0x28] sm:$0xff]
    %v3968 = vld [vmem:[%s14 + $0x30] sm:$0xff]
    %v3969 = vld [vmem:[%s14 + $0x38] sm:$0xff]
    %v3970 = vld [vmem:[%s15] sm:$0x1]
    %v3972 = vlaneseq
    %v3973 = vshrl.u32 %v3972, 7
    %v3974 = vsub.s32 0, %v3973
    %v3975 = vrot.slane %v3970, %v3974
    %vm3977 = vcmask 523264
    %v3979 = vsel %vm3977, %v3957, 0
    %v3982 = vsel %vm3977, %v3958, 0
    %v3985 = vsel %vm3977, %v3959, 0
    %v3988 = vsel %vm3977, %v3960, 0
    %v3991 = vsel %vm3977, %v3961, 0
    %3993 = vmatprep.subr.mxu0 0.0
    %3994 = vmatpush1.msra.mxu0 0.0
    %3995 = vmatprep.subr.mxu0 0.0
    %3996 = vmatpush1.msra.mxu0 0.0
    %3997 = vmatprep.subr.mxu0 0.0
    %3998 = vmatpush1.msra.mxu0 0.0
    %3999 = vmatprep.subr.mxu0 0.0
    %4000 = vmatpush1.msra.mxu0 0.0
    %4001 = vmatprep.subr.mxu0 0.0
    %4002 = vmatpush1.msra.mxu0 0.0
    %4003 = vmatprep.subr.mxu0 0.0
    %4004 = vmatpush1.msra.mxu0 0.0
    %4005 = vmatprep.subr.mxu0 0.0
    %4006 = vmatpush1.msra.mxu0 0.0
    %4007 = vmatprep.subr.mxu0 0.0
    %4008 = vmatpush1.msra.mxu0 0.0
    %4009 = vmatprep.subr.mxu0 0.0
    %4010 = vmatpush1.msra.mxu0 %v3969
    %4011 = vmatprep.subr.mxu0 0.0
    %4012 = vmatpush1.msra.mxu0 %v3968
    %4013 = vmatprep.subr.mxu0 0.0
    %4014 = vmatpush1.msra.mxu0 %v3967
    %4015 = vmatprep.subr.mxu0 0.0
    %4016 = vmatpush1.msra.mxu0 %v3966
    %4017 = vmatprep.subr.mxu0 0.0
    %4018 = vmatpush1.msra.mxu0 %v3965
    %4019 = vmatprep.subr.mxu0 0.0
    %4020 = vmatpush1.msra.mxu0 %v3964
    %4021 = vmatprep.subr.mxu0 0.0
    %4022 = vmatpush1.msra.mxu0 %v3963
    %4023 = vmatprep.subr.mxu0 0.0
    %4024 = vmatpush1.msra.mxu0 %v3962
    %4025 = vmatprep.subr.mxu0 0.0
    %4026 = vmatpush2.msra.mxu0 0.0
    %4027 = vmatprep.subr.mxu0 0.0
    %4028 = vmatpush2.msra.mxu0 0.0
    %4029 = vmatprep.subr.mxu0 0.0
    %4030 = vmatpush2.msra.mxu0 0.0
    %4031 = vmatprep.subr.mxu0 0.0
    %4032 = vmatpush2.msra.mxu0 0.0
    %4033 = vmatprep.subr.mxu0 0.0
    %4034 = vmatpush2.msra.mxu0 0.0
    %4035 = vmatprep.subr.mxu0 0.0
    %4036 = vmatpush2.msra.mxu0 0.0
    %4037 = vmatprep.subr.mxu0 0.0
    %4038 = vmatpush2.msra.mxu0 0.0
    %4039 = vmatprep.subr.mxu0 0.0
    %4040 = vmatpush2.msra.mxu0 0.0
    %4041 = vmatprep.subr.mxu0 0.0
    %4042 = vmatpush2.msra.mxu0 0.0
    %4043 = vmatprep.subr.mxu0 0.0
    %4044 = vmatpush2.msra.mxu0 0.0
    %4045 = vmatprep.subr.mxu0 0.0
    %4046 = vmatpush2.msra.mxu0 0.0
    %4047 = vmatprep.subr.mxu0 0.0
    %4048 = vmatpush2.msra.mxu0 0.0
    %4049 = vmatprep.subr.mxu0 0.0
    %4050 = vmatpush2.msra.mxu0 0.0
    %4051 = vmatprep.subr.mxu0 0.0
    %4052 = vmatpush2.msra.mxu0 0.0
    %4053 = vmatprep.subr.mxu0 0.0
    %4054 = vmatpush2.msra.mxu0 0.0
    %4055 = vmatprep.subr.mxu0 0.0
    %4056 = vmatpush2.msra.mxu0 0.0
    %4057 = vmatprep.mubr.f32.mxu0 0.0
    %4058 = vmatmul.mubr.f32.gmra.mxu0 %v3979
    %v4059 = vpop.f32.mrf.mxu0
    %v4060 = vadd.f32 %v3975, %v4059
    %v4061 = vpop.f32.mrf.mxu0
    %4062 = vmatprep.mubr.f32.mxu0 0.0
    %4063 = vmatmul.mubr.f32.gmra.mxu0 %v3982
    %v4064 = vpop.f32.mrf.mxu0
    %v4065 = vadd.f32 %v3975, %v4064
    %v4066 = vpop.f32.mrf.mxu0
    %4067 = vmatprep.mubr.f32.mxu0 0.0
    %4068 = vmatmul.mubr.f32.gmra.mxu0 %v3985
    %v4069 = vpop.f32.mrf.mxu0
    %v4070 = vadd.f32 %v3975, %v4069
    %v4071 = vpop.f32.mrf.mxu0
    %4072 = vmatprep.mubr.f32.mxu0 0.0
    %4073 = vmatmul.mubr.f32.gmra.mxu0 %v3988
    %v4074 = vpop.f32.mrf.mxu0
    %v4075 = vadd.f32 %v3975, %v4074
    %v4076 = vpop.f32.mrf.mxu0
    %4077 = vmatprep.mubr.f32.mxu0 0.0
    %4078 = vmatmul.mubr.f32.gmra.mxu0 %v3991
    %v4079 = vpop.f32.mrf.mxu0
    %v4080 = vadd.f32 %v3975, %v4079
    %v4081 = vpop.f32.mrf.mxu0
    %4082 = vdwg.mxu0
    %v4083 = vadd.f32 %v3727, %v4060
    %v4084 = vadd.f32 %v3728, %v4065
    %v4085 = vadd.f32 %v3729, %v4070
    %v4086 = vadd.f32 %v3730, %v4075
    %v4087 = vadd.f32 %v3731, %v4080
    %s4088 = scalar_lea.vmem %s3, 1
    %v4089 = vld [vmem:[%s4088] sm:$0x1]
    %s4090 = scalar_lea.vmem %s4, 1
    %v4091 = vld [vmem:[%s4090] sm:$0x1]
    %v4092 = vsel %vm113, %v4083, 0.0
    %4093 = vadd.xlane.f32.xlu0 %v4092
    %v4094 = vpop.xlane.xlu0 %4093
    %v4095 = vsel %vm113, %v4084, 0.0
    %4096 = vadd.xlane.f32.xlu0 %v4095
    %v4097 = vpop.xlane.xlu0 %4096
    %v4098 = vsel %vm113, %v4085, 0.0
    %4099 = vadd.xlane.f32.xlu0 %v4098
    %v4100 = vpop.xlane.xlu0 %4099
    %v4101 = vsel %vm113, %v4086, 0.0
    %4102 = vadd.xlane.f32.xlu0 %v4101
    %v4103 = vpop.xlane.xlu0 %4102
    %v4104 = vsel %vm126, %v4087, 0.0
    %4105 = vadd.xlane.f32.xlu0 %v4104
    %v4106 = vpop.xlane.xlu0 %4105
    %v4107 = vmul.f32 %v4094, %v130
    %v4108 = vmul.f32 %v4097, %v130
    %v4109 = vmul.f32 %v4100, %v130
    %v4110 = vmul.f32 %v4103, %v130
    %v4111 = vmul.f32 %v4106, %v130
    %v4112 = vsub.f32 %v4083, %v4107
    %v4113 = vsub.f32 %v4084, %v4108
    %v4114 = vsub.f32 %v4085, %v4109
    %v4115 = vsub.f32 %v4086, %v4110
    %v4116 = vsub.f32 %v4087, %v4111
    %v4117 = vmul.f32 %v4112, %v4112
    %v4118 = vmul.f32 %v4113, %v4113
    %v4119 = vmul.f32 %v4114, %v4114
    %v4120 = vmul.f32 %v4115, %v4115
    %v4121 = vmul.f32 %v4116, %v4116
    %v4122 = vsel %vm113, %v4117, 0.0
    %4123 = vadd.xlane.f32.xlu0 %v4122
    %v4124 = vpop.xlane.xlu0 %4123
    %v4125 = vsel %vm113, %v4118, 0.0
    %4126 = vadd.xlane.f32.xlu0 %v4125
    %v4127 = vpop.xlane.xlu0 %4126
    %v4128 = vsel %vm113, %v4119, 0.0
    %4129 = vadd.xlane.f32.xlu0 %v4128
    %v4130 = vpop.xlane.xlu0 %4129
    %v4131 = vsel %vm113, %v4120, 0.0
    %4132 = vadd.xlane.f32.xlu0 %v4131
    %v4133 = vpop.xlane.xlu0 %4132
    %v4134 = vsel %vm126, %v4121, 0.0
    %4135 = vadd.xlane.f32.xlu0 %v4134
    %v4136 = vpop.xlane.xlu0 %4135
    %v4137 = vmul.f32 %v4124, %v130
    %v4138 = vmul.f32 %v4127, %v130
    %v4139 = vmul.f32 %v4130, %v130
    %v4140 = vmul.f32 %v4133, %v130
    %v4141 = vmul.f32 %v4136, %v130
    %v4142 = vadd.f32 %v4137, 1e-05
    %v4143 = vadd.f32 %v4138, 1e-05
    %v4144 = vadd.f32 %v4139, 1e-05
    %v4145 = vadd.f32 %v4140, 1e-05
    %v4146 = vadd.f32 %v4141, 1e-05
    %v4147 = vrsqrt.pop %v4142
    %v4148 = vrsqrt.pop %v4143
    %v4149 = vrsqrt.pop %v4144
    %v4150 = vrsqrt.pop %v4145
    %v4151 = vrsqrt.pop %v4146
    %v4152 = vmul.f32 %v4112, %v4147
    %v4153 = vmul.f32 %v4113, %v4148
    %v4154 = vmul.f32 %v4114, %v4149
    %v4155 = vmul.f32 %v4115, %v4150
    %v4156 = vmul.f32 %v4116, %v4151
    %v4158 = vlaneseq
    %v4159 = vshrl.u32 %v4158, 7
    %v4160 = vsub.s32 0, %v4159
    %v4161 = vrot.slane %v4089, %v4160
    %v4163 = vmul.f32 %v4152, %v4161
    %v4164 = vmul.f32 %v4153, %v4161
    %v4165 = vmul.f32 %v4154, %v4161
    %v4166 = vmul.f32 %v4155, %v4161
    %v4167 = vmul.f32 %v4156, %v4161
    %v4169 = vlaneseq
    %v4170 = vshrl.u32 %v4169, 7
    %v4171 = vsub.s32 0, %v4170
    %v4172 = vrot.slane %v4091, %v4171
    %v4174 = vadd.f32 %v4163, %v4172
    %v4175 = vadd.f32 %v4164, %v4172
    %v4176 = vadd.f32 %v4165, %v4172
    %v4177 = vadd.f32 %v4166, %v4172
    %v4178 = vadd.f32 %v4167, %v4172
    %s4179 = scalar_lea.vmem %s5, 128
    %v4180 = vld [vmem:[%s4179] sm:$0xff]
    %v4181 = vld [vmem:[%s4179 + $0x8] sm:$0xff]
    %v4182 = vld [vmem:[%s4179 + $0x10] sm:$0xff]
    %v4183 = vld [vmem:[%s4179 + $0x18] sm:$0xff]
    %v4185 = vsel %vm113, %v4174, 0
    %v4188 = vsel %vm113, %v4175, 0
    %v4191 = vsel %vm113, %v4176, 0
    %v4194 = vsel %vm113, %v4177, 0
    %v4197 = vsel %vm113, %v4178, 0
    %4199 = vmatprep.subr.mxu0 0.0
    %4200 = vmatpush1.msra.mxu0 0.0
    %4201 = vmatprep.subr.mxu0 0.0
    %4202 = vmatpush1.msra.mxu0 0.0
    %4203 = vmatprep.subr.mxu0 0.0
    %4204 = vmatpush1.msra.mxu0 0.0
    %4205 = vmatprep.subr.mxu0 0.0
    %4206 = vmatpush1.msra.mxu0 0.0
    %4207 = vmatprep.subr.mxu0 0.0
    %4208 = vmatpush1.msra.mxu0 0.0
    %4209 = vmatprep.subr.mxu0 0.0
    %4210 = vmatpush1.msra.mxu0 0.0
    %4211 = vmatprep.subr.mxu0 0.0
    %4212 = vmatpush1.msra.mxu0 0.0
    %4213 = vmatprep.subr.mxu0 0.0
    %4214 = vmatpush1.msra.mxu0 0.0
    %4215 = vmatprep.subr.mxu0 0.0
    %4216 = vmatpush1.msra.mxu0 0.0
    %4217 = vmatprep.subr.mxu0 0.0
    %4218 = vmatpush1.msra.mxu0 0.0
    %4219 = vmatprep.subr.mxu0 0.0
    %4220 = vmatpush1.msra.mxu0 0.0
    %4221 = vmatprep.subr.mxu0 0.0
    %4222 = vmatpush1.msra.mxu0 0.0
    %4223 = vmatprep.subr.mxu0 0.0
    %4224 = vmatpush1.msra.mxu0 %v4183
    %4225 = vmatprep.subr.mxu0 0.0
    %4226 = vmatpush1.msra.mxu0 %v4182
    %4227 = vmatprep.subr.mxu0 0.0
    %4228 = vmatpush1.msra.mxu0 %v4181
    %4229 = vmatprep.subr.mxu0 0.0
    %4230 = vmatpush1.msra.mxu0 %v4180
    %4231 = vmatprep.subr.mxu0 0.0
    %4232 = vmatpush2.msra.mxu0 0.0
    %4233 = vmatprep.subr.mxu0 0.0
    %4234 = vmatpush2.msra.mxu0 0.0
    %4235 = vmatprep.subr.mxu0 0.0
    %4236 = vmatpush2.msra.mxu0 0.0
    %4237 = vmatprep.subr.mxu0 0.0
    %4238 = vmatpush2.msra.mxu0 0.0
    %4239 = vmatprep.subr.mxu0 0.0
    %4240 = vmatpush2.msra.mxu0 0.0
    %4241 = vmatprep.subr.mxu0 0.0
    %4242 = vmatpush2.msra.mxu0 0.0
    %4243 = vmatprep.subr.mxu0 0.0
    %4244 = vmatpush2.msra.mxu0 0.0
    %4245 = vmatprep.subr.mxu0 0.0
    %4246 = vmatpush2.msra.mxu0 0.0
    %4247 = vmatprep.subr.mxu0 0.0
    %4248 = vmatpush2.msra.mxu0 0.0
    %4249 = vmatprep.subr.mxu0 0.0
    %4250 = vmatpush2.msra.mxu0 0.0
    %4251 = vmatprep.subr.mxu0 0.0
    %4252 = vmatpush2.msra.mxu0 0.0
    %4253 = vmatprep.subr.mxu0 0.0
    %4254 = vmatpush2.msra.mxu0 0.0
    %4255 = vmatprep.subr.mxu0 0.0
    %4256 = vmatpush2.msra.mxu0 0.0
    %4257 = vmatprep.subr.mxu0 0.0
    %4258 = vmatpush2.msra.mxu0 0.0
    %4259 = vmatprep.subr.mxu0 0.0
    %4260 = vmatpush2.msra.mxu0 0.0
    %4261 = vmatprep.subr.mxu0 0.0
    %4262 = vmatpush2.msra.mxu0 0.0
    %4263 = vmatprep.mubr.f32.mxu0 0.0
    %4264 = vmatmul.mubr.f32.gmra.mxu0 %v4185
    %v4265 = vpop.f32.mrf.mxu0
    %v4266 = vadd.f32 0.0, %v4265
    %v4267 = vpop.f32.mrf.mxu0
    %4268 = vmatprep.mubr.f32.mxu0 0.0
    %4269 = vmatmul.mubr.f32.gmra.mxu0 %v4188
    %v4270 = vpop.f32.mrf.mxu0
    %v4271 = vadd.f32 0.0, %v4270
    %v4272 = vpop.f32.mrf.mxu0
    %4273 = vmatprep.mubr.f32.mxu0 0.0
    %4274 = vmatmul.mubr.f32.gmra.mxu0 %v4191
    %v4275 = vpop.f32.mrf.mxu0
    %v4276 = vadd.f32 0.0, %v4275
    %v4277 = vpop.f32.mrf.mxu0
    %4278 = vmatprep.mubr.f32.mxu0 0.0
    %4279 = vmatmul.mubr.f32.gmra.mxu0 %v4194
    %v4280 = vpop.f32.mrf.mxu0
    %v4281 = vadd.f32 0.0, %v4280
    %v4282 = vpop.f32.mrf.mxu0
    %4283 = vmatprep.mubr.f32.mxu0 0.0
    %4284 = vmatmul.mubr.f32.gmra.mxu0 %v4197
    %v4285 = vpop.f32.mrf.mxu0
    %v4286 = vadd.f32 0.0, %v4285
    %v4287 = vpop.f32.mrf.mxu0
    %4288 = vdwg.mxu0
    %s4289 = scalar_lea.vmem %s6, 128
    %v4290 = vld [vmem:[%s4289] sm:$0xff]
    %v4291 = vld [vmem:[%s4289 + $0x8] sm:$0xff]
    %v4292 = vld [vmem:[%s4289 + $0x10] sm:$0xff]
    %v4293 = vld [vmem:[%s4289 + $0x18] sm:$0xff]
    %4294 = vmatprep.subr.mxu0 0.0
    %4295 = vmatpush1.msra.mxu0 0.0
    %4296 = vmatprep.subr.mxu0 0.0
    %4297 = vmatpush1.msra.mxu0 0.0
    %4298 = vmatprep.subr.mxu0 0.0
    %4299 = vmatpush1.msra.mxu0 0.0
    %4300 = vmatprep.subr.mxu0 0.0
    %4301 = vmatpush1.msra.mxu0 0.0
    %4302 = vmatprep.subr.mxu0 0.0
    %4303 = vmatpush1.msra.mxu0 0.0
    %4304 = vmatprep.subr.mxu0 0.0
    %4305 = vmatpush1.msra.mxu0 0.0
    %4306 = vmatprep.subr.mxu0 0.0
    %4307 = vmatpush1.msra.mxu0 0.0
    %4308 = vmatprep.subr.mxu0 0.0
    %4309 = vmatpush1.msra.mxu0 0.0
    %4310 = vmatprep.subr.mxu0 0.0
    %4311 = vmatpush1.msra.mxu0 0.0
    %4312 = vmatprep.subr.mxu0 0.0
    %4313 = vmatpush1.msra.mxu0 0.0
    %4314 = vmatprep.subr.mxu0 0.0
    %4315 = vmatpush1.msra.mxu0 0.0
    %4316 = vmatprep.subr.mxu0 0.0
    %4317 = vmatpush1.msra.mxu0 0.0
    %4318 = vmatprep.subr.mxu0 0.0
    %4319 = vmatpush1.msra.mxu0 %v4293
    %4320 = vmatprep.subr.mxu0 0.0
    %4321 = vmatpush1.msra.mxu0 %v4292
    %4322 = vmatprep.subr.mxu0 0.0
    %4323 = vmatpush1.msra.mxu0 %v4291
    %4324 = vmatprep.subr.mxu0 0.0
    %4325 = vmatpush1.msra.mxu0 %v4290
    %4326 = vmatprep.subr.mxu0 0.0
    %4327 = vmatpush2.msra.mxu0 0.0
    %4328 = vmatprep.subr.mxu0 0.0
    %4329 = vmatpush2.msra.mxu0 0.0
    %4330 = vmatprep.subr.mxu0 0.0
    %4331 = vmatpush2.msra.mxu0 0.0
    %4332 = vmatprep.subr.mxu0 0.0
    %4333 = vmatpush2.msra.mxu0 0.0
    %4334 = vmatprep.subr.mxu0 0.0
    %4335 = vmatpush2.msra.mxu0 0.0
    %4336 = vmatprep.subr.mxu0 0.0
    %4337 = vmatpush2.msra.mxu0 0.0
    %4338 = vmatprep.subr.mxu0 0.0
    %4339 = vmatpush2.msra.mxu0 0.0
    %4340 = vmatprep.subr.mxu0 0.0
    %4341 = vmatpush2.msra.mxu0 0.0
    %4342 = vmatprep.subr.mxu0 0.0
    %4343 = vmatpush2.msra.mxu0 0.0
    %4344 = vmatprep.subr.mxu0 0.0
    %4345 = vmatpush2.msra.mxu0 0.0
    %4346 = vmatprep.subr.mxu0 0.0
    %4347 = vmatpush2.msra.mxu0 0.0
    %4348 = vmatprep.subr.mxu0 0.0
    %4349 = vmatpush2.msra.mxu0 0.0
    %4350 = vmatprep.subr.mxu0 0.0
    %4351 = vmatpush2.msra.mxu0 0.0
    %4352 = vmatprep.subr.mxu0 0.0
    %4353 = vmatpush2.msra.mxu0 0.0
    %4354 = vmatprep.subr.mxu0 0.0
    %4355 = vmatpush2.msra.mxu0 0.0
    %4356 = vmatprep.subr.mxu0 0.0
    %4357 = vmatpush2.msra.mxu0 0.0
    %4358 = vmatprep.mubr.f32.mxu0 0.0
    %4359 = vmatmul.mubr.f32.gmra.mxu0 %v4185
    %v4360 = vpop.f32.mrf.mxu0
    %v4361 = vadd.f32 0.0, %v4360
    %v4362 = vpop.f32.mrf.mxu0
    %4363 = vmatprep.mubr.f32.mxu0 0.0
    %4364 = vmatmul.mubr.f32.gmra.mxu0 %v4188
    %v4365 = vpop.f32.mrf.mxu0
    %v4366 = vadd.f32 0.0, %v4365
    %v4367 = vpop.f32.mrf.mxu0
    %4368 = vmatprep.mubr.f32.mxu0 0.0
    %4369 = vmatmul.mubr.f32.gmra.mxu0 %v4191
    %v4370 = vpop.f32.mrf.mxu0
    %v4371 = vadd.f32 0.0, %v4370
    %v4372 = vpop.f32.mrf.mxu0
    %4373 = vmatprep.mubr.f32.mxu0 0.0
    %4374 = vmatmul.mubr.f32.gmra.mxu0 %v4194
    %v4375 = vpop.f32.mrf.mxu0
    %v4376 = vadd.f32 0.0, %v4375
    %v4377 = vpop.f32.mrf.mxu0
    %4378 = vmatprep.mubr.f32.mxu0 0.0
    %4379 = vmatmul.mubr.f32.gmra.mxu0 %v4197
    %v4380 = vpop.f32.mrf.mxu0
    %v4381 = vadd.f32 0.0, %v4380
    %v4382 = vpop.f32.mrf.mxu0
    %4383 = vdwg.mxu0
    %s4384 = scalar_lea.vmem %s7, 128
    %v4385 = vld [vmem:[%s4384] sm:$0xff]
    %v4386 = vld [vmem:[%s4384 + $0x8] sm:$0xff]
    %v4387 = vld [vmem:[%s4384 + $0x10] sm:$0xff]
    %v4388 = vld [vmem:[%s4384 + $0x18] sm:$0xff]
    %4389 = vmatprep.subr.mxu0 0.0
    %4390 = vmatpush1.msra.mxu0 0.0
    %4391 = vmatprep.subr.mxu0 0.0
    %4392 = vmatpush1.msra.mxu0 0.0
    %4393 = vmatprep.subr.mxu0 0.0
    %4394 = vmatpush1.msra.mxu0 0.0
    %4395 = vmatprep.subr.mxu0 0.0
    %4396 = vmatpush1.msra.mxu0 0.0
    %4397 = vmatprep.subr.mxu0 0.0
    %4398 = vmatpush1.msra.mxu0 0.0
    %4399 = vmatprep.subr.mxu0 0.0
    %4400 = vmatpush1.msra.mxu0 0.0
    %4401 = vmatprep.subr.mxu0 0.0
    %4402 = vmatpush1.msra.mxu0 0.0
    %4403 = vmatprep.subr.mxu0 0.0
    %4404 = vmatpush1.msra.mxu0 0.0
    %4405 = vmatprep.subr.mxu0 0.0
    %4406 = vmatpush1.msra.mxu0 0.0
    %4407 = vmatprep.subr.mxu0 0.0
    %4408 = vmatpush1.msra.mxu0 0.0
    %4409 = vmatprep.subr.mxu0 0.0
    %4410 = vmatpush1.msra.mxu0 0.0
    %4411 = vmatprep.subr.mxu0 0.0
    %4412 = vmatpush1.msra.mxu0 0.0
    %4413 = vmatprep.subr.mxu0 0.0
    %4414 = vmatpush1.msra.mxu0 %v4388
    %4415 = vmatprep.subr.mxu0 0.0
    %4416 = vmatpush1.msra.mxu0 %v4387
    %4417 = vmatprep.subr.mxu0 0.0
    %4418 = vmatpush1.msra.mxu0 %v4386
    %4419 = vmatprep.subr.mxu0 0.0
    %4420 = vmatpush1.msra.mxu0 %v4385
    %4421 = vmatprep.subr.mxu0 0.0
    %4422 = vmatpush2.msra.mxu0 0.0
    %4423 = vmatprep.subr.mxu0 0.0
    %4424 = vmatpush2.msra.mxu0 0.0
    %4425 = vmatprep.subr.mxu0 0.0
    %4426 = vmatpush2.msra.mxu0 0.0
    %4427 = vmatprep.subr.mxu0 0.0
    %4428 = vmatpush2.msra.mxu0 0.0
    %4429 = vmatprep.subr.mxu0 0.0
    %4430 = vmatpush2.msra.mxu0 0.0
    %4431 = vmatprep.subr.mxu0 0.0
    %4432 = vmatpush2.msra.mxu0 0.0
    %4433 = vmatprep.subr.mxu0 0.0
    %4434 = vmatpush2.msra.mxu0 0.0
    %4435 = vmatprep.subr.mxu0 0.0
    %4436 = vmatpush2.msra.mxu0 0.0
    %4437 = vmatprep.subr.mxu0 0.0
    %4438 = vmatpush2.msra.mxu0 0.0
    %4439 = vmatprep.subr.mxu0 0.0
    %4440 = vmatpush2.msra.mxu0 0.0
    %4441 = vmatprep.subr.mxu0 0.0
    %4442 = vmatpush2.msra.mxu0 0.0
    %4443 = vmatprep.subr.mxu0 0.0
    %4444 = vmatpush2.msra.mxu0 0.0
    %4445 = vmatprep.subr.mxu0 0.0
    %4446 = vmatpush2.msra.mxu0 0.0
    %4447 = vmatprep.subr.mxu0 0.0
    %4448 = vmatpush2.msra.mxu0 0.0
    %4449 = vmatprep.subr.mxu0 0.0
    %4450 = vmatpush2.msra.mxu0 0.0
    %4451 = vmatprep.subr.mxu0 0.0
    %4452 = vmatpush2.msra.mxu0 0.0
    %4453 = vmatprep.mubr.f32.mxu0 0.0
    %4454 = vmatmul.mubr.f32.gmra.mxu0 %v4185
    %v4455 = vpop.f32.mrf.mxu0
    %v4456 = vadd.f32 0.0, %v4455
    %v4457 = vpop.f32.mrf.mxu0
    %4458 = vmatprep.mubr.f32.mxu0 0.0
    %4459 = vmatmul.mubr.f32.gmra.mxu0 %v4188
    %v4460 = vpop.f32.mrf.mxu0
    %v4461 = vadd.f32 0.0, %v4460
    %v4462 = vpop.f32.mrf.mxu0
    %4463 = vmatprep.mubr.f32.mxu0 0.0
    %4464 = vmatmul.mubr.f32.gmra.mxu0 %v4191
    %v4465 = vpop.f32.mrf.mxu0
    %v4466 = vadd.f32 0.0, %v4465
    %v4467 = vpop.f32.mrf.mxu0
    %4468 = vmatprep.mubr.f32.mxu0 0.0
    %4469 = vmatmul.mubr.f32.gmra.mxu0 %v4194
    %v4470 = vpop.f32.mrf.mxu0
    %v4471 = vadd.f32 0.0, %v4470
    %v4472 = vpop.f32.mrf.mxu0
    %4473 = vmatprep.mubr.f32.mxu0 0.0
    %4474 = vmatmul.mubr.f32.gmra.mxu0 %v4197
    %v4475 = vpop.f32.mrf.mxu0
    %v4476 = vadd.f32 0.0, %v4475
    %v4477 = vpop.f32.mrf.mxu0
    %4478 = vdwg.mxu0
    %v4480 = vsel %vm500, %v4266, 0
    %v4483 = vsel %vm500, %v4271, 0
    %v4486 = vsel %vm500, %v4276, 0
    %v4489 = vsel %vm500, %v4361, 0
    %v4492 = vsel %vm500, %v4366, 0
    %v4495 = vsel %vm500, %v4371, 0
    %4497 = vmatprep.subr.mxu0 0.0
    %4498 = vmatpush1.xpose.msra.mxu0 0.0
    %4499 = vmatprep.subr.mxu0 0.0
    %4500 = vmatpush1.xpose.msra.mxu0 0.0
    %4501 = vmatprep.subr.mxu0 0.0
    %4502 = vmatpush1.xpose.msra.mxu0 0.0
    %4503 = vmatprep.subr.mxu0 0.0
    %4504 = vmatpush1.xpose.msra.mxu0 0.0
    %4505 = vmatprep.subr.mxu0 0.0
    %4506 = vmatpush1.xpose.msra.mxu0 0.0
    %4507 = vmatprep.subr.mxu0 0.0
    %4508 = vmatpush1.xpose.msra.mxu0 0.0
    %4509 = vmatprep.subr.mxu0 0.0
    %4510 = vmatpush1.xpose.msra.mxu0 0.0
    %4511 = vmatprep.subr.mxu0 0.0
    %4512 = vmatpush1.xpose.msra.mxu0 0.0
    %4513 = vmatprep.subr.mxu0 0.0
    %4514 = vmatpush1.xpose.msra.mxu0 0.0
    %4515 = vmatprep.subr.mxu0 0.0
    %4516 = vmatpush1.xpose.msra.mxu0 0.0
    %4517 = vmatprep.subr.mxu0 0.0
    %4518 = vmatpush1.xpose.msra.mxu0 0.0
    %4519 = vmatprep.subr.mxu0 0.0
    %4520 = vmatpush1.xpose.msra.mxu0 0.0
    %4521 = vmatprep.subr.mxu0 0.0
    %4522 = vmatpush1.xpose.msra.mxu0 0.0
    %4523 = vmatprep.subr.mxu0 0.0
    %4524 = vmatpush1.xpose.msra.mxu0 %v4495
    %4525 = vmatprep.subr.mxu0 0.0
    %4526 = vmatpush1.xpose.msra.mxu0 %v4492
    %4527 = vmatprep.subr.mxu0 0.0
    %4528 = vmatpush1.xpose.msra.mxu0 %v4489
    %4529 = vmatprep.subr.mxu0 0.0
    %4530 = vmatpush2.xpose.msra.mxu0 0.0
    %4531 = vmatprep.subr.mxu0 0.0
    %4532 = vmatpush2.xpose.msra.mxu0 0.0
    %4533 = vmatprep.subr.mxu0 0.0
    %4534 = vmatpush2.xpose.msra.mxu0 0.0
    %4535 = vmatprep.subr.mxu0 0.0
    %4536 = vmatpush2.xpose.msra.mxu0 0.0
    %4537 = vmatprep.subr.mxu0 0.0
    %4538 = vmatpush2.xpose.msra.mxu0 0.0
    %4539 = vmatprep.subr.mxu0 0.0
    %4540 = vmatpush2.xpose.msra.mxu0 0.0
    %4541 = vmatprep.subr.mxu0 0.0
    %4542 = vmatpush2.xpose.msra.mxu0 0.0
    %4543 = vmatprep.subr.mxu0 0.0
    %4544 = vmatpush2.xpose.msra.mxu0 0.0
    %4545 = vmatprep.subr.mxu0 0.0
    %4546 = vmatpush2.xpose.msra.mxu0 0.0
    %4547 = vmatprep.subr.mxu0 0.0
    %4548 = vmatpush2.xpose.msra.mxu0 0.0
    %4549 = vmatprep.subr.mxu0 0.0
    %4550 = vmatpush2.xpose.msra.mxu0 0.0
    %4551 = vmatprep.subr.mxu0 0.0
    %4552 = vmatpush2.xpose.msra.mxu0 0.0
    %4553 = vmatprep.subr.mxu0 0.0
    %4554 = vmatpush2.xpose.msra.mxu0 0.0
    %4555 = vmatprep.subr.mxu0 0.0
    %4556 = vmatpush2.xpose.msra.mxu0 0.0
    %4557 = vmatprep.subr.mxu0 0.0
    %4558 = vmatpush2.xpose.msra.mxu0 0.0
    %4559 = vmatprep.subr.mxu0 0.0
    %4560 = vmatpush2.xpose.msra.mxu0 0.0
    %4561 = vmatprep.mubr.f32.mxu0 0.0
    %4562 = vmatmul.mubr.f32.gmra.mxu0 %v4480
    %v4563 = vpop.f32.mrf.mxu0
    %v4564 = vadd.f32 0.0, %v4563
    %v4565 = vpop.f32.mrf.mxu0
    %4566 = vmatprep.mubr.f32.mxu0 0.0
    %4567 = vmatmul.mubr.f32.gmra.mxu0 %v4483
    %v4568 = vpop.f32.mrf.mxu0
    %v4569 = vadd.f32 0.0, %v4568
    %v4570 = vpop.f32.mrf.mxu0
    %4571 = vmatprep.mubr.f32.mxu0 0.0
    %4572 = vmatmul.mubr.f32.gmra.mxu0 %v4486
    %v4573 = vpop.f32.mrf.mxu0
    %v4574 = vadd.f32 0.0, %v4573
    %v4575 = vpop.f32.mrf.mxu0
    %4576 = vdwg.mxu0
    %v4579 = vrot.slane %v4276, 1
    %v4580 = vrot.slane %v4281, 1
    %v4581 = vsel %vm601, %v4579, %v4580
    %v4582 = vrot.slane %v4286, 1
    %v4583 = vsel %vm601, %v4580, %v4582
    %v4586 = vrot.slane %v4371, 1
    %v4587 = vrot.slane %v4376, 1
    %v4588 = vsel %vm601, %v4586, %v4587
    %v4589 = vrot.slane %v4381, 1
    %v4590 = vsel %vm601, %v4587, %v4589
    %v4591 = vsel %vm500, %v4581, 0
    %v4593 = vsel %vm500, %v4583, 0
    %v4595 = vsel %vm500, %v4582, 0
    %v4597 = vsel %vm500, %v4588, 0
    %v4599 = vsel %vm500, %v4590, 0
    %v4601 = vsel %vm500, %v4589, 0
    %4603 = vmatprep.subr.mxu0 0.0
    %4604 = vmatpush1.xpose.msra.mxu0 0.0
    %4605 = vmatprep.subr.mxu0 0.0
    %4606 = vmatpush1.xpose.msra.mxu0 0.0
    %4607 = vmatprep.subr.mxu0 0.0
    %4608 = vmatpush1.xpose.msra.mxu0 0.0
    %4609 = vmatprep.subr.mxu0 0.0
    %4610 = vmatpush1.xpose.msra.mxu0 0.0
    %4611 = vmatprep.subr.mxu0 0.0
    %4612 = vmatpush1.xpose.msra.mxu0 0.0
    %4613 = vmatprep.subr.mxu0 0.0
    %4614 = vmatpush1.xpose.msra.mxu0 0.0
    %4615 = vmatprep.subr.mxu0 0.0
    %4616 = vmatpush1.xpose.msra.mxu0 0.0
    %4617 = vmatprep.subr.mxu0 0.0
    %4618 = vmatpush1.xpose.msra.mxu0 0.0
    %4619 = vmatprep.subr.mxu0 0.0
    %4620 = vmatpush1.xpose.msra.mxu0 0.0
    %4621 = vmatprep.subr.mxu0 0.0
    %4622 = vmatpush1.xpose.msra.mxu0 0.0
    %4623 = vmatprep.subr.mxu0 0.0
    %4624 = vmatpush1.xpose.msra.mxu0 0.0
    %4625 = vmatprep.subr.mxu0 0.0
    %4626 = vmatpush1.xpose.msra.mxu0 0.0
    %4627 = vmatprep.subr.mxu0 0.0
    %4628 = vmatpush1.xpose.msra.mxu0 0.0
    %4629 = vmatprep.subr.mxu0 0.0
    %4630 = vmatpush1.xpose.msra.mxu0 %v4601
    %4631 = vmatprep.subr.mxu0 0.0
    %4632 = vmatpush1.xpose.msra.mxu0 %v4599
    %4633 = vmatprep.subr.mxu0 0.0
    %4634 = vmatpush1.xpose.msra.mxu0 %v4597
    %4635 = vmatprep.subr.mxu0 0.0
    %4636 = vmatpush2.xpose.msra.mxu0 0.0
    %4637 = vmatprep.subr.mxu0 0.0
    %4638 = vmatpush2.xpose.msra.mxu0 0.0
    %4639 = vmatprep.subr.mxu0 0.0
    %4640 = vmatpush2.xpose.msra.mxu0 0.0
    %4641 = vmatprep.subr.mxu0 0.0
    %4642 = vmatpush2.xpose.msra.mxu0 0.0
    %4643 = vmatprep.subr.mxu0 0.0
    %4644 = vmatpush2.xpose.msra.mxu0 0.0
    %4645 = vmatprep.subr.mxu0 0.0
    %4646 = vmatpush2.xpose.msra.mxu0 0.0
    %4647 = vmatprep.subr.mxu0 0.0
    %4648 = vmatpush2.xpose.msra.mxu0 0.0
    %4649 = vmatprep.subr.mxu0 0.0
    %4650 = vmatpush2.xpose.msra.mxu0 0.0
    %4651 = vmatprep.subr.mxu0 0.0
    %4652 = vmatpush2.xpose.msra.mxu0 0.0
    %4653 = vmatprep.subr.mxu0 0.0
    %4654 = vmatpush2.xpose.msra.mxu0 0.0
    %4655 = vmatprep.subr.mxu0 0.0
    %4656 = vmatpush2.xpose.msra.mxu0 0.0
    %4657 = vmatprep.subr.mxu0 0.0
    %4658 = vmatpush2.xpose.msra.mxu0 0.0
    %4659 = vmatprep.subr.mxu0 0.0
    %4660 = vmatpush2.xpose.msra.mxu0 0.0
    %4661 = vmatprep.subr.mxu0 0.0
    %4662 = vmatpush2.xpose.msra.mxu0 0.0
    %4663 = vmatprep.subr.mxu0 0.0
    %4664 = vmatpush2.xpose.msra.mxu0 0.0
    %4665 = vmatprep.subr.mxu0 0.0
    %4666 = vmatpush2.xpose.msra.mxu0 0.0
    %4667 = vmatprep.mubr.f32.mxu0 0.0
    %4668 = vmatmul.mubr.f32.gmra.mxu0 %v4591
    %v4669 = vpop.f32.mrf.mxu0
    %v4670 = vadd.f32 0.0, %v4669
    %v4671 = vpop.f32.mrf.mxu0
    %4672 = vmatprep.mubr.f32.mxu0 0.0
    %4673 = vmatmul.mubr.f32.gmra.mxu0 %v4593
    %v4674 = vpop.f32.mrf.mxu0
    %v4675 = vadd.f32 0.0, %v4674
    %v4676 = vpop.f32.mrf.mxu0
    %4677 = vmatprep.mubr.f32.mxu0 0.0
    %4678 = vmatmul.mubr.f32.gmra.mxu0 %v4595
    %v4679 = vpop.f32.mrf.mxu0
    %v4680 = vadd.f32 0.0, %v4679
    %v4681 = vpop.f32.mrf.mxu0
    %4682 = vdwg.mxu0
    %s4683 = scalar_lea.vmem %s5, 160
    %v4684 = vld [vmem:[%s4683] sm:$0xff]
    %v4685 = vld [vmem:[%s4683 + $0x8] sm:$0xff]
    %v4686 = vld [vmem:[%s4683 + $0x10] sm:$0xff]
    %v4687 = vld [vmem:[%s4683 + $0x18] sm:$0xff]
    %4688 = vmatprep.subr.mxu0 0.0
    %4689 = vmatpush1.msra.mxu0 0.0
    %4690 = vmatprep.subr.mxu0 0.0
    %4691 = vmatpush1.msra.mxu0 0.0
    %4692 = vmatprep.subr.mxu0 0.0
    %4693 = vmatpush1.msra.mxu0 0.0
    %4694 = vmatprep.subr.mxu0 0.0
    %4695 = vmatpush1.msra.mxu0 0.0
    %4696 = vmatprep.subr.mxu0 0.0
    %4697 = vmatpush1.msra.mxu0 0.0
    %4698 = vmatprep.subr.mxu0 0.0
    %4699 = vmatpush1.msra.mxu0 0.0
    %4700 = vmatprep.subr.mxu0 0.0
    %4701 = vmatpush1.msra.mxu0 0.0
    %4702 = vmatprep.subr.mxu0 0.0
    %4703 = vmatpush1.msra.mxu0 0.0
    %4704 = vmatprep.subr.mxu0 0.0
    %4705 = vmatpush1.msra.mxu0 0.0
    %4706 = vmatprep.subr.mxu0 0.0
    %4707 = vmatpush1.msra.mxu0 0.0
    %4708 = vmatprep.subr.mxu0 0.0
    %4709 = vmatpush1.msra.mxu0 0.0
    %4710 = vmatprep.subr.mxu0 0.0
    %4711 = vmatpush1.msra.mxu0 0.0
    %4712 = vmatprep.subr.mxu0 0.0
    %4713 = vmatpush1.msra.mxu0 %v4687
    %4714 = vmatprep.subr.mxu0 0.0
    %4715 = vmatpush1.msra.mxu0 %v4686
    %4716 = vmatprep.subr.mxu0 0.0
    %4717 = vmatpush1.msra.mxu0 %v4685
    %4718 = vmatprep.subr.mxu0 0.0
    %4719 = vmatpush1.msra.mxu0 %v4684
    %4720 = vmatprep.subr.mxu0 0.0
    %4721 = vmatpush2.msra.mxu0 0.0
    %4722 = vmatprep.subr.mxu0 0.0
    %4723 = vmatpush2.msra.mxu0 0.0
    %4724 = vmatprep.subr.mxu0 0.0
    %4725 = vmatpush2.msra.mxu0 0.0
    %4726 = vmatprep.subr.mxu0 0.0
    %4727 = vmatpush2.msra.mxu0 0.0
    %4728 = vmatprep.subr.mxu0 0.0
    %4729 = vmatpush2.msra.mxu0 0.0
    %4730 = vmatprep.subr.mxu0 0.0
    %4731 = vmatpush2.msra.mxu0 0.0
    %4732 = vmatprep.subr.mxu0 0.0
    %4733 = vmatpush2.msra.mxu0 0.0
    %4734 = vmatprep.subr.mxu0 0.0
    %4735 = vmatpush2.msra.mxu0 0.0
    %4736 = vmatprep.subr.mxu0 0.0
    %4737 = vmatpush2.msra.mxu0 0.0
    %4738 = vmatprep.subr.mxu0 0.0
    %4739 = vmatpush2.msra.mxu0 0.0
    %4740 = vmatprep.subr.mxu0 0.0
    %4741 = vmatpush2.msra.mxu0 0.0
    %4742 = vmatprep.subr.mxu0 0.0
    %4743 = vmatpush2.msra.mxu0 0.0
    %4744 = vmatprep.subr.mxu0 0.0
    %4745 = vmatpush2.msra.mxu0 0.0
    %4746 = vmatprep.subr.mxu0 0.0
    %4747 = vmatpush2.msra.mxu0 0.0
    %4748 = vmatprep.subr.mxu0 0.0
    %4749 = vmatpush2.msra.mxu0 0.0
    %4750 = vmatprep.subr.mxu0 0.0
    %4751 = vmatpush2.msra.mxu0 0.0
    %4752 = vmatprep.mubr.f32.mxu0 0.0
    %4753 = vmatmul.mubr.f32.gmra.mxu0 %v4185
    %v4754 = vpop.f32.mrf.mxu0
    %v4755 = vadd.f32 0.0, %v4754
    %v4756 = vpop.f32.mrf.mxu0
    %4757 = vmatprep.mubr.f32.mxu0 0.0
    %4758 = vmatmul.mubr.f32.gmra.mxu0 %v4188
    %v4759 = vpop.f32.mrf.mxu0
    %v4760 = vadd.f32 0.0, %v4759
    %v4761 = vpop.f32.mrf.mxu0
    %4762 = vmatprep.mubr.f32.mxu0 0.0
    %4763 = vmatmul.mubr.f32.gmra.mxu0 %v4191
    %v4764 = vpop.f32.mrf.mxu0
    %v4765 = vadd.f32 0.0, %v4764
    %v4766 = vpop.f32.mrf.mxu0
    %4767 = vmatprep.mubr.f32.mxu0 0.0
    %4768 = vmatmul.mubr.f32.gmra.mxu0 %v4194
    %v4769 = vpop.f32.mrf.mxu0
    %v4770 = vadd.f32 0.0, %v4769
    %v4771 = vpop.f32.mrf.mxu0
    %4772 = vmatprep.mubr.f32.mxu0 0.0
    %4773 = vmatmul.mubr.f32.gmra.mxu0 %v4197
    %v4774 = vpop.f32.mrf.mxu0
    %v4775 = vadd.f32 0.0, %v4774
    %v4776 = vpop.f32.mrf.mxu0
    %4777 = vdwg.mxu0
    %s4778 = scalar_lea.vmem %s6, 160
    %v4779 = vld [vmem:[%s4778] sm:$0xff]
    %v4780 = vld [vmem:[%s4778 + $0x8] sm:$0xff]
    %v4781 = vld [vmem:[%s4778 + $0x10] sm:$0xff]
    %v4782 = vld [vmem:[%s4778 + $0x18] sm:$0xff]
    %4783 = vmatprep.subr.mxu0 0.0
    %4784 = vmatpush1.msra.mxu0 0.0
    %4785 = vmatprep.subr.mxu0 0.0
    %4786 = vmatpush1.msra.mxu0 0.0
    %4787 = vmatprep.subr.mxu0 0.0
    %4788 = vmatpush1.msra.mxu0 0.0
    %4789 = vmatprep.subr.mxu0 0.0
    %4790 = vmatpush1.msra.mxu0 0.0
    %4791 = vmatprep.subr.mxu0 0.0
    %4792 = vmatpush1.msra.mxu0 0.0
    %4793 = vmatprep.subr.mxu0 0.0
    %4794 = vmatpush1.msra.mxu0 0.0
    %4795 = vmatprep.subr.mxu0 0.0
    %4796 = vmatpush1.msra.mxu0 0.0
    %4797 = vmatprep.subr.mxu0 0.0
    %4798 = vmatpush1.msra.mxu0 0.0
    %4799 = vmatprep.subr.mxu0 0.0
    %4800 = vmatpush1.msra.mxu0 0.0
    %4801 = vmatprep.subr.mxu0 0.0
    %4802 = vmatpush1.msra.mxu0 0.0
    %4803 = vmatprep.subr.mxu0 0.0
    %4804 = vmatpush1.msra.mxu0 0.0
    %4805 = vmatprep.subr.mxu0 0.0
    %4806 = vmatpush1.msra.mxu0 0.0
    %4807 = vmatprep.subr.mxu0 0.0
    %4808 = vmatpush1.msra.mxu0 %v4782
    %4809 = vmatprep.subr.mxu0 0.0
    %4810 = vmatpush1.msra.mxu0 %v4781
    %4811 = vmatprep.subr.mxu0 0.0
    %4812 = vmatpush1.msra.mxu0 %v4780
    %4813 = vmatprep.subr.mxu0 0.0
    %4814 = vmatpush1.msra.mxu0 %v4779
    %4815 = vmatprep.subr.mxu0 0.0
    %4816 = vmatpush2.msra.mxu0 0.0
    %4817 = vmatprep.subr.mxu0 0.0
    %4818 = vmatpush2.msra.mxu0 0.0
    %4819 = vmatprep.subr.mxu0 0.0
    %4820 = vmatpush2.msra.mxu0 0.0
    %4821 = vmatprep.subr.mxu0 0.0
    %4822 = vmatpush2.msra.mxu0 0.0
    %4823 = vmatprep.subr.mxu0 0.0
    %4824 = vmatpush2.msra.mxu0 0.0
    %4825 = vmatprep.subr.mxu0 0.0
    %4826 = vmatpush2.msra.mxu0 0.0
    %4827 = vmatprep.subr.mxu0 0.0
    %4828 = vmatpush2.msra.mxu0 0.0
    %4829 = vmatprep.subr.mxu0 0.0
    %4830 = vmatpush2.msra.mxu0 0.0
    %4831 = vmatprep.subr.mxu0 0.0
    %4832 = vmatpush2.msra.mxu0 0.0
    %4833 = vmatprep.subr.mxu0 0.0
    %4834 = vmatpush2.msra.mxu0 0.0
    %4835 = vmatprep.subr.mxu0 0.0
    %4836 = vmatpush2.msra.mxu0 0.0
    %4837 = vmatprep.subr.mxu0 0.0
    %4838 = vmatpush2.msra.mxu0 0.0
    %4839 = vmatprep.subr.mxu0 0.0
    %4840 = vmatpush2.msra.mxu0 0.0
    %4841 = vmatprep.subr.mxu0 0.0
    %4842 = vmatpush2.msra.mxu0 0.0
    %4843 = vmatprep.subr.mxu0 0.0
    %4844 = vmatpush2.msra.mxu0 0.0
    %4845 = vmatprep.subr.mxu0 0.0
    %4846 = vmatpush2.msra.mxu0 0.0
    %4847 = vmatprep.mubr.f32.mxu0 0.0
    %4848 = vmatmul.mubr.f32.gmra.mxu0 %v4185
    %v4849 = vpop.f32.mrf.mxu0
    %v4850 = vadd.f32 0.0, %v4849
    %v4851 = vpop.f32.mrf.mxu0
    %4852 = vmatprep.mubr.f32.mxu0 0.0
    %4853 = vmatmul.mubr.f32.gmra.mxu0 %v4188
    %v4854 = vpop.f32.mrf.mxu0
    %v4855 = vadd.f32 0.0, %v4854
    %v4856 = vpop.f32.mrf.mxu0
    %4857 = vmatprep.mubr.f32.mxu0 0.0
    %4858 = vmatmul.mubr.f32.gmra.mxu0 %v4191
    %v4859 = vpop.f32.mrf.mxu0
    %v4860 = vadd.f32 0.0, %v4859
    %v4861 = vpop.f32.mrf.mxu0
    %4862 = vmatprep.mubr.f32.mxu0 0.0
    %4863 = vmatmul.mubr.f32.gmra.mxu0 %v4194
    %v4864 = vpop.f32.mrf.mxu0
    %v4865 = vadd.f32 0.0, %v4864
    %v4866 = vpop.f32.mrf.mxu0
    %4867 = vmatprep.mubr.f32.mxu0 0.0
    %4868 = vmatmul.mubr.f32.gmra.mxu0 %v4197
    %v4869 = vpop.f32.mrf.mxu0
    %v4870 = vadd.f32 0.0, %v4869
    %v4871 = vpop.f32.mrf.mxu0
    %4872 = vdwg.mxu0
    %s4873 = scalar_lea.vmem %s7, 160
    %v4874 = vld [vmem:[%s4873] sm:$0xff]
    %v4875 = vld [vmem:[%s4873 + $0x8] sm:$0xff]
    %v4876 = vld [vmem:[%s4873 + $0x10] sm:$0xff]
    %v4877 = vld [vmem:[%s4873 + $0x18] sm:$0xff]
    %4878 = vmatprep.subr.mxu0 0.0
    %4879 = vmatpush1.msra.mxu0 0.0
    %4880 = vmatprep.subr.mxu0 0.0
    %4881 = vmatpush1.msra.mxu0 0.0
    %4882 = vmatprep.subr.mxu0 0.0
    %4883 = vmatpush1.msra.mxu0 0.0
    %4884 = vmatprep.subr.mxu0 0.0
    %4885 = vmatpush1.msra.mxu0 0.0
    %4886 = vmatprep.subr.mxu0 0.0
    %4887 = vmatpush1.msra.mxu0 0.0
    %4888 = vmatprep.subr.mxu0 0.0
    %4889 = vmatpush1.msra.mxu0 0.0
    %4890 = vmatprep.subr.mxu0 0.0
    %4891 = vmatpush1.msra.mxu0 0.0
    %4892 = vmatprep.subr.mxu0 0.0
    %4893 = vmatpush1.msra.mxu0 0.0
    %4894 = vmatprep.subr.mxu0 0.0
    %4895 = vmatpush1.msra.mxu0 0.0
    %4896 = vmatprep.subr.mxu0 0.0
    %4897 = vmatpush1.msra.mxu0 0.0
    %4898 = vmatprep.subr.mxu0 0.0
    %4899 = vmatpush1.msra.mxu0 0.0
    %4900 = vmatprep.subr.mxu0 0.0
    %4901 = vmatpush1.msra.mxu0 0.0
    %4902 = vmatprep.subr.mxu0 0.0
    %4903 = vmatpush1.msra.mxu0 %v4877
    %4904 = vmatprep.subr.mxu0 0.0
    %4905 = vmatpush1.msra.mxu0 %v4876
    %4906 = vmatprep.subr.mxu0 0.0
    %4907 = vmatpush1.msra.mxu0 %v4875
    %4908 = vmatprep.subr.mxu0 0.0
    %4909 = vmatpush1.msra.mxu0 %v4874
    %4910 = vmatprep.subr.mxu0 0.0
    %4911 = vmatpush2.msra.mxu0 0.0
    %4912 = vmatprep.subr.mxu0 0.0
    %4913 = vmatpush2.msra.mxu0 0.0
    %4914 = vmatprep.subr.mxu0 0.0
    %4915 = vmatpush2.msra.mxu0 0.0
    %4916 = vmatprep.subr.mxu0 0.0
    %4917 = vmatpush2.msra.mxu0 0.0
    %4918 = vmatprep.subr.mxu0 0.0
    %4919 = vmatpush2.msra.mxu0 0.0
    %4920 = vmatprep.subr.mxu0 0.0
    %4921 = vmatpush2.msra.mxu0 0.0
    %4922 = vmatprep.subr.mxu0 0.0
    %4923 = vmatpush2.msra.mxu0 0.0
    %4924 = vmatprep.subr.mxu0 0.0
    %4925 = vmatpush2.msra.mxu0 0.0
    %4926 = vmatprep.subr.mxu0 0.0
    %4927 = vmatpush2.msra.mxu0 0.0
    %4928 = vmatprep.subr.mxu0 0.0
    %4929 = vmatpush2.msra.mxu0 0.0
    %4930 = vmatprep.subr.mxu0 0.0
    %4931 = vmatpush2.msra.mxu0 0.0
    %4932 = vmatprep.subr.mxu0 0.0
    %4933 = vmatpush2.msra.mxu0 0.0
    %4934 = vmatprep.subr.mxu0 0.0
    %4935 = vmatpush2.msra.mxu0 0.0
    %4936 = vmatprep.subr.mxu0 0.0
    %4937 = vmatpush2.msra.mxu0 0.0
    %4938 = vmatprep.subr.mxu0 0.0
    %4939 = vmatpush2.msra.mxu0 0.0
    %4940 = vmatprep.subr.mxu0 0.0
    %4941 = vmatpush2.msra.mxu0 0.0
    %4942 = vmatprep.mubr.f32.mxu0 0.0
    %4943 = vmatmul.mubr.f32.gmra.mxu0 %v4185
    %v4944 = vpop.f32.mrf.mxu0
    %v4945 = vadd.f32 0.0, %v4944
    %v4946 = vpop.f32.mrf.mxu0
    %4947 = vmatprep.mubr.f32.mxu0 0.0
    %4948 = vmatmul.mubr.f32.gmra.mxu0 %v4188
    %v4949 = vpop.f32.mrf.mxu0
    %v4950 = vadd.f32 0.0, %v4949
    %v4951 = vpop.f32.mrf.mxu0
    %4952 = vmatprep.mubr.f32.mxu0 0.0
    %4953 = vmatmul.mubr.f32.gmra.mxu0 %v4191
    %v4954 = vpop.f32.mrf.mxu0
    %v4955 = vadd.f32 0.0, %v4954
    %v4956 = vpop.f32.mrf.mxu0
    %4957 = vmatprep.mubr.f32.mxu0 0.0
    %4958 = vmatmul.mubr.f32.gmra.mxu0 %v4194
    %v4959 = vpop.f32.mrf.mxu0
    %v4960 = vadd.f32 0.0, %v4959
    %v4961 = vpop.f32.mrf.mxu0
    %4962 = vmatprep.mubr.f32.mxu0 0.0
    %4963 = vmatmul.mubr.f32.gmra.mxu0 %v4197
    %v4964 = vpop.f32.mrf.mxu0
    %v4965 = vadd.f32 0.0, %v4964
    %v4966 = vpop.f32.mrf.mxu0
    %4967 = vdwg.mxu0
    %v4969 = vsel %vm500, %v4755, 0
    %v4972 = vsel %vm500, %v4760, 0
    %v4975 = vsel %vm500, %v4765, 0
    %v4978 = vsel %vm500, %v4850, 0
    %v4981 = vsel %vm500, %v4855, 0
    %v4984 = vsel %vm500, %v4860, 0
    %4986 = vmatprep.subr.mxu0 0.0
    %4987 = vmatpush1.xpose.msra.mxu0 0.0
    %4988 = vmatprep.subr.mxu0 0.0
    %4989 = vmatpush1.xpose.msra.mxu0 0.0
    %4990 = vmatprep.subr.mxu0 0.0
    %4991 = vmatpush1.xpose.msra.mxu0 0.0
    %4992 = vmatprep.subr.mxu0 0.0
    %4993 = vmatpush1.xpose.msra.mxu0 0.0
    %4994 = vmatprep.subr.mxu0 0.0
    %4995 = vmatpush1.xpose.msra.mxu0 0.0
    %4996 = vmatprep.subr.mxu0 0.0
    %4997 = vmatpush1.xpose.msra.mxu0 0.0
    %4998 = vmatprep.subr.mxu0 0.0
    %4999 = vmatpush1.xpose.msra.mxu0 0.0
    %5000 = vmatprep.subr.mxu0 0.0
    %5001 = vmatpush1.xpose.msra.mxu0 0.0
    %5002 = vmatprep.subr.mxu0 0.0
    %5003 = vmatpush1.xpose.msra.mxu0 0.0
    %5004 = vmatprep.subr.mxu0 0.0
    %5005 = vmatpush1.xpose.msra.mxu0 0.0
    %5006 = vmatprep.subr.mxu0 0.0
    %5007 = vmatpush1.xpose.msra.mxu0 0.0
    %5008 = vmatprep.subr.mxu0 0.0
    %5009 = vmatpush1.xpose.msra.mxu0 0.0
    %5010 = vmatprep.subr.mxu0 0.0
    %5011 = vmatpush1.xpose.msra.mxu0 0.0
    %5012 = vmatprep.subr.mxu0 0.0
    %5013 = vmatpush1.xpose.msra.mxu0 %v4984
    %5014 = vmatprep.subr.mxu0 0.0
    %5015 = vmatpush1.xpose.msra.mxu0 %v4981
    %5016 = vmatprep.subr.mxu0 0.0
    %5017 = vmatpush1.xpose.msra.mxu0 %v4978
    %5018 = vmatprep.subr.mxu0 0.0
    %5019 = vmatpush2.xpose.msra.mxu0 0.0
    %5020 = vmatprep.subr.mxu0 0.0
    %5021 = vmatpush2.xpose.msra.mxu0 0.0
    %5022 = vmatprep.subr.mxu0 0.0
    %5023 = vmatpush2.xpose.msra.mxu0 0.0
    %5024 = vmatprep.subr.mxu0 0.0
    %5025 = vmatpush2.xpose.msra.mxu0 0.0
    %5026 = vmatprep.subr.mxu0 0.0
    %5027 = vmatpush2.xpose.msra.mxu0 0.0
    %5028 = vmatprep.subr.mxu0 0.0
    %5029 = vmatpush2.xpose.msra.mxu0 0.0
    %5030 = vmatprep.subr.mxu0 0.0
    %5031 = vmatpush2.xpose.msra.mxu0 0.0
    %5032 = vmatprep.subr.mxu0 0.0
    %5033 = vmatpush2.xpose.msra.mxu0 0.0
    %5034 = vmatprep.subr.mxu0 0.0
    %5035 = vmatpush2.xpose.msra.mxu0 0.0
    %5036 = vmatprep.subr.mxu0 0.0
    %5037 = vmatpush2.xpose.msra.mxu0 0.0
    %5038 = vmatprep.subr.mxu0 0.0
    %5039 = vmatpush2.xpose.msra.mxu0 0.0
    %5040 = vmatprep.subr.mxu0 0.0
    %5041 = vmatpush2.xpose.msra.mxu0 0.0
    %5042 = vmatprep.subr.mxu0 0.0
    %5043 = vmatpush2.xpose.msra.mxu0 0.0
    %5044 = vmatprep.subr.mxu0 0.0
    %5045 = vmatpush2.xpose.msra.mxu0 0.0
    %5046 = vmatprep.subr.mxu0 0.0
    %5047 = vmatpush2.xpose.msra.mxu0 0.0
    %5048 = vmatprep.subr.mxu0 0.0
    %5049 = vmatpush2.xpose.msra.mxu0 0.0
    %5050 = vmatprep.mubr.f32.mxu0 0.0
    %5051 = vmatmul.mubr.f32.gmra.mxu0 %v4969
    %v5052 = vpop.f32.mrf.mxu0
    %v5053 = vadd.f32 0.0, %v5052
    %v5054 = vpop.f32.mrf.mxu0
    %5055 = vmatprep.mubr.f32.mxu0 0.0
    %5056 = vmatmul.mubr.f32.gmra.mxu0 %v4972
    %v5057 = vpop.f32.mrf.mxu0
    %v5058 = vadd.f32 0.0, %v5057
    %v5059 = vpop.f32.mrf.mxu0
    %5060 = vmatprep.mubr.f32.mxu0 0.0
    %5061 = vmatmul.mubr.f32.gmra.mxu0 %v4975
    %v5062 = vpop.f32.mrf.mxu0
    %v5063 = vadd.f32 0.0, %v5062
    %v5064 = vpop.f32.mrf.mxu0
    %5065 = vdwg.mxu0
    %v5068 = vrot.slane %v4765, 1
    %v5069 = vrot.slane %v4770, 1
    %v5070 = vsel %vm601, %v5068, %v5069
    %v5071 = vrot.slane %v4775, 1
    %v5072 = vsel %vm601, %v5069, %v5071
    %v5075 = vrot.slane %v4860, 1
    %v5076 = vrot.slane %v4865, 1
    %v5077 = vsel %vm601, %v5075, %v5076
    %v5078 = vrot.slane %v4870, 1
    %v5079 = vsel %vm601, %v5076, %v5078
    %v5080 = vsel %vm500, %v5070, 0
    %v5082 = vsel %vm500, %v5072, 0
    %v5084 = vsel %vm500, %v5071, 0
    %v5086 = vsel %vm500, %v5077, 0
    %v5088 = vsel %vm500, %v5079, 0
    %v5090 = vsel %vm500, %v5078, 0
    %5092 = vmatprep.subr.mxu0 0.0
    %5093 = vmatpush1.xpose.msra.mxu0 0.0
    %5094 = vmatprep.subr.mxu0 0.0
    %5095 = vmatpush1.xpose.msra.mxu0 0.0
    %5096 = vmatprep.subr.mxu0 0.0
    %5097 = vmatpush1.xpose.msra.mxu0 0.0
    %5098 = vmatprep.subr.mxu0 0.0
    %5099 = vmatpush1.xpose.msra.mxu0 0.0
    %5100 = vmatprep.subr.mxu0 0.0
    %5101 = vmatpush1.xpose.msra.mxu0 0.0
    %5102 = vmatprep.subr.mxu0 0.0
    %5103 = vmatpush1.xpose.msra.mxu0 0.0
    %5104 = vmatprep.subr.mxu0 0.0
    %5105 = vmatpush1.xpose.msra.mxu0 0.0
    %5106 = vmatprep.subr.mxu0 0.0
    %5107 = vmatpush1.xpose.msra.mxu0 0.0
    %5108 = vmatprep.subr.mxu0 0.0
    %5109 = vmatpush1.xpose.msra.mxu0 0.0
    %5110 = vmatprep.subr.mxu0 0.0
    %5111 = vmatpush1.xpose.msra.mxu0 0.0
    %5112 = vmatprep.subr.mxu0 0.0
    %5113 = vmatpush1.xpose.msra.mxu0 0.0
    %5114 = vmatprep.subr.mxu0 0.0
    %5115 = vmatpush1.xpose.msra.mxu0 0.0
    %5116 = vmatprep.subr.mxu0 0.0
    %5117 = vmatpush1.xpose.msra.mxu0 0.0
    %5118 = vmatprep.subr.mxu0 0.0
    %5119 = vmatpush1.xpose.msra.mxu0 %v5090
    %5120 = vmatprep.subr.mxu0 0.0
    %5121 = vmatpush1.xpose.msra.mxu0 %v5088
    %5122 = vmatprep.subr.mxu0 0.0
    %5123 = vmatpush1.xpose.msra.mxu0 %v5086
    %5124 = vmatprep.subr.mxu0 0.0
    %5125 = vmatpush2.xpose.msra.mxu0 0.0
    %5126 = vmatprep.subr.mxu0 0.0
    %5127 = vmatpush2.xpose.msra.mxu0 0.0
    %5128 = vmatprep.subr.mxu0 0.0
    %5129 = vmatpush2.xpose.msra.mxu0 0.0
    %5130 = vmatprep.subr.mxu0 0.0
    %5131 = vmatpush2.xpose.msra.mxu0 0.0
    %5132 = vmatprep.subr.mxu0 0.0
    %5133 = vmatpush2.xpose.msra.mxu0 0.0
    %5134 = vmatprep.subr.mxu0 0.0
    %5135 = vmatpush2.xpose.msra.mxu0 0.0
    %5136 = vmatprep.subr.mxu0 0.0
    %5137 = vmatpush2.xpose.msra.mxu0 0.0
    %5138 = vmatprep.subr.mxu0 0.0
    %5139 = vmatpush2.xpose.msra.mxu0 0.0
    %5140 = vmatprep.subr.mxu0 0.0
    %5141 = vmatpush2.xpose.msra.mxu0 0.0
    %5142 = vmatprep.subr.mxu0 0.0
    %5143 = vmatpush2.xpose.msra.mxu0 0.0
    %5144 = vmatprep.subr.mxu0 0.0
    %5145 = vmatpush2.xpose.msra.mxu0 0.0
    %5146 = vmatprep.subr.mxu0 0.0
    %5147 = vmatpush2.xpose.msra.mxu0 0.0
    %5148 = vmatprep.subr.mxu0 0.0
    %5149 = vmatpush2.xpose.msra.mxu0 0.0
    %5150 = vmatprep.subr.mxu0 0.0
    %5151 = vmatpush2.xpose.msra.mxu0 0.0
    %5152 = vmatprep.subr.mxu0 0.0
    %5153 = vmatpush2.xpose.msra.mxu0 0.0
    %5154 = vmatprep.subr.mxu0 0.0
    %5155 = vmatpush2.xpose.msra.mxu0 0.0
    %5156 = vmatprep.mubr.f32.mxu0 0.0
    %5157 = vmatmul.mubr.f32.gmra.mxu0 %v5080
    %v5158 = vpop.f32.mrf.mxu0
    %v5159 = vadd.f32 0.0, %v5158
    %v5160 = vpop.f32.mrf.mxu0
    %5161 = vmatprep.mubr.f32.mxu0 0.0
    %5162 = vmatmul.mubr.f32.gmra.mxu0 %v5082
    %v5163 = vpop.f32.mrf.mxu0
    %v5164 = vadd.f32 0.0, %v5163
    %v5165 = vpop.f32.mrf.mxu0
    %5166 = vmatprep.mubr.f32.mxu0 0.0
    %5167 = vmatmul.mubr.f32.gmra.mxu0 %v5084
    %v5168 = vpop.f32.mrf.mxu0
    %v5169 = vadd.f32 0.0, %v5168
    %v5170 = vpop.f32.mrf.mxu0
    %5171 = vdwg.mxu0
    %s5172 = scalar_lea.vmem %s5, 192
    %v5173 = vld [vmem:[%s5172] sm:$0xff]
    %v5174 = vld [vmem:[%s5172 + $0x8] sm:$0xff]
    %v5175 = vld [vmem:[%s5172 + $0x10] sm:$0xff]
    %v5176 = vld [vmem:[%s5172 + $0x18] sm:$0xff]
    %5177 = vmatprep.subr.mxu0 0.0
    %5178 = vmatpush1.msra.mxu0 0.0
    %5179 = vmatprep.subr.mxu0 0.0
    %5180 = vmatpush1.msra.mxu0 0.0
    %5181 = vmatprep.subr.mxu0 0.0
    %5182 = vmatpush1.msra.mxu0 0.0
    %5183 = vmatprep.subr.mxu0 0.0
    %5184 = vmatpush1.msra.mxu0 0.0
    %5185 = vmatprep.subr.mxu0 0.0
    %5186 = vmatpush1.msra.mxu0 0.0
    %5187 = vmatprep.subr.mxu0 0.0
    %5188 = vmatpush1.msra.mxu0 0.0
    %5189 = vmatprep.subr.mxu0 0.0
    %5190 = vmatpush1.msra.mxu0 0.0
    %5191 = vmatprep.subr.mxu0 0.0
    %5192 = vmatpush1.msra.mxu0 0.0
    %5193 = vmatprep.subr.mxu0 0.0
    %5194 = vmatpush1.msra.mxu0 0.0
    %5195 = vmatprep.subr.mxu0 0.0
    %5196 = vmatpush1.msra.mxu0 0.0
    %5197 = vmatprep.subr.mxu0 0.0
    %5198 = vmatpush1.msra.mxu0 0.0
    %5199 = vmatprep.subr.mxu0 0.0
    %5200 = vmatpush1.msra.mxu0 0.0
    %5201 = vmatprep.subr.mxu0 0.0
    %5202 = vmatpush1.msra.mxu0 %v5176
    %5203 = vmatprep.subr.mxu0 0.0
    %5204 = vmatpush1.msra.mxu0 %v5175
    %5205 = vmatprep.subr.mxu0 0.0
    %5206 = vmatpush1.msra.mxu0 %v5174
    %5207 = vmatprep.subr.mxu0 0.0
    %5208 = vmatpush1.msra.mxu0 %v5173
    %5209 = vmatprep.subr.mxu0 0.0
    %5210 = vmatpush2.msra.mxu0 0.0
    %5211 = vmatprep.subr.mxu0 0.0
    %5212 = vmatpush2.msra.mxu0 0.0
    %5213 = vmatprep.subr.mxu0 0.0
    %5214 = vmatpush2.msra.mxu0 0.0
    %5215 = vmatprep.subr.mxu0 0.0
    %5216 = vmatpush2.msra.mxu0 0.0
    %5217 = vmatprep.subr.mxu0 0.0
    %5218 = vmatpush2.msra.mxu0 0.0
    %5219 = vmatprep.subr.mxu0 0.0
    %5220 = vmatpush2.msra.mxu0 0.0
    %5221 = vmatprep.subr.mxu0 0.0
    %5222 = vmatpush2.msra.mxu0 0.0
    %5223 = vmatprep.subr.mxu0 0.0
    %5224 = vmatpush2.msra.mxu0 0.0
    %5225 = vmatprep.subr.mxu0 0.0
    %5226 = vmatpush2.msra.mxu0 0.0
    %5227 = vmatprep.subr.mxu0 0.0
    %5228 = vmatpush2.msra.mxu0 0.0
    %5229 = vmatprep.subr.mxu0 0.0
    %5230 = vmatpush2.msra.mxu0 0.0
    %5231 = vmatprep.subr.mxu0 0.0
    %5232 = vmatpush2.msra.mxu0 0.0
    %5233 = vmatprep.subr.mxu0 0.0
    %5234 = vmatpush2.msra.mxu0 0.0
    %5235 = vmatprep.subr.mxu0 0.0
    %5236 = vmatpush2.msra.mxu0 0.0
    %5237 = vmatprep.subr.mxu0 0.0
    %5238 = vmatpush2.msra.mxu0 0.0
    %5239 = vmatprep.subr.mxu0 0.0
    %5240 = vmatpush2.msra.mxu0 0.0
    %5241 = vmatprep.mubr.f32.mxu0 0.0
    %5242 = vmatmul.mubr.f32.gmra.mxu0 %v4185
    %v5243 = vpop.f32.mrf.mxu0
    %v5244 = vadd.f32 0.0, %v5243
    %v5245 = vpop.f32.mrf.mxu0
    %5246 = vmatprep.mubr.f32.mxu0 0.0
    %5247 = vmatmul.mubr.f32.gmra.mxu0 %v4188
    %v5248 = vpop.f32.mrf.mxu0
    %v5249 = vadd.f32 0.0, %v5248
    %v5250 = vpop.f32.mrf.mxu0
    %5251 = vmatprep.mubr.f32.mxu0 0.0
    %5252 = vmatmul.mubr.f32.gmra.mxu0 %v4191
    %v5253 = vpop.f32.mrf.mxu0
    %v5254 = vadd.f32 0.0, %v5253
    %v5255 = vpop.f32.mrf.mxu0
    %5256 = vmatprep.mubr.f32.mxu0 0.0
    %5257 = vmatmul.mubr.f32.gmra.mxu0 %v4194
    %v5258 = vpop.f32.mrf.mxu0
    %v5259 = vadd.f32 0.0, %v5258
    %v5260 = vpop.f32.mrf.mxu0
    %5261 = vmatprep.mubr.f32.mxu0 0.0
    %5262 = vmatmul.mubr.f32.gmra.mxu0 %v4197
    %v5263 = vpop.f32.mrf.mxu0
    %v5264 = vadd.f32 0.0, %v5263
    %v5265 = vpop.f32.mrf.mxu0
    %5266 = vdwg.mxu0
    %s5267 = scalar_lea.vmem %s6, 192
    %v5268 = vld [vmem:[%s5267] sm:$0xff]
    %v5269 = vld [vmem:[%s5267 + $0x8] sm:$0xff]
    %v5270 = vld [vmem:[%s5267 + $0x10] sm:$0xff]
    %v5271 = vld [vmem:[%s5267 + $0x18] sm:$0xff]
    %5272 = vmatprep.subr.mxu0 0.0
    %5273 = vmatpush1.msra.mxu0 0.0
    %5274 = vmatprep.subr.mxu0 0.0
    %5275 = vmatpush1.msra.mxu0 0.0
    %5276 = vmatprep.subr.mxu0 0.0
    %5277 = vmatpush1.msra.mxu0 0.0
    %5278 = vmatprep.subr.mxu0 0.0
    %5279 = vmatpush1.msra.mxu0 0.0
    %5280 = vmatprep.subr.mxu0 0.0
    %5281 = vmatpush1.msra.mxu0 0.0
    %5282 = vmatprep.subr.mxu0 0.0
    %5283 = vmatpush1.msra.mxu0 0.0
    %5284 = vmatprep.subr.mxu0 0.0
    %5285 = vmatpush1.msra.mxu0 0.0
    %5286 = vmatprep.subr.mxu0 0.0
    %5287 = vmatpush1.msra.mxu0 0.0
    %5288 = vmatprep.subr.mxu0 0.0
    %5289 = vmatpush1.msra.mxu0 0.0
    %5290 = vmatprep.subr.mxu0 0.0
    %5291 = vmatpush1.msra.mxu0 0.0
    %5292 = vmatprep.subr.mxu0 0.0
    %5293 = vmatpush1.msra.mxu0 0.0
    %5294 = vmatprep.subr.mxu0 0.0
    %5295 = vmatpush1.msra.mxu0 0.0
    %5296 = vmatprep.subr.mxu0 0.0
    %5297 = vmatpush1.msra.mxu0 %v5271
    %5298 = vmatprep.subr.mxu0 0.0
    %5299 = vmatpush1.msra.mxu0 %v5270
    %5300 = vmatprep.subr.mxu0 0.0
    %5301 = vmatpush1.msra.mxu0 %v5269
    %5302 = vmatprep.subr.mxu0 0.0
    %5303 = vmatpush1.msra.mxu0 %v5268
    %5304 = vmatprep.subr.mxu0 0.0
    %5305 = vmatpush2.msra.mxu0 0.0
    %5306 = vmatprep.subr.mxu0 0.0
    %5307 = vmatpush2.msra.mxu0 0.0
    %5308 = vmatprep.subr.mxu0 0.0
    %5309 = vmatpush2.msra.mxu0 0.0
    %5310 = vmatprep.subr.mxu0 0.0
    %5311 = vmatpush2.msra.mxu0 0.0
    %5312 = vmatprep.subr.mxu0 0.0
    %5313 = vmatpush2.msra.mxu0 0.0
    %5314 = vmatprep.subr.mxu0 0.0
    %5315 = vmatpush2.msra.mxu0 0.0
    %5316 = vmatprep.subr.mxu0 0.0
    %5317 = vmatpush2.msra.mxu0 0.0
    %5318 = vmatprep.subr.mxu0 0.0
    %5319 = vmatpush2.msra.mxu0 0.0
    %5320 = vmatprep.subr.mxu0 0.0
    %5321 = vmatpush2.msra.mxu0 0.0
    %5322 = vmatprep.subr.mxu0 0.0
    %5323 = vmatpush2.msra.mxu0 0.0
    %5324 = vmatprep.subr.mxu0 0.0
    %5325 = vmatpush2.msra.mxu0 0.0
    %5326 = vmatprep.subr.mxu0 0.0
    %5327 = vmatpush2.msra.mxu0 0.0
    %5328 = vmatprep.subr.mxu0 0.0
    %5329 = vmatpush2.msra.mxu0 0.0
    %5330 = vmatprep.subr.mxu0 0.0
    %5331 = vmatpush2.msra.mxu0 0.0
    %5332 = vmatprep.subr.mxu0 0.0
    %5333 = vmatpush2.msra.mxu0 0.0
    %5334 = vmatprep.subr.mxu0 0.0
    %5335 = vmatpush2.msra.mxu0 0.0
    %5336 = vmatprep.mubr.f32.mxu0 0.0
    %5337 = vmatmul.mubr.f32.gmra.mxu0 %v4185
    %v5338 = vpop.f32.mrf.mxu0
    %v5339 = vadd.f32 0.0, %v5338
    %v5340 = vpop.f32.mrf.mxu0
    %5341 = vmatprep.mubr.f32.mxu0 0.0
    %5342 = vmatmul.mubr.f32.gmra.mxu0 %v4188
    %v5343 = vpop.f32.mrf.mxu0
    %v5344 = vadd.f32 0.0, %v5343
    %v5345 = vpop.f32.mrf.mxu0
    %5346 = vmatprep.mubr.f32.mxu0 0.0
    %5347 = vmatmul.mubr.f32.gmra.mxu0 %v4191
    %v5348 = vpop.f32.mrf.mxu0
    %v5349 = vadd.f32 0.0, %v5348
    %v5350 = vpop.f32.mrf.mxu0
    %5351 = vmatprep.mubr.f32.mxu0 0.0
    %5352 = vmatmul.mubr.f32.gmra.mxu0 %v4194
    %v5353 = vpop.f32.mrf.mxu0
    %v5354 = vadd.f32 0.0, %v5353
    %v5355 = vpop.f32.mrf.mxu0
    %5356 = vmatprep.mubr.f32.mxu0 0.0
    %5357 = vmatmul.mubr.f32.gmra.mxu0 %v4197
    %v5358 = vpop.f32.mrf.mxu0
    %v5359 = vadd.f32 0.0, %v5358
    %v5360 = vpop.f32.mrf.mxu0
    %5361 = vdwg.mxu0
    %s5362 = scalar_lea.vmem %s7, 192
    %v5363 = vld [vmem:[%s5362] sm:$0xff]
    %v5364 = vld [vmem:[%s5362 + $0x8] sm:$0xff]
    %v5365 = vld [vmem:[%s5362 + $0x10] sm:$0xff]
    %v5366 = vld [vmem:[%s5362 + $0x18] sm:$0xff]
    %5367 = vmatprep.subr.mxu0 0.0
    %5368 = vmatpush1.msra.mxu0 0.0
    %5369 = vmatprep.subr.mxu0 0.0
    %5370 = vmatpush1.msra.mxu0 0.0
    %5371 = vmatprep.subr.mxu0 0.0
    %5372 = vmatpush1.msra.mxu0 0.0
    %5373 = vmatprep.subr.mxu0 0.0
    %5374 = vmatpush1.msra.mxu0 0.0
    %5375 = vmatprep.subr.mxu0 0.0
    %5376 = vmatpush1.msra.mxu0 0.0
    %5377 = vmatprep.subr.mxu0 0.0
    %5378 = vmatpush1.msra.mxu0 0.0
    %5379 = vmatprep.subr.mxu0 0.0
    %5380 = vmatpush1.msra.mxu0 0.0
    %5381 = vmatprep.subr.mxu0 0.0
    %5382 = vmatpush1.msra.mxu0 0.0
    %5383 = vmatprep.subr.mxu0 0.0
    %5384 = vmatpush1.msra.mxu0 0.0
    %5385 = vmatprep.subr.mxu0 0.0
    %5386 = vmatpush1.msra.mxu0 0.0
    %5387 = vmatprep.subr.mxu0 0.0
    %5388 = vmatpush1.msra.mxu0 0.0
    %5389 = vmatprep.subr.mxu0 0.0
    %5390 = vmatpush1.msra.mxu0 0.0
    %5391 = vmatprep.subr.mxu0 0.0
    %5392 = vmatpush1.msra.mxu0 %v5366
    %5393 = vmatprep.subr.mxu0 0.0
    %5394 = vmatpush1.msra.mxu0 %v5365
    %5395 = vmatprep.subr.mxu0 0.0
    %5396 = vmatpush1.msra.mxu0 %v5364
    %5397 = vmatprep.subr.mxu0 0.0
    %5398 = vmatpush1.msra.mxu0 %v5363
    %5399 = vmatprep.subr.mxu0 0.0
    %5400 = vmatpush2.msra.mxu0 0.0
    %5401 = vmatprep.subr.mxu0 0.0
    %5402 = vmatpush2.msra.mxu0 0.0
    %5403 = vmatprep.subr.mxu0 0.0
    %5404 = vmatpush2.msra.mxu0 0.0
    %5405 = vmatprep.subr.mxu0 0.0
    %5406 = vmatpush2.msra.mxu0 0.0
    %5407 = vmatprep.subr.mxu0 0.0
    %5408 = vmatpush2.msra.mxu0 0.0
    %5409 = vmatprep.subr.mxu0 0.0
    %5410 = vmatpush2.msra.mxu0 0.0
    %5411 = vmatprep.subr.mxu0 0.0
    %5412 = vmatpush2.msra.mxu0 0.0
    %5413 = vmatprep.subr.mxu0 0.0
    %5414 = vmatpush2.msra.mxu0 0.0
    %5415 = vmatprep.subr.mxu0 0.0
    %5416 = vmatpush2.msra.mxu0 0.0
    %5417 = vmatprep.subr.mxu0 0.0
    %5418 = vmatpush2.msra.mxu0 0.0
    %5419 = vmatprep.subr.mxu0 0.0
    %5420 = vmatpush2.msra.mxu0 0.0
    %5421 = vmatprep.subr.mxu0 0.0
    %5422 = vmatpush2.msra.mxu0 0.0
    %5423 = vmatprep.subr.mxu0 0.0
    %5424 = vmatpush2.msra.mxu0 0.0
    %5425 = vmatprep.subr.mxu0 0.0
    %5426 = vmatpush2.msra.mxu0 0.0
    %5427 = vmatprep.subr.mxu0 0.0
    %5428 = vmatpush2.msra.mxu0 0.0
    %5429 = vmatprep.subr.mxu0 0.0
    %5430 = vmatpush2.msra.mxu0 0.0
    %5431 = vmatprep.mubr.f32.mxu0 0.0
    %5432 = vmatmul.mubr.f32.gmra.mxu0 %v4185
    %v5433 = vpop.f32.mrf.mxu0
    %v5434 = vadd.f32 0.0, %v5433
    %v5435 = vpop.f32.mrf.mxu0
    %5436 = vmatprep.mubr.f32.mxu0 0.0
    %5437 = vmatmul.mubr.f32.gmra.mxu0 %v4188
    %v5438 = vpop.f32.mrf.mxu0
    %v5439 = vadd.f32 0.0, %v5438
    %v5440 = vpop.f32.mrf.mxu0
    %5441 = vmatprep.mubr.f32.mxu0 0.0
    %5442 = vmatmul.mubr.f32.gmra.mxu0 %v4191
    %v5443 = vpop.f32.mrf.mxu0
    %v5444 = vadd.f32 0.0, %v5443
    %v5445 = vpop.f32.mrf.mxu0
    %5446 = vmatprep.mubr.f32.mxu0 0.0
    %5447 = vmatmul.mubr.f32.gmra.mxu0 %v4194
    %v5448 = vpop.f32.mrf.mxu0
    %v5449 = vadd.f32 0.0, %v5448
    %v5450 = vpop.f32.mrf.mxu0
    %5451 = vmatprep.mubr.f32.mxu0 0.0
    %5452 = vmatmul.mubr.f32.gmra.mxu0 %v4197
    %v5453 = vpop.f32.mrf.mxu0
    %v5454 = vadd.f32 0.0, %v5453
    %v5455 = vpop.f32.mrf.mxu0
    %5456 = vdwg.mxu0
    %v5458 = vsel %vm500, %v5244, 0
    %v5461 = vsel %vm500, %v5249, 0
    %v5464 = vsel %vm500, %v5254, 0
    %v5467 = vsel %vm500, %v5339, 0
    %v5470 = vsel %vm500, %v5344, 0
    %v5473 = vsel %vm500, %v5349, 0
    %5475 = vmatprep.subr.mxu0 0.0
    %5476 = vmatpush1.xpose.msra.mxu0 0.0
    %5477 = vmatprep.subr.mxu0 0.0
    %5478 = vmatpush1.xpose.msra.mxu0 0.0
    %5479 = vmatprep.subr.mxu0 0.0
    %5480 = vmatpush1.xpose.msra.mxu0 0.0
    %5481 = vmatprep.subr.mxu0 0.0
    %5482 = vmatpush1.xpose.msra.mxu0 0.0
    %5483 = vmatprep.subr.mxu0 0.0
    %5484 = vmatpush1.xpose.msra.mxu0 0.0
    %5485 = vmatprep.subr.mxu0 0.0
    %5486 = vmatpush1.xpose.msra.mxu0 0.0
    %5487 = vmatprep.subr.mxu0 0.0
    %5488 = vmatpush1.xpose.msra.mxu0 0.0
    %5489 = vmatprep.subr.mxu0 0.0
    %5490 = vmatpush1.xpose.msra.mxu0 0.0
    %5491 = vmatprep.subr.mxu0 0.0
    %5492 = vmatpush1.xpose.msra.mxu0 0.0
    %5493 = vmatprep.subr.mxu0 0.0
    %5494 = vmatpush1.xpose.msra.mxu0 0.0
    %5495 = vmatprep.subr.mxu0 0.0
    %5496 = vmatpush1.xpose.msra.mxu0 0.0
    %5497 = vmatprep.subr.mxu0 0.0
    %5498 = vmatpush1.xpose.msra.mxu0 0.0
    %5499 = vmatprep.subr.mxu0 0.0
    %5500 = vmatpush1.xpose.msra.mxu0 0.0
    %5501 = vmatprep.subr.mxu0 0.0
    %5502 = vmatpush1.xpose.msra.mxu0 %v5473
    %5503 = vmatprep.subr.mxu0 0.0
    %5504 = vmatpush1.xpose.msra.mxu0 %v5470
    %5505 = vmatprep.subr.mxu0 0.0
    %5506 = vmatpush1.xpose.msra.mxu0 %v5467
    %5507 = vmatprep.subr.mxu0 0.0
    %5508 = vmatpush2.xpose.msra.mxu0 0.0
    %5509 = vmatprep.subr.mxu0 0.0
    %5510 = vmatpush2.xpose.msra.mxu0 0.0
    %5511 = vmatprep.subr.mxu0 0.0
    %5512 = vmatpush2.xpose.msra.mxu0 0.0
    %5513 = vmatprep.subr.mxu0 0.0
    %5514 = vmatpush2.xpose.msra.mxu0 0.0
    %5515 = vmatprep.subr.mxu0 0.0
    %5516 = vmatpush2.xpose.msra.mxu0 0.0
    %5517 = vmatprep.subr.mxu0 0.0
    %5518 = vmatpush2.xpose.msra.mxu0 0.0
    %5519 = vmatprep.subr.mxu0 0.0
    %5520 = vmatpush2.xpose.msra.mxu0 0.0
    %5521 = vmatprep.subr.mxu0 0.0
    %5522 = vmatpush2.xpose.msra.mxu0 0.0
    %5523 = vmatprep.subr.mxu0 0.0
    %5524 = vmatpush2.xpose.msra.mxu0 0.0
    %5525 = vmatprep.subr.mxu0 0.0
    %5526 = vmatpush2.xpose.msra.mxu0 0.0
    %5527 = vmatprep.subr.mxu0 0.0
    %5528 = vmatpush2.xpose.msra.mxu0 0.0
    %5529 = vmatprep.subr.mxu0 0.0
    %5530 = vmatpush2.xpose.msra.mxu0 0.0
    %5531 = vmatprep.subr.mxu0 0.0
    %5532 = vmatpush2.xpose.msra.mxu0 0.0
    %5533 = vmatprep.subr.mxu0 0.0
    %5534 = vmatpush2.xpose.msra.mxu0 0.0
    %5535 = vmatprep.subr.mxu0 0.0
    %5536 = vmatpush2.xpose.msra.mxu0 0.0
    %5537 = vmatprep.subr.mxu0 0.0
    %5538 = vmatpush2.xpose.msra.mxu0 0.0
    %5539 = vmatprep.mubr.f32.mxu0 0.0
    %5540 = vmatmul.mubr.f32.gmra.mxu0 %v5458
    %v5541 = vpop.f32.mrf.mxu0
    %v5542 = vadd.f32 0.0, %v5541
    %v5543 = vpop.f32.mrf.mxu0
    %5544 = vmatprep.mubr.f32.mxu0 0.0
    %5545 = vmatmul.mubr.f32.gmra.mxu0 %v5461
    %v5546 = vpop.f32.mrf.mxu0
    %v5547 = vadd.f32 0.0, %v5546
    %v5548 = vpop.f32.mrf.mxu0
    %5549 = vmatprep.mubr.f32.mxu0 0.0
    %5550 = vmatmul.mubr.f32.gmra.mxu0 %v5464
    %v5551 = vpop.f32.mrf.mxu0
    %v5552 = vadd.f32 0.0, %v5551
    %v5553 = vpop.f32.mrf.mxu0
    %5554 = vdwg.mxu0
    %v5557 = vrot.slane %v5254, 1
    %v5558 = vrot.slane %v5259, 1
    %v5559 = vsel %vm601, %v5557, %v5558
    %v5560 = vrot.slane %v5264, 1
    %v5561 = vsel %vm601, %v5558, %v5560
    %v5564 = vrot.slane %v5349, 1
    %v5565 = vrot.slane %v5354, 1
    %v5566 = vsel %vm601, %v5564, %v5565
    %v5567 = vrot.slane %v5359, 1
    %v5568 = vsel %vm601, %v5565, %v5567
    %v5569 = vsel %vm500, %v5559, 0
    %v5571 = vsel %vm500, %v5561, 0
    %v5573 = vsel %vm500, %v5560, 0
    %v5575 = vsel %vm500, %v5566, 0
    %v5577 = vsel %vm500, %v5568, 0
    %v5579 = vsel %vm500, %v5567, 0
    %5581 = vmatprep.subr.mxu0 0.0
    %5582 = vmatpush1.xpose.msra.mxu0 0.0
    %5583 = vmatprep.subr.mxu0 0.0
    %5584 = vmatpush1.xpose.msra.mxu0 0.0
    %5585 = vmatprep.subr.mxu0 0.0
    %5586 = vmatpush1.xpose.msra.mxu0 0.0
    %5587 = vmatprep.subr.mxu0 0.0
    %5588 = vmatpush1.xpose.msra.mxu0 0.0
    %5589 = vmatprep.subr.mxu0 0.0
    %5590 = vmatpush1.xpose.msra.mxu0 0.0
    %5591 = vmatprep.subr.mxu0 0.0
    %5592 = vmatpush1.xpose.msra.mxu0 0.0
    %5593 = vmatprep.subr.mxu0 0.0
    %5594 = vmatpush1.xpose.msra.mxu0 0.0
    %5595 = vmatprep.subr.mxu0 0.0
    %5596 = vmatpush1.xpose.msra.mxu0 0.0
    %5597 = vmatprep.subr.mxu0 0.0
    %5598 = vmatpush1.xpose.msra.mxu0 0.0
    %5599 = vmatprep.subr.mxu0 0.0
    %5600 = vmatpush1.xpose.msra.mxu0 0.0
    %5601 = vmatprep.subr.mxu0 0.0
    %5602 = vmatpush1.xpose.msra.mxu0 0.0
    %5603 = vmatprep.subr.mxu0 0.0
    %5604 = vmatpush1.xpose.msra.mxu0 0.0
    %5605 = vmatprep.subr.mxu0 0.0
    %5606 = vmatpush1.xpose.msra.mxu0 0.0
    %5607 = vmatprep.subr.mxu0 0.0
    %5608 = vmatpush1.xpose.msra.mxu0 %v5579
    %5609 = vmatprep.subr.mxu0 0.0
    %5610 = vmatpush1.xpose.msra.mxu0 %v5577
    %5611 = vmatprep.subr.mxu0 0.0
    %5612 = vmatpush1.xpose.msra.mxu0 %v5575
    %5613 = vmatprep.subr.mxu0 0.0
    %5614 = vmatpush2.xpose.msra.mxu0 0.0
    %5615 = vmatprep.subr.mxu0 0.0
    %5616 = vmatpush2.xpose.msra.mxu0 0.0
    %5617 = vmatprep.subr.mxu0 0.0
    %5618 = vmatpush2.xpose.msra.mxu0 0.0
    %5619 = vmatprep.subr.mxu0 0.0
    %5620 = vmatpush2.xpose.msra.mxu0 0.0
    %5621 = vmatprep.subr.mxu0 0.0
    %5622 = vmatpush2.xpose.msra.mxu0 0.0
    %5623 = vmatprep.subr.mxu0 0.0
    %5624 = vmatpush2.xpose.msra.mxu0 0.0
    %5625 = vmatprep.subr.mxu0 0.0
    %5626 = vmatpush2.xpose.msra.mxu0 0.0
    %5627 = vmatprep.subr.mxu0 0.0
    %5628 = vmatpush2.xpose.msra.mxu0 0.0
    %5629 = vmatprep.subr.mxu0 0.0
    %5630 = vmatpush2.xpose.msra.mxu0 0.0
    %5631 = vmatprep.subr.mxu0 0.0
    %5632 = vmatpush2.xpose.msra.mxu0 0.0
    %5633 = vmatprep.subr.mxu0 0.0
    %5634 = vmatpush2.xpose.msra.mxu0 0.0
    %5635 = vmatprep.subr.mxu0 0.0
    %5636 = vmatpush2.xpose.msra.mxu0 0.0
    %5637 = vmatprep.subr.mxu0 0.0
    %5638 = vmatpush2.xpose.msra.mxu0 0.0
    %5639 = vmatprep.subr.mxu0 0.0
    %5640 = vmatpush2.xpose.msra.mxu0 0.0
    %5641 = vmatprep.subr.mxu0 0.0
    %5642 = vmatpush2.xpose.msra.mxu0 0.0
    %5643 = vmatprep.subr.mxu0 0.0
    %5644 = vmatpush2.xpose.msra.mxu0 0.0
    %5645 = vmatprep.mubr.f32.mxu0 0.0
    %5646 = vmatmul.mubr.f32.gmra.mxu0 %v5569
    %v5647 = vpop.f32.mrf.mxu0
    %v5648 = vadd.f32 0.0, %v5647
    %v5649 = vpop.f32.mrf.mxu0
    %5650 = vmatprep.mubr.f32.mxu0 0.0
    %5651 = vmatmul.mubr.f32.gmra.mxu0 %v5571
    %v5652 = vpop.f32.mrf.mxu0
    %v5653 = vadd.f32 0.0, %v5652
    %v5654 = vpop.f32.mrf.mxu0
    %5655 = vmatprep.mubr.f32.mxu0 0.0
    %5656 = vmatmul.mubr.f32.gmra.mxu0 %v5573
    %v5657 = vpop.f32.mrf.mxu0
    %v5658 = vadd.f32 0.0, %v5657
    %v5659 = vpop.f32.mrf.mxu0
    %5660 = vdwg.mxu0
    %s5661 = scalar_lea.vmem %s5, 224
    %v5662 = vld [vmem:[%s5661] sm:$0xff]
    %v5663 = vld [vmem:[%s5661 + $0x8] sm:$0xff]
    %v5664 = vld [vmem:[%s5661 + $0x10] sm:$0xff]
    %v5665 = vld [vmem:[%s5661 + $0x18] sm:$0xff]
    %5666 = vmatprep.subr.mxu0 0.0
    %5667 = vmatpush1.msra.mxu0 0.0
    %5668 = vmatprep.subr.mxu0 0.0
    %5669 = vmatpush1.msra.mxu0 0.0
    %5670 = vmatprep.subr.mxu0 0.0
    %5671 = vmatpush1.msra.mxu0 0.0
    %5672 = vmatprep.subr.mxu0 0.0
    %5673 = vmatpush1.msra.mxu0 0.0
    %5674 = vmatprep.subr.mxu0 0.0
    %5675 = vmatpush1.msra.mxu0 0.0
    %5676 = vmatprep.subr.mxu0 0.0
    %5677 = vmatpush1.msra.mxu0 0.0
    %5678 = vmatprep.subr.mxu0 0.0
    %5679 = vmatpush1.msra.mxu0 0.0
    %5680 = vmatprep.subr.mxu0 0.0
    %5681 = vmatpush1.msra.mxu0 0.0
    %5682 = vmatprep.subr.mxu0 0.0
    %5683 = vmatpush1.msra.mxu0 0.0
    %5684 = vmatprep.subr.mxu0 0.0
    %5685 = vmatpush1.msra.mxu0 0.0
    %5686 = vmatprep.subr.mxu0 0.0
    %5687 = vmatpush1.msra.mxu0 0.0
    %5688 = vmatprep.subr.mxu0 0.0
    %5689 = vmatpush1.msra.mxu0 0.0
    %5690 = vmatprep.subr.mxu0 0.0
    %5691 = vmatpush1.msra.mxu0 %v5665
    %5692 = vmatprep.subr.mxu0 0.0
    %5693 = vmatpush1.msra.mxu0 %v5664
    %5694 = vmatprep.subr.mxu0 0.0
    %5695 = vmatpush1.msra.mxu0 %v5663
    %5696 = vmatprep.subr.mxu0 0.0
    %5697 = vmatpush1.msra.mxu0 %v5662
    %5698 = vmatprep.subr.mxu0 0.0
    %5699 = vmatpush2.msra.mxu0 0.0
    %5700 = vmatprep.subr.mxu0 0.0
    %5701 = vmatpush2.msra.mxu0 0.0
    %5702 = vmatprep.subr.mxu0 0.0
    %5703 = vmatpush2.msra.mxu0 0.0
    %5704 = vmatprep.subr.mxu0 0.0
    %5705 = vmatpush2.msra.mxu0 0.0
    %5706 = vmatprep.subr.mxu0 0.0
    %5707 = vmatpush2.msra.mxu0 0.0
    %5708 = vmatprep.subr.mxu0 0.0
    %5709 = vmatpush2.msra.mxu0 0.0
    %5710 = vmatprep.subr.mxu0 0.0
    %5711 = vmatpush2.msra.mxu0 0.0
    %5712 = vmatprep.subr.mxu0 0.0
    %5713 = vmatpush2.msra.mxu0 0.0
    %5714 = vmatprep.subr.mxu0 0.0
    %5715 = vmatpush2.msra.mxu0 0.0
    %5716 = vmatprep.subr.mxu0 0.0
    %5717 = vmatpush2.msra.mxu0 0.0
    %5718 = vmatprep.subr.mxu0 0.0
    %5719 = vmatpush2.msra.mxu0 0.0
    %5720 = vmatprep.subr.mxu0 0.0
    %5721 = vmatpush2.msra.mxu0 0.0
    %5722 = vmatprep.subr.mxu0 0.0
    %5723 = vmatpush2.msra.mxu0 0.0
    %5724 = vmatprep.subr.mxu0 0.0
    %5725 = vmatpush2.msra.mxu0 0.0
    %5726 = vmatprep.subr.mxu0 0.0
    %5727 = vmatpush2.msra.mxu0 0.0
    %5728 = vmatprep.subr.mxu0 0.0
    %5729 = vmatpush2.msra.mxu0 0.0
    %5730 = vmatprep.mubr.f32.mxu0 0.0
    %5731 = vmatmul.mubr.f32.gmra.mxu0 %v4185
    %v5732 = vpop.f32.mrf.mxu0
    %v5733 = vadd.f32 0.0, %v5732
    %v5734 = vpop.f32.mrf.mxu0
    %5735 = vmatprep.mubr.f32.mxu0 0.0
    %5736 = vmatmul.mubr.f32.gmra.mxu0 %v4188
    %v5737 = vpop.f32.mrf.mxu0
    %v5738 = vadd.f32 0.0, %v5737
    %v5739 = vpop.f32.mrf.mxu0
    %5740 = vmatprep.mubr.f32.mxu0 0.0
    %5741 = vmatmul.mubr.f32.gmra.mxu0 %v4191
    %v5742 = vpop.f32.mrf.mxu0
    %v5743 = vadd.f32 0.0, %v5742
    %v5744 = vpop.f32.mrf.mxu0
    %5745 = vmatprep.mubr.f32.mxu0 0.0
    %5746 = vmatmul.mubr.f32.gmra.mxu0 %v4194
    %v5747 = vpop.f32.mrf.mxu0
    %v5748 = vadd.f32 0.0, %v5747
    %v5749 = vpop.f32.mrf.mxu0
    %5750 = vmatprep.mubr.f32.mxu0 0.0
    %5751 = vmatmul.mubr.f32.gmra.mxu0 %v4197
    %v5752 = vpop.f32.mrf.mxu0
    %v5753 = vadd.f32 0.0, %v5752
    %v5754 = vpop.f32.mrf.mxu0
    %5755 = vdwg.mxu0
    %s5756 = scalar_lea.vmem %s6, 224
    %v5757 = vld [vmem:[%s5756] sm:$0xff]
    %v5758 = vld [vmem:[%s5756 + $0x8] sm:$0xff]
    %v5759 = vld [vmem:[%s5756 + $0x10] sm:$0xff]
    %v5760 = vld [vmem:[%s5756 + $0x18] sm:$0xff]
    %5761 = vmatprep.subr.mxu0 0.0
    %5762 = vmatpush1.msra.mxu0 0.0
    %5763 = vmatprep.subr.mxu0 0.0
    %5764 = vmatpush1.msra.mxu0 0.0
    %5765 = vmatprep.subr.mxu0 0.0
    %5766 = vmatpush1.msra.mxu0 0.0
    %5767 = vmatprep.subr.mxu0 0.0
    %5768 = vmatpush1.msra.mxu0 0.0
    %5769 = vmatprep.subr.mxu0 0.0
    %5770 = vmatpush1.msra.mxu0 0.0
    %5771 = vmatprep.subr.mxu0 0.0
    %5772 = vmatpush1.msra.mxu0 0.0
    %5773 = vmatprep.subr.mxu0 0.0
    %5774 = vmatpush1.msra.mxu0 0.0
    %5775 = vmatprep.subr.mxu0 0.0
    %5776 = vmatpush1.msra.mxu0 0.0
    %5777 = vmatprep.subr.mxu0 0.0
    %5778 = vmatpush1.msra.mxu0 0.0
    %5779 = vmatprep.subr.mxu0 0.0
    %5780 = vmatpush1.msra.mxu0 0.0
    %5781 = vmatprep.subr.mxu0 0.0
    %5782 = vmatpush1.msra.mxu0 0.0
    %5783 = vmatprep.subr.mxu0 0.0
    %5784 = vmatpush1.msra.mxu0 0.0
    %5785 = vmatprep.subr.mxu0 0.0
    %5786 = vmatpush1.msra.mxu0 %v5760
    %5787 = vmatprep.subr.mxu0 0.0
    %5788 = vmatpush1.msra.mxu0 %v5759
    %5789 = vmatprep.subr.mxu0 0.0
    %5790 = vmatpush1.msra.mxu0 %v5758
    %5791 = vmatprep.subr.mxu0 0.0
    %5792 = vmatpush1.msra.mxu0 %v5757
    %5793 = vmatprep.subr.mxu0 0.0
    %5794 = vmatpush2.msra.mxu0 0.0
    %5795 = vmatprep.subr.mxu0 0.0
    %5796 = vmatpush2.msra.mxu0 0.0
    %5797 = vmatprep.subr.mxu0 0.0
    %5798 = vmatpush2.msra.mxu0 0.0
    %5799 = vmatprep.subr.mxu0 0.0
    %5800 = vmatpush2.msra.mxu0 0.0
    %5801 = vmatprep.subr.mxu0 0.0
    %5802 = vmatpush2.msra.mxu0 0.0
    %5803 = vmatprep.subr.mxu0 0.0
    %5804 = vmatpush2.msra.mxu0 0.0
    %5805 = vmatprep.subr.mxu0 0.0
    %5806 = vmatpush2.msra.mxu0 0.0
    %5807 = vmatprep.subr.mxu0 0.0
    %5808 = vmatpush2.msra.mxu0 0.0
    %5809 = vmatprep.subr.mxu0 0.0
    %5810 = vmatpush2.msra.mxu0 0.0
    %5811 = vmatprep.subr.mxu0 0.0
    %5812 = vmatpush2.msra.mxu0 0.0
    %5813 = vmatprep.subr.mxu0 0.0
    %5814 = vmatpush2.msra.mxu0 0.0
    %5815 = vmatprep.subr.mxu0 0.0
    %5816 = vmatpush2.msra.mxu0 0.0
    %5817 = vmatprep.subr.mxu0 0.0
    %5818 = vmatpush2.msra.mxu0 0.0
    %5819 = vmatprep.subr.mxu0 0.0
    %5820 = vmatpush2.msra.mxu0 0.0
    %5821 = vmatprep.subr.mxu0 0.0
    %5822 = vmatpush2.msra.mxu0 0.0
    %5823 = vmatprep.subr.mxu0 0.0
    %5824 = vmatpush2.msra.mxu0 0.0
    %5825 = vmatprep.mubr.f32.mxu0 0.0
    %5826 = vmatmul.mubr.f32.gmra.mxu0 %v4185
    %v5827 = vpop.f32.mrf.mxu0
    %v5828 = vadd.f32 0.0, %v5827
    %v5829 = vpop.f32.mrf.mxu0
    %5830 = vmatprep.mubr.f32.mxu0 0.0
    %5831 = vmatmul.mubr.f32.gmra.mxu0 %v4188
    %v5832 = vpop.f32.mrf.mxu0
    %v5833 = vadd.f32 0.0, %v5832
    %v5834 = vpop.f32.mrf.mxu0
    %5835 = vmatprep.mubr.f32.mxu0 0.0
    %5836 = vmatmul.mubr.f32.gmra.mxu0 %v4191
    %v5837 = vpop.f32.mrf.mxu0
    %v5838 = vadd.f32 0.0, %v5837
    %v5839 = vpop.f32.mrf.mxu0
    %5840 = vmatprep.mubr.f32.mxu0 0.0
    %5841 = vmatmul.mubr.f32.gmra.mxu0 %v4194
    %v5842 = vpop.f32.mrf.mxu0
    %v5843 = vadd.f32 0.0, %v5842
    %v5844 = vpop.f32.mrf.mxu0
    %5845 = vmatprep.mubr.f32.mxu0 0.0
    %5846 = vmatmul.mubr.f32.gmra.mxu0 %v4197
    %v5847 = vpop.f32.mrf.mxu0
    %v5848 = vadd.f32 0.0, %v5847
    %v5849 = vpop.f32.mrf.mxu0
    %5850 = vdwg.mxu0
    %s5851 = scalar_lea.vmem %s7, 224
    %v5852 = vld [vmem:[%s5851] sm:$0xff]
    %v5853 = vld [vmem:[%s5851 + $0x8] sm:$0xff]
    %v5854 = vld [vmem:[%s5851 + $0x10] sm:$0xff]
    %v5855 = vld [vmem:[%s5851 + $0x18] sm:$0xff]
    %5856 = vmatprep.subr.mxu0 0.0
    %5857 = vmatpush1.msra.mxu0 0.0
    %5858 = vmatprep.subr.mxu0 0.0
    %5859 = vmatpush1.msra.mxu0 0.0
    %5860 = vmatprep.subr.mxu0 0.0
    %5861 = vmatpush1.msra.mxu0 0.0
    %5862 = vmatprep.subr.mxu0 0.0
    %5863 = vmatpush1.msra.mxu0 0.0
    %5864 = vmatprep.subr.mxu0 0.0
    %5865 = vmatpush1.msra.mxu0 0.0
    %5866 = vmatprep.subr.mxu0 0.0
    %5867 = vmatpush1.msra.mxu0 0.0
    %5868 = vmatprep.subr.mxu0 0.0
    %5869 = vmatpush1.msra.mxu0 0.0
    %5870 = vmatprep.subr.mxu0 0.0
    %5871 = vmatpush1.msra.mxu0 0.0
    %5872 = vmatprep.subr.mxu0 0.0
    %5873 = vmatpush1.msra.mxu0 0.0
    %5874 = vmatprep.subr.mxu0 0.0
    %5875 = vmatpush1.msra.mxu0 0.0
    %5876 = vmatprep.subr.mxu0 0.0
    %5877 = vmatpush1.msra.mxu0 0.0
    %5878 = vmatprep.subr.mxu0 0.0
    %5879 = vmatpush1.msra.mxu0 0.0
    %5880 = vmatprep.subr.mxu0 0.0
    %5881 = vmatpush1.msra.mxu0 %v5855
    %5882 = vmatprep.subr.mxu0 0.0
    %5883 = vmatpush1.msra.mxu0 %v5854
    %5884 = vmatprep.subr.mxu0 0.0
    %5885 = vmatpush1.msra.mxu0 %v5853
    %5886 = vmatprep.subr.mxu0 0.0
    %5887 = vmatpush1.msra.mxu0 %v5852
    %5888 = vmatprep.subr.mxu0 0.0
    %5889 = vmatpush2.msra.mxu0 0.0
    %5890 = vmatprep.subr.mxu0 0.0
    %5891 = vmatpush2.msra.mxu0 0.0
    %5892 = vmatprep.subr.mxu0 0.0
    %5893 = vmatpush2.msra.mxu0 0.0
    %5894 = vmatprep.subr.mxu0 0.0
    %5895 = vmatpush2.msra.mxu0 0.0
    %5896 = vmatprep.subr.mxu0 0.0
    %5897 = vmatpush2.msra.mxu0 0.0
    %5898 = vmatprep.subr.mxu0 0.0
    %5899 = vmatpush2.msra.mxu0 0.0
    %5900 = vmatprep.subr.mxu0 0.0
    %5901 = vmatpush2.msra.mxu0 0.0
    %5902 = vmatprep.subr.mxu0 0.0
    %5903 = vmatpush2.msra.mxu0 0.0
    %5904 = vmatprep.subr.mxu0 0.0
    %5905 = vmatpush2.msra.mxu0 0.0
    %5906 = vmatprep.subr.mxu0 0.0
    %5907 = vmatpush2.msra.mxu0 0.0
    %5908 = vmatprep.subr.mxu0 0.0
    %5909 = vmatpush2.msra.mxu0 0.0
    %5910 = vmatprep.subr.mxu0 0.0
    %5911 = vmatpush2.msra.mxu0 0.0
    %5912 = vmatprep.subr.mxu0 0.0
    %5913 = vmatpush2.msra.mxu0 0.0
    %5914 = vmatprep.subr.mxu0 0.0
    %5915 = vmatpush2.msra.mxu0 0.0
    %5916 = vmatprep.subr.mxu0 0.0
    %5917 = vmatpush2.msra.mxu0 0.0
    %5918 = vmatprep.subr.mxu0 0.0
    %5919 = vmatpush2.msra.mxu0 0.0
    %5920 = vmatprep.mubr.f32.mxu0 0.0
    %5921 = vmatmul.mubr.f32.gmra.mxu0 %v4185
    %v5922 = vpop.f32.mrf.mxu0
    %v5923 = vadd.f32 0.0, %v5922
    %v5924 = vpop.f32.mrf.mxu0
    %5925 = vmatprep.mubr.f32.mxu0 0.0
    %5926 = vmatmul.mubr.f32.gmra.mxu0 %v4188
    %v5927 = vpop.f32.mrf.mxu0
    %v5928 = vadd.f32 0.0, %v5927
    %v5929 = vpop.f32.mrf.mxu0
    %5930 = vmatprep.mubr.f32.mxu0 0.0
    %5931 = vmatmul.mubr.f32.gmra.mxu0 %v4191
    %v5932 = vpop.f32.mrf.mxu0
    %v5933 = vadd.f32 0.0, %v5932
    %v5934 = vpop.f32.mrf.mxu0
    %5935 = vmatprep.mubr.f32.mxu0 0.0
    %5936 = vmatmul.mubr.f32.gmra.mxu0 %v4194
    %v5937 = vpop.f32.mrf.mxu0
    %v5938 = vadd.f32 0.0, %v5937
    %v5939 = vpop.f32.mrf.mxu0
    %5940 = vmatprep.mubr.f32.mxu0 0.0
    %5941 = vmatmul.mubr.f32.gmra.mxu0 %v4197
    %v5942 = vpop.f32.mrf.mxu0
    %v5943 = vadd.f32 0.0, %v5942
    %v5944 = vpop.f32.mrf.mxu0
    %5945 = vdwg.mxu0
    %v5947 = vsel %vm500, %v5733, 0
    %v5950 = vsel %vm500, %v5738, 0
    %v5953 = vsel %vm500, %v5743, 0
    %v5956 = vsel %vm500, %v5828, 0
    %v5959 = vsel %vm500, %v5833, 0
    %v5962 = vsel %vm500, %v5838, 0
    %5964 = vmatprep.subr.mxu0 0.0
    %5965 = vmatpush1.xpose.msra.mxu0 0.0
    %5966 = vmatprep.subr.mxu0 0.0
    %5967 = vmatpush1.xpose.msra.mxu0 0.0
    %5968 = vmatprep.subr.mxu0 0.0
    %5969 = vmatpush1.xpose.msra.mxu0 0.0
    %5970 = vmatprep.subr.mxu0 0.0
    %5971 = vmatpush1.xpose.msra.mxu0 0.0
    %5972 = vmatprep.subr.mxu0 0.0
    %5973 = vmatpush1.xpose.msra.mxu0 0.0
    %5974 = vmatprep.subr.mxu0 0.0
    %5975 = vmatpush1.xpose.msra.mxu0 0.0
    %5976 = vmatprep.subr.mxu0 0.0
    %5977 = vmatpush1.xpose.msra.mxu0 0.0
    %5978 = vmatprep.subr.mxu0 0.0
    %5979 = vmatpush1.xpose.msra.mxu0 0.0
    %5980 = vmatprep.subr.mxu0 0.0
    %5981 = vmatpush1.xpose.msra.mxu0 0.0
    %5982 = vmatprep.subr.mxu0 0.0
    %5983 = vmatpush1.xpose.msra.mxu0 0.0
    %5984 = vmatprep.subr.mxu0 0.0
    %5985 = vmatpush1.xpose.msra.mxu0 0.0
    %5986 = vmatprep.subr.mxu0 0.0
    %5987 = vmatpush1.xpose.msra.mxu0 0.0
    %5988 = vmatprep.subr.mxu0 0.0
    %5989 = vmatpush1.xpose.msra.mxu0 0.0
    %5990 = vmatprep.subr.mxu0 0.0
    %5991 = vmatpush1.xpose.msra.mxu0 %v5962
    %5992 = vmatprep.subr.mxu0 0.0
    %5993 = vmatpush1.xpose.msra.mxu0 %v5959
    %5994 = vmatprep.subr.mxu0 0.0
    %5995 = vmatpush1.xpose.msra.mxu0 %v5956
    %5996 = vmatprep.subr.mxu0 0.0
    %5997 = vmatpush2.xpose.msra.mxu0 0.0
    %5998 = vmatprep.subr.mxu0 0.0
    %5999 = vmatpush2.xpose.msra.mxu0 0.0
    %6000 = vmatprep.subr.mxu0 0.0
    %6001 = vmatpush2.xpose.msra.mxu0 0.0
    %6002 = vmatprep.subr.mxu0 0.0
    %6003 = vmatpush2.xpose.msra.mxu0 0.0
    %6004 = vmatprep.subr.mxu0 0.0
    %6005 = vmatpush2.xpose.msra.mxu0 0.0
    %6006 = vmatprep.subr.mxu0 0.0
    %6007 = vmatpush2.xpose.msra.mxu0 0.0
    %6008 = vmatprep.subr.mxu0 0.0
    %6009 = vmatpush2.xpose.msra.mxu0 0.0
    %6010 = vmatprep.subr.mxu0 0.0
    %6011 = vmatpush2.xpose.msra.mxu0 0.0
    %6012 = vmatprep.subr.mxu0 0.0
    %6013 = vmatpush2.xpose.msra.mxu0 0.0
    %6014 = vmatprep.subr.mxu0 0.0
    %6015 = vmatpush2.xpose.msra.mxu0 0.0
    %6016 = vmatprep.subr.mxu0 0.0
    %6017 = vmatpush2.xpose.msra.mxu0 0.0
    %6018 = vmatprep.subr.mxu0 0.0
    %6019 = vmatpush2.xpose.msra.mxu0 0.0
    %6020 = vmatprep.subr.mxu0 0.0
    %6021 = vmatpush2.xpose.msra.mxu0 0.0
    %6022 = vmatprep.subr.mxu0 0.0
    %6023 = vmatpush2.xpose.msra.mxu0 0.0
    %6024 = vmatprep.subr.mxu0 0.0
    %6025 = vmatpush2.xpose.msra.mxu0 0.0
    %6026 = vmatprep.subr.mxu0 0.0
    %6027 = vmatpush2.xpose.msra.mxu0 0.0
    %6028 = vmatprep.mubr.f32.mxu0 0.0
    %6029 = vmatmul.mubr.f32.gmra.mxu0 %v5947
    %v6030 = vpop.f32.mrf.mxu0
    %v6031 = vadd.f32 0.0, %v6030
    %v6032 = vpop.f32.mrf.mxu0
    %6033 = vmatprep.mubr.f32.mxu0 0.0
    %6034 = vmatmul.mubr.f32.gmra.mxu0 %v5950
    %v6035 = vpop.f32.mrf.mxu0
    %v6036 = vadd.f32 0.0, %v6035
    %v6037 = vpop.f32.mrf.mxu0
    %6038 = vmatprep.mubr.f32.mxu0 0.0
    %6039 = vmatmul.mubr.f32.gmra.mxu0 %v5953
    %v6040 = vpop.f32.mrf.mxu0
    %v6041 = vadd.f32 0.0, %v6040
    %v6042 = vpop.f32.mrf.mxu0
    %6043 = vdwg.mxu0
    %v6046 = vrot.slane %v5743, 1
    %v6047 = vrot.slane %v5748, 1
    %v6048 = vsel %vm601, %v6046, %v6047
    %v6049 = vrot.slane %v5753, 1
    %v6050 = vsel %vm601, %v6047, %v6049
    %v6053 = vrot.slane %v5838, 1
    %v6054 = vrot.slane %v5843, 1
    %v6055 = vsel %vm601, %v6053, %v6054
    %v6056 = vrot.slane %v5848, 1
    %v6057 = vsel %vm601, %v6054, %v6056
    %v6058 = vsel %vm500, %v6048, 0
    %v6060 = vsel %vm500, %v6050, 0
    %v6062 = vsel %vm500, %v6049, 0
    %v6064 = vsel %vm500, %v6055, 0
    %v6066 = vsel %vm500, %v6057, 0
    %v6068 = vsel %vm500, %v6056, 0
    %6070 = vmatprep.subr.mxu0 0.0
    %6071 = vmatpush1.xpose.msra.mxu0 0.0
    %6072 = vmatprep.subr.mxu0 0.0
    %6073 = vmatpush1.xpose.msra.mxu0 0.0
    %6074 = vmatprep.subr.mxu0 0.0
    %6075 = vmatpush1.xpose.msra.mxu0 0.0
    %6076 = vmatprep.subr.mxu0 0.0
    %6077 = vmatpush1.xpose.msra.mxu0 0.0
    %6078 = vmatprep.subr.mxu0 0.0
    %6079 = vmatpush1.xpose.msra.mxu0 0.0
    %6080 = vmatprep.subr.mxu0 0.0
    %6081 = vmatpush1.xpose.msra.mxu0 0.0
    %6082 = vmatprep.subr.mxu0 0.0
    %6083 = vmatpush1.xpose.msra.mxu0 0.0
    %6084 = vmatprep.subr.mxu0 0.0
    %6085 = vmatpush1.xpose.msra.mxu0 0.0
    %6086 = vmatprep.subr.mxu0 0.0
    %6087 = vmatpush1.xpose.msra.mxu0 0.0
    %6088 = vmatprep.subr.mxu0 0.0
    %6089 = vmatpush1.xpose.msra.mxu0 0.0
    %6090 = vmatprep.subr.mxu0 0.0
    %6091 = vmatpush1.xpose.msra.mxu0 0.0
    %6092 = vmatprep.subr.mxu0 0.0
    %6093 = vmatpush1.xpose.msra.mxu0 0.0
    %6094 = vmatprep.subr.mxu0 0.0
    %6095 = vmatpush1.xpose.msra.mxu0 0.0
    %6096 = vmatprep.subr.mxu0 0.0
    %6097 = vmatpush1.xpose.msra.mxu0 %v6068
    %6098 = vmatprep.subr.mxu0 0.0
    %6099 = vmatpush1.xpose.msra.mxu0 %v6066
    %6100 = vmatprep.subr.mxu0 0.0
    %6101 = vmatpush1.xpose.msra.mxu0 %v6064
    %6102 = vmatprep.subr.mxu0 0.0
    %6103 = vmatpush2.xpose.msra.mxu0 0.0
    %6104 = vmatprep.subr.mxu0 0.0
    %6105 = vmatpush2.xpose.msra.mxu0 0.0
    %6106 = vmatprep.subr.mxu0 0.0
    %6107 = vmatpush2.xpose.msra.mxu0 0.0
    %6108 = vmatprep.subr.mxu0 0.0
    %6109 = vmatpush2.xpose.msra.mxu0 0.0
    %6110 = vmatprep.subr.mxu0 0.0
    %6111 = vmatpush2.xpose.msra.mxu0 0.0
    %6112 = vmatprep.subr.mxu0 0.0
    %6113 = vmatpush2.xpose.msra.mxu0 0.0
    %6114 = vmatprep.subr.mxu0 0.0
    %6115 = vmatpush2.xpose.msra.mxu0 0.0
    %6116 = vmatprep.subr.mxu0 0.0
    %6117 = vmatpush2.xpose.msra.mxu0 0.0
    %6118 = vmatprep.subr.mxu0 0.0
    %6119 = vmatpush2.xpose.msra.mxu0 0.0
    %6120 = vmatprep.subr.mxu0 0.0
    %6121 = vmatpush2.xpose.msra.mxu0 0.0
    %6122 = vmatprep.subr.mxu0 0.0
    %6123 = vmatpush2.xpose.msra.mxu0 0.0
    %6124 = vmatprep.subr.mxu0 0.0
    %6125 = vmatpush2.xpose.msra.mxu0 0.0
    %6126 = vmatprep.subr.mxu0 0.0
    %6127 = vmatpush2.xpose.msra.mxu0 0.0
    %6128 = vmatprep.subr.mxu0 0.0
    %6129 = vmatpush2.xpose.msra.mxu0 0.0
    %6130 = vmatprep.subr.mxu0 0.0
    %6131 = vmatpush2.xpose.msra.mxu0 0.0
    %6132 = vmatprep.subr.mxu0 0.0
    %6133 = vmatpush2.xpose.msra.mxu0 0.0
    %6134 = vmatprep.mubr.f32.mxu0 0.0
    %6135 = vmatmul.mubr.f32.gmra.mxu0 %v6058
    %v6136 = vpop.f32.mrf.mxu0
    %v6137 = vadd.f32 0.0, %v6136
    %v6138 = vpop.f32.mrf.mxu0
    %6139 = vmatprep.mubr.f32.mxu0 0.0
    %6140 = vmatmul.mubr.f32.gmra.mxu0 %v6060
    %v6141 = vpop.f32.mrf.mxu0
    %v6142 = vadd.f32 0.0, %v6141
    %v6143 = vpop.f32.mrf.mxu0
    %6144 = vmatprep.mubr.f32.mxu0 0.0
    %6145 = vmatmul.mubr.f32.gmra.mxu0 %v6062
    %v6146 = vpop.f32.mrf.mxu0
    %v6147 = vadd.f32 0.0, %v6146
    %v6148 = vpop.f32.mrf.mxu0
    %6149 = vdwg.mxu0
    %v6153 = vrot.slane %v4670, 7
    %v6154 = vrot.slane %v4675, 7
    %v6155 = vsel %vm76, %v6153, %v6154
    %v6156 = vrot.slane %v4680, 7
    %v6157 = vsel %vm76, %v6154, %v6156
    %v6164 = vrot.slane %v5053, 6
    %v6165 = vrot.slane %v5058, 6
    %v6166 = vsel %vm2187, %v6164, %v6165
    %v6167 = vrot.slane %v5063, 6
    %v6168 = vsel %vm2187, %v6165, %v6167
    %v6175 = vrot.slane %v5159, 5
    %v6176 = vrot.slane %v5164, 5
    %v6177 = vsel %vm2199, %v6175, %v6176
    %v6178 = vrot.slane %v5169, 5
    %v6179 = vsel %vm2199, %v6176, %v6178
    %v6186 = vrot.slane %v5542, 4
    %v6187 = vrot.slane %v5547, 4
    %v6188 = vsel %vm2211, %v6186, %v6187
    %v6189 = vrot.slane %v5552, 4
    %v6190 = vsel %vm2211, %v6187, %v6189
    %v6197 = vrot.slane %v5648, 3
    %v6198 = vrot.slane %v5653, 3
    %v6199 = vsel %vm2223, %v6197, %v6198
    %v6200 = vrot.slane %v5658, 3
    %v6201 = vsel %vm2223, %v6198, %v6200
    %v6208 = vrot.slane %v6031, 2
    %v6209 = vrot.slane %v6036, 2
    %v6210 = vsel %vm2235, %v6208, %v6209
    %v6211 = vrot.slane %v6041, 2
    %v6212 = vsel %vm2235, %v6209, %v6211
    %v6219 = vrot.slane %v6137, 1
    %v6220 = vrot.slane %v6142, 1
    %v6221 = vsel %vm601, %v6219, %v6220
    %v6222 = vrot.slane %v6147, 1
    %v6223 = vsel %vm601, %v6220, %v6222
    %v6227 = vsel %vm76, %v4574, %v6153
    %v6228 = vsel %vm2187, %v6157, %v6164
    %v6229 = vsel %vm2199, %v6168, %v6175
    %v6230 = vsel %vm2211, %v6179, %v6186
    %v6231 = vsel %vm2223, %v6190, %v6197
    %v6232 = vsel %vm2235, %v6201, %v6208
    %v6233 = vsel %vm601, %v6212, %v6219
    %v6234 = vsel %vm2262, %v4564, -inf
    %6235 = vmax.xlane.f32.xlu0 %v6234
    %v6236 = vpop.xlane.xlu0 %6235
    %v6237 = vsel %vm2262, %v4569, -inf
    %6238 = vmax.xlane.f32.xlu0 %v6237
    %v6239 = vpop.xlane.xlu0 %6238
    %v6240 = vsel %vm2262, %v6227, -inf
    %6241 = vmax.xlane.f32.xlu0 %v6240
    %v6242 = vpop.xlane.xlu0 %6241
    %v6243 = vsel %vm2262, %v6155, -inf
    %6244 = vmax.xlane.f32.xlu0 %v6243
    %v6245 = vpop.xlane.xlu0 %6244
    %v6246 = vsel %vm2262, %v6228, -inf
    %6247 = vmax.xlane.f32.xlu0 %v6246
    %v6248 = vpop.xlane.xlu0 %6247
    %v6249 = vsel %vm2262, %v6166, -inf
    %6250 = vmax.xlane.f32.xlu0 %v6249
    %v6251 = vpop.xlane.xlu0 %6250
    %v6252 = vsel %vm2262, %v6229, -inf
    %6253 = vmax.xlane.f32.xlu0 %v6252
    %v6254 = vpop.xlane.xlu0 %6253
    %v6255 = vsel %vm2262, %v6177, -inf
    %6256 = vmax.xlane.f32.xlu0 %v6255
    %v6257 = vpop.xlane.xlu0 %6256
    %v6258 = vsel %vm2262, %v6230, -inf
    %6259 = vmax.xlane.f32.xlu0 %v6258
    %v6260 = vpop.xlane.xlu0 %6259
    %v6261 = vsel %vm2262, %v6188, -inf
    %6262 = vmax.xlane.f32.xlu0 %v6261
    %v6263 = vpop.xlane.xlu0 %6262
    %v6264 = vsel %vm2262, %v6231, -inf
    %6265 = vmax.xlane.f32.xlu0 %v6264
    %v6266 = vpop.xlane.xlu0 %6265
    %v6267 = vsel %vm2262, %v6199, -inf
    %6268 = vmax.xlane.f32.xlu0 %v6267
    %v6269 = vpop.xlane.xlu0 %6268
    %v6270 = vsel %vm2262, %v6232, -inf
    %6271 = vmax.xlane.f32.xlu0 %v6270
    %v6272 = vpop.xlane.xlu0 %6271
    %v6273 = vsel %vm2262, %v6210, -inf
    %6274 = vmax.xlane.f32.xlu0 %v6273
    %v6275 = vpop.xlane.xlu0 %6274
    %v6276 = vsel %vm2262, %v6233, -inf
    %6277 = vmax.xlane.f32.xlu0 %v6276
    %v6278 = vpop.xlane.xlu0 %6277
    %v6279 = vsel %vm2262, %v6221, -inf
    %6280 = vmax.xlane.f32.xlu0 %v6279
    %v6281 = vpop.xlane.xlu0 %6280
    %v6282 = vsel %vm2262, %v6223, -inf
    %6283 = vmax.xlane.f32.xlu0 %v6282
    %v6284 = vpop.xlane.xlu0 %6283
    %v6285 = vsub.f32 %v4564, %v6236
    %v6286 = vsub.f32 %v4569, %v6239
    %v6287 = vsub.f32 %v6227, %v6242
    %v6288 = vsub.f32 %v6155, %v6245
    %v6289 = vsub.f32 %v6228, %v6248
    %v6290 = vsub.f32 %v6166, %v6251
    %v6291 = vsub.f32 %v6229, %v6254
    %v6292 = vsub.f32 %v6177, %v6257
    %v6293 = vsub.f32 %v6230, %v6260
    %v6294 = vsub.f32 %v6188, %v6263
    %v6295 = vsub.f32 %v6231, %v6266
    %v6296 = vsub.f32 %v6199, %v6269
    %v6297 = vsub.f32 %v6232, %v6272
    %v6298 = vsub.f32 %v6210, %v6275
    %v6299 = vsub.f32 %v6233, %v6278
    %v6300 = vsub.f32 %v6221, %v6281
    %v6301 = vsub.f32 %v6223, %v6284
    %v6302 = vmul.f32 %v6285, 1.442695
    %v6303 = vpow.pop %v6302
    %v6304 = vmul.f32 %v6286, 1.442695
    %v6305 = vpow.pop %v6304
    %v6306 = vmul.f32 %v6287, 1.442695
    %v6307 = vpow.pop %v6306
    %v6308 = vmul.f32 %v6288, 1.442695
    %v6309 = vpow.pop %v6308
    %v6310 = vmul.f32 %v6289, 1.442695
    %v6311 = vpow.pop %v6310
    %v6312 = vmul.f32 %v6290, 1.442695
    %v6313 = vpow.pop %v6312
    %v6314 = vmul.f32 %v6291, 1.442695
    %v6315 = vpow.pop %v6314
    %v6316 = vmul.f32 %v6292, 1.442695
    %v6317 = vpow.pop %v6316
    %v6318 = vmul.f32 %v6293, 1.442695
    %v6319 = vpow.pop %v6318
    %v6320 = vmul.f32 %v6294, 1.442695
    %v6321 = vpow.pop %v6320
    %v6322 = vmul.f32 %v6295, 1.442695
    %v6323 = vpow.pop %v6322
    %v6324 = vmul.f32 %v6296, 1.442695
    %v6325 = vpow.pop %v6324
    %v6326 = vmul.f32 %v6297, 1.442695
    %v6327 = vpow.pop %v6326
    %v6328 = vmul.f32 %v6298, 1.442695
    %v6329 = vpow.pop %v6328
    %v6330 = vmul.f32 %v6299, 1.442695
    %v6331 = vpow.pop %v6330
    %v6332 = vmul.f32 %v6300, 1.442695
    %v6333 = vpow.pop %v6332
    %v6334 = vmul.f32 %v6301, 1.442695
    %v6335 = vpow.pop %v6334
    %v6336 = vsel %vm2262, %v6303, 0.0
    %6337 = vadd.xlane.f32.xlu0 %v6336
    %v6338 = vpop.xlane.xlu0 %6337
    %v6339 = vsel %vm2262, %v6305, 0.0
    %6340 = vadd.xlane.f32.xlu0 %v6339
    %v6341 = vpop.xlane.xlu0 %6340
    %v6342 = vsel %vm2262, %v6307, 0.0
    %6343 = vadd.xlane.f32.xlu0 %v6342
    %v6344 = vpop.xlane.xlu0 %6343
    %v6345 = vsel %vm2262, %v6309, 0.0
    %6346 = vadd.xlane.f32.xlu0 %v6345
    %v6347 = vpop.xlane.xlu0 %6346
    %v6348 = vsel %vm2262, %v6311, 0.0
    %6349 = vadd.xlane.f32.xlu0 %v6348
    %v6350 = vpop.xlane.xlu0 %6349
    %v6351 = vsel %vm2262, %v6313, 0.0
    %6352 = vadd.xlane.f32.xlu0 %v6351
    %v6353 = vpop.xlane.xlu0 %6352
    %v6354 = vsel %vm2262, %v6315, 0.0
    %6355 = vadd.xlane.f32.xlu0 %v6354
    %v6356 = vpop.xlane.xlu0 %6355
    %v6357 = vsel %vm2262, %v6317, 0.0
    %6358 = vadd.xlane.f32.xlu0 %v6357
    %v6359 = vpop.xlane.xlu0 %6358
    %v6360 = vsel %vm2262, %v6319, 0.0
    %6361 = vadd.xlane.f32.xlu0 %v6360
    %v6362 = vpop.xlane.xlu0 %6361
    %v6363 = vsel %vm2262, %v6321, 0.0
    %6364 = vadd.xlane.f32.xlu0 %v6363
    %v6365 = vpop.xlane.xlu0 %6364
    %v6366 = vsel %vm2262, %v6323, 0.0
    %6367 = vadd.xlane.f32.xlu0 %v6366
    %v6368 = vpop.xlane.xlu0 %6367
    %v6369 = vsel %vm2262, %v6325, 0.0
    %6370 = vadd.xlane.f32.xlu0 %v6369
    %v6371 = vpop.xlane.xlu0 %6370
    %v6372 = vsel %vm2262, %v6327, 0.0
    %6373 = vadd.xlane.f32.xlu0 %v6372
    %v6374 = vpop.xlane.xlu0 %6373
    %v6375 = vsel %vm2262, %v6329, 0.0
    %6376 = vadd.xlane.f32.xlu0 %v6375
    %v6377 = vpop.xlane.xlu0 %6376
    %v6378 = vsel %vm2262, %v6331, 0.0
    %6379 = vadd.xlane.f32.xlu0 %v6378
    %v6380 = vpop.xlane.xlu0 %6379
    %v6381 = vsel %vm2262, %v6333, 0.0
    %6382 = vadd.xlane.f32.xlu0 %v6381
    %v6383 = vpop.xlane.xlu0 %6382
    %v6384 = vsel %vm2262, %v6335, 0.0
    %6385 = vadd.xlane.f32.xlu0 %v6384
    %v6386 = vpop.xlane.xlu0 %6385
    %v6387 = vrcp.pop %v6338
    %v6388 = vrcp.pop %v6341
    %v6389 = vrcp.pop %v6344
    %v6390 = vrcp.pop %v6347
    %v6391 = vrcp.pop %v6350
    %v6392 = vrcp.pop %v6353
    %v6393 = vrcp.pop %v6356
    %v6394 = vrcp.pop %v6359
    %v6395 = vrcp.pop %v6362
    %v6396 = vrcp.pop %v6365
    %v6397 = vrcp.pop %v6368
    %v6398 = vrcp.pop %v6371
    %v6399 = vrcp.pop %v6374
    %v6400 = vrcp.pop %v6377
    %v6401 = vrcp.pop %v6380
    %v6402 = vrcp.pop %v6383
    %v6403 = vrcp.pop %v6386
    %v6404 = vmul.f32 %v6303, %v6387
    %v6405 = vmul.f32 %v6305, %v6388
    %v6406 = vmul.f32 %v6307, %v6389
    %v6407 = vmul.f32 %v6309, %v6390
    %v6408 = vmul.f32 %v6311, %v6391
    %v6409 = vmul.f32 %v6313, %v6392
    %v6410 = vmul.f32 %v6315, %v6393
    %v6411 = vmul.f32 %v6317, %v6394
    %v6412 = vmul.f32 %v6319, %v6395
    %v6413 = vmul.f32 %v6321, %v6396
    %v6414 = vmul.f32 %v6323, %v6397
    %v6415 = vmul.f32 %v6325, %v6398
    %v6416 = vmul.f32 %v6327, %v6399
    %v6417 = vmul.f32 %v6329, %v6400
    %v6418 = vmul.f32 %v6331, %v6401
    %v6419 = vmul.f32 %v6333, %v6402
    %v6420 = vmul.f32 %v6335, %v6403
    %v6422 = vsel %vm2262, %v6404, 0
    %v6425 = vsel %vm2262, %v6405, 0
    %v6428 = vsel %vm2262, %v6406, 0
    %v6431 = vsel %vm76, %v4466, 0
    %6433 = vmatprep.subr.mxu0 0.0
    %6434 = vmatpush1.msra.mxu0 0.0
    %6435 = vmatprep.subr.mxu0 0.0
    %6436 = vmatpush1.msra.mxu0 0.0
    %6437 = vmatprep.subr.mxu0 0.0
    %6438 = vmatpush1.msra.mxu0 0.0
    %6439 = vmatprep.subr.mxu0 0.0
    %6440 = vmatpush1.msra.mxu0 0.0
    %6441 = vmatprep.subr.mxu0 0.0
    %6442 = vmatpush1.msra.mxu0 0.0
    %6443 = vmatprep.subr.mxu0 0.0
    %6444 = vmatpush1.msra.mxu0 0.0
    %6445 = vmatprep.subr.mxu0 0.0
    %6446 = vmatpush1.msra.mxu0 0.0
    %6447 = vmatprep.subr.mxu0 0.0
    %6448 = vmatpush1.msra.mxu0 0.0
    %6449 = vmatprep.subr.mxu0 0.0
    %6450 = vmatpush1.msra.mxu0 0.0
    %6451 = vmatprep.subr.mxu0 0.0
    %6452 = vmatpush1.msra.mxu0 0.0
    %6453 = vmatprep.subr.mxu0 0.0
    %6454 = vmatpush1.msra.mxu0 0.0
    %6455 = vmatprep.subr.mxu0 0.0
    %6456 = vmatpush1.msra.mxu0 0.0
    %6457 = vmatprep.subr.mxu0 0.0
    %6458 = vmatpush1.msra.mxu0 0.0
    %6459 = vmatprep.subr.mxu0 0.0
    %6460 = vmatpush1.msra.mxu0 %v6431
    %6461 = vmatprep.subr.mxu0 0.0
    %6462 = vmatpush1.msra.mxu0 %v4461
    %6463 = vmatprep.subr.mxu0 0.0
    %6464 = vmatpush1.msra.mxu0 %v4456
    %6465 = vmatprep.subr.mxu0 0.0
    %6466 = vmatpush2.msra.mxu0 0.0
    %6467 = vmatprep.subr.mxu0 0.0
    %6468 = vmatpush2.msra.mxu0 0.0
    %6469 = vmatprep.subr.mxu0 0.0
    %6470 = vmatpush2.msra.mxu0 0.0
    %6471 = vmatprep.subr.mxu0 0.0
    %6472 = vmatpush2.msra.mxu0 0.0
    %6473 = vmatprep.subr.mxu0 0.0
    %6474 = vmatpush2.msra.mxu0 0.0
    %6475 = vmatprep.subr.mxu0 0.0
    %6476 = vmatpush2.msra.mxu0 0.0
    %6477 = vmatprep.subr.mxu0 0.0
    %6478 = vmatpush2.msra.mxu0 0.0
    %6479 = vmatprep.subr.mxu0 0.0
    %6480 = vmatpush2.msra.mxu0 0.0
    %6481 = vmatprep.subr.mxu0 0.0
    %6482 = vmatpush2.msra.mxu0 0.0
    %6483 = vmatprep.subr.mxu0 0.0
    %6484 = vmatpush2.msra.mxu0 0.0
    %6485 = vmatprep.subr.mxu0 0.0
    %6486 = vmatpush2.msra.mxu0 0.0
    %6487 = vmatprep.subr.mxu0 0.0
    %6488 = vmatpush2.msra.mxu0 0.0
    %6489 = vmatprep.subr.mxu0 0.0
    %6490 = vmatpush2.msra.mxu0 0.0
    %6491 = vmatprep.subr.mxu0 0.0
    %6492 = vmatpush2.msra.mxu0 0.0
    %6493 = vmatprep.subr.mxu0 0.0
    %6494 = vmatpush2.msra.mxu0 0.0
    %6495 = vmatprep.subr.mxu0 0.0
    %6496 = vmatpush2.msra.mxu0 0.0
    %6497 = vmatprep.mubr.f32.mxu0 0.0
    %6498 = vmatmul.mubr.f32.gmra.mxu0 %v6422
    %v6499 = vpop.f32.mrf.mxu0
    %v6500 = vadd.f32 0.0, %v6499
    %v6501 = vpop.f32.mrf.mxu0
    %6502 = vmatprep.mubr.f32.mxu0 0.0
    %6503 = vmatmul.mubr.f32.gmra.mxu0 %v6425
    %v6504 = vpop.f32.mrf.mxu0
    %v6505 = vadd.f32 0.0, %v6504
    %v6506 = vpop.f32.mrf.mxu0
    %6507 = vmatprep.mubr.f32.mxu0 0.0
    %6508 = vmatmul.mubr.f32.gmra.mxu0 %v6428
    %v6509 = vpop.f32.mrf.mxu0
    %v6510 = vadd.f32 0.0, %v6509
    %v6511 = vpop.f32.mrf.mxu0
    %6512 = vdwg.mxu0
    %v6515 = vrot.slane %v6406, 1
    %v6516 = vrot.slane %v6407, 1
    %v6517 = vsel %vm601, %v6515, %v6516
    %v6518 = vrot.slane %v6408, 1
    %v6519 = vsel %vm601, %v6516, %v6518
    %v6522 = vrot.slane %v4466, 1
    %v6523 = vrot.slane %v4471, 1
    %v6524 = vsel %vm601, %v6522, %v6523
    %v6525 = vrot.slane %v4476, 1
    %v6526 = vsel %vm601, %v6523, %v6525
    %v6529 = vsel %vm2262, %v6517, 0
    %v6531 = vsel %vm2262, %v6519, 0
    %v6533 = vsel %vm2262, %v6518, 0
    %v6535 = vsel %vm76, %v6525, 0
    %6537 = vmatprep.subr.mxu0 0.0
    %6538 = vmatpush1.msra.mxu0 0.0
    %6539 = vmatprep.subr.mxu0 0.0
    %6540 = vmatpush1.msra.mxu0 0.0
    %6541 = vmatprep.subr.mxu0 0.0
    %6542 = vmatpush1.msra.mxu0 0.0
    %6543 = vmatprep.subr.mxu0 0.0
    %6544 = vmatpush1.msra.mxu0 0.0
    %6545 = vmatprep.subr.mxu0 0.0
    %6546 = vmatpush1.msra.mxu0 0.0
    %6547 = vmatprep.subr.mxu0 0.0
    %6548 = vmatpush1.msra.mxu0 0.0
    %6549 = vmatprep.subr.mxu0 0.0
    %6550 = vmatpush1.msra.mxu0 0.0
    %6551 = vmatprep.subr.mxu0 0.0
    %6552 = vmatpush1.msra.mxu0 0.0
    %6553 = vmatprep.subr.mxu0 0.0
    %6554 = vmatpush1.msra.mxu0 0.0
    %6555 = vmatprep.subr.mxu0 0.0
    %6556 = vmatpush1.msra.mxu0 0.0
    %6557 = vmatprep.subr.mxu0 0.0
    %6558 = vmatpush1.msra.mxu0 0.0
    %6559 = vmatprep.subr.mxu0 0.0
    %6560 = vmatpush1.msra.mxu0 0.0
    %6561 = vmatprep.subr.mxu0 0.0
    %6562 = vmatpush1.msra.mxu0 0.0
    %6563 = vmatprep.subr.mxu0 0.0
    %6564 = vmatpush1.msra.mxu0 %v6535
    %6565 = vmatprep.subr.mxu0 0.0
    %6566 = vmatpush1.msra.mxu0 %v6526
    %6567 = vmatprep.subr.mxu0 0.0
    %6568 = vmatpush1.msra.mxu0 %v6524
    %6569 = vmatprep.subr.mxu0 0.0
    %6570 = vmatpush2.msra.mxu0 0.0
    %6571 = vmatprep.subr.mxu0 0.0
    %6572 = vmatpush2.msra.mxu0 0.0
    %6573 = vmatprep.subr.mxu0 0.0
    %6574 = vmatpush2.msra.mxu0 0.0
    %6575 = vmatprep.subr.mxu0 0.0
    %6576 = vmatpush2.msra.mxu0 0.0
    %6577 = vmatprep.subr.mxu0 0.0
    %6578 = vmatpush2.msra.mxu0 0.0
    %6579 = vmatprep.subr.mxu0 0.0
    %6580 = vmatpush2.msra.mxu0 0.0
    %6581 = vmatprep.subr.mxu0 0.0
    %6582 = vmatpush2.msra.mxu0 0.0
    %6583 = vmatprep.subr.mxu0 0.0
    %6584 = vmatpush2.msra.mxu0 0.0
    %6585 = vmatprep.subr.mxu0 0.0
    %6586 = vmatpush2.msra.mxu0 0.0
    %6587 = vmatprep.subr.mxu0 0.0
    %6588 = vmatpush2.msra.mxu0 0.0
    %6589 = vmatprep.subr.mxu0 0.0
    %6590 = vmatpush2.msra.mxu0 0.0
    %6591 = vmatprep.subr.mxu0 0.0
    %6592 = vmatpush2.msra.mxu0 0.0
    %6593 = vmatprep.subr.mxu0 0.0
    %6594 = vmatpush2.msra.mxu0 0.0
    %6595 = vmatprep.subr.mxu0 0.0
    %6596 = vmatpush2.msra.mxu0 0.0
    %6597 = vmatprep.subr.mxu0 0.0
    %6598 = vmatpush2.msra.mxu0 0.0
    %6599 = vmatprep.subr.mxu0 0.0
    %6600 = vmatpush2.msra.mxu0 0.0
    %6601 = vmatprep.mubr.f32.mxu0 0.0
    %6602 = vmatmul.mubr.f32.gmra.mxu0 %v6529
    %v6603 = vpop.f32.mrf.mxu0
    %v6604 = vadd.f32 0.0, %v6603
    %v6605 = vpop.f32.mrf.mxu0
    %6606 = vmatprep.mubr.f32.mxu0 0.0
    %6607 = vmatmul.mubr.f32.gmra.mxu0 %v6531
    %v6608 = vpop.f32.mrf.mxu0
    %v6609 = vadd.f32 0.0, %v6608
    %v6610 = vpop.f32.mrf.mxu0
    %6611 = vmatprep.mubr.f32.mxu0 0.0
    %6612 = vmatmul.mubr.f32.gmra.mxu0 %v6533
    %v6613 = vpop.f32.mrf.mxu0
    %v6614 = vadd.f32 0.0, %v6613
    %v6615 = vpop.f32.mrf.mxu0
    %6616 = vdwg.mxu0
    %v6620 = vrot.slane %v6604, 7
    %v6621 = vrot.slane %v6609, 7
    %v6622 = vsel %vm76, %v6620, %v6621
    %v6623 = vrot.slane %v6614, 7
    %v6624 = vsel %vm76, %v6621, %v6623
    %v6626 = vsel %vm76, %v6510, %v6620
    %s6627 = scalar_lea.vmem %s8, 32
    %v6628 = vld [vmem:[%s6627] sm:$0xff]
    %v6631 = vrot.slane %v6408, 2
    %v6632 = vrot.slane %v6409, 2
    %v6633 = vsel %vm2235, %v6631, %v6632
    %v6634 = vrot.slane %v6410, 2
    %v6635 = vsel %vm2235, %v6632, %v6634
    %v6636 = vsel %vm2262, %v6633, 0
    %v6638 = vsel %vm2262, %v6635, 0
    %v6640 = vsel %vm2262, %v6634, 0
    %v6643 = vsel %vm76, %v4955, 0
    %6645 = vmatprep.subr.mxu0 0.0
    %6646 = vmatpush1.msra.mxu0 0.0
    %6647 = vmatprep.subr.mxu0 0.0
    %6648 = vmatpush1.msra.mxu0 0.0
    %6649 = vmatprep.subr.mxu0 0.0
    %6650 = vmatpush1.msra.mxu0 0.0
    %6651 = vmatprep.subr.mxu0 0.0
    %6652 = vmatpush1.msra.mxu0 0.0
    %6653 = vmatprep.subr.mxu0 0.0
    %6654 = vmatpush1.msra.mxu0 0.0
    %6655 = vmatprep.subr.mxu0 0.0
    %6656 = vmatpush1.msra.mxu0 0.0
    %6657 = vmatprep.subr.mxu0 0.0
    %6658 = vmatpush1.msra.mxu0 0.0
    %6659 = vmatprep.subr.mxu0 0.0
    %6660 = vmatpush1.msra.mxu0 0.0
    %6661 = vmatprep.subr.mxu0 0.0
    %6662 = vmatpush1.msra.mxu0 0.0
    %6663 = vmatprep.subr.mxu0 0.0
    %6664 = vmatpush1.msra.mxu0 0.0
    %6665 = vmatprep.subr.mxu0 0.0
    %6666 = vmatpush1.msra.mxu0 0.0
    %6667 = vmatprep.subr.mxu0 0.0
    %6668 = vmatpush1.msra.mxu0 0.0
    %6669 = vmatprep.subr.mxu0 0.0
    %6670 = vmatpush1.msra.mxu0 0.0
    %6671 = vmatprep.subr.mxu0 0.0
    %6672 = vmatpush1.msra.mxu0 %v6643
    %6673 = vmatprep.subr.mxu0 0.0
    %6674 = vmatpush1.msra.mxu0 %v4950
    %6675 = vmatprep.subr.mxu0 0.0
    %6676 = vmatpush1.msra.mxu0 %v4945
    %6677 = vmatprep.subr.mxu0 0.0
    %6678 = vmatpush2.msra.mxu0 0.0
    %6679 = vmatprep.subr.mxu0 0.0
    %6680 = vmatpush2.msra.mxu0 0.0
    %6681 = vmatprep.subr.mxu0 0.0
    %6682 = vmatpush2.msra.mxu0 0.0
    %6683 = vmatprep.subr.mxu0 0.0
    %6684 = vmatpush2.msra.mxu0 0.0
    %6685 = vmatprep.subr.mxu0 0.0
    %6686 = vmatpush2.msra.mxu0 0.0
    %6687 = vmatprep.subr.mxu0 0.0
    %6688 = vmatpush2.msra.mxu0 0.0
    %6689 = vmatprep.subr.mxu0 0.0
    %6690 = vmatpush2.msra.mxu0 0.0
    %6691 = vmatprep.subr.mxu0 0.0
    %6692 = vmatpush2.msra.mxu0 0.0
    %6693 = vmatprep.subr.mxu0 0.0
    %6694 = vmatpush2.msra.mxu0 0.0
    %6695 = vmatprep.subr.mxu0 0.0
    %6696 = vmatpush2.msra.mxu0 0.0
    %6697 = vmatprep.subr.mxu0 0.0
    %6698 = vmatpush2.msra.mxu0 0.0
    %6699 = vmatprep.subr.mxu0 0.0
    %6700 = vmatpush2.msra.mxu0 0.0
    %6701 = vmatprep.subr.mxu0 0.0
    %6702 = vmatpush2.msra.mxu0 0.0
    %6703 = vmatprep.subr.mxu0 0.0
    %6704 = vmatpush2.msra.mxu0 0.0
    %6705 = vmatprep.subr.mxu0 0.0
    %6706 = vmatpush2.msra.mxu0 0.0
    %6707 = vmatprep.subr.mxu0 0.0
    %6708 = vmatpush2.msra.mxu0 0.0
    %6709 = vmatprep.mubr.f32.mxu0 0.0
    %6710 = vmatmul.mubr.f32.gmra.mxu0 %v6636
    %v6711 = vpop.f32.mrf.mxu0
    %v6712 = vadd.f32 0.0, %v6711
    %v6713 = vpop.f32.mrf.mxu0
    %6714 = vmatprep.mubr.f32.mxu0 0.0
    %6715 = vmatmul.mubr.f32.gmra.mxu0 %v6638
    %v6716 = vpop.f32.mrf.mxu0
    %v6717 = vadd.f32 0.0, %v6716
    %v6718 = vpop.f32.mrf.mxu0
    %6719 = vmatprep.mubr.f32.mxu0 0.0
    %6720 = vmatmul.mubr.f32.gmra.mxu0 %v6640
    %v6721 = vpop.f32.mrf.mxu0
    %v6722 = vadd.f32 0.0, %v6721
    %v6723 = vpop.f32.mrf.mxu0
    %6724 = vdwg.mxu0
    %v6727 = vrot.slane %v6410, 3
    %v6728 = vrot.slane %v6411, 3
    %v6729 = vsel %vm2223, %v6727, %v6728
    %v6730 = vrot.slane %v6412, 3
    %v6731 = vsel %vm2223, %v6728, %v6730
    %v6734 = vrot.slane %v4955, 1
    %v6735 = vrot.slane %v4960, 1
    %v6736 = vsel %vm601, %v6734, %v6735
    %v6737 = vrot.slane %v4965, 1
    %v6738 = vsel %vm601, %v6735, %v6737
    %v6741 = vsel %vm2262, %v6729, 0
    %v6743 = vsel %vm2262, %v6731, 0
    %v6745 = vsel %vm2262, %v6730, 0
    %v6747 = vsel %vm76, %v6737, 0
    %6749 = vmatprep.subr.mxu0 0.0
    %6750 = vmatpush1.msra.mxu0 0.0
    %6751 = vmatprep.subr.mxu0 0.0
    %6752 = vmatpush1.msra.mxu0 0.0
    %6753 = vmatprep.subr.mxu0 0.0
    %6754 = vmatpush1.msra.mxu0 0.0
    %6755 = vmatprep.subr.mxu0 0.0
    %6756 = vmatpush1.msra.mxu0 0.0
    %6757 = vmatprep.subr.mxu0 0.0
    %6758 = vmatpush1.msra.mxu0 0.0
    %6759 = vmatprep.subr.mxu0 0.0
    %6760 = vmatpush1.msra.mxu0 0.0
    %6761 = vmatprep.subr.mxu0 0.0
    %6762 = vmatpush1.msra.mxu0 0.0
    %6763 = vmatprep.subr.mxu0 0.0
    %6764 = vmatpush1.msra.mxu0 0.0
    %6765 = vmatprep.subr.mxu0 0.0
    %6766 = vmatpush1.msra.mxu0 0.0
    %6767 = vmatprep.subr.mxu0 0.0
    %6768 = vmatpush1.msra.mxu0 0.0
    %6769 = vmatprep.subr.mxu0 0.0
    %6770 = vmatpush1.msra.mxu0 0.0
    %6771 = vmatprep.subr.mxu0 0.0
    %6772 = vmatpush1.msra.mxu0 0.0
    %6773 = vmatprep.subr.mxu0 0.0
    %6774 = vmatpush1.msra.mxu0 0.0
    %6775 = vmatprep.subr.mxu0 0.0
    %6776 = vmatpush1.msra.mxu0 %v6747
    %6777 = vmatprep.subr.mxu0 0.0
    %6778 = vmatpush1.msra.mxu0 %v6738
    %6779 = vmatprep.subr.mxu0 0.0
    %6780 = vmatpush1.msra.mxu0 %v6736
    %6781 = vmatprep.subr.mxu0 0.0
    %6782 = vmatpush2.msra.mxu0 0.0
    %6783 = vmatprep.subr.mxu0 0.0
    %6784 = vmatpush2.msra.mxu0 0.0
    %6785 = vmatprep.subr.mxu0 0.0
    %6786 = vmatpush2.msra.mxu0 0.0
    %6787 = vmatprep.subr.mxu0 0.0
    %6788 = vmatpush2.msra.mxu0 0.0
    %6789 = vmatprep.subr.mxu0 0.0
    %6790 = vmatpush2.msra.mxu0 0.0
    %6791 = vmatprep.subr.mxu0 0.0
    %6792 = vmatpush2.msra.mxu0 0.0
    %6793 = vmatprep.subr.mxu0 0.0
    %6794 = vmatpush2.msra.mxu0 0.0
    %6795 = vmatprep.subr.mxu0 0.0
    %6796 = vmatpush2.msra.mxu0 0.0
    %6797 = vmatprep.subr.mxu0 0.0
    %6798 = vmatpush2.msra.mxu0 0.0
    %6799 = vmatprep.subr.mxu0 0.0
    %6800 = vmatpush2.msra.mxu0 0.0
    %6801 = vmatprep.subr.mxu0 0.0
    %6802 = vmatpush2.msra.mxu0 0.0
    %6803 = vmatprep.subr.mxu0 0.0
    %6804 = vmatpush2.msra.mxu0 0.0
    %6805 = vmatprep.subr.mxu0 0.0
    %6806 = vmatpush2.msra.mxu0 0.0
    %6807 = vmatprep.subr.mxu0 0.0
    %6808 = vmatpush2.msra.mxu0 0.0
    %6809 = vmatprep.subr.mxu0 0.0
    %6810 = vmatpush2.msra.mxu0 0.0
    %6811 = vmatprep.subr.mxu0 0.0
    %6812 = vmatpush2.msra.mxu0 0.0
    %6813 = vmatprep.mubr.f32.mxu0 0.0
    %6814 = vmatmul.mubr.f32.gmra.mxu0 %v6741
    %v6815 = vpop.f32.mrf.mxu0
    %v6816 = vadd.f32 0.0, %v6815
    %v6817 = vpop.f32.mrf.mxu0
    %6818 = vmatprep.mubr.f32.mxu0 0.0
    %6819 = vmatmul.mubr.f32.gmra.mxu0 %v6743
    %v6820 = vpop.f32.mrf.mxu0
    %v6821 = vadd.f32 0.0, %v6820
    %v6822 = vpop.f32.mrf.mxu0
    %6823 = vmatprep.mubr.f32.mxu0 0.0
    %6824 = vmatmul.mubr.f32.gmra.mxu0 %v6745
    %v6825 = vpop.f32.mrf.mxu0
    %v6826 = vadd.f32 0.0, %v6825
    %v6827 = vpop.f32.mrf.mxu0
    %6828 = vdwg.mxu0
    %v6832 = vrot.slane %v6816, 7
    %v6833 = vrot.slane %v6821, 7
    %v6834 = vsel %vm76, %v6832, %v6833
    %v6835 = vrot.slane %v6826, 7
    %v6836 = vsel %vm76, %v6833, %v6835
    %v6838 = vsel %vm76, %v6722, %v6832
    %s6839 = scalar_lea.vmem %s8, 40
    %v6840 = vld [vmem:[%s6839] sm:$0xff]
    %v6842 = vsel %vm500, %v6712, 0
    %v6845 = vsel %vm500, %v6717, 0
    %v6848 = vsel %vm500, %v6838, 0
    %v6850 = vsel %vm500, %v6834, 0
    %v6852 = vsel %vm500, %v6836, 0
    %6854 = vmatprep.subr.mxu0 0.0
    %6855 = vmatpush1.msra.mxu0 0.0
    %6856 = vmatprep.subr.mxu0 0.0
    %6857 = vmatpush1.msra.mxu0 0.0
    %6858 = vmatprep.subr.mxu0 0.0
    %6859 = vmatpush1.msra.mxu0 0.0
    %6860 = vmatprep.subr.mxu0 0.0
    %6861 = vmatpush1.msra.mxu0 0.0
    %6862 = vmatprep.subr.mxu0 0.0
    %6863 = vmatpush1.msra.mxu0 0.0
    %6864 = vmatprep.subr.mxu0 0.0
    %6865 = vmatpush1.msra.mxu0 0.0
    %6866 = vmatprep.subr.mxu0 0.0
    %6867 = vmatpush1.msra.mxu0 0.0
    %6868 = vmatprep.subr.mxu0 0.0
    %6869 = vmatpush1.msra.mxu0 0.0
    %6870 = vmatprep.subr.mxu0 0.0
    %6871 = vmatpush1.msra.mxu0 0.0
    %6872 = vmatprep.subr.mxu0 0.0
    %6873 = vmatpush1.msra.mxu0 0.0
    %6874 = vmatprep.subr.mxu0 0.0
    %6875 = vmatpush1.msra.mxu0 0.0
    %6876 = vmatprep.subr.mxu0 0.0
    %6877 = vmatpush1.msra.mxu0 0.0
    %6878 = vmatprep.subr.mxu0 0.0
    %6879 = vmatpush1.msra.mxu0 0.0
    %6880 = vmatprep.subr.mxu0 0.0
    %6881 = vmatpush1.msra.mxu0 0.0
    %6882 = vmatprep.subr.mxu0 0.0
    %6883 = vmatpush1.msra.mxu0 0.0
    %6884 = vmatprep.subr.mxu0 0.0
    %6885 = vmatpush1.msra.mxu0 %v6840
    %6886 = vmatprep.subr.mxu0 0.0
    %6887 = vmatpush2.msra.mxu0 0.0
    %6888 = vmatprep.subr.mxu0 0.0
    %6889 = vmatpush2.msra.mxu0 0.0
    %6890 = vmatprep.subr.mxu0 0.0
    %6891 = vmatpush2.msra.mxu0 0.0
    %6892 = vmatprep.subr.mxu0 0.0
    %6893 = vmatpush2.msra.mxu0 0.0
    %6894 = vmatprep.subr.mxu0 0.0
    %6895 = vmatpush2.msra.mxu0 0.0
    %6896 = vmatprep.subr.mxu0 0.0
    %6897 = vmatpush2.msra.mxu0 0.0
    %6898 = vmatprep.subr.mxu0 0.0
    %6899 = vmatpush2.msra.mxu0 0.0
    %6900 = vmatprep.subr.mxu0 0.0
    %6901 = vmatpush2.msra.mxu0 0.0
    %6902 = vmatprep.subr.mxu0 0.0
    %6903 = vmatpush2.msra.mxu0 0.0
    %6904 = vmatprep.subr.mxu0 0.0
    %6905 = vmatpush2.msra.mxu0 0.0
    %6906 = vmatprep.subr.mxu0 0.0
    %6907 = vmatpush2.msra.mxu0 0.0
    %6908 = vmatprep.subr.mxu0 0.0
    %6909 = vmatpush2.msra.mxu0 0.0
    %6910 = vmatprep.subr.mxu0 0.0
    %6911 = vmatpush2.msra.mxu0 0.0
    %6912 = vmatprep.subr.mxu0 0.0
    %6913 = vmatpush2.msra.mxu0 0.0
    %6914 = vmatprep.subr.mxu0 0.0
    %6915 = vmatpush2.msra.mxu0 0.0
    %6916 = vmatprep.subr.mxu0 0.0
    %6917 = vmatpush2.msra.mxu0 0.0
    %6918 = vmatprep.mubr.f32.mxu0 0.0
    %6919 = vmatmul.mubr.f32.gmra.mxu0 %v6842
    %v6920 = vpop.f32.mrf.mxu0
    %v6921 = vadd.f32 0.0, %v6920
    %v6922 = vpop.f32.mrf.mxu0
    %6923 = vmatprep.mubr.f32.mxu0 0.0
    %6924 = vmatmul.mubr.f32.gmra.mxu0 %v6845
    %v6925 = vpop.f32.mrf.mxu0
    %v6926 = vadd.f32 0.0, %v6925
    %v6927 = vpop.f32.mrf.mxu0
    %6928 = vmatprep.mubr.f32.mxu0 0.0
    %6929 = vmatmul.mubr.f32.gmra.mxu0 %v6848
    %v6930 = vpop.f32.mrf.mxu0
    %v6931 = vadd.f32 0.0, %v6930
    %v6932 = vpop.f32.mrf.mxu0
    %6933 = vmatprep.mubr.f32.mxu0 0.0
    %6934 = vmatmul.mubr.f32.gmra.mxu0 %v6850
    %v6935 = vpop.f32.mrf.mxu0
    %v6936 = vadd.f32 0.0, %v6935
    %v6937 = vpop.f32.mrf.mxu0
    %6938 = vmatprep.mubr.f32.mxu0 0.0
    %6939 = vmatmul.mubr.f32.gmra.mxu0 %v6852
    %v6940 = vpop.f32.mrf.mxu0
    %v6941 = vadd.f32 0.0, %v6940
    %v6942 = vpop.f32.mrf.mxu0
    %6943 = vdwg.mxu0
    %v6945 = vsel %vm500, %v6500, 0
    %v6948 = vsel %vm500, %v6505, 0
    %v6951 = vsel %vm500, %v6626, 0
    %v6953 = vsel %vm500, %v6622, 0
    %v6955 = vsel %vm500, %v6624, 0
    %6957 = vmatprep.subr.mxu0 0.0
    %6958 = vmatpush1.msra.mxu0 0.0
    %6959 = vmatprep.subr.mxu0 0.0
    %6960 = vmatpush1.msra.mxu0 0.0
    %6961 = vmatprep.subr.mxu0 0.0
    %6962 = vmatpush1.msra.mxu0 0.0
    %6963 = vmatprep.subr.mxu0 0.0
    %6964 = vmatpush1.msra.mxu0 0.0
    %6965 = vmatprep.subr.mxu0 0.0
    %6966 = vmatpush1.msra.mxu0 0.0
    %6967 = vmatprep.subr.mxu0 0.0
    %6968 = vmatpush1.msra.mxu0 0.0
    %6969 = vmatprep.subr.mxu0 0.0
    %6970 = vmatpush1.msra.mxu0 0.0
    %6971 = vmatprep.subr.mxu0 0.0
    %6972 = vmatpush1.msra.mxu0 0.0
    %6973 = vmatprep.subr.mxu0 0.0
    %6974 = vmatpush1.msra.mxu0 0.0
    %6975 = vmatprep.subr.mxu0 0.0
    %6976 = vmatpush1.msra.mxu0 0.0
    %6977 = vmatprep.subr.mxu0 0.0
    %6978 = vmatpush1.msra.mxu0 0.0
    %6979 = vmatprep.subr.mxu0 0.0
    %6980 = vmatpush1.msra.mxu0 0.0
    %6981 = vmatprep.subr.mxu0 0.0
    %6982 = vmatpush1.msra.mxu0 0.0
    %6983 = vmatprep.subr.mxu0 0.0
    %6984 = vmatpush1.msra.mxu0 0.0
    %6985 = vmatprep.subr.mxu0 0.0
    %6986 = vmatpush1.msra.mxu0 0.0
    %6987 = vmatprep.subr.mxu0 0.0
    %6988 = vmatpush1.msra.mxu0 %v6628
    %6989 = vmatprep.subr.mxu0 0.0
    %6990 = vmatpush2.msra.mxu0 0.0
    %6991 = vmatprep.subr.mxu0 0.0
    %6992 = vmatpush2.msra.mxu0 0.0
    %6993 = vmatprep.subr.mxu0 0.0
    %6994 = vmatpush2.msra.mxu0 0.0
    %6995 = vmatprep.subr.mxu0 0.0
    %6996 = vmatpush2.msra.mxu0 0.0
    %6997 = vmatprep.subr.mxu0 0.0
    %6998 = vmatpush2.msra.mxu0 0.0
    %6999 = vmatprep.subr.mxu0 0.0
    %7000 = vmatpush2.msra.mxu0 0.0
    %7001 = vmatprep.subr.mxu0 0.0
    %7002 = vmatpush2.msra.mxu0 0.0
    %7003 = vmatprep.subr.mxu0 0.0
    %7004 = vmatpush2.msra.mxu0 0.0
    %7005 = vmatprep.subr.mxu0 0.0
    %7006 = vmatpush2.msra.mxu0 0.0
    %7007 = vmatprep.subr.mxu0 0.0
    %7008 = vmatpush2.msra.mxu0 0.0
    %7009 = vmatprep.subr.mxu0 0.0
    %7010 = vmatpush2.msra.mxu0 0.0
    %7011 = vmatprep.subr.mxu0 0.0
    %7012 = vmatpush2.msra.mxu0 0.0
    %7013 = vmatprep.subr.mxu0 0.0
    %7014 = vmatpush2.msra.mxu0 0.0
    %7015 = vmatprep.subr.mxu0 0.0
    %7016 = vmatpush2.msra.mxu0 0.0
    %7017 = vmatprep.subr.mxu0 0.0
    %7018 = vmatpush2.msra.mxu0 0.0
    %7019 = vmatprep.subr.mxu0 0.0
    %7020 = vmatpush2.msra.mxu0 0.0
    %7021 = vmatprep.mubr.f32.mxu0 0.0
    %7022 = vmatmul.mubr.f32.gmra.mxu0 %v6945
    %v7023 = vpop.f32.mrf.mxu0
    %v7024 = vadd.f32 %v6921, %v7023
    %v7025 = vpop.f32.mrf.mxu0
    %7026 = vmatprep.mubr.f32.mxu0 0.0
    %7027 = vmatmul.mubr.f32.gmra.mxu0 %v6948
    %v7028 = vpop.f32.mrf.mxu0
    %v7029 = vadd.f32 %v6926, %v7028
    %v7030 = vpop.f32.mrf.mxu0
    %7031 = vmatprep.mubr.f32.mxu0 0.0
    %7032 = vmatmul.mubr.f32.gmra.mxu0 %v6951
    %v7033 = vpop.f32.mrf.mxu0
    %v7034 = vadd.f32 %v6931, %v7033
    %v7035 = vpop.f32.mrf.mxu0
    %7036 = vmatprep.mubr.f32.mxu0 0.0
    %7037 = vmatmul.mubr.f32.gmra.mxu0 %v6953
    %v7038 = vpop.f32.mrf.mxu0
    %v7039 = vadd.f32 %v6936, %v7038
    %v7040 = vpop.f32.mrf.mxu0
    %7041 = vmatprep.mubr.f32.mxu0 0.0
    %7042 = vmatmul.mubr.f32.gmra.mxu0 %v6955
    %v7043 = vpop.f32.mrf.mxu0
    %v7044 = vadd.f32 %v6941, %v7043
    %v7045 = vpop.f32.mrf.mxu0
    %7046 = vdwg.mxu0
    %v7049 = vrot.slane %v6412, 4
    %v7050 = vrot.slane %v6413, 4
    %v7051 = vsel %vm2211, %v7049, %v7050
    %v7052 = vrot.slane %v6414, 4
    %v7053 = vsel %vm2211, %v7050, %v7052
    %v7054 = vsel %vm2262, %v7051, 0
    %v7056 = vsel %vm2262, %v7053, 0
    %v7058 = vsel %vm2262, %v7052, 0
    %v7061 = vsel %vm76, %v5444, 0
    %7063 = vmatprep.subr.mxu0 0.0
    %7064 = vmatpush1.msra.mxu0 0.0
    %7065 = vmatprep.subr.mxu0 0.0
    %7066 = vmatpush1.msra.mxu0 0.0
    %7067 = vmatprep.subr.mxu0 0.0
    %7068 = vmatpush1.msra.mxu0 0.0
    %7069 = vmatprep.subr.mxu0 0.0
    %7070 = vmatpush1.msra.mxu0 0.0
    %7071 = vmatprep.subr.mxu0 0.0
    %7072 = vmatpush1.msra.mxu0 0.0
    %7073 = vmatprep.subr.mxu0 0.0
    %7074 = vmatpush1.msra.mxu0 0.0
    %7075 = vmatprep.subr.mxu0 0.0
    %7076 = vmatpush1.msra.mxu0 0.0
    %7077 = vmatprep.subr.mxu0 0.0
    %7078 = vmatpush1.msra.mxu0 0.0
    %7079 = vmatprep.subr.mxu0 0.0
    %7080 = vmatpush1.msra.mxu0 0.0
    %7081 = vmatprep.subr.mxu0 0.0
    %7082 = vmatpush1.msra.mxu0 0.0
    %7083 = vmatprep.subr.mxu0 0.0
    %7084 = vmatpush1.msra.mxu0 0.0
    %7085 = vmatprep.subr.mxu0 0.0
    %7086 = vmatpush1.msra.mxu0 0.0
    %7087 = vmatprep.subr.mxu0 0.0
    %7088 = vmatpush1.msra.mxu0 0.0
    %7089 = vmatprep.subr.mxu0 0.0
    %7090 = vmatpush1.msra.mxu0 %v7061
    %7091 = vmatprep.subr.mxu0 0.0
    %7092 = vmatpush1.msra.mxu0 %v5439
    %7093 = vmatprep.subr.mxu0 0.0
    %7094 = vmatpush1.msra.mxu0 %v5434
    %7095 = vmatprep.subr.mxu0 0.0
    %7096 = vmatpush2.msra.mxu0 0.0
    %7097 = vmatprep.subr.mxu0 0.0
    %7098 = vmatpush2.msra.mxu0 0.0
    %7099 = vmatprep.subr.mxu0 0.0
    %7100 = vmatpush2.msra.mxu0 0.0
    %7101 = vmatprep.subr.mxu0 0.0
    %7102 = vmatpush2.msra.mxu0 0.0
    %7103 = vmatprep.subr.mxu0 0.0
    %7104 = vmatpush2.msra.mxu0 0.0
    %7105 = vmatprep.subr.mxu0 0.0
    %7106 = vmatpush2.msra.mxu0 0.0
    %7107 = vmatprep.subr.mxu0 0.0
    %7108 = vmatpush2.msra.mxu0 0.0
    %7109 = vmatprep.subr.mxu0 0.0
    %7110 = vmatpush2.msra.mxu0 0.0
    %7111 = vmatprep.subr.mxu0 0.0
    %7112 = vmatpush2.msra.mxu0 0.0
    %7113 = vmatprep.subr.mxu0 0.0
    %7114 = vmatpush2.msra.mxu0 0.0
    %7115 = vmatprep.subr.mxu0 0.0
    %7116 = vmatpush2.msra.mxu0 0.0
    %7117 = vmatprep.subr.mxu0 0.0
    %7118 = vmatpush2.msra.mxu0 0.0
    %7119 = vmatprep.subr.mxu0 0.0
    %7120 = vmatpush2.msra.mxu0 0.0
    %7121 = vmatprep.subr.mxu0 0.0
    %7122 = vmatpush2.msra.mxu0 0.0
    %7123 = vmatprep.subr.mxu0 0.0
    %7124 = vmatpush2.msra.mxu0 0.0
    %7125 = vmatprep.subr.mxu0 0.0
    %7126 = vmatpush2.msra.mxu0 0.0
    %7127 = vmatprep.mubr.f32.mxu0 0.0
    %7128 = vmatmul.mubr.f32.gmra.mxu0 %v7054
    %v7129 = vpop.f32.mrf.mxu0
    %v7130 = vadd.f32 0.0, %v7129
    %v7131 = vpop.f32.mrf.mxu0
    %7132 = vmatprep.mubr.f32.mxu0 0.0
    %7133 = vmatmul.mubr.f32.gmra.mxu0 %v7056
    %v7134 = vpop.f32.mrf.mxu0
    %v7135 = vadd.f32 0.0, %v7134
    %v7136 = vpop.f32.mrf.mxu0
    %7137 = vmatprep.mubr.f32.mxu0 0.0
    %7138 = vmatmul.mubr.f32.gmra.mxu0 %v7058
    %v7139 = vpop.f32.mrf.mxu0
    %v7140 = vadd.f32 0.0, %v7139
    %v7141 = vpop.f32.mrf.mxu0
    %7142 = vdwg.mxu0
    %v7145 = vrot.slane %v6414, 5
    %v7146 = vrot.slane %v6415, 5
    %v7147 = vsel %vm2199, %v7145, %v7146
    %v7148 = vrot.slane %v6416, 5
    %v7149 = vsel %vm2199, %v7146, %v7148
    %v7152 = vrot.slane %v5444, 1
    %v7153 = vrot.slane %v5449, 1
    %v7154 = vsel %vm601, %v7152, %v7153
    %v7155 = vrot.slane %v5454, 1
    %v7156 = vsel %vm601, %v7153, %v7155
    %v7159 = vsel %vm2262, %v7147, 0
    %v7161 = vsel %vm2262, %v7149, 0
    %v7163 = vsel %vm2262, %v7148, 0
    %v7165 = vsel %vm76, %v7155, 0
    %7167 = vmatprep.subr.mxu0 0.0
    %7168 = vmatpush1.msra.mxu0 0.0
    %7169 = vmatprep.subr.mxu0 0.0
    %7170 = vmatpush1.msra.mxu0 0.0
    %7171 = vmatprep.subr.mxu0 0.0
    %7172 = vmatpush1.msra.mxu0 0.0
    %7173 = vmatprep.subr.mxu0 0.0
    %7174 = vmatpush1.msra.mxu0 0.0
    %7175 = vmatprep.subr.mxu0 0.0
    %7176 = vmatpush1.msra.mxu0 0.0
    %7177 = vmatprep.subr.mxu0 0.0
    %7178 = vmatpush1.msra.mxu0 0.0
    %7179 = vmatprep.subr.mxu0 0.0
    %7180 = vmatpush1.msra.mxu0 0.0
    %7181 = vmatprep.subr.mxu0 0.0
    %7182 = vmatpush1.msra.mxu0 0.0
    %7183 = vmatprep.subr.mxu0 0.0
    %7184 = vmatpush1.msra.mxu0 0.0
    %7185 = vmatprep.subr.mxu0 0.0
    %7186 = vmatpush1.msra.mxu0 0.0
    %7187 = vmatprep.subr.mxu0 0.0
    %7188 = vmatpush1.msra.mxu0 0.0
    %7189 = vmatprep.subr.mxu0 0.0
    %7190 = vmatpush1.msra.mxu0 0.0
    %7191 = vmatprep.subr.mxu0 0.0
    %7192 = vmatpush1.msra.mxu0 0.0
    %7193 = vmatprep.subr.mxu0 0.0
    %7194 = vmatpush1.msra.mxu0 %v7165
    %7195 = vmatprep.subr.mxu0 0.0
    %7196 = vmatpush1.msra.mxu0 %v7156
    %7197 = vmatprep.subr.mxu0 0.0
    %7198 = vmatpush1.msra.mxu0 %v7154
    %7199 = vmatprep.subr.mxu0 0.0
    %7200 = vmatpush2.msra.mxu0 0.0
    %7201 = vmatprep.subr.mxu0 0.0
    %7202 = vmatpush2.msra.mxu0 0.0
    %7203 = vmatprep.subr.mxu0 0.0
    %7204 = vmatpush2.msra.mxu0 0.0
    %7205 = vmatprep.subr.mxu0 0.0
    %7206 = vmatpush2.msra.mxu0 0.0
    %7207 = vmatprep.subr.mxu0 0.0
    %7208 = vmatpush2.msra.mxu0 0.0
    %7209 = vmatprep.subr.mxu0 0.0
    %7210 = vmatpush2.msra.mxu0 0.0
    %7211 = vmatprep.subr.mxu0 0.0
    %7212 = vmatpush2.msra.mxu0 0.0
    %7213 = vmatprep.subr.mxu0 0.0
    %7214 = vmatpush2.msra.mxu0 0.0
    %7215 = vmatprep.subr.mxu0 0.0
    %7216 = vmatpush2.msra.mxu0 0.0
    %7217 = vmatprep.subr.mxu0 0.0
    %7218 = vmatpush2.msra.mxu0 0.0
    %7219 = vmatprep.subr.mxu0 0.0
    %7220 = vmatpush2.msra.mxu0 0.0
    %7221 = vmatprep.subr.mxu0 0.0
    %7222 = vmatpush2.msra.mxu0 0.0
    %7223 = vmatprep.subr.mxu0 0.0
    %7224 = vmatpush2.msra.mxu0 0.0
    %7225 = vmatprep.subr.mxu0 0.0
    %7226 = vmatpush2.msra.mxu0 0.0
    %7227 = vmatprep.subr.mxu0 0.0
    %7228 = vmatpush2.msra.mxu0 0.0
    %7229 = vmatprep.subr.mxu0 0.0
    %7230 = vmatpush2.msra.mxu0 0.0
    %7231 = vmatprep.mubr.f32.mxu0 0.0
    %7232 = vmatmul.mubr.f32.gmra.mxu0 %v7159
    %v7233 = vpop.f32.mrf.mxu0
    %v7234 = vadd.f32 0.0, %v7233
    %v7235 = vpop.f32.mrf.mxu0
    %7236 = vmatprep.mubr.f32.mxu0 0.0
    %7237 = vmatmul.mubr.f32.gmra.mxu0 %v7161
    %v7238 = vpop.f32.mrf.mxu0
    %v7239 = vadd.f32 0.0, %v7238
    %v7240 = vpop.f32.mrf.mxu0
    %7241 = vmatprep.mubr.f32.mxu0 0.0
    %7242 = vmatmul.mubr.f32.gmra.mxu0 %v7163
    %v7243 = vpop.f32.mrf.mxu0
    %v7244 = vadd.f32 0.0, %v7243
    %v7245 = vpop.f32.mrf.mxu0
    %7246 = vdwg.mxu0
    %v7250 = vrot.slane %v7234, 7
    %v7251 = vrot.slane %v7239, 7
    %v7252 = vsel %vm76, %v7250, %v7251
    %v7253 = vrot.slane %v7244, 7
    %v7254 = vsel %vm76, %v7251, %v7253
    %v7256 = vsel %vm76, %v7140, %v7250
    %s7257 = scalar_lea.vmem %s8, 48
    %v7258 = vld [vmem:[%s7257] sm:$0xff]
    %v7260 = vsel %vm500, %v7130, 0
    %v7263 = vsel %vm500, %v7135, 0
    %v7266 = vsel %vm500, %v7256, 0
    %v7268 = vsel %vm500, %v7252, 0
    %v7270 = vsel %vm500, %v7254, 0
    %7272 = vmatprep.subr.mxu0 0.0
    %7273 = vmatpush1.msra.mxu0 0.0
    %7274 = vmatprep.subr.mxu0 0.0
    %7275 = vmatpush1.msra.mxu0 0.0
    %7276 = vmatprep.subr.mxu0 0.0
    %7277 = vmatpush1.msra.mxu0 0.0
    %7278 = vmatprep.subr.mxu0 0.0
    %7279 = vmatpush1.msra.mxu0 0.0
    %7280 = vmatprep.subr.mxu0 0.0
    %7281 = vmatpush1.msra.mxu0 0.0
    %7282 = vmatprep.subr.mxu0 0.0
    %7283 = vmatpush1.msra.mxu0 0.0
    %7284 = vmatprep.subr.mxu0 0.0
    %7285 = vmatpush1.msra.mxu0 0.0
    %7286 = vmatprep.subr.mxu0 0.0
    %7287 = vmatpush1.msra.mxu0 0.0
    %7288 = vmatprep.subr.mxu0 0.0
    %7289 = vmatpush1.msra.mxu0 0.0
    %7290 = vmatprep.subr.mxu0 0.0
    %7291 = vmatpush1.msra.mxu0 0.0
    %7292 = vmatprep.subr.mxu0 0.0
    %7293 = vmatpush1.msra.mxu0 0.0
    %7294 = vmatprep.subr.mxu0 0.0
    %7295 = vmatpush1.msra.mxu0 0.0
    %7296 = vmatprep.subr.mxu0 0.0
    %7297 = vmatpush1.msra.mxu0 0.0
    %7298 = vmatprep.subr.mxu0 0.0
    %7299 = vmatpush1.msra.mxu0 0.0
    %7300 = vmatprep.subr.mxu0 0.0
    %7301 = vmatpush1.msra.mxu0 0.0
    %7302 = vmatprep.subr.mxu0 0.0
    %7303 = vmatpush1.msra.mxu0 %v7258
    %7304 = vmatprep.subr.mxu0 0.0
    %7305 = vmatpush2.msra.mxu0 0.0
    %7306 = vmatprep.subr.mxu0 0.0
    %7307 = vmatpush2.msra.mxu0 0.0
    %7308 = vmatprep.subr.mxu0 0.0
    %7309 = vmatpush2.msra.mxu0 0.0
    %7310 = vmatprep.subr.mxu0 0.0
    %7311 = vmatpush2.msra.mxu0 0.0
    %7312 = vmatprep.subr.mxu0 0.0
    %7313 = vmatpush2.msra.mxu0 0.0
    %7314 = vmatprep.subr.mxu0 0.0
    %7315 = vmatpush2.msra.mxu0 0.0
    %7316 = vmatprep.subr.mxu0 0.0
    %7317 = vmatpush2.msra.mxu0 0.0
    %7318 = vmatprep.subr.mxu0 0.0
    %7319 = vmatpush2.msra.mxu0 0.0
    %7320 = vmatprep.subr.mxu0 0.0
    %7321 = vmatpush2.msra.mxu0 0.0
    %7322 = vmatprep.subr.mxu0 0.0
    %7323 = vmatpush2.msra.mxu0 0.0
    %7324 = vmatprep.subr.mxu0 0.0
    %7325 = vmatpush2.msra.mxu0 0.0
    %7326 = vmatprep.subr.mxu0 0.0
    %7327 = vmatpush2.msra.mxu0 0.0
    %7328 = vmatprep.subr.mxu0 0.0
    %7329 = vmatpush2.msra.mxu0 0.0
    %7330 = vmatprep.subr.mxu0 0.0
    %7331 = vmatpush2.msra.mxu0 0.0
    %7332 = vmatprep.subr.mxu0 0.0
    %7333 = vmatpush2.msra.mxu0 0.0
    %7334 = vmatprep.subr.mxu0 0.0
    %7335 = vmatpush2.msra.mxu0 0.0
    %7336 = vmatprep.mubr.f32.mxu0 0.0
    %7337 = vmatmul.mubr.f32.gmra.mxu0 %v7260
    %v7338 = vpop.f32.mrf.mxu0
    %v7339 = vadd.f32 0.0, %v7338
    %v7340 = vpop.f32.mrf.mxu0
    %7341 = vmatprep.mubr.f32.mxu0 0.0
    %7342 = vmatmul.mubr.f32.gmra.mxu0 %v7263
    %v7343 = vpop.f32.mrf.mxu0
    %v7344 = vadd.f32 0.0, %v7343
    %v7345 = vpop.f32.mrf.mxu0
    %7346 = vmatprep.mubr.f32.mxu0 0.0
    %7347 = vmatmul.mubr.f32.gmra.mxu0 %v7266
    %v7348 = vpop.f32.mrf.mxu0
    %v7349 = vadd.f32 0.0, %v7348
    %v7350 = vpop.f32.mrf.mxu0
    %7351 = vmatprep.mubr.f32.mxu0 0.0
    %7352 = vmatmul.mubr.f32.gmra.mxu0 %v7268
    %v7353 = vpop.f32.mrf.mxu0
    %v7354 = vadd.f32 0.0, %v7353
    %v7355 = vpop.f32.mrf.mxu0
    %7356 = vmatprep.mubr.f32.mxu0 0.0
    %7357 = vmatmul.mubr.f32.gmra.mxu0 %v7270
    %v7358 = vpop.f32.mrf.mxu0
    %v7359 = vadd.f32 0.0, %v7358
    %v7360 = vpop.f32.mrf.mxu0
    %7361 = vdwg.mxu0
    %v7362 = vadd.f32 %v7024, %v7339
    %v7363 = vadd.f32 %v7029, %v7344
    %v7364 = vadd.f32 %v7034, %v7349
    %v7365 = vadd.f32 %v7039, %v7354
    %v7366 = vadd.f32 %v7044, %v7359
    %v7369 = vrot.slane %v6416, 6
    %v7370 = vrot.slane %v6417, 6
    %v7371 = vsel %vm2187, %v7369, %v7370
    %v7372 = vrot.slane %v6418, 6
    %v7373 = vsel %vm2187, %v7370, %v7372
    %v7374 = vsel %vm2262, %v7371, 0
    %v7376 = vsel %vm2262, %v7373, 0
    %v7378 = vsel %vm2262, %v7372, 0
    %v7381 = vsel %vm76, %v5933, 0
    %7383 = vmatprep.subr.mxu0 0.0
    %7384 = vmatpush1.msra.mxu0 0.0
    %7385 = vmatprep.subr.mxu0 0.0
    %7386 = vmatpush1.msra.mxu0 0.0
    %7387 = vmatprep.subr.mxu0 0.0
    %7388 = vmatpush1.msra.mxu0 0.0
    %7389 = vmatprep.subr.mxu0 0.0
    %7390 = vmatpush1.msra.mxu0 0.0
    %7391 = vmatprep.subr.mxu0 0.0
    %7392 = vmatpush1.msra.mxu0 0.0
    %7393 = vmatprep.subr.mxu0 0.0
    %7394 = vmatpush1.msra.mxu0 0.0
    %7395 = vmatprep.subr.mxu0 0.0
    %7396 = vmatpush1.msra.mxu0 0.0
    %7397 = vmatprep.subr.mxu0 0.0
    %7398 = vmatpush1.msra.mxu0 0.0
    %7399 = vmatprep.subr.mxu0 0.0
    %7400 = vmatpush1.msra.mxu0 0.0
    %7401 = vmatprep.subr.mxu0 0.0
    %7402 = vmatpush1.msra.mxu0 0.0
    %7403 = vmatprep.subr.mxu0 0.0
    %7404 = vmatpush1.msra.mxu0 0.0
    %7405 = vmatprep.subr.mxu0 0.0
    %7406 = vmatpush1.msra.mxu0 0.0
    %7407 = vmatprep.subr.mxu0 0.0
    %7408 = vmatpush1.msra.mxu0 0.0
    %7409 = vmatprep.subr.mxu0 0.0
    %7410 = vmatpush1.msra.mxu0 %v7381
    %7411 = vmatprep.subr.mxu0 0.0
    %7412 = vmatpush1.msra.mxu0 %v5928
    %7413 = vmatprep.subr.mxu0 0.0
    %7414 = vmatpush1.msra.mxu0 %v5923
    %7415 = vmatprep.subr.mxu0 0.0
    %7416 = vmatpush2.msra.mxu0 0.0
    %7417 = vmatprep.subr.mxu0 0.0
    %7418 = vmatpush2.msra.mxu0 0.0
    %7419 = vmatprep.subr.mxu0 0.0
    %7420 = vmatpush2.msra.mxu0 0.0
    %7421 = vmatprep.subr.mxu0 0.0
    %7422 = vmatpush2.msra.mxu0 0.0
    %7423 = vmatprep.subr.mxu0 0.0
    %7424 = vmatpush2.msra.mxu0 0.0
    %7425 = vmatprep.subr.mxu0 0.0
    %7426 = vmatpush2.msra.mxu0 0.0
    %7427 = vmatprep.subr.mxu0 0.0
    %7428 = vmatpush2.msra.mxu0 0.0
    %7429 = vmatprep.subr.mxu0 0.0
    %7430 = vmatpush2.msra.mxu0 0.0
    %7431 = vmatprep.subr.mxu0 0.0
    %7432 = vmatpush2.msra.mxu0 0.0
    %7433 = vmatprep.subr.mxu0 0.0
    %7434 = vmatpush2.msra.mxu0 0.0
    %7435 = vmatprep.subr.mxu0 0.0
    %7436 = vmatpush2.msra.mxu0 0.0
    %7437 = vmatprep.subr.mxu0 0.0
    %7438 = vmatpush2.msra.mxu0 0.0
    %7439 = vmatprep.subr.mxu0 0.0
    %7440 = vmatpush2.msra.mxu0 0.0
    %7441 = vmatprep.subr.mxu0 0.0
    %7442 = vmatpush2.msra.mxu0 0.0
    %7443 = vmatprep.subr.mxu0 0.0
    %7444 = vmatpush2.msra.mxu0 0.0
    %7445 = vmatprep.subr.mxu0 0.0
    %7446 = vmatpush2.msra.mxu0 0.0
    %7447 = vmatprep.mubr.f32.mxu0 0.0
    %7448 = vmatmul.mubr.f32.gmra.mxu0 %v7374
    %v7449 = vpop.f32.mrf.mxu0
    %v7450 = vadd.f32 0.0, %v7449
    %v7451 = vpop.f32.mrf.mxu0
    %7452 = vmatprep.mubr.f32.mxu0 0.0
    %7453 = vmatmul.mubr.f32.gmra.mxu0 %v7376
    %v7454 = vpop.f32.mrf.mxu0
    %v7455 = vadd.f32 0.0, %v7454
    %v7456 = vpop.f32.mrf.mxu0
    %7457 = vmatprep.mubr.f32.mxu0 0.0
    %7458 = vmatmul.mubr.f32.gmra.mxu0 %v7378
    %v7459 = vpop.f32.mrf.mxu0
    %v7460 = vadd.f32 0.0, %v7459
    %v7461 = vpop.f32.mrf.mxu0
    %7462 = vdwg.mxu0
    %v7465 = vrot.slane %v6418, 7
    %v7466 = vrot.slane %v6419, 7
    %v7467 = vsel %vm76, %v7465, %v7466
    %v7468 = vrot.slane %v6420, 7
    %v7469 = vsel %vm76, %v7466, %v7468
    %v7472 = vrot.slane %v5933, 1
    %v7473 = vrot.slane %v5938, 1
    %v7474 = vsel %vm601, %v7472, %v7473
    %v7475 = vrot.slane %v5943, 1
    %v7476 = vsel %vm601, %v7473, %v7475
    %v7479 = vsel %vm2262, %v7467, 0
    %v7481 = vsel %vm2262, %v7469, 0
    %v7483 = vsel %vm2262, %v7468, 0
    %v7485 = vsel %vm76, %v7475, 0
    %7487 = vmatprep.subr.mxu0 0.0
    %7488 = vmatpush1.msra.mxu0 0.0
    %7489 = vmatprep.subr.mxu0 0.0
    %7490 = vmatpush1.msra.mxu0 0.0
    %7491 = vmatprep.subr.mxu0 0.0
    %7492 = vmatpush1.msra.mxu0 0.0
    %7493 = vmatprep.subr.mxu0 0.0
    %7494 = vmatpush1.msra.mxu0 0.0
    %7495 = vmatprep.subr.mxu0 0.0
    %7496 = vmatpush1.msra.mxu0 0.0
    %7497 = vmatprep.subr.mxu0 0.0
    %7498 = vmatpush1.msra.mxu0 0.0
    %7499 = vmatprep.subr.mxu0 0.0
    %7500 = vmatpush1.msra.mxu0 0.0
    %7501 = vmatprep.subr.mxu0 0.0
    %7502 = vmatpush1.msra.mxu0 0.0
    %7503 = vmatprep.subr.mxu0 0.0
    %7504 = vmatpush1.msra.mxu0 0.0
    %7505 = vmatprep.subr.mxu0 0.0
    %7506 = vmatpush1.msra.mxu0 0.0
    %7507 = vmatprep.subr.mxu0 0.0
    %7508 = vmatpush1.msra.mxu0 0.0
    %7509 = vmatprep.subr.mxu0 0.0
    %7510 = vmatpush1.msra.mxu0 0.0
    %7511 = vmatprep.subr.mxu0 0.0
    %7512 = vmatpush1.msra.mxu0 0.0
    %7513 = vmatprep.subr.mxu0 0.0
    %7514 = vmatpush1.msra.mxu0 %v7485
    %7515 = vmatprep.subr.mxu0 0.0
    %7516 = vmatpush1.msra.mxu0 %v7476
    %7517 = vmatprep.subr.mxu0 0.0
    %7518 = vmatpush1.msra.mxu0 %v7474
    %7519 = vmatprep.subr.mxu0 0.0
    %7520 = vmatpush2.msra.mxu0 0.0
    %7521 = vmatprep.subr.mxu0 0.0
    %7522 = vmatpush2.msra.mxu0 0.0
    %7523 = vmatprep.subr.mxu0 0.0
    %7524 = vmatpush2.msra.mxu0 0.0
    %7525 = vmatprep.subr.mxu0 0.0
    %7526 = vmatpush2.msra.mxu0 0.0
    %7527 = vmatprep.subr.mxu0 0.0
    %7528 = vmatpush2.msra.mxu0 0.0
    %7529 = vmatprep.subr.mxu0 0.0
    %7530 = vmatpush2.msra.mxu0 0.0
    %7531 = vmatprep.subr.mxu0 0.0
    %7532 = vmatpush2.msra.mxu0 0.0
    %7533 = vmatprep.subr.mxu0 0.0
    %7534 = vmatpush2.msra.mxu0 0.0
    %7535 = vmatprep.subr.mxu0 0.0
    %7536 = vmatpush2.msra.mxu0 0.0
    %7537 = vmatprep.subr.mxu0 0.0
    %7538 = vmatpush2.msra.mxu0 0.0
    %7539 = vmatprep.subr.mxu0 0.0
    %7540 = vmatpush2.msra.mxu0 0.0
    %7541 = vmatprep.subr.mxu0 0.0
    %7542 = vmatpush2.msra.mxu0 0.0
    %7543 = vmatprep.subr.mxu0 0.0
    %7544 = vmatpush2.msra.mxu0 0.0
    %7545 = vmatprep.subr.mxu0 0.0
    %7546 = vmatpush2.msra.mxu0 0.0
    %7547 = vmatprep.subr.mxu0 0.0
    %7548 = vmatpush2.msra.mxu0 0.0
    %7549 = vmatprep.subr.mxu0 0.0
    %7550 = vmatpush2.msra.mxu0 0.0
    %7551 = vmatprep.mubr.f32.mxu0 0.0
    %7552 = vmatmul.mubr.f32.gmra.mxu0 %v7479
    %v7553 = vpop.f32.mrf.mxu0
    %v7554 = vadd.f32 0.0, %v7553
    %v7555 = vpop.f32.mrf.mxu0
    %7556 = vmatprep.mubr.f32.mxu0 0.0
    %7557 = vmatmul.mubr.f32.gmra.mxu0 %v7481
    %v7558 = vpop.f32.mrf.mxu0
    %v7559 = vadd.f32 0.0, %v7558
    %v7560 = vpop.f32.mrf.mxu0
    %7561 = vmatprep.mubr.f32.mxu0 0.0
    %7562 = vmatmul.mubr.f32.gmra.mxu0 %v7483
    %v7563 = vpop.f32.mrf.mxu0
    %v7564 = vadd.f32 0.0, %v7563
    %v7565 = vpop.f32.mrf.mxu0
    %7566 = vdwg.mxu0
    %v7570 = vrot.slane %v7554, 7
    %v7571 = vrot.slane %v7559, 7
    %v7572 = vsel %vm76, %v7570, %v7571
    %v7573 = vrot.slane %v7564, 7
    %v7574 = vsel %vm76, %v7571, %v7573
    %v7576 = vsel %vm76, %v7460, %v7570
    %s7577 = scalar_lea.vmem %s8, 56
    %v7578 = vld [vmem:[%s7577] sm:$0xff]
    %v7580 = vsel %vm500, %v7450, 0
    %v7583 = vsel %vm500, %v7455, 0
    %v7586 = vsel %vm500, %v7576, 0
    %v7588 = vsel %vm500, %v7572, 0
    %v7590 = vsel %vm500, %v7574, 0
    %7592 = vmatprep.subr.mxu0 0.0
    %7593 = vmatpush1.msra.mxu0 0.0
    %7594 = vmatprep.subr.mxu0 0.0
    %7595 = vmatpush1.msra.mxu0 0.0
    %7596 = vmatprep.subr.mxu0 0.0
    %7597 = vmatpush1.msra.mxu0 0.0
    %7598 = vmatprep.subr.mxu0 0.0
    %7599 = vmatpush1.msra.mxu0 0.0
    %7600 = vmatprep.subr.mxu0 0.0
    %7601 = vmatpush1.msra.mxu0 0.0
    %7602 = vmatprep.subr.mxu0 0.0
    %7603 = vmatpush1.msra.mxu0 0.0
    %7604 = vmatprep.subr.mxu0 0.0
    %7605 = vmatpush1.msra.mxu0 0.0
    %7606 = vmatprep.subr.mxu0 0.0
    %7607 = vmatpush1.msra.mxu0 0.0
    %7608 = vmatprep.subr.mxu0 0.0
    %7609 = vmatpush1.msra.mxu0 0.0
    %7610 = vmatprep.subr.mxu0 0.0
    %7611 = vmatpush1.msra.mxu0 0.0
    %7612 = vmatprep.subr.mxu0 0.0
    %7613 = vmatpush1.msra.mxu0 0.0
    %7614 = vmatprep.subr.mxu0 0.0
    %7615 = vmatpush1.msra.mxu0 0.0
    %7616 = vmatprep.subr.mxu0 0.0
    %7617 = vmatpush1.msra.mxu0 0.0
    %7618 = vmatprep.subr.mxu0 0.0
    %7619 = vmatpush1.msra.mxu0 0.0
    %7620 = vmatprep.subr.mxu0 0.0
    %7621 = vmatpush1.msra.mxu0 0.0
    %7622 = vmatprep.subr.mxu0 0.0
    %7623 = vmatpush1.msra.mxu0 %v7578
    %7624 = vmatprep.subr.mxu0 0.0
    %7625 = vmatpush2.msra.mxu0 0.0
    %7626 = vmatprep.subr.mxu0 0.0
    %7627 = vmatpush2.msra.mxu0 0.0
    %7628 = vmatprep.subr.mxu0 0.0
    %7629 = vmatpush2.msra.mxu0 0.0
    %7630 = vmatprep.subr.mxu0 0.0
    %7631 = vmatpush2.msra.mxu0 0.0
    %7632 = vmatprep.subr.mxu0 0.0
    %7633 = vmatpush2.msra.mxu0 0.0
    %7634 = vmatprep.subr.mxu0 0.0
    %7635 = vmatpush2.msra.mxu0 0.0
    %7636 = vmatprep.subr.mxu0 0.0
    %7637 = vmatpush2.msra.mxu0 0.0
    %7638 = vmatprep.subr.mxu0 0.0
    %7639 = vmatpush2.msra.mxu0 0.0
    %7640 = vmatprep.subr.mxu0 0.0
    %7641 = vmatpush2.msra.mxu0 0.0
    %7642 = vmatprep.subr.mxu0 0.0
    %7643 = vmatpush2.msra.mxu0 0.0
    %7644 = vmatprep.subr.mxu0 0.0
    %7645 = vmatpush2.msra.mxu0 0.0
    %7646 = vmatprep.subr.mxu0 0.0
    %7647 = vmatpush2.msra.mxu0 0.0
    %7648 = vmatprep.subr.mxu0 0.0
    %7649 = vmatpush2.msra.mxu0 0.0
    %7650 = vmatprep.subr.mxu0 0.0
    %7651 = vmatpush2.msra.mxu0 0.0
    %7652 = vmatprep.subr.mxu0 0.0
    %7653 = vmatpush2.msra.mxu0 0.0
    %7654 = vmatprep.subr.mxu0 0.0
    %7655 = vmatpush2.msra.mxu0 0.0
    %7656 = vmatprep.mubr.f32.mxu0 0.0
    %7657 = vmatmul.mubr.f32.gmra.mxu0 %v7580
    %v7658 = vpop.f32.mrf.mxu0
    %v7659 = vadd.f32 0.0, %v7658
    %v7660 = vpop.f32.mrf.mxu0
    %7661 = vmatprep.mubr.f32.mxu0 0.0
    %7662 = vmatmul.mubr.f32.gmra.mxu0 %v7583
    %v7663 = vpop.f32.mrf.mxu0
    %v7664 = vadd.f32 0.0, %v7663
    %v7665 = vpop.f32.mrf.mxu0
    %7666 = vmatprep.mubr.f32.mxu0 0.0
    %7667 = vmatmul.mubr.f32.gmra.mxu0 %v7586
    %v7668 = vpop.f32.mrf.mxu0
    %v7669 = vadd.f32 0.0, %v7668
    %v7670 = vpop.f32.mrf.mxu0
    %7671 = vmatprep.mubr.f32.mxu0 0.0
    %7672 = vmatmul.mubr.f32.gmra.mxu0 %v7588
    %v7673 = vpop.f32.mrf.mxu0
    %v7674 = vadd.f32 0.0, %v7673
    %v7675 = vpop.f32.mrf.mxu0
    %7676 = vmatprep.mubr.f32.mxu0 0.0
    %7677 = vmatmul.mubr.f32.gmra.mxu0 %v7590
    %v7678 = vpop.f32.mrf.mxu0
    %v7679 = vadd.f32 0.0, %v7678
    %v7680 = vpop.f32.mrf.mxu0
    %7681 = vdwg.mxu0
    %v7682 = vadd.f32 %v7362, %v7659
    %v7683 = vadd.f32 %v7363, %v7664
    %v7684 = vadd.f32 %v7364, %v7669
    %v7685 = vadd.f32 %v7365, %v7674
    %v7686 = vadd.f32 %v7366, %v7679
    %v7687 = vadd.f32 %v4083, %v7682
    %v7688 = vadd.f32 %v4084, %v7683
    %v7689 = vadd.f32 %v4085, %v7684
    %v7690 = vadd.f32 %v4086, %v7685
    %v7691 = vadd.f32 %v4087, %v7686
    %s7692 = scalar_lea.vmem %s9, 1
    %v7693 = vld [vmem:[%s7692] sm:$0x1]
    %v7695 = vlaneseq
    %v7696 = vshrl.u32 %v7695, 7
    %v7697 = vsub.s32 0, %v7696
    %v7698 = vrot.slane %v7693, %v7697
    %v7700 = vadd.f32 %v7687, %v7698
    %v7701 = vadd.f32 %v7688, %v7698
    %v7702 = vadd.f32 %v7689, %v7698
    %v7703 = vadd.f32 %v7690, %v7698
    %v7704 = vadd.f32 %v7691, %v7698
    %s7705 = scalar_lea.vmem %s10, 1
    %v7706 = vld [vmem:[%s7705] sm:$0x1]
    %s7707 = scalar_lea.vmem %s11, 1
    %v7708 = vld [vmem:[%s7707] sm:$0x1]
    %v7709 = vsel %vm113, %v7700, 0.0
    %7710 = vadd.xlane.f32.xlu0 %v7709
    %v7711 = vpop.xlane.xlu0 %7710
    %v7712 = vsel %vm113, %v7701, 0.0
    %7713 = vadd.xlane.f32.xlu0 %v7712
    %v7714 = vpop.xlane.xlu0 %7713
    %v7715 = vsel %vm113, %v7702, 0.0
    %7716 = vadd.xlane.f32.xlu0 %v7715
    %v7717 = vpop.xlane.xlu0 %7716
    %v7718 = vsel %vm113, %v7703, 0.0
    %7719 = vadd.xlane.f32.xlu0 %v7718
    %v7720 = vpop.xlane.xlu0 %7719
    %v7721 = vsel %vm126, %v7704, 0.0
    %7722 = vadd.xlane.f32.xlu0 %v7721
    %v7723 = vpop.xlane.xlu0 %7722
    %v7724 = vmul.f32 %v7711, %v130
    %v7725 = vmul.f32 %v7714, %v130
    %v7726 = vmul.f32 %v7717, %v130
    %v7727 = vmul.f32 %v7720, %v130
    %v7728 = vmul.f32 %v7723, %v130
    %v7729 = vsub.f32 %v7700, %v7724
    %v7730 = vsub.f32 %v7701, %v7725
    %v7731 = vsub.f32 %v7702, %v7726
    %v7732 = vsub.f32 %v7703, %v7727
    %v7733 = vsub.f32 %v7704, %v7728
    %v7734 = vmul.f32 %v7729, %v7729
    %v7735 = vmul.f32 %v7730, %v7730
    %v7736 = vmul.f32 %v7731, %v7731
    %v7737 = vmul.f32 %v7732, %v7732
    %v7738 = vmul.f32 %v7733, %v7733
    %v7739 = vsel %vm113, %v7734, 0.0
    %7740 = vadd.xlane.f32.xlu0 %v7739
    %v7741 = vpop.xlane.xlu0 %7740
    %v7742 = vsel %vm113, %v7735, 0.0
    %7743 = vadd.xlane.f32.xlu0 %v7742
    %v7744 = vpop.xlane.xlu0 %7743
    %v7745 = vsel %vm113, %v7736, 0.0
    %7746 = vadd.xlane.f32.xlu0 %v7745
    %v7747 = vpop.xlane.xlu0 %7746
    %v7748 = vsel %vm113, %v7737, 0.0
    %7749 = vadd.xlane.f32.xlu0 %v7748
    %v7750 = vpop.xlane.xlu0 %7749
    %v7751 = vsel %vm126, %v7738, 0.0
    %7752 = vadd.xlane.f32.xlu0 %v7751
    %v7753 = vpop.xlane.xlu0 %7752
    %v7754 = vmul.f32 %v7741, %v130
    %v7755 = vmul.f32 %v7744, %v130
    %v7756 = vmul.f32 %v7747, %v130
    %v7757 = vmul.f32 %v7750, %v130
    %v7758 = vmul.f32 %v7753, %v130
    %v7759 = vadd.f32 %v7754, 1e-05
    %v7760 = vadd.f32 %v7755, 1e-05
    %v7761 = vadd.f32 %v7756, 1e-05
    %v7762 = vadd.f32 %v7757, 1e-05
    %v7763 = vadd.f32 %v7758, 1e-05
    %v7764 = vrsqrt.pop %v7759
    %v7765 = vrsqrt.pop %v7760
    %v7766 = vrsqrt.pop %v7761
    %v7767 = vrsqrt.pop %v7762
    %v7768 = vrsqrt.pop %v7763
    %v7769 = vmul.f32 %v7729, %v7764
    %v7770 = vmul.f32 %v7730, %v7765
    %v7771 = vmul.f32 %v7731, %v7766
    %v7772 = vmul.f32 %v7732, %v7767
    %v7773 = vmul.f32 %v7733, %v7768
    %v7775 = vlaneseq
    %v7776 = vshrl.u32 %v7775, 7
    %v7777 = vsub.s32 0, %v7776
    %v7778 = vrot.slane %v7706, %v7777
    %v7780 = vmul.f32 %v7769, %v7778
    %v7781 = vmul.f32 %v7770, %v7778
    %v7782 = vmul.f32 %v7771, %v7778
    %v7783 = vmul.f32 %v7772, %v7778
    %v7784 = vmul.f32 %v7773, %v7778
    %v7786 = vlaneseq
    %v7787 = vshrl.u32 %v7786, 7
    %v7788 = vsub.s32 0, %v7787
    %v7789 = vrot.slane %v7708, %v7788
    %v7791 = vadd.f32 %v7780, %v7789
    %v7792 = vadd.f32 %v7781, %v7789
    %v7793 = vadd.f32 %v7782, %v7789
    %v7794 = vadd.f32 %v7783, %v7789
    %v7795 = vadd.f32 %v7784, %v7789
    %s7796 = scalar_lea.vmem %s12, 32
    %v7797 = vld [vmem:[%s7796] sm:$0xff]
    %v7798 = vld [vmem:[%s7796 + $0x8] sm:$0xff]
    %v7799 = vld [vmem:[%s7796 + $0x10] sm:$0xff]
    %v7800 = vld [vmem:[%s7796 + $0x18] sm:$0xff]
    %s7801 = scalar_lea.vmem %s13, 1
    %v7802 = vld [vmem:[%s7801] sm:$0x1]
    %v7804 = vlaneseq
    %v7805 = vshrl.u32 %v7804, 7
    %v7806 = vsub.s32 0, %v7805
    %v7807 = vrot.slane %v7802, %v7806
    %v7810 = vsel %vm113, %v7791, 0
    %v7813 = vsel %vm113, %v7792, 0
    %v7816 = vsel %vm113, %v7793, 0
    %v7819 = vsel %vm113, %v7794, 0
    %v7822 = vsel %vm113, %v7795, 0
    %7824 = vmatprep.subr.mxu0 0.0
    %7825 = vmatpush1.msra.mxu0 0.0
    %7826 = vmatprep.subr.mxu0 0.0
    %7827 = vmatpush1.msra.mxu0 0.0
    %7828 = vmatprep.subr.mxu0 0.0
    %7829 = vmatpush1.msra.mxu0 0.0
    %7830 = vmatprep.subr.mxu0 0.0
    %7831 = vmatpush1.msra.mxu0 0.0
    %7832 = vmatprep.subr.mxu0 0.0
    %7833 = vmatpush1.msra.mxu0 0.0
    %7834 = vmatprep.subr.mxu0 0.0
    %7835 = vmatpush1.msra.mxu0 0.0
    %7836 = vmatprep.subr.mxu0 0.0
    %7837 = vmatpush1.msra.mxu0 0.0
    %7838 = vmatprep.subr.mxu0 0.0
    %7839 = vmatpush1.msra.mxu0 0.0
    %7840 = vmatprep.subr.mxu0 0.0
    %7841 = vmatpush1.msra.mxu0 0.0
    %7842 = vmatprep.subr.mxu0 0.0
    %7843 = vmatpush1.msra.mxu0 0.0
    %7844 = vmatprep.subr.mxu0 0.0
    %7845 = vmatpush1.msra.mxu0 0.0
    %7846 = vmatprep.subr.mxu0 0.0
    %7847 = vmatpush1.msra.mxu0 0.0
    %7848 = vmatprep.subr.mxu0 0.0
    %7849 = vmatpush1.msra.mxu0 %v7800
    %7850 = vmatprep.subr.mxu0 0.0
    %7851 = vmatpush1.msra.mxu0 %v7799
    %7852 = vmatprep.subr.mxu0 0.0
    %7853 = vmatpush1.msra.mxu0 %v7798
    %7854 = vmatprep.subr.mxu0 0.0
    %7855 = vmatpush1.msra.mxu0 %v7797
    %7856 = vmatprep.subr.mxu0 0.0
    %7857 = vmatpush2.msra.mxu0 0.0
    %7858 = vmatprep.subr.mxu0 0.0
    %7859 = vmatpush2.msra.mxu0 0.0
    %7860 = vmatprep.subr.mxu0 0.0
    %7861 = vmatpush2.msra.mxu0 0.0
    %7862 = vmatprep.subr.mxu0 0.0
    %7863 = vmatpush2.msra.mxu0 0.0
    %7864 = vmatprep.subr.mxu0 0.0
    %7865 = vmatpush2.msra.mxu0 0.0
    %7866 = vmatprep.subr.mxu0 0.0
    %7867 = vmatpush2.msra.mxu0 0.0
    %7868 = vmatprep.subr.mxu0 0.0
    %7869 = vmatpush2.msra.mxu0 0.0
    %7870 = vmatprep.subr.mxu0 0.0
    %7871 = vmatpush2.msra.mxu0 0.0
    %7872 = vmatprep.subr.mxu0 0.0
    %7873 = vmatpush2.msra.mxu0 0.0
    %7874 = vmatprep.subr.mxu0 0.0
    %7875 = vmatpush2.msra.mxu0 0.0
    %7876 = vmatprep.subr.mxu0 0.0
    %7877 = vmatpush2.msra.mxu0 0.0
    %7878 = vmatprep.subr.mxu0 0.0
    %7879 = vmatpush2.msra.mxu0 0.0
    %7880 = vmatprep.subr.mxu0 0.0
    %7881 = vmatpush2.msra.mxu0 0.0
    %7882 = vmatprep.subr.mxu0 0.0
    %7883 = vmatpush2.msra.mxu0 0.0
    %7884 = vmatprep.subr.mxu0 0.0
    %7885 = vmatpush2.msra.mxu0 0.0
    %7886 = vmatprep.subr.mxu0 0.0
    %7887 = vmatpush2.msra.mxu0 0.0
    %7888 = vmatprep.mubr.f32.mxu0 0.0
    %7889 = vmatmul.mubr.f32.gmra.mxu0 %v7810
    %v7890 = vpop.f32.mrf.mxu0
    %v7891 = vadd.f32 %v7807, %v7890
    %v7892 = vpop.f32.mrf.mxu0
    %7893 = vmatprep.mubr.f32.mxu0 0.0
    %7894 = vmatmul.mubr.f32.gmra.mxu0 %v7813
    %v7895 = vpop.f32.mrf.mxu0
    %v7896 = vadd.f32 %v7807, %v7895
    %v7897 = vpop.f32.mrf.mxu0
    %7898 = vmatprep.mubr.f32.mxu0 0.0
    %7899 = vmatmul.mubr.f32.gmra.mxu0 %v7816
    %v7900 = vpop.f32.mrf.mxu0
    %v7901 = vadd.f32 %v7807, %v7900
    %v7902 = vpop.f32.mrf.mxu0
    %7903 = vmatprep.mubr.f32.mxu0 0.0
    %7904 = vmatmul.mubr.f32.gmra.mxu0 %v7819
    %v7905 = vpop.f32.mrf.mxu0
    %v7906 = vadd.f32 %v7807, %v7905
    %v7907 = vpop.f32.mrf.mxu0
    %7908 = vmatprep.mubr.f32.mxu0 0.0
    %7909 = vmatmul.mubr.f32.gmra.mxu0 %v7822
    %v7910 = vpop.f32.mrf.mxu0
    %v7911 = vadd.f32 %v7807, %v7910
    %v7912 = vpop.f32.mrf.mxu0
    %7913 = vdwg.mxu0
    %v7914 = vmul.f32 %v7891, 0.5
    %v7915 = vmul.f32 %v7896, 0.5
    %v7916 = vmul.f32 %v7901, 0.5
    %v7917 = vmul.f32 %v7906, 0.5
    %v7918 = vmul.f32 %v7911, 0.5
    %v7919 = vmul.f32 %v7891, 0.70710677
    %v7920 = vmul.f32 %v7896, 0.70710677
    %v7921 = vmul.f32 %v7901, 0.70710677
    %v7922 = vmul.f32 %v7906, 0.70710677
    %v7923 = vmul.f32 %v7911, 0.70710677
    %v7924 = verf.f32.pop %v7919
    %v7925 = verf.f32.pop %v7920
    %v7926 = verf.f32.pop %v7921
    %v7927 = verf.f32.pop %v7922
    %v7928 = verf.f32.pop %v7923
    %v7929 = vadd.f32 %v7924, 1.0
    %v7930 = vadd.f32 %v7925, 1.0
    %v7931 = vadd.f32 %v7926, 1.0
    %v7932 = vadd.f32 %v7927, 1.0
    %v7933 = vadd.f32 %v7928, 1.0
    %v7934 = vmul.f32 %v7914, %v7929
    %v7935 = vmul.f32 %v7915, %v7930
    %v7936 = vmul.f32 %v7916, %v7931
    %v7937 = vmul.f32 %v7917, %v7932
    %v7938 = vmul.f32 %v7918, %v7933
    %s7939 = scalar_lea.vmem %s14, 64
    %v7940 = vld [vmem:[%s7939] sm:$0xff]
    %v7941 = vld [vmem:[%s7939 + $0x8] sm:$0xff]
    %v7942 = vld [vmem:[%s7939 + $0x10] sm:$0xff]
    %v7943 = vld [vmem:[%s7939 + $0x18] sm:$0xff]
    %v7944 = vld [vmem:[%s7939 + $0x20] sm:$0xff]
    %v7945 = vld [vmem:[%s7939 + $0x28] sm:$0xff]
    %v7946 = vld [vmem:[%s7939 + $0x30] sm:$0xff]
    %v7947 = vld [vmem:[%s7939 + $0x38] sm:$0xff]
    %s7948 = scalar_lea.vmem %s15, 1
    %v7949 = vld [vmem:[%s7948] sm:$0x1]
    %v7951 = vlaneseq
    %v7952 = vshrl.u32 %v7951, 7
    %v7953 = vsub.s32 0, %v7952
    %v7954 = vrot.slane %v7949, %v7953
    %v7957 = vsel %vm3977, %v7934, 0
    %v7960 = vsel %vm3977, %v7935, 0
    %v7963 = vsel %vm3977, %v7936, 0
    %v7966 = vsel %vm3977, %v7937, 0
    %v7969 = vsel %vm3977, %v7938, 0
    %7971 = vmatprep.subr.mxu0 0.0
    %7972 = vmatpush1.msra.mxu0 0.0
    %7973 = vmatprep.subr.mxu0 0.0
    %7974 = vmatpush1.msra.mxu0 0.0
    %7975 = vmatprep.subr.mxu0 0.0
    %7976 = vmatpush1.msra.mxu0 0.0
    %7977 = vmatprep.subr.mxu0 0.0
    %7978 = vmatpush1.msra.mxu0 0.0
    %7979 = vmatprep.subr.mxu0 0.0
    %7980 = vmatpush1.msra.mxu0 0.0
    %7981 = vmatprep.subr.mxu0 0.0
    %7982 = vmatpush1.msra.mxu0 0.0
    %7983 = vmatprep.subr.mxu0 0.0
    %7984 = vmatpush1.msra.mxu0 0.0
    %7985 = vmatprep.subr.mxu0 0.0
    %7986 = vmatpush1.msra.mxu0 0.0
    %7987 = vmatprep.subr.mxu0 0.0
    %7988 = vmatpush1.msra.mxu0 %v7947
    %7989 = vmatprep.subr.mxu0 0.0
    %7990 = vmatpush1.msra.mxu0 %v7946
    %7991 = vmatprep.subr.mxu0 0.0
    %7992 = vmatpush1.msra.mxu0 %v7945
    %7993 = vmatprep.subr.mxu0 0.0
    %7994 = vmatpush1.msra.mxu0 %v7944
    %7995 = vmatprep.subr.mxu0 0.0
    %7996 = vmatpush1.msra.mxu0 %v7943
    %7997 = vmatprep.subr.mxu0 0.0
    %7998 = vmatpush1.msra.mxu0 %v7942
    %7999 = vmatprep.subr.mxu0 0.0
    %8000 = vmatpush1.msra.mxu0 %v7941
    %8001 = vmatprep.subr.mxu0 0.0
    %8002 = vmatpush1.msra.mxu0 %v7940
    %8003 = vmatprep.subr.mxu0 0.0
    %8004 = vmatpush2.msra.mxu0 0.0
    %8005 = vmatprep.subr.mxu0 0.0
    %8006 = vmatpush2.msra.mxu0 0.0
    %8007 = vmatprep.subr.mxu0 0.0
    %8008 = vmatpush2.msra.mxu0 0.0
    %8009 = vmatprep.subr.mxu0 0.0
    %8010 = vmatpush2.msra.mxu0 0.0
    %8011 = vmatprep.subr.mxu0 0.0
    %8012 = vmatpush2.msra.mxu0 0.0
    %8013 = vmatprep.subr.mxu0 0.0
    %8014 = vmatpush2.msra.mxu0 0.0
    %8015 = vmatprep.subr.mxu0 0.0
    %8016 = vmatpush2.msra.mxu0 0.0
    %8017 = vmatprep.subr.mxu0 0.0
    %8018 = vmatpush2.msra.mxu0 0.0
    %8019 = vmatprep.subr.mxu0 0.0
    %8020 = vmatpush2.msra.mxu0 0.0
    %8021 = vmatprep.subr.mxu0 0.0
    %8022 = vmatpush2.msra.mxu0 0.0
    %8023 = vmatprep.subr.mxu0 0.0
    %8024 = vmatpush2.msra.mxu0 0.0
    %8025 = vmatprep.subr.mxu0 0.0
    %8026 = vmatpush2.msra.mxu0 0.0
    %8027 = vmatprep.subr.mxu0 0.0
    %8028 = vmatpush2.msra.mxu0 0.0
    %8029 = vmatprep.subr.mxu0 0.0
    %8030 = vmatpush2.msra.mxu0 0.0
    %8031 = vmatprep.subr.mxu0 0.0
    %8032 = vmatpush2.msra.mxu0 0.0
    %8033 = vmatprep.subr.mxu0 0.0
    %8034 = vmatpush2.msra.mxu0 0.0
    %8035 = vmatprep.mubr.f32.mxu0 0.0
    %8036 = vmatmul.mubr.f32.gmra.mxu0 %v7957
    %v8037 = vpop.f32.mrf.mxu0
    %v8038 = vadd.f32 %v7954, %v8037
    %v8039 = vpop.f32.mrf.mxu0
    %8040 = vmatprep.mubr.f32.mxu0 0.0
    %8041 = vmatmul.mubr.f32.gmra.mxu0 %v7960
    %v8042 = vpop.f32.mrf.mxu0
    %v8043 = vpop.f32.mrf.mxu0
    %8044 = vmatprep.mubr.f32.mxu0 0.0
    %8045 = vmatmul.mubr.f32.gmra.mxu0 %v7963
    %v8046 = vpop.f32.mrf.mxu0
    %v8047 = vadd.f32 %v7954, %v8046
    %v8048 = vpop.f32.mrf.mxu0
    %8049 = vmatprep.mubr.f32.mxu0 0.0
    %8050 = vmatmul.mubr.f32.gmra.mxu0 %v7966
    %v8051 = vpop.f32.mrf.mxu0
    %v8052 = vpop.f32.mrf.mxu0
    %8053 = vmatprep.mubr.f32.mxu0 0.0
    %8054 = vmatmul.mubr.f32.gmra.mxu0 %v7969
    %v8055 = vpop.f32.mrf.mxu0
    %v8056 = vpop.f32.mrf.mxu0
    %8057 = vdwg.mxu0
    %v8058 = vadd.f32 %v7700, %v8038
    %v8059 = vadd.f32 %v7702, %v8047
    %v8060 = vsel %vm76, %v8058, %v8059
    %v8061 = vld [vmem:[%s16] sm:$0x1]
    %v8062 = vld [vmem:[%s17] sm:$0x1]
    %v8063 = vsel %vm126, %v8060, 0.0
    %8064 = vadd.xlane.f32.xlu0 %v8063
    %v8065 = vpop.xlane.xlu0 %8064
    %v8066 = vmul.f32 %v8065, %v130
    %v8067 = vsub.f32 %v8060, %v8066
    %v8068 = vmul.f32 %v8067, %v8067
    %v8069 = vsel %vm126, %v8068, 0.0
    %8070 = vadd.xlane.f32.xlu0 %v8069
    %v8071 = vpop.xlane.xlu0 %8070
    %v8072 = vmul.f32 %v8071, %v130
    %v8073 = vadd.f32 %v8072, 1e-05
    %v8074 = vrsqrt.pop %v8073
    %v8075 = vmul.f32 %v8067, %v8074
    %v8077 = vlaneseq
    %v8078 = vshrl.u32 %v8077, 7
    %v8079 = vsub.s32 0, %v8078
    %v8080 = vrot.slane %v8061, %v8079
    %v8082 = vmul.f32 %v8075, %v8080
    %v8084 = vlaneseq
    %v8085 = vshrl.u32 %v8084, 7
    %v8086 = vsub.s32 0, %v8085
    %v8087 = vrot.slane %v8062, %v8086
    %v8089 = vadd.f32 %v8082, %v8087
    %v8090 = vld [vmem:[%s18] sm:$0xff]
    %v8091 = vld [vmem:[%s18 + $0x8] sm:$0xff]
    %v8092 = vld [vmem:[%s18 + $0x10] sm:$0xff]
    %v8093 = vld [vmem:[%s18 + $0x18] sm:$0xff]
    %v8094 = vld [vmem:[%s19] sm:$0x1]
    %v8096 = vlaneseq
    %v8097 = vshrl.u32 %v8096, 7
    %v8098 = vsub.s32 0, %v8097
    %v8099 = vrot.slane %v8094, %v8098
    %v8102 = vsel %vm113, %v8089, 0
    %8104 = vmatprep.subr.mxu0 0.0
    %8105 = vmatpush1.msra.mxu0 0.0
    %8106 = vmatprep.subr.mxu0 0.0
    %8107 = vmatpush1.msra.mxu0 0.0
    %8108 = vmatprep.subr.mxu0 0.0
    %8109 = vmatpush1.msra.mxu0 0.0
    %8110 = vmatprep.subr.mxu0 0.0
    %8111 = vmatpush1.msra.mxu0 0.0
    %8112 = vmatprep.subr.mxu0 0.0
    %8113 = vmatpush1.msra.mxu0 0.0
    %8114 = vmatprep.subr.mxu0 0.0
    %8115 = vmatpush1.msra.mxu0 0.0
    %8116 = vmatprep.subr.mxu0 0.0
    %8117 = vmatpush1.msra.mxu0 0.0
    %8118 = vmatprep.subr.mxu0 0.0
    %8119 = vmatpush1.msra.mxu0 0.0
    %8120 = vmatprep.subr.mxu0 0.0
    %8121 = vmatpush1.msra.mxu0 0.0
    %8122 = vmatprep.subr.mxu0 0.0
    %8123 = vmatpush1.msra.mxu0 0.0
    %8124 = vmatprep.subr.mxu0 0.0
    %8125 = vmatpush1.msra.mxu0 0.0
    %8126 = vmatprep.subr.mxu0 0.0
    %8127 = vmatpush1.msra.mxu0 0.0
    %8128 = vmatprep.subr.mxu0 0.0
    %8129 = vmatpush1.msra.mxu0 %v8093
    %8130 = vmatprep.subr.mxu0 0.0
    %8131 = vmatpush1.msra.mxu0 %v8092
    %8132 = vmatprep.subr.mxu0 0.0
    %8133 = vmatpush1.msra.mxu0 %v8091
    %8134 = vmatprep.subr.mxu0 0.0
    %8135 = vmatpush1.msra.mxu0 %v8090
    %8136 = vmatprep.subr.mxu0 0.0
    %8137 = vmatpush2.msra.mxu0 0.0
    %8138 = vmatprep.subr.mxu0 0.0
    %8139 = vmatpush2.msra.mxu0 0.0
    %8140 = vmatprep.subr.mxu0 0.0
    %8141 = vmatpush2.msra.mxu0 0.0
    %8142 = vmatprep.subr.mxu0 0.0
    %8143 = vmatpush2.msra.mxu0 0.0
    %8144 = vmatprep.subr.mxu0 0.0
    %8145 = vmatpush2.msra.mxu0 0.0
    %8146 = vmatprep.subr.mxu0 0.0
    %8147 = vmatpush2.msra.mxu0 0.0
    %8148 = vmatprep.subr.mxu0 0.0
    %8149 = vmatpush2.msra.mxu0 0.0
    %8150 = vmatprep.subr.mxu0 0.0
    %8151 = vmatpush2.msra.mxu0 0.0
    %8152 = vmatprep.subr.mxu0 0.0
    %8153 = vmatpush2.msra.mxu0 0.0
    %8154 = vmatprep.subr.mxu0 0.0
    %8155 = vmatpush2.msra.mxu0 0.0
    %8156 = vmatprep.subr.mxu0 0.0
    %8157 = vmatpush2.msra.mxu0 0.0
    %8158 = vmatprep.subr.mxu0 0.0
    %8159 = vmatpush2.msra.mxu0 0.0
    %8160 = vmatprep.subr.mxu0 0.0
    %8161 = vmatpush2.msra.mxu0 0.0
    %8162 = vmatprep.subr.mxu0 0.0
    %8163 = vmatpush2.msra.mxu0 0.0
    %8164 = vmatprep.subr.mxu0 0.0
    %8165 = vmatpush2.msra.mxu0 0.0
    %8166 = vmatprep.subr.mxu0 0.0
    %8167 = vmatpush2.msra.mxu0 0.0
    %8168 = vmatprep.mubr.f32.mxu0 0.0
    %8169 = vmatmul.mubr.f32.gmra.mxu0 %v8102
    %v8170 = vpop.f32.mrf.mxu0
    %v8171 = vadd.f32 %v8099, %v8170
    %v8172 = vpop.f32.mrf.mxu0
    %8173 = vdwg.mxu0
    %vm8174 = vcmask 74752
    %8175 = vst.msk [vmem:[#allocation2] sm:$0x3] %vm8174, %v8171
    // Predicated region
    $region82: #{transformer_forward.1} parent=1 // pred_check
      _
    $region83: #{transformer_forward.1} parent=1 // pred_check_branch
      %8177 = sbr.rel (0) target = $region85
    $region84: #{transformer_forward.1} parent=1 // pred_region
      %s8179 = ssub.s32 32, 32
      %8180 = vsyncadd [#allocation3], %s8179
      %s8182 = sshll.u32 [#allocation2], 4
      %s8183 = int_to_ptr.vmem [resolvable:$true] %s8182
      %8185 = dma.vmem_to_hbm [thread:$0]  %s8183, 32, %s20, [#allocation3]
    $region85: #{transformer_forward.1} parent=1 // pred_fallthru
      _
    // Predicated region
    $region86: #{transformer_forward.1} parent=1 // pred_check
      _
    $region87: #{transformer_forward.1} parent=1 // pred_check_branch
      %8187 = sbr.rel (0) target = $region89
    $region88: #{transformer_forward.1} parent=1 // pred_region
      %8188 = dma.done [#allocation3], 32
    $region89: #{transformer_forward.1} parent=1 // pred_fallthru
      _
    %8189 = vsyncpa [#allocation3], 1

</llo_original>
